<compile_context>
chip_gen: v6e
topology: v6e:2x2x1
jax: 0.10.0
libtpu: 0.0.40
codegen_flags: <defaults>
</compile_context>

<pallas_src>
import functools

import jax
import jax.numpy as jnp
from jax import lax
from jax.experimental import pallas as pl
from jax.experimental.pallas import tpu as pltpu


def _round_up(x, m):
    return (x + m - 1) // m * m


def _conv3x3_9mm(x_slab, w_ref, rout):
    """'valid' 3x3 conv over a width-Wp slab as 9 accumulated MXU matmuls.

    x_slab : (rin, wp, cin) bf16 value, rin >= rout + 2, wp % 8 == 0.
    w_ref  : (3, 3, cin, cout) bf16 VMEM ref (BN scale already folded in).
    rout   : number of output rows.
    Returns (rout * wp, cout) float32.  For every output row, columns wp-2 and
    wp-1 hold roll-wraparound garbage; harmless because wp >= W + 4 and the
    caller masks / drops them.
    """
    _, wp, cin = x_slab.shape
    m = rout * wp                         # multiple of 8 because wp % 8 == 0
    acc = None
    for dx in (2, 1, 0):                  # dx high -> low: only 2 output rolls
        z = None
        for dy in range(3):
            lhs = x_slab[dy:dy + rout].reshape(m, cin)    # free row slice
            t = jnp.dot(lhs, w_ref[dy, dx],
                        preferred_element_type=jnp.float32)
            z = t if z is None else z + t
        if acc is None:
            acc = z
        else:
            # acc[k] <- acc[k + 1] (shift width by one), then add z_dx.
            acc = pltpu.roll(acc, shift=m - 1, axis=0) + z
    return acc


def _double_conv_kernel(x_hbm, w1_ref, b1_ref, w2_ref, b2_ref, o_ref,
                        xbuf, mid_ref, sem, *, H, W, TH):
    n = pl.program_id(0)
    r = pl.program_id(1)
    nr = pl.num_programs(1)
    Wp = xbuf.shape[2]
    slot = r % 2

    def halo_dma(batch, row_tile, s):
        return pltpu.make_async_copy(
            x_hbm.at[batch, pl.ds(row_tile * TH, TH + 4)],
            xbuf.at[s], sem.at[s])

    # Prime the double buffer at the first row-tile of each batch element.
    @pl.when(r == 0)
    def _():
        halo_dma(n, r, slot).start()

    # Prefetch the next row-tile's halo slab so it overlaps this tile's work.
    @pl.when(r + 1 < nr)
    def _():
        halo_dma(n, r + 1, 1 - slot).start()

    halo_dma(n, r, slot).wait()
    xs = xbuf[slot]                                   # (TH+4, Wp, Cinp) bf16

    # ---- conv1 (BN scale folded into w1) + bias + ReLU -> bf16 mid scratch.
    r1 = TH + 2
    cmid = mid_ref.shape[-1]
    y1 = _conv3x3_9mm(xs, w1_ref, r1) + b1_ref[...]       # (r1*Wp, Cmidp) f32
    y1 = jnp.maximum(y1, 0.0).reshape(r1, Wp, cmid)

    # conv2's zero-padding ring (+ roll-wrap garbage kill) as ONE masked
    # select: mid row i is global row r*TH + i - 1, mid col j is global j - 1.
    rows = lax.broadcasted_iota(jnp.int32, (r1, Wp, 1), 0)
    cols = lax.broadcasted_iota(jnp.int32, (r1, Wp, 1), 1)
    g = r * TH + rows - 1
    valid = (g >= 0) & (g < H) & (cols >= 1) & (cols <= W)
    mid_ref[...] = jnp.where(valid, y1, 0.0).astype(mid_ref.dtype)

    # ---- conv2 (BN folded) + bias + ReLU -> output tile (drop garbage cols).
    coutp = o_ref.shape[-1]
    y2 = _conv3x3_9mm(mid_ref[...], w2_ref, TH) + b2_ref[...]
    out = jnp.maximum(y2, 0.0).reshape(TH, Wp, coutp)[:, :W, :]
    o_ref[...] = out[None].astype(o_ref.dtype)


def _vmem_limit_bytes():
    """Per-generation VMEM limit with headroom for compiler temporaries."""
    try:
        cap = pltpu.get_tpu_info().vmem_capacity_bytes
    except Exception:
        cap = 64 << 20
    if cap >= (100 << 20):                          # v5e / v6e: 128 MiB physical
        return cap - (32 << 20)
    return max(min(cap - (8 << 20), 56 << 20), 16 << 20)   # v7x: 64 MiB physical


def _pick_row_tile(h, w, wp, cinp, cmidp, coutp, vmem_limit, resident_bytes):
    """Largest row tile whose per-step VMEM footprint fits the budget."""
    budget = vmem_limit - resident_bytes - (4 << 20)    # compiler headroom
    best = 1
    for t in range(min(h, 256), 0, -1):
        need = (2 * (t + 4) * wp * cinp * 2       # 2x bf16 input halo slabs
                + (t + 2) * wp * cmidp * 2        # bf16 mid activation scratch
                + 2 * (t + 2) * wp * cmidp * 4    # conv1 f32 acc + z
                + 2 * t * wp * coutp * 4          # conv2 f32 acc + z
                + 2 * t * w * coutp * 4)          # 2x f32 output block
        if need <= budget:
            best = t
            break
    if best >= 32:
        # Mild preference for an MXU-friendly M dimension (multiple of 256).
        for t in range(best, best - 8, -1):
            if t >= 1 and (t * wp) % 256 == 0:
                return t
    return best


def double_conv_nhwc(x_nhwc, w1, s1, o1, w2, s2, o2, max_row_tile=None):
    """Fused (conv3x3 -> folded BN -> ReLU) x 2.  NHWC float32 in/out."""
    N, H, W, Cin = x_nhwc.shape
    Cmid, Cout = w1.shape[-1], w2.shape[-1]
    Cinp = _round_up(Cin, 128)
    Cmidp = _round_up(Cmid, 128)
    Coutp = _round_up(Cout, 128)
    Wp = _round_up(W + 4, 8)              # >= W + 4, sublane (8) aligned
    assert Wp >= W + 4                    # guards roll-wraparound columns

    # Fold BN scale into the conv weights (exact in eval mode); keep bias.
    w1f = w1 * s1[None, None, None, :]
    w2f = w2 * s2[None, None, None, :]
    w1p = jnp.zeros((3, 3, Cinp, Cmidp), jnp.float32
                    ).at[:, :, :Cin, :Cmid].set(w1f).astype(jnp.bfloat16)
    w2p = jnp.zeros((3, 3, Cmidp, Coutp), jnp.float32
                    ).at[:, :, :Cmid, :Cout].set(w2f).astype(jnp.bfloat16)
    b1k = jnp.zeros((1, Cmidp), jnp.float32).at[0, :Cmid].set(o1)
    b2k = jnp.zeros((1, Coutp), jnp.float32).at[0, :Cout].set(o2)

    vmem_limit = _vmem_limit_bytes()
    resident = (2 * (9 * Cinp * Cmidp + 9 * Cmidp * Coutp) * 2
                + 2 * (Cmidp + Coutp) * 4 * 2)
    TH = _pick_row_tile(H, W, Wp, Cinp, Cmidp, Coutp, vmem_limit, resident)
    if max_row_tile is not None:
        TH = min(TH, max_row_tile)
    nr = -(-H // TH)                       # cdiv: no divisor requirement on H
    Hp = nr * TH                           # padded output rows (sliced below)

    # One spatial pad for the fused pair (2-deep halo), bottom-pad to a whole
    # number of row tiles, channel/lane pad; stored bf16 in HBM.
    x_pad = jnp.pad(
        x_nhwc.astype(jnp.float32),
        ((0, 0), (2, 2 + Hp - H), (2, Wp - W - 2), (0, Cinp - Cin))
    ).astype(jnp.bfloat16)

    kernel = functools.partial(_double_conv_kernel, H=H, W=W, TH=TH)

    flops = 2 * N * Hp * Wp * 9 * (Cinp * Cmidp + Cmidp * Coutp)
    bytes_accessed = (x_pad.size * 2 + w1p.size * 2 + w2p.size * 2
                      + b1k.size * 4 + b2k.size * 4 + N * Hp * W * Coutp * 4)

    out = pl.pallas_call(
        kernel,
        out_shape=jax.ShapeDtypeStruct((N, Hp, W, Coutp), jnp.float32),
        grid=(N, nr),
        in_specs=[
            pl.BlockSpec(memory_space=pl.ANY),                  # x (HBM, manual DMA)
            pl.BlockSpec(memory_space=pltpu.MemorySpace.VMEM),  # w1 (resident)
            pl.BlockSpec(memory_space=pltpu.MemorySpace.VMEM),  # b1
            pl.BlockSpec(memory_space=pltpu.MemorySpace.VMEM),  # w2
            pl.BlockSpec(memory_space=pltpu.MemorySpace.VMEM),  # b2
        ],
        out_specs=pl.BlockSpec((1, TH, W, Coutp), lambda n, r: (n, r, 0, 0)),
        scratch_shapes=[
            pltpu.VMEM((2, TH + 4, Wp, Cinp), jnp.bfloat16),   # dbl-buf halo slabs
            pltpu.VMEM((TH + 2, Wp, Cmidp), jnp.bfloat16),     # mid activation
            pltpu.SemaphoreType.DMA((2,)),
        ],
        compiler_params=pltpu.CompilerParams(
            dimension_semantics=("parallel", "arbitrary"),
            vmem_limit_bytes=vmem_limit),
        cost_estimate=pl.CostEstimate(
            flops=flops, transcendentals=0, bytes_accessed=bytes_accessed),
    )(x_pad, w1p, b1k, w2p, b2k)

    return out[:, :H, :, :Cout]


def fold_bn(gamma, beta, running_mean, running_var, eps=1e-5):
    scale = gamma / jnp.sqrt(running_var + eps)
    bias = beta - running_mean * scale
    return scale, bias


def make_double_conv_params(key, in_channels, out_channels, mid_channels=None):
    if not mid_channels:
        mid_channels = out_channels
    k1, k2 = jax.random.split(key)

    # Conv weights in HWIO layout, deterministic init (kaiming-ish scaling).
    w1 = jax.random.normal(k1, (3, 3, in_channels, mid_channels),
                           jnp.float32) * (2.0 / (9 * in_channels)) ** 0.5
    w2 = jax.random.normal(k2, (3, 3, mid_channels, out_channels),
                           jnp.float32) * (2.0 / (9 * mid_channels)) ** 0.5

    # Deterministic BatchNorm params / running stats (eval mode).
    g1 = 1.0 + 0.05 * jnp.arange(mid_channels, dtype=jnp.float32)
    b1 = 0.02 * jnp.arange(mid_channels, dtype=jnp.float32)
    m1 = 0.01 * jnp.arange(mid_channels, dtype=jnp.float32)
    v1 = 1.0 + 0.1 * jnp.arange(mid_channels, dtype=jnp.float32)

    g2 = 1.0 - 0.03 * jnp.arange(out_channels, dtype=jnp.float32)
    b2 = -0.01 * jnp.arange(out_channels, dtype=jnp.float32)
    m2 = 0.02 * jnp.arange(out_channels, dtype=jnp.float32)
    v2 = 1.0 + 0.05 * jnp.arange(out_channels, dtype=jnp.float32)

    s1, o1 = fold_bn(g1, b1, m1, v1)
    s2, o2 = fold_bn(g2, b2, m2, v2)
    return dict(w1=w1, s1=s1, o1=o1, w2=w2, s2=s2, o2=o2)


def double_conv(x_nchw, params, max_row_tile=None):
    """PyTorch-compatible entry: NCHW in, NCHW out (eval-mode BN)."""
    x = jnp.transpose(x_nchw, (0, 2, 3, 1)).astype(jnp.float32)   # -> NHWC
    y = double_conv_nhwc(x, params["w1"], params["s1"], params["o1"],
                         params["w2"], params["s2"], params["o2"],
                         max_row_tile=max_row_tile)
    return jnp.transpose(y, (0, 3, 1, 2))                         # -> NCHW


def _reference(x_nchw, params):
    """Pure-JAX reference (lax.conv) for correctness check."""
    def step(x_nhwc, w, s, o):
        y = lax.conv_general_dilated(
            x_nhwc, w, window_strides=(1, 1), padding="SAME",
            dimension_numbers=("NHWC", "HWIO", "NHWC"))
        y = y * s.reshape(1, 1, 1, -1) + o.reshape(1, 1, 1, -1)
        return jnp.maximum(y, 0.0)

    x = jnp.transpose(x_nchw, (0, 2, 3, 1)).astype(jnp.float32)
    y = step(x, params["w1"], params["s1"], params["o1"])
    y = step(y, params["w2"], params["s2"], params["o2"])
    return jnp.transpose(y, (0, 3, 1, 2))


if __name__ == "__main__":
    key = jax.random.PRNGKey(0)
    kx, kp, kx2, kp2 = jax.random.split(key, 4)

    # Primary config: batch=2, Cin=4, 16x16 spatial, Cout=8.
    N, Cin, H, W = 2, 4, 16, 16
    Cout = 8
    x = jax.random.normal(kx, (N, Cin, H, W), jnp.float32)
    params = make_double_conv_params(kp, Cin, Cout)

    run = jax.jit(double_conv)
    out = jax.block_until_ready(run(x, params))
    ref = jax.block_until_ready(_reference(x, params))
    assert out.shape == (N, Cout, H, W), out.shape
    # bf16 MXU inputs / bf16 mid activations (f32 accumulation) => loose tol.
    max_err = float(jnp.max(jnp.abs(out - ref)))
    assert jnp.allclose(out, ref, atol=5e-2, rtol=5e-2), (
        f"mismatch vs reference, max abs err {max_err}")

    # Secondary config: forces multiple row tiles + a partial last tile, which
    # exercises the double-buffered halo DMA and masked boundary handling.
    N2, Cin2, H2, W2, Cout2 = 1, 4, 20, 16, 8
    x2 = jax.random.normal(kx2, (N2, Cin2, H2, W2), jnp.float32)
    params2 = make_double_conv_params(kp2, Cin2, Cout2)
    out2 = jax.block_until_ready(double_conv(x2, params2, max_row_tile=8))
    ref2 = jax.block_until_ready(_reference(x2, params2))
    assert out2.shape == (N2, Cout2, H2, W2), out2.shape
    max_err2 = float(jnp.max(jnp.abs(out2 - ref2)))
    assert jnp.allclose(out2, ref2, atol=5e-2, rtol=5e-2), (
        f"mismatch vs reference (tiled), max abs err {max_err2}")

    print("KERNEL_OK")
</pallas_src>

<mosaic_0001>
module attributes {stable_mosaic.version = 11 : i64} {
  func.func @_double_conv_kernel(%arg0: i32, %arg1: i32, %arg2: memref<2x20x24x128xbf16, #tpu.memory_space<any>>, %arg3: memref<3x3x128x128xbf16, #tpu.memory_space<vmem>>, %arg4: memref<1x128xf32, #tpu.memory_space<vmem>>, %arg5: memref<3x3x128x128xbf16, #tpu.memory_space<vmem>>, %arg6: memref<1x128xf32, #tpu.memory_space<vmem>>, %arg7: memref<1x16x16x128xf32, #tpu.memory_space<vmem>>, %arg8: memref<2x20x24x128xbf16, #tpu.memory_space<vmem>>, %arg9: memref<18x24x128xbf16, #tpu.memory_space<vmem>>, %arg10: memref<2x!tpu.dma_semaphore, #tpu.memory_space<semaphore_mem>>) attributes {dimension_semantics = [#tpu.dimension_semantics<parallel>, #tpu.dimension_semantics<arbitrary>], iteration_bounds = array<i64: 2, 1>, scalar_prefetch = 0 : i64, scratch_operands = 3 : i64, tpu.core_type = #tpu.core_type<tc>, window_params = [{}, {pipeline_mode = #tpu.pipeline_mode<synchronous>, transform_indices = @transform_1, window_bounds = array<i64: 3, 3, 128, 128>}, {pipeline_mode = #tpu.pipeline_mode<synchronous>, transform_indices = @transform_2, window_bounds = array<i64: 1, 128>}, {pipeline_mode = #tpu.pipeline_mode<synchronous>, transform_indices = @transform_3, window_bounds = array<i64: 3, 3, 128, 128>}, {pipeline_mode = #tpu.pipeline_mode<synchronous>, transform_indices = @transform_4, window_bounds = array<i64: 1, 128>}, {transform_indices = @transform_5, window_bounds = array<i64: 1, 16, 16, 128>}]} {
    %c2_i32 = arith.constant 2 : i32
    %c0_i32 = arith.constant 0 : i32
    %0 = arith.cmpi eq, %c2_i32, %c0_i32 : i32
    %c1_i32 = arith.constant 1 : i32
    %1 = arith.select %0, %c1_i32, %c2_i32 : i32
    %2 = arith.remsi %arg1, %1 : i32
    %c0_i32_0 = arith.constant 0 : i32
    %3 = arith.cmpi ne, %2, %c0_i32_0 : i32
    %c0_i32_1 = arith.constant 0 : i32
    %4 = arith.cmpi slt, %2, %c0_i32_1 : i32
    %c0_i32_2 = arith.constant 0 : i32
    %5 = arith.cmpi slt, %1, %c0_i32_2 : i32
    %6 = arith.xori %4, %5 : i1
    %7 = arith.andi %6, %3 : i1
    %8 = arith.addi %2, %1 : i32
    %9 = arith.select %7, %8, %2 : i32
    %c0_i32_3 = arith.constant 0 : i32
    %10 = arith.cmpi eq, %arg1, %c0_i32_3 : i32
    %11 = arith.extui %10 : i1 to i32
    %c0_i32_4 = arith.constant 0 : i32
    %12 = arith.cmpi ne, %11, %c0_i32_4 : i32
    scf.if %12 {
      %c16_i32_127 = arith.constant 16 : i32
      %177 = arith.muli %arg1, %c16_i32_127 : i32
      %c0_i32_128 = arith.constant 0 : i32
      %c0_i32_129 = arith.constant 0 : i32
      %178 = tpu.memref_slice %arg2[%arg0, %177, %c0_i32_128, %c0_i32_129] : memref<2x20x24x128xbf16, #tpu.memory_space<any>> -> memref<1x20x24x128xbf16, #tpu.memory_space<any>>
      %179 = tpu.memref_squeeze %178 : memref<1x20x24x128xbf16, #tpu.memory_space<any>> -> memref<20x24x128xbf16, #tpu.memory_space<any>>
      %c0_i32_130 = arith.constant 0 : i32
      %c0_i32_131 = arith.constant 0 : i32
      %c0_i32_132 = arith.constant 0 : i32
      %180 = tpu.memref_slice %arg8[%9, %c0_i32_130, %c0_i32_131, %c0_i32_132] : memref<2x20x24x128xbf16, #tpu.memory_space<vmem>> -> memref<1x20x24x128xbf16, #tpu.memory_space<vmem>>
      %181 = tpu.memref_squeeze %180 : memref<1x20x24x128xbf16, #tpu.memory_space<vmem>> -> memref<20x24x128xbf16, #tpu.memory_space<vmem>>
      %182 = tpu.memref_slice %arg10[%9] : memref<2x!tpu.dma_semaphore, #tpu.memory_space<semaphore_mem>> -> memref<1x!tpu.dma_semaphore, #tpu.memory_space<semaphore_mem>>
      %183 = tpu.memref_squeeze %182 : memref<1x!tpu.dma_semaphore, #tpu.memory_space<semaphore_mem>> -> memref<!tpu.dma_semaphore, #tpu.memory_space<semaphore_mem>>
      tpu.enqueue_dma source(%179 : memref<20x24x128xbf16, #tpu.memory_space<any>>) target(%181 : memref<20x24x128xbf16, #tpu.memory_space<vmem>>) target_semaphore(%183 : memref<!tpu.dma_semaphore, #tpu.memory_space<semaphore_mem>>)
    } else {
    }
    %c1_i32_5 = arith.constant 1 : i32
    %13 = arith.addi %arg1, %c1_i32_5 : i32
    %c1_i32_6 = arith.constant 1 : i32
    %14 = arith.cmpi slt, %13, %c1_i32_6 : i32
    %15 = arith.extui %14 : i1 to i32
    %c0_i32_7 = arith.constant 0 : i32
    %16 = arith.cmpi ne, %15, %c0_i32_7 : i32
    scf.if %16 {
      %c1_i32_127 = arith.constant 1 : i32
      %177 = arith.addi %arg1, %c1_i32_127 : i32
      %c1_i32_128 = arith.constant 1 : i32
      %178 = arith.subi %c1_i32_128, %9 : i32
      %c16_i32_129 = arith.constant 16 : i32
      %179 = arith.muli %177, %c16_i32_129 : i32
      %c0_i32_130 = arith.constant 0 : i32
      %c0_i32_131 = arith.constant 0 : i32
      %180 = tpu.memref_slice %arg2[%arg0, %179, %c0_i32_130, %c0_i32_131] : memref<2x20x24x128xbf16, #tpu.memory_space<any>> -> memref<1x20x24x128xbf16, #tpu.memory_space<any>>
      %181 = tpu.memref_squeeze %180 : memref<1x20x24x128xbf16, #tpu.memory_space<any>> -> memref<20x24x128xbf16, #tpu.memory_space<any>>
      %c0_i32_132 = arith.constant 0 : i32
      %c0_i32_133 = arith.constant 0 : i32
      %c0_i32_134 = arith.constant 0 : i32
      %182 = tpu.memref_slice %arg8[%178, %c0_i32_132, %c0_i32_133, %c0_i32_134] : memref<2x20x24x128xbf16, #tpu.memory_space<vmem>> -> memref<1x20x24x128xbf16, #tpu.memory_space<vmem>>
      %183 = tpu.memref_squeeze %182 : memref<1x20x24x128xbf16, #tpu.memory_space<vmem>> -> memref<20x24x128xbf16, #tpu.memory_space<vmem>>
      %184 = tpu.memref_slice %arg10[%178] : memref<2x!tpu.dma_semaphore, #tpu.memory_space<semaphore_mem>> -> memref<1x!tpu.dma_semaphore, #tpu.memory_space<semaphore_mem>>
      %185 = tpu.memref_squeeze %184 : memref<1x!tpu.dma_semaphore, #tpu.memory_space<semaphore_mem>> -> memref<!tpu.dma_semaphore, #tpu.memory_space<semaphore_mem>>
      tpu.enqueue_dma source(%181 : memref<20x24x128xbf16, #tpu.memory_space<any>>) target(%183 : memref<20x24x128xbf16, #tpu.memory_space<vmem>>) target_semaphore(%185 : memref<!tpu.dma_semaphore, #tpu.memory_space<semaphore_mem>>)
    } else {
    }
    %c16_i32 = arith.constant 16 : i32
    %17 = arith.muli %arg1, %c16_i32 : i32
    %c0_i32_8 = arith.constant 0 : i32
    %c0_i32_9 = arith.constant 0 : i32
    %18 = tpu.memref_slice %arg2[%arg0, %17, %c0_i32_8, %c0_i32_9] : memref<2x20x24x128xbf16, #tpu.memory_space<any>> -> memref<1x20x24x128xbf16, #tpu.memory_space<any>>
    %19 = tpu.memref_squeeze %18 : memref<1x20x24x128xbf16, #tpu.memory_space<any>> -> memref<20x24x128xbf16, #tpu.memory_space<any>>
    %c0_i32_10 = arith.constant 0 : i32
    %c0_i32_11 = arith.constant 0 : i32
    %c0_i32_12 = arith.constant 0 : i32
    %20 = tpu.memref_slice %arg8[%9, %c0_i32_10, %c0_i32_11, %c0_i32_12] : memref<2x20x24x128xbf16, #tpu.memory_space<vmem>> -> memref<1x20x24x128xbf16, #tpu.memory_space<vmem>>
    %21 = tpu.memref_squeeze %20 : memref<1x20x24x128xbf16, #tpu.memory_space<vmem>> -> memref<20x24x128xbf16, #tpu.memory_space<vmem>>
    %22 = tpu.memref_slice %arg10[%9] : memref<2x!tpu.dma_semaphore, #tpu.memory_space<semaphore_mem>> -> memref<1x!tpu.dma_semaphore, #tpu.memory_space<semaphore_mem>>
    %23 = tpu.memref_squeeze %22 : memref<1x!tpu.dma_semaphore, #tpu.memory_space<semaphore_mem>> -> memref<!tpu.dma_semaphore, #tpu.memory_space<semaphore_mem>>
    tpu.wait_dma2 semaphore(%23 : memref<!tpu.dma_semaphore, #tpu.memory_space<semaphore_mem>>) src(%19 : memref<20x24x128xbf16, #tpu.memory_space<any>>) dst(%21 : memref<20x24x128xbf16, #tpu.memory_space<vmem>>)
    %24 = arith.index_cast %9 : i32 to index
    %c0 = arith.constant 0 : index
    %c0_13 = arith.constant 0 : index
    %c0_14 = arith.constant 0 : index
    %25 = vector.load %arg8[%24, %c0, %c0_13, %c0_14] : memref<2x20x24x128xbf16, #tpu.memory_space<vmem>>, vector<1x20x24x128xbf16>
    %26 = vector.shape_cast %25 : vector<1x20x24x128xbf16> to vector<20x24x128xbf16>
    %27 = vector.extract_strided_slice %26 {offsets = [0, 0, 0], sizes = [18, 24, 128], strides = [1, 1, 1]} : vector<20x24x128xbf16> to vector<18x24x128xbf16>
    %28 = vector.shape_cast %27 : vector<18x24x128xbf16> to vector<432x128xbf16>
    %c0_15 = arith.constant 0 : index
    %c2 = arith.constant 2 : index
    %c0_16 = arith.constant 0 : index
    %c0_17 = arith.constant 0 : index
    %29 = vector.load %arg3[%c0_15, %c2, %c0_16, %c0_17] : memref<3x3x128x128xbf16, #tpu.memory_space<vmem>>, vector<1x1x128x128xbf16>
    %30 = vector.shape_cast %29 : vector<1x1x128x128xbf16> to vector<128x128xbf16>
    %cst = arith.constant dense<0.000000e+00> : vector<432x128xf32>
    %31 = tpu.matmul %28, %30, %cst {dimension_numbers = #tpu.dot_dimension_numbers<[1], [0], [0], [1], [0, 0, 1, 1], [], []>} : vector<432x128xbf16>, vector<128x128xbf16>, vector<432x128xf32> -> vector<432x128xf32>
    %32 = vector.extract_strided_slice %26 {offsets = [1, 0, 0], sizes = [18, 24, 128], strides = [1, 1, 1]} : vector<20x24x128xbf16> to vector<18x24x128xbf16>
    %33 = vector.shape_cast %32 : vector<18x24x128xbf16> to vector<432x128xbf16>
    %c1 = arith.constant 1 : index
    %c2_18 = arith.constant 2 : index
    %c0_19 = arith.constant 0 : index
    %c0_20 = arith.constant 0 : index
    %34 = vector.load %arg3[%c1, %c2_18, %c0_19, %c0_20] : memref<3x3x128x128xbf16, #tpu.memory_space<vmem>>, vector<1x1x128x128xbf16>
    %35 = vector.shape_cast %34 : vector<1x1x128x128xbf16> to vector<128x128xbf16>
    %cst_21 = arith.constant dense<0.000000e+00> : vector<432x128xf32>
    %36 = tpu.matmul %33, %35, %cst_21 {dimension_numbers = #tpu.dot_dimension_numbers<[1], [0], [0], [1], [0, 0, 1, 1], [], []>} : vector<432x128xbf16>, vector<128x128xbf16>, vector<432x128xf32> -> vector<432x128xf32>
    %37 = arith.addf %31, %36 : vector<432x128xf32>
    %38 = vector.extract_strided_slice %26 {offsets = [2, 0, 0], sizes = [18, 24, 128], strides = [1, 1, 1]} : vector<20x24x128xbf16> to vector<18x24x128xbf16>
    %39 = vector.shape_cast %38 : vector<18x24x128xbf16> to vector<432x128xbf16>
    %c2_22 = arith.constant 2 : index
    %c2_23 = arith.constant 2 : index
    %c0_24 = arith.constant 0 : index
    %c0_25 = arith.constant 0 : index
    %40 = vector.load %arg3[%c2_22, %c2_23, %c0_24, %c0_25] : memref<3x3x128x128xbf16, #tpu.memory_space<vmem>>, vector<1x1x128x128xbf16>
    %41 = vector.shape_cast %40 : vector<1x1x128x128xbf16> to vector<128x128xbf16>
    %cst_26 = arith.constant dense<0.000000e+00> : vector<432x128xf32>
    %42 = tpu.matmul %39, %41, %cst_26 {dimension_numbers = #tpu.dot_dimension_numbers<[1], [0], [0], [1], [0, 0, 1, 1], [], []>} : vector<432x128xbf16>, vector<128x128xbf16>, vector<432x128xf32> -> vector<432x128xf32>
    %43 = arith.addf %37, %42 : vector<432x128xf32>
    %44 = vector.extract_strided_slice %26 {offsets = [0, 0, 0], sizes = [18, 24, 128], strides = [1, 1, 1]} : vector<20x24x128xbf16> to vector<18x24x128xbf16>
    %45 = vector.shape_cast %44 : vector<18x24x128xbf16> to vector<432x128xbf16>
    %c0_27 = arith.constant 0 : index
    %c1_28 = arith.constant 1 : index
    %c0_29 = arith.constant 0 : index
    %c0_30 = arith.constant 0 : index
    %46 = vector.load %arg3[%c0_27, %c1_28, %c0_29, %c0_30] : memref<3x3x128x128xbf16, #tpu.memory_space<vmem>>, vector<1x1x128x128xbf16>
    %47 = vector.shape_cast %46 : vector<1x1x128x128xbf16> to vector<128x128xbf16>
    %cst_31 = arith.constant dense<0.000000e+00> : vector<432x128xf32>
    %48 = tpu.matmul %45, %47, %cst_31 {dimension_numbers = #tpu.dot_dimension_numbers<[1], [0], [0], [1], [0, 0, 1, 1], [], []>} : vector<432x128xbf16>, vector<128x128xbf16>, vector<432x128xf32> -> vector<432x128xf32>
    %49 = vector.extract_strided_slice %26 {offsets = [1, 0, 0], sizes = [18, 24, 128], strides = [1, 1, 1]} : vector<20x24x128xbf16> to vector<18x24x128xbf16>
    %50 = vector.shape_cast %49 : vector<18x24x128xbf16> to vector<432x128xbf16>
    %c1_32 = arith.constant 1 : index
    %c1_33 = arith.constant 1 : index
    %c0_34 = arith.constant 0 : index
    %c0_35 = arith.constant 0 : index
    %51 = vector.load %arg3[%c1_32, %c1_33, %c0_34, %c0_35] : memref<3x3x128x128xbf16, #tpu.memory_space<vmem>>, vector<1x1x128x128xbf16>
    %52 = vector.shape_cast %51 : vector<1x1x128x128xbf16> to vector<128x128xbf16>
    %cst_36 = arith.constant dense<0.000000e+00> : vector<432x128xf32>
    %53 = tpu.matmul %50, %52, %cst_36 {dimension_numbers = #tpu.dot_dimension_numbers<[1], [0], [0], [1], [0, 0, 1, 1], [], []>} : vector<432x128xbf16>, vector<128x128xbf16>, vector<432x128xf32> -> vector<432x128xf32>
    %54 = arith.addf %48, %53 : vector<432x128xf32>
    %55 = vector.extract_strided_slice %26 {offsets = [2, 0, 0], sizes = [18, 24, 128], strides = [1, 1, 1]} : vector<20x24x128xbf16> to vector<18x24x128xbf16>
    %56 = vector.shape_cast %55 : vector<18x24x128xbf16> to vector<432x128xbf16>
    %c2_37 = arith.constant 2 : index
    %c1_38 = arith.constant 1 : index
    %c0_39 = arith.constant 0 : index
    %c0_40 = arith.constant 0 : index
    %57 = vector.load %arg3[%c2_37, %c1_38, %c0_39, %c0_40] : memref<3x3x128x128xbf16, #tpu.memory_space<vmem>>, vector<1x1x128x128xbf16>
    %58 = vector.shape_cast %57 : vector<1x1x128x128xbf16> to vector<128x128xbf16>
    %cst_41 = arith.constant dense<0.000000e+00> : vector<432x128xf32>
    %59 = tpu.matmul %56, %58, %cst_41 {dimension_numbers = #tpu.dot_dimension_numbers<[1], [0], [0], [1], [0, 0, 1, 1], [], []>} : vector<432x128xbf16>, vector<128x128xbf16>, vector<432x128xf32> -> vector<432x128xf32>
    %60 = arith.addf %54, %59 : vector<432x128xf32>
    %c431_i32 = arith.constant 431 : i32
    %61 = tpu.dynamic_rotate %43 by %c431_i32 dim 0 : vector<432x128xf32>, i32 -> vector<432x128xf32>
    %62 = arith.addf %61, %60 : vector<432x128xf32>
    %63 = vector.extract_strided_slice %26 {offsets = [0, 0, 0], sizes = [18, 24, 128], strides = [1, 1, 1]} : vector<20x24x128xbf16> to vector<18x24x128xbf16>
    %64 = vector.shape_cast %63 : vector<18x24x128xbf16> to vector<432x128xbf16>
    %c0_42 = arith.constant 0 : index
    %c0_43 = arith.constant 0 : index
    %c0_44 = arith.constant 0 : index
    %c0_45 = arith.constant 0 : index
    %65 = vector.load %arg3[%c0_42, %c0_43, %c0_44, %c0_45] : memref<3x3x128x128xbf16, #tpu.memory_space<vmem>>, vector<1x1x128x128xbf16>
    %66 = vector.shape_cast %65 : vector<1x1x128x128xbf16> to vector<128x128xbf16>
    %cst_46 = arith.constant dense<0.000000e+00> : vector<432x128xf32>
    %67 = tpu.matmul %64, %66, %cst_46 {dimension_numbers = #tpu.dot_dimension_numbers<[1], [0], [0], [1], [0, 0, 1, 1], [], []>} : vector<432x128xbf16>, vector<128x128xbf16>, vector<432x128xf32> -> vector<432x128xf32>
    %68 = vector.extract_strided_slice %26 {offsets = [1, 0, 0], sizes = [18, 24, 128], strides = [1, 1, 1]} : vector<20x24x128xbf16> to vector<18x24x128xbf16>
    %69 = vector.shape_cast %68 : vector<18x24x128xbf16> to vector<432x128xbf16>
    %c1_47 = arith.constant 1 : index
    %c0_48 = arith.constant 0 : index
    %c0_49 = arith.constant 0 : index
    %c0_50 = arith.constant 0 : index
    %70 = vector.load %arg3[%c1_47, %c0_48, %c0_49, %c0_50] : memref<3x3x128x128xbf16, #tpu.memory_space<vmem>>, vector<1x1x128x128xbf16>
    %71 = vector.shape_cast %70 : vector<1x1x128x128xbf16> to vector<128x128xbf16>
    %cst_51 = arith.constant dense<0.000000e+00> : vector<432x128xf32>
    %72 = tpu.matmul %69, %71, %cst_51 {dimension_numbers = #tpu.dot_dimension_numbers<[1], [0], [0], [1], [0, 0, 1, 1], [], []>} : vector<432x128xbf16>, vector<128x128xbf16>, vector<432x128xf32> -> vector<432x128xf32>
    %73 = arith.addf %67, %72 : vector<432x128xf32>
    %74 = vector.extract_strided_slice %26 {offsets = [2, 0, 0], sizes = [18, 24, 128], strides = [1, 1, 1]} : vector<20x24x128xbf16> to vector<18x24x128xbf16>
    %75 = vector.shape_cast %74 : vector<18x24x128xbf16> to vector<432x128xbf16>
    %c2_52 = arith.constant 2 : index
    %c0_53 = arith.constant 0 : index
    %c0_54 = arith.constant 0 : index
    %c0_55 = arith.constant 0 : index
    %76 = vector.load %arg3[%c2_52, %c0_53, %c0_54, %c0_55] : memref<3x3x128x128xbf16, #tpu.memory_space<vmem>>, vector<1x1x128x128xbf16>
    %77 = vector.shape_cast %76 : vector<1x1x128x128xbf16> to vector<128x128xbf16>
    %cst_56 = arith.constant dense<0.000000e+00> : vector<432x128xf32>
    %78 = tpu.matmul %75, %77, %cst_56 {dimension_numbers = #tpu.dot_dimension_numbers<[1], [0], [0], [1], [0, 0, 1, 1], [], []>} : vector<432x128xbf16>, vector<128x128xbf16>, vector<432x128xf32> -> vector<432x128xf32>
    %79 = arith.addf %73, %78 : vector<432x128xf32>
    %c431_i32_57 = arith.constant 431 : i32
    %80 = tpu.dynamic_rotate %62 by %c431_i32_57 dim 0 : vector<432x128xf32>, i32 -> vector<432x128xf32>
    %81 = arith.addf %80, %79 : vector<432x128xf32>
    %c0_58 = arith.constant 0 : index
    %c0_59 = arith.constant 0 : index
    %82 = vector.load %arg4[%c0_58, %c0_59] : memref<1x128xf32, #tpu.memory_space<vmem>>, vector<1x128xf32>
    %83 = vector.broadcast %82 : vector<1x128xf32> to vector<432x128xf32>
    %84 = arith.addf %81, %83 : vector<432x128xf32>
    %cst_60 = arith.constant 0.000000e+00 : f32
    %85 = vector.broadcast %cst_60 : f32 to vector<432x128xf32>
    %86 = arith.maximumf %84, %85 : vector<432x128xf32>
    %87 = vector.shape_cast %86 : vector<432x128xf32> to vector<18x24x128xf32>
    %88 = tpu.iota {dimensions = array<i32: 0>} : vector<18x24x1xi32>
    %89 = tpu.iota {dimensions = array<i32: 1>} : vector<18x24x1xi32>
    %c16_i32_61 = arith.constant 16 : i32
    %90 = arith.muli %arg1, %c16_i32_61 : i32
    %91 = vector.broadcast %90 : i32 to vector<18x24x1xi32>
    %92 = arith.addi %91, %88 : vector<18x24x1xi32>
    %c1_i32_62 = arith.constant 1 : i32
    %93 = vector.broadcast %c1_i32_62 : i32 to vector<18x24x1xi32>
    %94 = arith.subi %92, %93 : vector<18x24x1xi32>
    %c0_i32_63 = arith.constant 0 : i32
    %95 = vector.broadcast %c0_i32_63 : i32 to vector<18x24x1xi32>
    %96 = arith.cmpi sge, %94, %95 : vector<18x24x1xi32>
    %c16_i32_64 = arith.constant 16 : i32
    %97 = vector.broadcast %c16_i32_64 : i32 to vector<18x24x1xi32>
    %98 = arith.cmpi slt, %94, %97 : vector<18x24x1xi32>
    %99 = arith.andi %96, %98 : vector<18x24x1xi1>
    %c1_i32_65 = arith.constant 1 : i32
    %100 = vector.broadcast %c1_i32_65 : i32 to vector<18x24x1xi32>
    %101 = arith.cmpi sge, %89, %100 : vector<18x24x1xi32>
    %102 = arith.andi %99, %101 : vector<18x24x1xi1>
    %c16_i32_66 = arith.constant 16 : i32
    %103 = vector.broadcast %c16_i32_66 : i32 to vector<18x24x1xi32>
    %104 = arith.cmpi sle, %89, %103 : vector<18x24x1xi32>
    %105 = arith.andi %102, %104 : vector<18x24x1xi1>
    %cst_67 = arith.constant 0.000000e+00 : f32
    %106 = vector.shape_cast %105 : vector<18x24x1xi1> to vector<18x24x1xi1>
    %107 = vector.broadcast %106 : vector<18x24x1xi1> to vector<18x24x128xi1>
    %108 = vector.broadcast %cst_67 : f32 to vector<18x24x128xf32>
    %109 = arith.select %107, %87, %108 : vector<18x24x128xi1>, vector<18x24x128xf32>
    %110 = arith.truncf %109 : vector<18x24x128xf32> to vector<18x24x128xbf16>
    %c0_68 = arith.constant 0 : index
    %c0_69 = arith.constant 0 : index
    %c0_70 = arith.constant 0 : index
    %111 = vector.load %arg9[%c0_68, %c0_69, %c0_70] : memref<18x24x128xbf16, #tpu.memory_space<vmem>>, vector<18x24x128xbf16>
    tpu.vector_store %arg9[%c0_68, %c0_69, %c0_70], %110 {strides = array<i32>} : memref<18x24x128xbf16, #tpu.memory_space<vmem>>, vector<18x24x128xbf16>,
    %c0_71 = arith.constant 0 : index
    %c0_72 = arith.constant 0 : index
    %c0_73 = arith.constant 0 : index
    %112 = vector.load %arg9[%c0_71, %c0_72, %c0_73] : memref<18x24x128xbf16, #tpu.memory_space<vmem>>, vector<18x24x128xbf16>
    %113 = vector.extract_strided_slice %112 {offsets = [0, 0, 0], sizes = [16, 24, 128], strides = [1, 1, 1]} : vector<18x24x128xbf16> to vector<16x24x128xbf16>
    %114 = vector.shape_cast %113 : vector<16x24x128xbf16> to vector<384x128xbf16>
    %c0_74 = arith.constant 0 : index
    %c2_75 = arith.constant 2 : index
    %c0_76 = arith.constant 0 : index
    %c0_77 = arith.constant 0 : index
    %115 = vector.load %arg5[%c0_74, %c2_75, %c0_76, %c0_77] : memref<3x3x128x128xbf16, #tpu.memory_space<vmem>>, vector<1x1x128x128xbf16>
    %116 = vector.shape_cast %115 : vector<1x1x128x128xbf16> to vector<128x128xbf16>
    %cst_78 = arith.constant dense<0.000000e+00> : vector<384x128xf32>
    %117 = tpu.matmul %114, %116, %cst_78 {dimension_numbers = #tpu.dot_dimension_numbers<[1], [0], [0], [1], [0, 0, 1, 1], [], []>} : vector<384x128xbf16>, vector<128x128xbf16>, vector<384x128xf32> -> vector<384x128xf32>
    %118 = vector.extract_strided_slice %112 {offsets = [1, 0, 0], sizes = [16, 24, 128], strides = [1, 1, 1]} : vector<18x24x128xbf16> to vector<16x24x128xbf16>
    %119 = vector.shape_cast %118 : vector<16x24x128xbf16> to vector<384x128xbf16>
    %c1_79 = arith.constant 1 : index
    %c2_80 = arith.constant 2 : index
    %c0_81 = arith.constant 0 : index
    %c0_82 = arith.constant 0 : index
    %120 = vector.load %arg5[%c1_79, %c2_80, %c0_81, %c0_82] : memref<3x3x128x128xbf16, #tpu.memory_space<vmem>>, vector<1x1x128x128xbf16>
    %121 = vector.shape_cast %120 : vector<1x1x128x128xbf16> to vector<128x128xbf16>
    %cst_83 = arith.constant dense<0.000000e+00> : vector<384x128xf32>
    %122 = tpu.matmul %119, %121, %cst_83 {dimension_numbers = #tpu.dot_dimension_numbers<[1], [0], [0], [1], [0, 0, 1, 1], [], []>} : vector<384x128xbf16>, vector<128x128xbf16>, vector<384x128xf32> -> vector<384x128xf32>
    %123 = arith.addf %117, %122 : vector<384x128xf32>
    %124 = vector.extract_strided_slice %112 {offsets = [2, 0, 0], sizes = [16, 24, 128], strides = [1, 1, 1]} : vector<18x24x128xbf16> to vector<16x24x128xbf16>
    %125 = vector.shape_cast %124 : vector<16x24x128xbf16> to vector<384x128xbf16>
    %c2_84 = arith.constant 2 : index
    %c2_85 = arith.constant 2 : index
    %c0_86 = arith.constant 0 : index
    %c0_87 = arith.constant 0 : index
    %126 = vector.load %arg5[%c2_84, %c2_85, %c0_86, %c0_87] : memref<3x3x128x128xbf16, #tpu.memory_space<vmem>>, vector<1x1x128x128xbf16>
    %127 = vector.shape_cast %126 : vector<1x1x128x128xbf16> to vector<128x128xbf16>
    %cst_88 = arith.constant dense<0.000000e+00> : vector<384x128xf32>
    %128 = tpu.matmul %125, %127, %cst_88 {dimension_numbers = #tpu.dot_dimension_numbers<[1], [0], [0], [1], [0, 0, 1, 1], [], []>} : vector<384x128xbf16>, vector<128x128xbf16>, vector<384x128xf32> -> vector<384x128xf32>
    %129 = arith.addf %123, %128 : vector<384x128xf32>
    %130 = vector.extract_strided_slice %112 {offsets = [0, 0, 0], sizes = [16, 24, 128], strides = [1, 1, 1]} : vector<18x24x128xbf16> to vector<16x24x128xbf16>
    %131 = vector.shape_cast %130 : vector<16x24x128xbf16> to vector<384x128xbf16>
    %c0_89 = arith.constant 0 : index
    %c1_90 = arith.constant 1 : index
    %c0_91 = arith.constant 0 : index
    %c0_92 = arith.constant 0 : index
    %132 = vector.load %arg5[%c0_89, %c1_90, %c0_91, %c0_92] : memref<3x3x128x128xbf16, #tpu.memory_space<vmem>>, vector<1x1x128x128xbf16>
    %133 = vector.shape_cast %132 : vector<1x1x128x128xbf16> to vector<128x128xbf16>
    %cst_93 = arith.constant dense<0.000000e+00> : vector<384x128xf32>
    %134 = tpu.matmul %131, %133, %cst_93 {dimension_numbers = #tpu.dot_dimension_numbers<[1], [0], [0], [1], [0, 0, 1, 1], [], []>} : vector<384x128xbf16>, vector<128x128xbf16>, vector<384x128xf32> -> vector<384x128xf32>
    %135 = vector.extract_strided_slice %112 {offsets = [1, 0, 0], sizes = [16, 24, 128], strides = [1, 1, 1]} : vector<18x24x128xbf16> to vector<16x24x128xbf16>
    %136 = vector.shape_cast %135 : vector<16x24x128xbf16> to vector<384x128xbf16>
    %c1_94 = arith.constant 1 : index
    %c1_95 = arith.constant 1 : index
    %c0_96 = arith.constant 0 : index
    %c0_97 = arith.constant 0 : index
    %137 = vector.load %arg5[%c1_94, %c1_95, %c0_96, %c0_97] : memref<3x3x128x128xbf16, #tpu.memory_space<vmem>>, vector<1x1x128x128xbf16>
    %138 = vector.shape_cast %137 : vector<1x1x128x128xbf16> to vector<128x128xbf16>
    %cst_98 = arith.constant dense<0.000000e+00> : vector<384x128xf32>
    %139 = tpu.matmul %136, %138, %cst_98 {dimension_numbers = #tpu.dot_dimension_numbers<[1], [0], [0], [1], [0, 0, 1, 1], [], []>} : vector<384x128xbf16>, vector<128x128xbf16>, vector<384x128xf32> -> vector<384x128xf32>
    %140 = arith.addf %134, %139 : vector<384x128xf32>
    %141 = vector.extract_strided_slice %112 {offsets = [2, 0, 0], sizes = [16, 24, 128], strides = [1, 1, 1]} : vector<18x24x128xbf16> to vector<16x24x128xbf16>
    %142 = vector.shape_cast %141 : vector<16x24x128xbf16> to vector<384x128xbf16>
    %c2_99 = arith.constant 2 : index
    %c1_100 = arith.constant 1 : index
    %c0_101 = arith.constant 0 : index
    %c0_102 = arith.constant 0 : index
    %143 = vector.load %arg5[%c2_99, %c1_100, %c0_101, %c0_102] : memref<3x3x128x128xbf16, #tpu.memory_space<vmem>>, vector<1x1x128x128xbf16>
    %144 = vector.shape_cast %143 : vector<1x1x128x128xbf16> to vector<128x128xbf16>
    %cst_103 = arith.constant dense<0.000000e+00> : vector<384x128xf32>
    %145 = tpu.matmul %142, %144, %cst_103 {dimension_numbers = #tpu.dot_dimension_numbers<[1], [0], [0], [1], [0, 0, 1, 1], [], []>} : vector<384x128xbf16>, vector<128x128xbf16>, vector<384x128xf32> -> vector<384x128xf32>
    %146 = arith.addf %140, %145 : vector<384x128xf32>
    %c383_i32 = arith.constant 383 : i32
    %147 = tpu.dynamic_rotate %129 by %c383_i32 dim 0 : vector<384x128xf32>, i32 -> vector<384x128xf32>
    %148 = arith.addf %147, %146 : vector<384x128xf32>
    %149 = vector.extract_strided_slice %112 {offsets = [0, 0, 0], sizes = [16, 24, 128], strides = [1, 1, 1]} : vector<18x24x128xbf16> to vector<16x24x128xbf16>
    %150 = vector.shape_cast %149 : vector<16x24x128xbf16> to vector<384x128xbf16>
    %c0_104 = arith.constant 0 : index
    %c0_105 = arith.constant 0 : index
    %c0_106 = arith.constant 0 : index
    %c0_107 = arith.constant 0 : index
    %151 = vector.load %arg5[%c0_104, %c0_105, %c0_106, %c0_107] : memref<3x3x128x128xbf16, #tpu.memory_space<vmem>>, vector<1x1x128x128xbf16>
    %152 = vector.shape_cast %151 : vector<1x1x128x128xbf16> to vector<128x128xbf16>
    %cst_108 = arith.constant dense<0.000000e+00> : vector<384x128xf32>
    %153 = tpu.matmul %150, %152, %cst_108 {dimension_numbers = #tpu.dot_dimension_numbers<[1], [0], [0], [1], [0, 0, 1, 1], [], []>} : vector<384x128xbf16>, vector<128x128xbf16>, vector<384x128xf32> -> vector<384x128xf32>
    %154 = vector.extract_strided_slice %112 {offsets = [1, 0, 0], sizes = [16, 24, 128], strides = [1, 1, 1]} : vector<18x24x128xbf16> to vector<16x24x128xbf16>
    %155 = vector.shape_cast %154 : vector<16x24x128xbf16> to vector<384x128xbf16>
    %c1_109 = arith.constant 1 : index
    %c0_110 = arith.constant 0 : index
    %c0_111 = arith.constant 0 : index
    %c0_112 = arith.constant 0 : index
    %156 = vector.load %arg5[%c1_109, %c0_110, %c0_111, %c0_112] : memref<3x3x128x128xbf16, #tpu.memory_space<vmem>>, vector<1x1x128x128xbf16>
    %157 = vector.shape_cast %156 : vector<1x1x128x128xbf16> to vector<128x128xbf16>
    %cst_113 = arith.constant dense<0.000000e+00> : vector<384x128xf32>
    %158 = tpu.matmul %155, %157, %cst_113 {dimension_numbers = #tpu.dot_dimension_numbers<[1], [0], [0], [1], [0, 0, 1, 1], [], []>} : vector<384x128xbf16>, vector<128x128xbf16>, vector<384x128xf32> -> vector<384x128xf32>
    %159 = arith.addf %153, %158 : vector<384x128xf32>
    %160 = vector.extract_strided_slice %112 {offsets = [2, 0, 0], sizes = [16, 24, 128], strides = [1, 1, 1]} : vector<18x24x128xbf16> to vector<16x24x128xbf16>
    %161 = vector.shape_cast %160 : vector<16x24x128xbf16> to vector<384x128xbf16>
    %c2_114 = arith.constant 2 : index
    %c0_115 = arith.constant 0 : index
    %c0_116 = arith.constant 0 : index
    %c0_117 = arith.constant 0 : index
    %162 = vector.load %arg5[%c2_114, %c0_115, %c0_116, %c0_117] : memref<3x3x128x128xbf16, #tpu.memory_space<vmem>>, vector<1x1x128x128xbf16>
    %163 = vector.shape_cast %162 : vector<1x1x128x128xbf16> to vector<128x128xbf16>
    %cst_118 = arith.constant dense<0.000000e+00> : vector<384x128xf32>
    %164 = tpu.matmul %161, %163, %cst_118 {dimension_numbers = #tpu.dot_dimension_numbers<[1], [0], [0], [1], [0, 0, 1, 1], [], []>} : vector<384x128xbf16>, vector<128x128xbf16>, vector<384x128xf32> -> vector<384x128xf32>
    %165 = arith.addf %159, %164 : vector<384x128xf32>
    %c383_i32_119 = arith.constant 383 : i32
    %166 = tpu.dynamic_rotate %148 by %c383_i32_119 dim 0 : vector<384x128xf32>, i32 -> vector<384x128xf32>
    %167 = arith.addf %166, %165 : vector<384x128xf32>
    %c0_120 = arith.constant 0 : index
    %c0_121 = arith.constant 0 : index
    %168 = vector.load %arg6[%c0_120, %c0_121] : memref<1x128xf32, #tpu.memory_space<vmem>>, vector<1x128xf32>
    %169 = vector.broadcast %168 : vector<1x128xf32> to vector<384x128xf32>
    %170 = arith.addf %167, %169 : vector<384x128xf32>
    %cst_122 = arith.constant 0.000000e+00 : f32
    %171 = vector.broadcast %cst_122 : f32 to vector<384x128xf32>
    %172 = arith.maximumf %170, %171 : vector<384x128xf32>
    %173 = vector.shape_cast %172 : vector<384x128xf32> to vector<16x24x128xf32>
    %174 = vector.extract_strided_slice %173 {offsets = [0, 0, 0], sizes = [16, 16, 128], strides = [1, 1, 1]} : vector<16x24x128xf32> to vector<16x16x128xf32>
    %175 = vector.shape_cast %174 : vector<16x16x128xf32> to vector<1x16x16x128xf32>
    %c0_123 = arith.constant 0 : index
    %c0_124 = arith.constant 0 : index
    %c0_125 = arith.constant 0 : index
    %c0_126 = arith.constant 0 : index
    %176 = vector.load %arg7[%c0_123, %c0_124, %c0_125, %c0_126] : memref<1x16x16x128xf32, #tpu.memory_space<vmem>>, vector<1x16x16x128xf32>
    tpu.vector_store %arg7[%c0_123, %c0_124, %c0_125, %c0_126], %175 {strides = array<i32>} : memref<1x16x16x128xf32, #tpu.memory_space<vmem>>, vector<1x16x16x128xf32>,
    return
  }
  func.func @transform_1(%arg0: i32, %arg1: i32) -> (i32, i32, i32, i32) {
    %c0_i32 = arith.constant 0 : i32
    %c0_i32_0 = arith.constant 0 : i32
    %c0_i32_1 = arith.constant 0 : i32
    %c0_i32_2 = arith.constant 0 : i32
    %c0_i32_3 = arith.constant 0 : i32
    return %c0_i32, %c0_i32_0, %c0_i32_1, %c0_i32_2 : i32, i32, i32, i32
  }
  func.func @transform_2(%arg0: i32, %arg1: i32) -> (i32, i32) {
    %c0_i32 = arith.constant 0 : i32
    %c0_i32_0 = arith.constant 0 : i32
    %c0_i32_1 = arith.constant 0 : i32
    return %c0_i32, %c0_i32_0 : i32, i32
  }
  func.func @transform_3(%arg0: i32, %arg1: i32) -> (i32, i32, i32, i32) {
    %c0_i32 = arith.constant 0 : i32
    %c0_i32_0 = arith.constant 0 : i32
    %c0_i32_1 = arith.constant 0 : i32
    %c0_i32_2 = arith.constant 0 : i32
    %c0_i32_3 = arith.constant 0 : i32
    return %c0_i32, %c0_i32_0, %c0_i32_1, %c0_i32_2 : i32, i32, i32, i32
  }
  func.func @transform_4(%arg0: i32, %arg1: i32) -> (i32, i32) {
    %c0_i32 = arith.constant 0 : i32
    %c0_i32_0 = arith.constant 0 : i32
    %c0_i32_1 = arith.constant 0 : i32
    return %c0_i32, %c0_i32_0 : i32, i32
  }
  func.func @transform_5(%arg0: i32, %arg1: i32) -> (i32, i32, i32, i32) {
    %c0_i32 = arith.constant 0 : i32
    %c0_i32_0 = arith.constant 0 : i32
    %c0_i32_1 = arith.constant 0 : i32
    return %arg0, %arg1, %c0_i32, %c0_i32_0 : i32, i32, i32, i32
  }
}

</mosaic_0001>

<llo_original>
// kernel: double_conv.1
$region0: #{double_conv.1}
  #allocation0 [shape = 'u32[]', space=smem, size = 0x4, offset = 0x4, fixed_abs, tag = 'smem constant byte address 0x4 - core index']
  #allocation1 [shape = 'u32[144,128]{1,0:T(1,128)}', space=vmem, size = 0x12000, scoped, tag = 'internal scratch']
  #allocation2 [shape = 'bf16[2,20,24,128]{3,2,1,0:T(8,128)(2,1)}', space=vmem, size = 0x3c000, scoped, tag = 'scratch operand']
  #allocation3 [shape = 'bf16[18,24,128]{2,1,0:T(8,128)(2,1)}', space=vmem, size = 0x1b000, scoped, tag = 'scratch operand']
  #allocation4 [shape = 's32[2]{0}', space=sflag, size = 0x8, scoped, tag = 'scratch operand']
  #allocation5 [shape = 's32[]', space=sflag, size = 0x4, offset = 0, fixed_abs, tag = 'sflag constant byte address 0x0 - dummy sync flag']
  #allocation6 [shape = 's32[]', space=sflag, size = 0x4, offset = 0, fixed_abs, tag = 'sflag constant byte address 0x0 - dummy sync flag']
  %s0 = inlined_call_operand.vmem [shape: bf16[2,20,24,128], index: 0, kind: input, shape index: {}]
  %s1 = inlined_call_operand.vmem [shape: bf16[3,3,128,128], index: 1, kind: input, shape index: {}]
  %s2 = inlined_call_operand.vmem [shape: f32[1,128], index: 2, kind: input, shape index: {}]
  %s3 = inlined_call_operand.vmem [shape: bf16[3,3,128,128], index: 3, kind: input, shape index: {}]
  %s4 = inlined_call_operand.vmem [shape: f32[1,128], index: 4, kind: input, shape index: {}]
  %s5 = inlined_call_operand.vmem [shape: f32[2,16,16,128], index: 5, kind: output, shape index: {}]
  %s6 = sld [smem:[#allocation0]]
  $region125: #{double_conv.1} parent=0
    _
  %s8 = ssub.s32 1, %s6
  %s9 = scalar_select 0, %s8, %s6
  loop: start=0, step=1, limit=4
  $region2: #{double_conv.1} parent=0 // loop_pre_header
    _
  $region3: #{double_conv.1} parent=0 // loop_header
    %s11 = sphi 0, %s15
    %p12 = scmp.ge.s32.totalorder %s11, 4
    %s18 = sphi 0, %s30
    %s19 = sphi 0, %s26
    %s20 = sphi 0, %s18
    %s21 = sphi 0, %s19
    %s22 = sphi 0, %s20
    %s23 = sphi 0, %s21
    %s31 = sphi 0, %s31
    %s33 = sphi 0, %s31
    %s34 = sphi 0, %s33
    %s48 = sphi 0, %s34
    %s52 = sphi 0, %s52
    %s54 = sphi 0, %s52
    %s55 = sphi 0, %s54
    %s69 = sphi 0, %s55
    %s73 = sphi 0, %s73
    %s75 = sphi 0, %s73
    %s76 = sphi 0, %s75
    %s90 = sphi 0, %s76
    %s94 = sphi 0, %s94
    %s96 = sphi 0, %s94
    %s97 = sphi 0, %s96
    %s111 = sphi 0, %s97
    %s119 = sphi 0, %s121
    %s122 = sphi 0, %s119
    %s123 = sphi 0, %s122
    %s139 = sphi 0, %s123
  $region4: #{double_conv.1} parent=0 // loop_header_branch
    %14 = sbr.rel (%p12) target = $region8
  $region5: #{double_conv.1} parent=0 // loop_body
    %s16 = ssub.s32 %s11, 1
    %s17 = ssub.s32 %s11, 2
    %s24 = sadd.s32 1, %s19
    %p25 = scmp.ge.s32.totalorder %s24, 1
    %s26 = scalar_select %p25, 0, %s24
    %s27 = sadd.s32 1, %s18
    %s28 = scalar_select %p25, %s27, %s18
    %p29 = scmp.ge.s32.totalorder %s28, 2
    %s30 = scalar_select %p29, 0, %s28
    %s32 = sadd.s32 %s31, 1
    %p35 = scmp.eq.s32.totalorder %s11, 1
    %p36 = scmp.ne.s32.totalorder %s31, %s33
    %p37 = scmp.eq.s32.totalorder %s11, 0
    %p38 = por %p36, %p37
    %p39 = scmp.ne.s32.totalorder %s31, %s33
    %p40 = scmp.eq.s32.totalorder %s16, 1
    %p41 = por %p39, %p40
    %p42 = scmp.ne.s32.totalorder %s33, %s34
    %p43 = scmp.eq.s32.totalorder %s16, 0
    %p44 = por %p42, %p43
    %p45 = scmp.ne.s32.totalorder %s33, %s34
    %p46 = scmp.eq.s32.totalorder %s17, 1
    %p47 = por %p45, %p46
    %p49 = scmp.ne.s32.totalorder %s34, %s48
    %p50 = scmp.eq.s32.totalorder %s17, 0
    %p51 = por %p49, %p50
    %s53 = sadd.s32 %s52, 1
    %p56 = scmp.eq.s32.totalorder %s11, 1
    %p57 = scmp.ne.s32.totalorder %s52, %s54
    %p58 = scmp.eq.s32.totalorder %s11, 0
    %p59 = por %p57, %p58
    %p60 = scmp.ne.s32.totalorder %s52, %s54
    %p61 = scmp.eq.s32.totalorder %s16, 1
    %p62 = por %p60, %p61
    %p63 = scmp.ne.s32.totalorder %s54, %s55
    %p64 = scmp.eq.s32.totalorder %s16, 0
    %p65 = por %p63, %p64
    %p66 = scmp.ne.s32.totalorder %s54, %s55
    %p67 = scmp.eq.s32.totalorder %s17, 1
    %p68 = por %p66, %p67
    %p70 = scmp.ne.s32.totalorder %s55, %s69
    %p71 = scmp.eq.s32.totalorder %s17, 0
    %p72 = por %p70, %p71
    %s74 = sadd.s32 %s73, 1
    %p77 = scmp.eq.s32.totalorder %s11, 1
    %p78 = scmp.ne.s32.totalorder %s73, %s75
    %p79 = scmp.eq.s32.totalorder %s11, 0
    %p80 = por %p78, %p79
    %p81 = scmp.ne.s32.totalorder %s73, %s75
    %p82 = scmp.eq.s32.totalorder %s16, 1
    %p83 = por %p81, %p82
    %p84 = scmp.ne.s32.totalorder %s75, %s76
    %p85 = scmp.eq.s32.totalorder %s16, 0
    %p86 = por %p84, %p85
    %p87 = scmp.ne.s32.totalorder %s75, %s76
    %p88 = scmp.eq.s32.totalorder %s17, 1
    %p89 = por %p87, %p88
    %p91 = scmp.ne.s32.totalorder %s76, %s90
    %p92 = scmp.eq.s32.totalorder %s17, 0
    %p93 = por %p91, %p92
    %s95 = sadd.s32 %s94, 1
    %p98 = scmp.eq.s32.totalorder %s11, 1
    %p99 = scmp.ne.s32.totalorder %s94, %s96
    %p100 = scmp.eq.s32.totalorder %s11, 0
    %p101 = por %p99, %p100
    %p102 = scmp.ne.s32.totalorder %s94, %s96
    %p103 = scmp.eq.s32.totalorder %s16, 1
    %p104 = por %p102, %p103
    %p105 = scmp.ne.s32.totalorder %s96, %s97
    %p106 = scmp.eq.s32.totalorder %s16, 0
    %p107 = por %p105, %p106
    %p108 = scmp.ne.s32.totalorder %s96, %s97
    %p109 = scmp.eq.s32.totalorder %s17, 1
    %p110 = por %p108, %p109
    %p112 = scmp.ne.s32.totalorder %s97, %s111
    %p113 = scmp.eq.s32.totalorder %s17, 0
    %p114 = por %p112, %p113
    %s115 = ssub.s32 %s18, %s30
    %s116 = ssub.s32 %s19, %s26
    %s117 = sor.u32 %s115, %s116
    %p118 = scmp.eq.s32.totalorder %s117, 0
    %s120 = sadd.s32 %s119, 1
    %s121 = scalar_select %p118, %s119, %s120
    %p124 = pneg %p118
    %p125 = scmp.eq.s32.totalorder %s11, 1
    %p126 = por %p124, %p125
    %p127 = scmp.ne.s32.totalorder %s119, %s122
    %p128 = scmp.eq.s32.totalorder %s11, 0
    %p129 = por %p127, %p128
    %p130 = scmp.ne.s32.totalorder %s119, %s122
    %p131 = scmp.eq.s32.totalorder %s16, 1
    %p132 = por %p130, %p131
    %p133 = scmp.ne.s32.totalorder %s122, %s123
    %p134 = scmp.eq.s32.totalorder %s16, 0
    %p135 = por %p133, %p134
    %p136 = scmp.ne.s32.totalorder %s122, %s123
    %p137 = scmp.eq.s32.totalorder %s17, 1
    %p138 = por %p136, %p137
    %p140 = scmp.ne.s32.totalorder %s123, %s139
    %p141 = scmp.eq.s32.totalorder %s17, 0
    %p142 = por %p140, %p141
    %p143 = scmp.le.s32.totalorder 1, %s11
    %p144 = scmp.lt.s32.totalorder %s11, 3
    %p145 = pnand %p143, %p144
    %p146 = pneg %p145
    // Predicated region
    $region9: #{double_conv.1} parent=5 // pred_check
      _
    $region10: #{double_conv.1} parent=5 // pred_check_branch
      %148 = sbr.rel (%p145) target = $region12
    $region11: #{double_conv.1} parent=5 // pred_region
      %s149 = ssub.s32 %s11, 1
      // Predicated region
      $region13: #{double_conv.1} parent=11 // pred_check
        %p150 = pneg %p44
      $region14: #{double_conv.1} parent=11 // pred_check_branch
        %152 = sbr.rel (%p150) target = $region16
      $region15: #{double_conv.1} parent=11 // pred_region
        _
      $region16: #{double_conv.1} parent=11 // pred_fallthru
        _
      // Predicated region
      $region17: #{double_conv.1} parent=11 // pred_check
        %p153 = pneg %p65
      $region18: #{double_conv.1} parent=11 // pred_check_branch
        %155 = sbr.rel (%p153) target = $region20
      $region19: #{double_conv.1} parent=11 // pred_region
        _
      $region20: #{double_conv.1} parent=11 // pred_fallthru
        _
      // Predicated region
      $region21: #{double_conv.1} parent=11 // pred_check
        %p156 = pneg %p86
      $region22: #{double_conv.1} parent=11 // pred_check_branch
        %158 = sbr.rel (%p156) target = $region24
      $region23: #{double_conv.1} parent=11 // pred_region
        _
      $region24: #{double_conv.1} parent=11 // pred_fallthru
        _
      // Predicated region
      $region25: #{double_conv.1} parent=11 // pred_check
        %p159 = pneg %p107
      $region26: #{double_conv.1} parent=11 // pred_check_branch
        %161 = sbr.rel (%p159) target = $region28
      $region27: #{double_conv.1} parent=11 // pred_region
        _
      $region28: #{double_conv.1} parent=11 // pred_fallthru
        _
    $region12: #{double_conv.1} parent=5 // pred_fallthru
      _
    %p162 = scmp.lt.s32.totalorder %s11, 2
    // Predicated region
    $region29: #{double_conv.1} parent=5 // pred_check
      %p163 = pneg %p162
    $region30: #{double_conv.1} parent=5 // pred_check_branch
      %165 = sbr.rel (%p163) target = $region32
    $region31: #{double_conv.1} parent=5 // pred_region
      _
    $region32: #{double_conv.1} parent=5 // pred_fallthru
      _
    %p166 = scmp.le.s32.totalorder 1, %s11
    %p167 = scmp.lt.s32.totalorder %s11, 3
    %p168 = pnand %p166, %p167
    %p169 = pneg %p168
    // Predicated region
    $region33: #{double_conv.1} parent=5 // pred_check
      _
    $region34: #{double_conv.1} parent=5 // pred_check_branch
      %171 = sbr.rel (%p168) target = $region36
    $region35: #{double_conv.1} parent=5 // pred_region
      %s172 = ssub.s32 %s11, 1
      %p173 = pneg %p44
      %p174 = pneg %p41
      %p175 = pneg %p65
      %p176 = pneg %p62
      %p177 = pneg %p86
      %p178 = pneg %p83
      %p179 = pneg %p107
      %p180 = pneg %p104
      %p181 = pneg %p135
      %p182 = pneg %p132
      %s183 = smul.u32 16, %s21
      %p184 = scmp.lt.s32.totalorder %s20, 1
      %s185 = scalar_select %p184, %s20, 1
      %p186 = scmp.lt.s32.totalorder %s183, 15
      %s187 = scalar_select %p186, %s183, 15
      %s188 = smul.addr %s187, 2
      %s189 = smul.addr %s185, 32
      %s190 = sadd.s32 %s188, %s189
      %s191 = smul.addr %s190, 8
      %s192 = scalar_lea.vmem %s5, %s191
      %s193 = smul.u32 16, %s21
      %p194 = scmp.lt.s32.totalorder %s20, 1
      %s195 = scalar_select %p194, %s20, 1
      %p196 = scmp.lt.s32.totalorder %s193, 15
      %s197 = scalar_select %p196, %s193, 15
      %s198 = smul.addr %s197, 2
      %s199 = smul.addr %s195, 32
      %s200 = sadd.s32 %s198, %s199
      %s201 = smul.addr %s200, 8
      %s202 = scalar_lea.vmem %s5, %s201
      %s203 = smul.u32 16, %s21
      %p205 = scmp.lt.s32.totalorder %s21, 0
      %s206 = ssub.s32 0, %s21
      %s207 = scalar_select %p205, %s206, %s21
      %s208 = sand.u32 %s207, 1
      %s209 = ssub.s32 0, %s208
      %s210 = scalar_select %p205, %s209, %s208
      %p211 = scmp.ne.s32.totalorder %s210, 0
      %p212 = scmp.lt.s32.totalorder %s210, 0
      %p213 = pnand %p212, %p211
      %p214 = pneg %p213
      %s215 = sadd.s32 %s210, 2
      %s216 = scalar_select %p214, %s215, %s210
      %p217 = scmp.eq.s32.totalorder %s21, 0
      // Predicated region
      $region37: #{double_conv.1} parent=35 // pred_check
        %p218 = pneg %p217
      $region38: #{double_conv.1} parent=35 // pred_check_branch
        %220 = sbr.rel (%p218) target = $region40
      $region39: #{double_conv.1} parent=35 // pred_region
        %s221 = smul.u32 %s21, 16
        %s222 = smul.u32 %s221, 3
        %s223 = smul.u32 %s20, 60
        %s224 = sadd.s32 %s222, %s223
        %s225 = smul.addr %s224, 4
        %s226 = scalar_lea.vmem %s0, %s225
        %s227 = smul.u32 %s216, 60
        %s228 = smul.addr %s227, 4
        %s229 = scalar_lea.vmem [#allocation2], %s228
        %s230 = scalar_lea.sflag [#allocation4], %s216
        %p232 = scmp.lt.u32.totalorder 240, 8
        %p233 = pneg %p232
        // Predicated region
        $region41: #{double_conv.1} parent=39 // pred_check
          _
        $region42: #{double_conv.1} parent=39 // pred_check_branch
          %235 = sbr.rel (%p232) target = $region44
        $region43: #{double_conv.1} parent=39 // pred_region
          %s251 = sand.u32 240, 7
          %p252 = scmp.eq.s32.totalorder %s251, 0
          // Predicated region
          $region56: #{double_conv.1} parent=43 // pred_check
            %p253 = pneg %p252
          $region57: #{double_conv.1} parent=43 // pred_check_branch
            %255 = sbr.rel (%p253) target = $region59
          $region58: #{double_conv.1} parent=43 // pred_region
            loop: start=0, step=1, limit=1
            $region60: #{double_conv.1} parent=58 // loop_pre_header
              _
            $region61: #{double_conv.1} parent=58 // loop_header
              %s257 = sphi 0, %s261
              %p258 = scmp.ge.s32.totalorder %s257, 1
              %s262 = sphi %s226, %s226
              %s263 = sphi %s229, %s229
            $region62: #{double_conv.1} parent=58 // loop_header_branch
              %260 = sbr.rel (%p258) target = $region66
            $region63: #{double_conv.1} parent=58 // loop_body
              %v264 = vld [vmem:[%s262] sm:$0xff]
              %265 = vst [vmem:[%s263] sm:$0xff] %v264
              %v266 = vld [vmem:[%s262 + $0x8] sm:$0xff]
              %267 = vst [vmem:[%s263 + $0x8] sm:$0xff] %v266
              %v268 = vld [vmem:[%s262 + $0x10] sm:$0xff]
              %269 = vst [vmem:[%s263 + $0x10] sm:$0xff] %v268
              %v270 = vld [vmem:[%s262 + $0x18] sm:$0xff]
              %271 = vst [vmem:[%s263 + $0x18] sm:$0xff] %v270
              %v272 = vld [vmem:[%s262 + $0x20] sm:$0xff]
              %273 = vst [vmem:[%s263 + $0x20] sm:$0xff] %v272
              %v274 = vld [vmem:[%s262 + $0x28] sm:$0xff]
              %275 = vst [vmem:[%s263 + $0x28] sm:$0xff] %v274
              %v276 = vld [vmem:[%s262 + $0x30] sm:$0xff]
              %277 = vst [vmem:[%s263 + $0x30] sm:$0xff] %v276
              %v278 = vld [vmem:[%s262 + $0x38] sm:$0xff]
              %279 = vst [vmem:[%s263 + $0x38] sm:$0xff] %v278
              %v280 = vld [vmem:[%s262 + $0x40] sm:$0xff]
              %281 = vst [vmem:[%s263 + $0x40] sm:$0xff] %v280
              %v282 = vld [vmem:[%s262 + $0x48] sm:$0xff]
              %283 = vst [vmem:[%s263 + $0x48] sm:$0xff] %v282
              %v284 = vld [vmem:[%s262 + $0x50] sm:$0xff]
              %285 = vst [vmem:[%s263 + $0x50] sm:$0xff] %v284
              %v286 = vld [vmem:[%s262 + $0x58] sm:$0xff]
              %287 = vst [vmem:[%s263 + $0x58] sm:$0xff] %v286
              %v288 = vld [vmem:[%s262 + $0x60] sm:$0xff]
              %289 = vst [vmem:[%s263 + $0x60] sm:$0xff] %v288
              %v290 = vld [vmem:[%s262 + $0x68] sm:$0xff]
              %291 = vst [vmem:[%s263 + $0x68] sm:$0xff] %v290
              %v292 = vld [vmem:[%s262 + $0x70] sm:$0xff]
              %293 = vst [vmem:[%s263 + $0x70] sm:$0xff] %v292
              %v294 = vld [vmem:[%s262 + $0x78] sm:$0xff]
              %295 = vst [vmem:[%s263 + $0x78] sm:$0xff] %v294
              %v296 = vld [vmem:[%s262 + $0x80] sm:$0xff]
              %297 = vst [vmem:[%s263 + $0x80] sm:$0xff] %v296
              %v298 = vld [vmem:[%s262 + $0x88] sm:$0xff]
              %299 = vst [vmem:[%s263 + $0x88] sm:$0xff] %v298
              %v300 = vld [vmem:[%s262 + $0x90] sm:$0xff]
              %301 = vst [vmem:[%s263 + $0x90] sm:$0xff] %v300
              %v302 = vld [vmem:[%s262 + $0x98] sm:$0xff]
              %303 = vst [vmem:[%s263 + $0x98] sm:$0xff] %v302
              %v304 = vld [vmem:[%s262 + $0xa0] sm:$0xff]
              %305 = vst [vmem:[%s263 + $0xa0] sm:$0xff] %v304
              %v306 = vld [vmem:[%s262 + $0xa8] sm:$0xff]
              %307 = vst [vmem:[%s263 + $0xa8] sm:$0xff] %v306
              %v308 = vld [vmem:[%s262 + $0xb0] sm:$0xff]
              %309 = vst [vmem:[%s263 + $0xb0] sm:$0xff] %v308
              %v310 = vld [vmem:[%s262 + $0xb8] sm:$0xff]
              %311 = vst [vmem:[%s263 + $0xb8] sm:$0xff] %v310
              %v312 = vld [vmem:[%s262 + $0xc0] sm:$0xff]
              %313 = vst [vmem:[%s263 + $0xc0] sm:$0xff] %v312
              %v314 = vld [vmem:[%s262 + $0xc8] sm:$0xff]
              %315 = vst [vmem:[%s263 + $0xc8] sm:$0xff] %v314
              %v316 = vld [vmem:[%s262 + $0xd0] sm:$0xff]
              %317 = vst [vmem:[%s263 + $0xd0] sm:$0xff] %v316
              %v318 = vld [vmem:[%s262 + $0xd8] sm:$0xff]
              %319 = vst [vmem:[%s263 + $0xd8] sm:$0xff] %v318
              %v320 = vld [vmem:[%s262 + $0xe0] sm:$0xff]
              %321 = vst [vmem:[%s263 + $0xe0] sm:$0xff] %v320
              %v322 = vld [vmem:[%s262 + $0xe8] sm:$0xff]
              %323 = vst [vmem:[%s263 + $0xe8] sm:$0xff] %v322
            $region64: #{double_conv.1} parent=58 // loop_footer
              %s261 = sadd.s32 1, %s257
            $region65: #{double_conv.1} parent=58 // loop_footer_branch
              %256 = sbr.rel target = $region61
            $region66: #{double_conv.1} parent=58 // loop_exit
              _
          $region59: #{double_conv.1} parent=43 // pred_fallthru
            _
          %p324 = pneg %p252
          // Predicated region
          $region67: #{double_conv.1} parent=43 // pred_check
            _
          $region68: #{double_conv.1} parent=43 // pred_check_branch
            %326 = sbr.rel (%p252) target = $region70
          $region69: #{double_conv.1} parent=43 // pred_region
            %s327 = sand.u32 240, 7
          $region70: #{double_conv.1} parent=43 // pred_fallthru
            _
        $region44: #{double_conv.1} parent=39 // pred_fallthru
          _
        // Predicated region
        $region45: #{double_conv.1} parent=39 // pred_check
          %p236 = pneg %p232
        $region46: #{double_conv.1} parent=39 // pred_check_branch
          %238 = sbr.rel (%p236) target = $region48
        $region47: #{double_conv.1} parent=39 // pred_region
          %s239 = sshll.u32 1, 240
          %s240 = ssub.s32 %s239, 1
          loop: start=0, step=1, limit=1
          $region49: #{double_conv.1} parent=47 // loop_pre_header
            _
          $region50: #{double_conv.1} parent=47 // loop_header
            %s242 = sphi 0, %s246
            %p243 = scmp.ge.s32.totalorder %s242, 1
            %s247 = sphi %s226, %s226
            %s248 = sphi %s229, %s229
          $region51: #{double_conv.1} parent=47 // loop_header_branch
            %245 = sbr.rel (%p243) target = $region55
          $region52: #{double_conv.1} parent=47 // loop_body
            %v249 = vld [vmem:[%s247] sm:%s240]
            %250 = vst [vmem:[%s248] sm:%s240] %v249
          $region53: #{double_conv.1} parent=47 // loop_footer
            %s246 = sadd.s32 1, %s242
          $region54: #{double_conv.1} parent=47 // loop_footer_branch
            %241 = sbr.rel target = $region50
          $region55: #{double_conv.1} parent=47 // loop_exit
            _
        $region48: #{double_conv.1} parent=39 // pred_fallthru
          _
        // Predicated region
        $region71: #{double_conv.1} parent=39 // pred_check
          _
        $region72: #{double_conv.1} parent=39 // pred_check_branch
          %330 = sbr.rel (0) target = $region74
        $region73: #{double_conv.1} parent=39 // pred_region
          %331 = vsyncadd %s230, 3840
        $region74: #{double_conv.1} parent=39 // pred_fallthru
          _
      $region40: #{double_conv.1} parent=35 // pred_fallthru
        _
      %s332 = sadd.s32 %s21, 1
      %p333 = scmp.lt.s32.totalorder %s332, 1
      // Predicated region
      $region75: #{double_conv.1} parent=35 // pred_check
        %p334 = pneg %p333
      $region76: #{double_conv.1} parent=35 // pred_check_branch
        %336 = sbr.rel (%p334) target = $region78
      $region77: #{double_conv.1} parent=35 // pred_region
        %s337 = ssub.s32 1, %s216
        %s338 = smul.u32 %s332, 16
        %s339 = smul.u32 %s338, 3
        %s340 = smul.u32 %s20, 60
        %s341 = sadd.s32 %s339, %s340
        %s342 = smul.addr %s341, 4
        %s343 = scalar_lea.vmem %s0, %s342
        %s344 = smul.u32 %s337, 60
        %s345 = smul.addr %s344, 4
        %s346 = scalar_lea.vmem [#allocation2], %s345
        %s347 = scalar_lea.sflag [#allocation4], %s337
        %p349 = scmp.lt.u32.totalorder 240, 8
        %p350 = pneg %p349
        // Predicated region
        $region79: #{double_conv.1} parent=77 // pred_check
          _
        $region80: #{double_conv.1} parent=77 // pred_check_branch
          %352 = sbr.rel (%p349) target = $region82
        $region81: #{double_conv.1} parent=77 // pred_region
          %s368 = sand.u32 240, 7
          %p369 = scmp.eq.s32.totalorder %s368, 0
          // Predicated region
          $region94: #{double_conv.1} parent=81 // pred_check
            %p370 = pneg %p369
          $region95: #{double_conv.1} parent=81 // pred_check_branch
            %372 = sbr.rel (%p370) target = $region97
          $region96: #{double_conv.1} parent=81 // pred_region
            loop: start=0, step=1, limit=1
            $region98: #{double_conv.1} parent=96 // loop_pre_header
              _
            $region99: #{double_conv.1} parent=96 // loop_header
              %s374 = sphi 0, %s378
              %p375 = scmp.ge.s32.totalorder %s374, 1
              %s379 = sphi %s343, %s343
              %s380 = sphi %s346, %s346
            $region100: #{double_conv.1} parent=96 // loop_header_branch
              %377 = sbr.rel (%p375) target = $region104
            $region101: #{double_conv.1} parent=96 // loop_body
              %v381 = vld [vmem:[%s379] sm:$0xff]
              %382 = vst [vmem:[%s380] sm:$0xff] %v381
              %v383 = vld [vmem:[%s379 + $0x8] sm:$0xff]
              %384 = vst [vmem:[%s380 + $0x8] sm:$0xff] %v383
              %v385 = vld [vmem:[%s379 + $0x10] sm:$0xff]
              %386 = vst [vmem:[%s380 + $0x10] sm:$0xff] %v385
              %v387 = vld [vmem:[%s379 + $0x18] sm:$0xff]
              %388 = vst [vmem:[%s380 + $0x18] sm:$0xff] %v387
              %v389 = vld [vmem:[%s379 + $0x20] sm:$0xff]
              %390 = vst [vmem:[%s380 + $0x20] sm:$0xff] %v389
              %v391 = vld [vmem:[%s379 + $0x28] sm:$0xff]
              %392 = vst [vmem:[%s380 + $0x28] sm:$0xff] %v391
              %v393 = vld [vmem:[%s379 + $0x30] sm:$0xff]
              %394 = vst [vmem:[%s380 + $0x30] sm:$0xff] %v393
              %v395 = vld [vmem:[%s379 + $0x38] sm:$0xff]
              %396 = vst [vmem:[%s380 + $0x38] sm:$0xff] %v395
              %v397 = vld [vmem:[%s379 + $0x40] sm:$0xff]
              %398 = vst [vmem:[%s380 + $0x40] sm:$0xff] %v397
              %v399 = vld [vmem:[%s379 + $0x48] sm:$0xff]
              %400 = vst [vmem:[%s380 + $0x48] sm:$0xff] %v399
              %v401 = vld [vmem:[%s379 + $0x50] sm:$0xff]
              %402 = vst [vmem:[%s380 + $0x50] sm:$0xff] %v401
              %v403 = vld [vmem:[%s379 + $0x58] sm:$0xff]
              %404 = vst [vmem:[%s380 + $0x58] sm:$0xff] %v403
              %v405 = vld [vmem:[%s379 + $0x60] sm:$0xff]
              %406 = vst [vmem:[%s380 + $0x60] sm:$0xff] %v405
              %v407 = vld [vmem:[%s379 + $0x68] sm:$0xff]
              %408 = vst [vmem:[%s380 + $0x68] sm:$0xff] %v407
              %v409 = vld [vmem:[%s379 + $0x70] sm:$0xff]
              %410 = vst [vmem:[%s380 + $0x70] sm:$0xff] %v409
              %v411 = vld [vmem:[%s379 + $0x78] sm:$0xff]
              %412 = vst [vmem:[%s380 + $0x78] sm:$0xff] %v411
              %v413 = vld [vmem:[%s379 + $0x80] sm:$0xff]
              %414 = vst [vmem:[%s380 + $0x80] sm:$0xff] %v413
              %v415 = vld [vmem:[%s379 + $0x88] sm:$0xff]
              %416 = vst [vmem:[%s380 + $0x88] sm:$0xff] %v415
              %v417 = vld [vmem:[%s379 + $0x90] sm:$0xff]
              %418 = vst [vmem:[%s380 + $0x90] sm:$0xff] %v417
              %v419 = vld [vmem:[%s379 + $0x98] sm:$0xff]
              %420 = vst [vmem:[%s380 + $0x98] sm:$0xff] %v419
              %v421 = vld [vmem:[%s379 + $0xa0] sm:$0xff]
              %422 = vst [vmem:[%s380 + $0xa0] sm:$0xff] %v421
              %v423 = vld [vmem:[%s379 + $0xa8] sm:$0xff]
              %424 = vst [vmem:[%s380 + $0xa8] sm:$0xff] %v423
              %v425 = vld [vmem:[%s379 + $0xb0] sm:$0xff]
              %426 = vst [vmem:[%s380 + $0xb0] sm:$0xff] %v425
              %v427 = vld [vmem:[%s379 + $0xb8] sm:$0xff]
              %428 = vst [vmem:[%s380 + $0xb8] sm:$0xff] %v427
              %v429 = vld [vmem:[%s379 + $0xc0] sm:$0xff]
              %430 = vst [vmem:[%s380 + $0xc0] sm:$0xff] %v429
              %v431 = vld [vmem:[%s379 + $0xc8] sm:$0xff]
              %432 = vst [vmem:[%s380 + $0xc8] sm:$0xff] %v431
              %v433 = vld [vmem:[%s379 + $0xd0] sm:$0xff]
              %434 = vst [vmem:[%s380 + $0xd0] sm:$0xff] %v433
              %v435 = vld [vmem:[%s379 + $0xd8] sm:$0xff]
              %436 = vst [vmem:[%s380 + $0xd8] sm:$0xff] %v435
              %v437 = vld [vmem:[%s379 + $0xe0] sm:$0xff]
              %438 = vst [vmem:[%s380 + $0xe0] sm:$0xff] %v437
              %v439 = vld [vmem:[%s379 + $0xe8] sm:$0xff]
              %440 = vst [vmem:[%s380 + $0xe8] sm:$0xff] %v439
            $region102: #{double_conv.1} parent=96 // loop_footer
              %s378 = sadd.s32 1, %s374
            $region103: #{double_conv.1} parent=96 // loop_footer_branch
              %373 = sbr.rel target = $region99
            $region104: #{double_conv.1} parent=96 // loop_exit
              _
          $region97: #{double_conv.1} parent=81 // pred_fallthru
            _
          %p441 = pneg %p369
          // Predicated region
          $region105: #{double_conv.1} parent=81 // pred_check
            _
          $region106: #{double_conv.1} parent=81 // pred_check_branch
            %443 = sbr.rel (%p369) target = $region108
          $region107: #{double_conv.1} parent=81 // pred_region
            %s444 = sand.u32 240, 7
          $region108: #{double_conv.1} parent=81 // pred_fallthru
            _
        $region82: #{double_conv.1} parent=77 // pred_fallthru
          _
        // Predicated region
        $region83: #{double_conv.1} parent=77 // pred_check
          %p353 = pneg %p349
        $region84: #{double_conv.1} parent=77 // pred_check_branch
          %355 = sbr.rel (%p353) target = $region86
        $region85: #{double_conv.1} parent=77 // pred_region
          %s356 = sshll.u32 1, 240
          %s357 = ssub.s32 %s356, 1
          loop: start=0, step=1, limit=1
          $region87: #{double_conv.1} parent=85 // loop_pre_header
            _
          $region88: #{double_conv.1} parent=85 // loop_header
            %s359 = sphi 0, %s363
            %p360 = scmp.ge.s32.totalorder %s359, 1
            %s364 = sphi %s343, %s343
            %s365 = sphi %s346, %s346
          $region89: #{double_conv.1} parent=85 // loop_header_branch
            %362 = sbr.rel (%p360) target = $region93
          $region90: #{double_conv.1} parent=85 // loop_body
            %v366 = vld [vmem:[%s364] sm:%s357]
            %367 = vst [vmem:[%s365] sm:%s357] %v366
          $region91: #{double_conv.1} parent=85 // loop_footer
            %s363 = sadd.s32 1, %s359
          $region92: #{double_conv.1} parent=85 // loop_footer_branch
            %358 = sbr.rel target = $region88
          $region93: #{double_conv.1} parent=85 // loop_exit
            _
        $region86: #{double_conv.1} parent=77 // pred_fallthru
          _
        // Predicated region
        $region109: #{double_conv.1} parent=77 // pred_check
          _
        $region110: #{double_conv.1} parent=77 // pred_check_branch
          %447 = sbr.rel (0) target = $region112
        $region111: #{double_conv.1} parent=77 // pred_region
          %448 = vsyncadd %s347, 3840
        $region112: #{double_conv.1} parent=77 // pred_fallthru
          _
      $region78: #{double_conv.1} parent=35 // pred_fallthru
        _
      %s449 = smul.u32 %s21, 16
      %s450 = smul.u32 %s216, 60
      %s451 = smul.addr %s450, 4
      %s452 = scalar_lea.vmem [#allocation2], %s451
      %s453 = scalar_lea.sflag [#allocation4], %s216
      %s454 = smul.u32 4, 20
      %s455 = smul.u32 %s454, 3
      %s456 = smul.u32 %s455, 1
      %s457 = sshll.u32 %s456, 4
      %458 = dma.done %s453, %s457
      %v459 = vld [vmem:[%s452] sm:$0xf]
      %v460 = vld [vmem:[%s452 + $0x4] sm:$0xf]
      %v461 = vld [vmem:[%s452 + $0x8] sm:$0xf]
      %v462 = vld [vmem:[%s452 + $0xc] sm:$0xf]
      %v463 = vld [vmem:[%s452 + $0x10] sm:$0xf]
      %v464 = vld [vmem:[%s452 + $0x14] sm:$0xf]
      %v465 = vld [vmem:[%s452 + $0x18] sm:$0xf]
      %v466 = vld [vmem:[%s452 + $0x1c] sm:$0xf]
      %v467 = vld [vmem:[%s452 + $0x20] sm:$0xf]
      %v468 = vld [vmem:[%s452 + $0x24] sm:$0xf]
      %v469 = vld [vmem:[%s452 + $0x28] sm:$0xf]
      %v470 = vld [vmem:[%s452 + $0x2c] sm:$0xf]
      %v471 = vld [vmem:[%s452 + $0x30] sm:$0xf]
      %v472 = vld [vmem:[%s452 + $0x34] sm:$0xf]
      %v473 = vld [vmem:[%s452 + $0x38] sm:$0xf]
      %v474 = vld [vmem:[%s452 + $0x3c] sm:$0xf]
      %v475 = vld [vmem:[%s452 + $0x40] sm:$0xf]
      %v476 = vld [vmem:[%s452 + $0x44] sm:$0xf]
      %v477 = vld [vmem:[%s452 + $0x48] sm:$0xf]
      %v478 = vld [vmem:[%s452 + $0x4c] sm:$0xf]
      %v479 = vld [vmem:[%s452 + $0x50] sm:$0xf]
      %v480 = vld [vmem:[%s452 + $0x54] sm:$0xf]
      %v481 = vld [vmem:[%s452 + $0x58] sm:$0xf]
      %v482 = vld [vmem:[%s452 + $0x5c] sm:$0xf]
      %v483 = vld [vmem:[%s452 + $0x60] sm:$0xf]
      %v484 = vld [vmem:[%s452 + $0x64] sm:$0xf]
      %v485 = vld [vmem:[%s452 + $0x68] sm:$0xf]
      %v486 = vld [vmem:[%s452 + $0x6c] sm:$0xf]
      %v487 = vld [vmem:[%s452 + $0x70] sm:$0xf]
      %v488 = vld [vmem:[%s452 + $0x74] sm:$0xf]
      %v489 = vld [vmem:[%s452 + $0x78] sm:$0xf]
      %v490 = vld [vmem:[%s452 + $0x7c] sm:$0xf]
      %v491 = vld [vmem:[%s452 + $0x80] sm:$0xf]
      %v492 = vld [vmem:[%s452 + $0x84] sm:$0xf]
      %v493 = vld [vmem:[%s452 + $0x88] sm:$0xf]
      %v494 = vld [vmem:[%s452 + $0x8c] sm:$0xf]
      %v495 = vld [vmem:[%s452 + $0x90] sm:$0xf]
      %v496 = vld [vmem:[%s452 + $0x94] sm:$0xf]
      %v497 = vld [vmem:[%s452 + $0x98] sm:$0xf]
      %v498 = vld [vmem:[%s452 + $0x9c] sm:$0xf]
      %v499 = vld [vmem:[%s452 + $0xa0] sm:$0xf]
      %v500 = vld [vmem:[%s452 + $0xa4] sm:$0xf]
      %v501 = vld [vmem:[%s452 + $0xa8] sm:$0xf]
      %v502 = vld [vmem:[%s452 + $0xac] sm:$0xf]
      %v503 = vld [vmem:[%s452 + $0xb0] sm:$0xf]
      %v504 = vld [vmem:[%s452 + $0xb4] sm:$0xf]
      %v505 = vld [vmem:[%s452 + $0xb8] sm:$0xf]
      %v506 = vld [vmem:[%s452 + $0xbc] sm:$0xf]
      %v507 = vld [vmem:[%s452 + $0xc0] sm:$0xf]
      %v508 = vld [vmem:[%s452 + $0xc4] sm:$0xf]
      %v509 = vld [vmem:[%s452 + $0xc8] sm:$0xf]
      %v510 = vld [vmem:[%s452 + $0xcc] sm:$0xf]
      %v511 = vld [vmem:[%s452 + $0xd0] sm:$0xf]
      %v512 = vld [vmem:[%s452 + $0xd4] sm:$0xf]
      %v513 = vld [vmem:[%s452 + $0xd8] sm:$0xf]
      %v514 = vld [vmem:[%s452 + $0xdc] sm:$0xf]
      %v515 = vld [vmem:[%s452 + $0xe0] sm:$0xf]
      %v516 = vld [vmem:[%s452 + $0xe4] sm:$0xf]
      %v517 = vld [vmem:[%s452 + $0xe8] sm:$0xf]
      %v518 = vld [vmem:[%s452 + $0xec] sm:$0xf]
      %s519 = scalar_lea.vmem %s1, 128
      %v520 = vld [vmem:[%s519] sm:$0xf]
      %v521 = vld [vmem:[%s519 + $0x4] sm:$0xf]
      %v522 = vld [vmem:[%s519 + $0x8] sm:$0xf]
      %v523 = vld [vmem:[%s519 + $0xc] sm:$0xf]
      %v524 = vld [vmem:[%s519 + $0x10] sm:$0xf]
      %v525 = vld [vmem:[%s519 + $0x14] sm:$0xf]
      %v526 = vld [vmem:[%s519 + $0x18] sm:$0xf]
      %v527 = vld [vmem:[%s519 + $0x1c] sm:$0xf]
      %v528 = vld [vmem:[%s519 + $0x20] sm:$0xf]
      %v529 = vld [vmem:[%s519 + $0x24] sm:$0xf]
      %v530 = vld [vmem:[%s519 + $0x28] sm:$0xf]
      %v531 = vld [vmem:[%s519 + $0x2c] sm:$0xf]
      %v532 = vld [vmem:[%s519 + $0x30] sm:$0xf]
      %v533 = vld [vmem:[%s519 + $0x34] sm:$0xf]
      %v534 = vld [vmem:[%s519 + $0x38] sm:$0xf]
      %v535 = vld [vmem:[%s519 + $0x3c] sm:$0xf]
      %s536 = scalar_lea.vmem %s1, 320
      %v537 = vld [vmem:[%s536] sm:$0xf]
      %v538 = vld [vmem:[%s536 + $0x4] sm:$0xf]
      %v539 = vld [vmem:[%s536 + $0x8] sm:$0xf]
      %v540 = vld [vmem:[%s536 + $0xc] sm:$0xf]
      %v541 = vld [vmem:[%s536 + $0x10] sm:$0xf]
      %v542 = vld [vmem:[%s536 + $0x14] sm:$0xf]
      %v543 = vld [vmem:[%s536 + $0x18] sm:$0xf]
      %v544 = vld [vmem:[%s536 + $0x1c] sm:$0xf]
      %v545 = vld [vmem:[%s536 + $0x20] sm:$0xf]
      %v546 = vld [vmem:[%s536 + $0x24] sm:$0xf]
      %v547 = vld [vmem:[%s536 + $0x28] sm:$0xf]
      %v548 = vld [vmem:[%s536 + $0x2c] sm:$0xf]
      %v549 = vld [vmem:[%s536 + $0x30] sm:$0xf]
      %v550 = vld [vmem:[%s536 + $0x34] sm:$0xf]
      %v551 = vld [vmem:[%s536 + $0x38] sm:$0xf]
      %v552 = vld [vmem:[%s536 + $0x3c] sm:$0xf]
      %v607 = vunpack.c.l.b16 %v462
      %v608 = vunpack.c.l.b16 %v463
      %v609 = vunpack.c.l.b16 %v464
      %v610 = vunpack.c.l.b16 %v465
      %v611 = vunpack.c.l.b16 %v466
      %v612 = vunpack.c.l.b16 %v467
      %v613 = vunpack.c.l.b16 %v468
      %v614 = vunpack.c.l.b16 %v469
      %v615 = vunpack.c.l.b16 %v470
      %v616 = vunpack.c.l.b16 %v471
      %v617 = vunpack.c.l.b16 %v472
      %v618 = vunpack.c.l.b16 %v473
      %v619 = vunpack.c.l.b16 %v474
      %v620 = vunpack.c.l.b16 %v475
      %v621 = vunpack.c.l.b16 %v476
      %v622 = vunpack.c.l.b16 %v477
      %v623 = vunpack.c.l.b16 %v478
      %v624 = vunpack.c.l.b16 %v479
      %v625 = vunpack.c.l.b16 %v480
      %v626 = vunpack.c.l.b16 %v481
      %v627 = vunpack.c.l.b16 %v482
      %v628 = vunpack.c.l.b16 %v483
      %v629 = vunpack.c.l.b16 %v484
      %v630 = vunpack.c.l.b16 %v485
      %v631 = vunpack.c.l.b16 %v486
      %v632 = vunpack.c.l.b16 %v487
      %v633 = vunpack.c.l.b16 %v488
      %v634 = vunpack.c.l.b16 %v489
      %v635 = vunpack.c.l.b16 %v490
      %v636 = vunpack.c.l.b16 %v491
      %v637 = vunpack.c.l.b16 %v492
      %v638 = vunpack.c.l.b16 %v493
      %v639 = vunpack.c.l.b16 %v494
      %v640 = vunpack.c.l.b16 %v495
      %v641 = vunpack.c.l.b16 %v496
      %v642 = vunpack.c.l.b16 %v497
      %v643 = vunpack.c.l.b16 %v498
      %v644 = vunpack.c.l.b16 %v499
      %v645 = vunpack.c.l.b16 %v500
      %v646 = vunpack.c.l.b16 %v501
      %v647 = vunpack.c.l.b16 %v502
      %v648 = vunpack.c.l.b16 %v503
      %v649 = vunpack.c.l.b16 %v504
      %v650 = vunpack.c.l.b16 %v505
      %v651 = vunpack.c.l.b16 %v506
      %v652 = vunpack.c.l.b16 %v507
      %v653 = vunpack.c.l.b16 %v508
      %v654 = vunpack.c.l.b16 %v509
      %v655 = vunpack.c.l.b16 %v510
      %v656 = vunpack.c.l.b16 %v511
      %v657 = vunpack.c.l.b16 %v512
      %v658 = vunpack.c.l.b16 %v513
      %v659 = vunpack.c.l.b16 %v514
      %v660 = vunpack.c.l.b16 %v515
      %v661 = vpack.c.b16 %v608, %v607
      %v662 = vpack.c.b16 %v610, %v609
      %v663 = vpack.c.b16 %v612, %v611
      %v664 = vpack.c.b16 %v614, %v613
      %v665 = vpack.c.b16 %v616, %v615
      %v666 = vpack.c.b16 %v618, %v617
      %v667 = vpack.c.b16 %v620, %v619
      %v668 = vpack.c.b16 %v622, %v621
      %v669 = vpack.c.b16 %v624, %v623
      %v670 = vpack.c.b16 %v626, %v625
      %v671 = vpack.c.b16 %v628, %v627
      %v672 = vpack.c.b16 %v630, %v629
      %v673 = vpack.c.b16 %v632, %v631
      %v674 = vpack.c.b16 %v634, %v633
      %v675 = vpack.c.b16 %v636, %v635
      %v676 = vpack.c.b16 %v638, %v637
      %v677 = vpack.c.b16 %v640, %v639
      %v678 = vpack.c.b16 %v642, %v641
      %v679 = vpack.c.b16 %v644, %v643
      %v680 = vpack.c.b16 %v646, %v645
      %v681 = vpack.c.b16 %v648, %v647
      %v682 = vpack.c.b16 %v650, %v649
      %v683 = vpack.c.b16 %v652, %v651
      %v684 = vpack.c.b16 %v654, %v653
      %v685 = vpack.c.b16 %v656, %v655
      %v686 = vpack.c.b16 %v658, %v657
      %v687 = vpack.c.b16 %v660, %v659
      %v731 = vunpack.c.l.b16 %v537
      %v732 = vunpack.c.l.b16 %v538
      %v733 = vunpack.c.l.b16 %v539
      %v734 = vunpack.c.l.b16 %v540
      %v735 = vunpack.c.l.b16 %v541
      %v736 = vunpack.c.l.b16 %v542
      %v737 = vunpack.c.l.b16 %v543
      %v738 = vunpack.c.l.b16 %v544
      %v739 = vunpack.c.l.b16 %v545
      %v740 = vunpack.c.l.b16 %v546
      %v741 = vunpack.c.l.b16 %v547
      %v742 = vunpack.c.l.b16 %v548
      %v743 = vunpack.c.l.b16 %v549
      %v744 = vunpack.c.l.b16 %v550
      %v745 = vunpack.c.l.b16 %v551
      %v746 = vunpack.c.l.b16 %v552
      %v747 = vpack.c.b16 %v732, %v731
      %v748 = vpack.c.b16 %v734, %v733
      %v749 = vpack.c.b16 %v736, %v735
      %v750 = vpack.c.b16 %v738, %v737
      %v751 = vpack.c.b16 %v740, %v739
      %v752 = vpack.c.b16 %v742, %v741
      %v753 = vpack.c.b16 %v744, %v743
      %v754 = vpack.c.b16 %v746, %v745
      %763 = vmatprep.subr.bf16.mxu0 0
      %764 = vmatpush1.bf16.msra.mxu0 %v754
      %765 = vmatprep.subr.bf16.mxu0 0
      %766 = vmatpush1.bf16.msra.mxu0 %v753
      %767 = vmatprep.subr.bf16.mxu0 0
      %768 = vmatpush1.bf16.msra.mxu0 %v752
      %769 = vmatprep.subr.bf16.mxu0 0
      %770 = vmatpush1.bf16.msra.mxu0 %v751
      %771 = vmatprep.subr.bf16.mxu0 0
      %772 = vmatpush1.bf16.msra.mxu0 %v750
      %773 = vmatprep.subr.bf16.mxu0 0
      %774 = vmatpush1.bf16.msra.mxu0 %v749
      %775 = vmatprep.subr.bf16.mxu0 0
      %776 = vmatpush1.bf16.msra.mxu0 %v748
      %777 = vmatprep.subr.bf16.mxu0 0
      %778 = vmatpush1.bf16.msra.mxu0 %v747
      %779 = vmatprep.subr.bf16.mxu0 0
      %780 = vmatpush2.bf16.msra.mxu0 0
      %781 = vmatprep.subr.bf16.mxu0 0
      %782 = vmatpush2.bf16.msra.mxu0 0
      %783 = vmatprep.subr.bf16.mxu0 0
      %784 = vmatpush2.bf16.msra.mxu0 0
      %785 = vmatprep.subr.bf16.mxu0 0
      %786 = vmatpush2.bf16.msra.mxu0 0
      %787 = vmatprep.subr.bf16.mxu0 0
      %788 = vmatpush2.bf16.msra.mxu0 0
      %789 = vmatprep.subr.bf16.mxu0 0
      %790 = vmatpush2.bf16.msra.mxu0 0
      %791 = vmatprep.subr.bf16.mxu0 0
      %792 = vmatpush2.bf16.msra.mxu0 0
      %793 = vmatprep.subr.bf16.mxu0 0
      %794 = vmatpush2.bf16.msra.mxu0 0
      %795 = vmatprep.mubr.bf16.mxu0 0
      %796 = vmatmul.mubr.bf16.gmra.mxu0 %v661
      %v797 = vpop.f32.mrf.mxu0
      %v798 = vadd.f32 0.0, %v797
      %v799 = vpop.f32.mrf.mxu0
      %v800 = vpop.f32.mrf.mxu0
      %v801 = vadd.f32 0.0, %v800
      %v802 = vpop.f32.mrf.mxu0
      %803 = vmatprep.mubr.bf16.mxu0 0
      %804 = vmatmul.mubr.bf16.gmra.mxu0 %v662
      %v805 = vpop.f32.mrf.mxu0
      %v806 = vadd.f32 0.0, %v805
      %v807 = vpop.f32.mrf.mxu0
      %v808 = vpop.f32.mrf.mxu0
      %v809 = vadd.f32 0.0, %v808
      %v810 = vpop.f32.mrf.mxu0
      %811 = vmatprep.mubr.bf16.mxu0 0
      %812 = vmatmul.mubr.bf16.gmra.mxu0 %v663
      %v813 = vpop.f32.mrf.mxu0
      %v814 = vadd.f32 0.0, %v813
      %v815 = vpop.f32.mrf.mxu0
      %v816 = vpop.f32.mrf.mxu0
      %v817 = vadd.f32 0.0, %v816
      %v818 = vpop.f32.mrf.mxu0
      %819 = vmatprep.mubr.bf16.mxu0 0
      %820 = vmatmul.mubr.bf16.gmra.mxu0 %v664
      %v821 = vpop.f32.mrf.mxu0
      %v822 = vadd.f32 0.0, %v821
      %v823 = vpop.f32.mrf.mxu0
      %v824 = vpop.f32.mrf.mxu0
      %v825 = vadd.f32 0.0, %v824
      %v826 = vpop.f32.mrf.mxu0
      %827 = vmatprep.mubr.bf16.mxu0 0
      %828 = vmatmul.mubr.bf16.gmra.mxu0 %v665
      %v829 = vpop.f32.mrf.mxu0
      %v830 = vadd.f32 0.0, %v829
      %v831 = vpop.f32.mrf.mxu0
      %v832 = vpop.f32.mrf.mxu0
      %v833 = vadd.f32 0.0, %v832
      %v834 = vpop.f32.mrf.mxu0
      %835 = vmatprep.mubr.bf16.mxu0 0
      %836 = vmatmul.mubr.bf16.gmra.mxu0 %v666
      %v837 = vpop.f32.mrf.mxu0
      %v838 = vadd.f32 0.0, %v837
      %v839 = vpop.f32.mrf.mxu0
      %v840 = vpop.f32.mrf.mxu0
      %v841 = vadd.f32 0.0, %v840
      %v842 = vpop.f32.mrf.mxu0
      %843 = vmatprep.mubr.bf16.mxu0 0
      %844 = vmatmul.mubr.bf16.gmra.mxu0 %v667
      %v845 = vpop.f32.mrf.mxu0
      %v846 = vadd.f32 0.0, %v845
      %v847 = vpop.f32.mrf.mxu0
      %v848 = vpop.f32.mrf.mxu0
      %v849 = vadd.f32 0.0, %v848
      %v850 = vpop.f32.mrf.mxu0
      %851 = vmatprep.mubr.bf16.mxu0 0
      %852 = vmatmul.mubr.bf16.gmra.mxu0 %v668
      %v853 = vpop.f32.mrf.mxu0
      %v854 = vadd.f32 0.0, %v853
      %v855 = vpop.f32.mrf.mxu0
      %v856 = vpop.f32.mrf.mxu0
      %v857 = vadd.f32 0.0, %v856
      %v858 = vpop.f32.mrf.mxu0
      %859 = vmatprep.mubr.bf16.mxu0 0
      %860 = vmatmul.mubr.bf16.gmra.mxu0 %v669
      %v861 = vpop.f32.mrf.mxu0
      %v862 = vadd.f32 0.0, %v861
      %v863 = vpop.f32.mrf.mxu0
      %v864 = vpop.f32.mrf.mxu0
      %v865 = vadd.f32 0.0, %v864
      %v866 = vpop.f32.mrf.mxu0
      %867 = vmatprep.mubr.bf16.mxu0 0
      %868 = vmatmul.mubr.bf16.gmra.mxu0 %v670
      %v869 = vpop.f32.mrf.mxu0
      %v870 = vadd.f32 0.0, %v869
      %v871 = vpop.f32.mrf.mxu0
      %v872 = vpop.f32.mrf.mxu0
      %v873 = vadd.f32 0.0, %v872
      %v874 = vpop.f32.mrf.mxu0
      %875 = vmatprep.mubr.bf16.mxu0 0
      %876 = vmatmul.mubr.bf16.gmra.mxu0 %v671
      %v877 = vpop.f32.mrf.mxu0
      %v878 = vadd.f32 0.0, %v877
      %v879 = vpop.f32.mrf.mxu0
      %v880 = vpop.f32.mrf.mxu0
      %v881 = vadd.f32 0.0, %v880
      %v882 = vpop.f32.mrf.mxu0
      %883 = vmatprep.mubr.bf16.mxu0 0
      %884 = vmatmul.mubr.bf16.gmra.mxu0 %v672
      %v885 = vpop.f32.mrf.mxu0
      %v886 = vadd.f32 0.0, %v885
      %v887 = vpop.f32.mrf.mxu0
      %v888 = vpop.f32.mrf.mxu0
      %v889 = vadd.f32 0.0, %v888
      %v890 = vpop.f32.mrf.mxu0
      %891 = vmatprep.mubr.bf16.mxu0 0
      %892 = vmatmul.mubr.bf16.gmra.mxu0 %v673
      %v893 = vpop.f32.mrf.mxu0
      %v894 = vadd.f32 0.0, %v893
      %v895 = vpop.f32.mrf.mxu0
      %v896 = vpop.f32.mrf.mxu0
      %v897 = vadd.f32 0.0, %v896
      %v898 = vpop.f32.mrf.mxu0
      %899 = vmatprep.mubr.bf16.mxu0 0
      %900 = vmatmul.mubr.bf16.gmra.mxu0 %v674
      %v901 = vpop.f32.mrf.mxu0
      %v902 = vadd.f32 0.0, %v901
      %v903 = vpop.f32.mrf.mxu0
      %v904 = vpop.f32.mrf.mxu0
      %v905 = vadd.f32 0.0, %v904
      %v906 = vpop.f32.mrf.mxu0
      %907 = vmatprep.mubr.bf16.mxu0 0
      %908 = vmatmul.mubr.bf16.gmra.mxu0 %v675
      %v909 = vpop.f32.mrf.mxu0
      %v910 = vadd.f32 0.0, %v909
      %v911 = vpop.f32.mrf.mxu0
      %v912 = vpop.f32.mrf.mxu0
      %v913 = vadd.f32 0.0, %v912
      %v914 = vpop.f32.mrf.mxu0
      %915 = vmatprep.mubr.bf16.mxu0 0
      %916 = vmatmul.mubr.bf16.gmra.mxu0 %v676
      %v917 = vpop.f32.mrf.mxu0
      %v918 = vadd.f32 0.0, %v917
      %v919 = vpop.f32.mrf.mxu0
      %v920 = vpop.f32.mrf.mxu0
      %v921 = vadd.f32 0.0, %v920
      %v922 = vpop.f32.mrf.mxu0
      %923 = vmatprep.mubr.bf16.mxu0 0
      %924 = vmatmul.mubr.bf16.gmra.mxu0 %v677
      %v925 = vpop.f32.mrf.mxu0
      %v926 = vadd.f32 0.0, %v925
      %v927 = vpop.f32.mrf.mxu0
      %v928 = vpop.f32.mrf.mxu0
      %v929 = vadd.f32 0.0, %v928
      %v930 = vpop.f32.mrf.mxu0
      %931 = vmatprep.mubr.bf16.mxu0 0
      %932 = vmatmul.mubr.bf16.gmra.mxu0 %v678
      %v933 = vpop.f32.mrf.mxu0
      %v934 = vadd.f32 0.0, %v933
      %v935 = vpop.f32.mrf.mxu0
      %v936 = vpop.f32.mrf.mxu0
      %v937 = vadd.f32 0.0, %v936
      %v938 = vpop.f32.mrf.mxu0
      %939 = vmatprep.mubr.bf16.mxu0 0
      %940 = vmatmul.mubr.bf16.gmra.mxu0 %v679
      %v941 = vpop.f32.mrf.mxu0
      %v942 = vadd.f32 0.0, %v941
      %v943 = vpop.f32.mrf.mxu0
      %v944 = vpop.f32.mrf.mxu0
      %v945 = vadd.f32 0.0, %v944
      %v946 = vpop.f32.mrf.mxu0
      %947 = vmatprep.mubr.bf16.mxu0 0
      %948 = vmatmul.mubr.bf16.gmra.mxu0 %v680
      %v949 = vpop.f32.mrf.mxu0
      %v950 = vadd.f32 0.0, %v949
      %v951 = vpop.f32.mrf.mxu0
      %v952 = vpop.f32.mrf.mxu0
      %v953 = vadd.f32 0.0, %v952
      %v954 = vpop.f32.mrf.mxu0
      %955 = vmatprep.mubr.bf16.mxu0 0
      %956 = vmatmul.mubr.bf16.gmra.mxu0 %v681
      %v957 = vpop.f32.mrf.mxu0
      %v958 = vadd.f32 0.0, %v957
      %v959 = vpop.f32.mrf.mxu0
      %v960 = vpop.f32.mrf.mxu0
      %v961 = vadd.f32 0.0, %v960
      %v962 = vpop.f32.mrf.mxu0
      %963 = vmatprep.mubr.bf16.mxu0 0
      %964 = vmatmul.mubr.bf16.gmra.mxu0 %v682
      %v965 = vpop.f32.mrf.mxu0
      %v966 = vadd.f32 0.0, %v965
      %v967 = vpop.f32.mrf.mxu0
      %v968 = vpop.f32.mrf.mxu0
      %v969 = vadd.f32 0.0, %v968
      %v970 = vpop.f32.mrf.mxu0
      %971 = vmatprep.mubr.bf16.mxu0 0
      %972 = vmatmul.mubr.bf16.gmra.mxu0 %v683
      %v973 = vpop.f32.mrf.mxu0
      %v974 = vadd.f32 0.0, %v973
      %v975 = vpop.f32.mrf.mxu0
      %v976 = vpop.f32.mrf.mxu0
      %v977 = vadd.f32 0.0, %v976
      %v978 = vpop.f32.mrf.mxu0
      %979 = vmatprep.mubr.bf16.mxu0 0
      %980 = vmatmul.mubr.bf16.gmra.mxu0 %v684
      %v981 = vpop.f32.mrf.mxu0
      %v982 = vadd.f32 0.0, %v981
      %v983 = vpop.f32.mrf.mxu0
      %v984 = vpop.f32.mrf.mxu0
      %v985 = vadd.f32 0.0, %v984
      %v986 = vpop.f32.mrf.mxu0
      %987 = vmatprep.mubr.bf16.mxu0 0
      %988 = vmatmul.mubr.bf16.gmra.mxu0 %v685
      %v989 = vpop.f32.mrf.mxu0
      %v990 = vadd.f32 0.0, %v989
      %v991 = vpop.f32.mrf.mxu0
      %v992 = vpop.f32.mrf.mxu0
      %v993 = vadd.f32 0.0, %v992
      %v994 = vpop.f32.mrf.mxu0
      %995 = vmatprep.mubr.bf16.mxu0 0
      %996 = vmatmul.mubr.bf16.gmra.mxu0 %v686
      %v997 = vpop.f32.mrf.mxu0
      %v998 = vadd.f32 0.0, %v997
      %v999 = vpop.f32.mrf.mxu0
      %v1000 = vpop.f32.mrf.mxu0
      %v1001 = vadd.f32 0.0, %v1000
      %v1002 = vpop.f32.mrf.mxu0
      %1003 = vmatprep.mubr.bf16.mxu0 0
      %1004 = vmatmul.mubr.bf16.gmra.mxu0 %v687
      %v1005 = vpop.f32.mrf.mxu0
      %v1006 = vadd.f32 0.0, %v1005
      %v1007 = vpop.f32.mrf.mxu0
      %v1008 = vpop.f32.mrf.mxu0
      %v1009 = vadd.f32 0.0, %v1008
      %v1010 = vpop.f32.mrf.mxu0
      %1011 = vdwg.mxu0
      %v1015 = vunpack.c.l.b16 %v459
      %v1016 = vunpack.c.l.b16 %v460
      %v1017 = vunpack.c.l.b16 %v461
      %v1018 = vpack.c.b16 %v1016, %v1015
      %v1019 = vpack.c.b16 %v607, %v1017
      %v1020 = vpack.c.b16 %v609, %v608
      %v1021 = vpack.c.b16 %v611, %v610
      %v1022 = vpack.c.b16 %v613, %v612
      %v1023 = vpack.c.b16 %v615, %v614
      %v1024 = vpack.c.b16 %v617, %v616
      %v1025 = vpack.c.b16 %v619, %v618
      %v1026 = vpack.c.b16 %v621, %v620
      %v1027 = vpack.c.b16 %v623, %v622
      %v1028 = vpack.c.b16 %v625, %v624
      %v1029 = vpack.c.b16 %v627, %v626
      %v1030 = vpack.c.b16 %v629, %v628
      %v1031 = vpack.c.b16 %v631, %v630
      %v1032 = vpack.c.b16 %v633, %v632
      %v1033 = vpack.c.b16 %v635, %v634
      %v1034 = vpack.c.b16 %v637, %v636
      %v1035 = vpack.c.b16 %v639, %v638
      %v1036 = vpack.c.b16 %v641, %v640
      %v1037 = vpack.c.b16 %v643, %v642
      %v1038 = vpack.c.b16 %v645, %v644
      %v1039 = vpack.c.b16 %v647, %v646
      %v1040 = vpack.c.b16 %v649, %v648
      %v1041 = vpack.c.b16 %v651, %v650
      %v1042 = vpack.c.b16 %v653, %v652
      %v1043 = vpack.c.b16 %v655, %v654
      %v1044 = vpack.c.b16 %v657, %v656
      %v1088 = vunpack.c.l.b16 %v520
      %v1089 = vunpack.c.l.b16 %v521
      %v1090 = vunpack.c.l.b16 %v522
      %v1091 = vunpack.c.l.b16 %v523
      %v1092 = vunpack.c.l.b16 %v524
      %v1093 = vunpack.c.l.b16 %v525
      %v1094 = vunpack.c.l.b16 %v526
      %v1095 = vunpack.c.l.b16 %v527
      %v1096 = vunpack.c.l.b16 %v528
      %v1097 = vunpack.c.l.b16 %v529
      %v1098 = vunpack.c.l.b16 %v530
      %v1099 = vunpack.c.l.b16 %v531
      %v1100 = vunpack.c.l.b16 %v532
      %v1101 = vunpack.c.l.b16 %v533
      %v1102 = vunpack.c.l.b16 %v534
      %v1103 = vunpack.c.l.b16 %v535
      %v1104 = vpack.c.b16 %v1089, %v1088
      %v1105 = vpack.c.b16 %v1091, %v1090
      %v1106 = vpack.c.b16 %v1093, %v1092
      %v1107 = vpack.c.b16 %v1095, %v1094
      %v1108 = vpack.c.b16 %v1097, %v1096
      %v1109 = vpack.c.b16 %v1099, %v1098
      %v1110 = vpack.c.b16 %v1101, %v1100
      %v1111 = vpack.c.b16 %v1103, %v1102
      %1120 = vmatprep.subr.bf16.mxu0 0
      %1121 = vmatpush1.bf16.msra.mxu0 %v1111
      %1122 = vmatprep.subr.bf16.mxu0 0
      %1123 = vmatpush1.bf16.msra.mxu0 %v1110
      %1124 = vmatprep.subr.bf16.mxu0 0
      %1125 = vmatpush1.bf16.msra.mxu0 %v1109
      %1126 = vmatprep.subr.bf16.mxu0 0
      %1127 = vmatpush1.bf16.msra.mxu0 %v1108
      %1128 = vmatprep.subr.bf16.mxu0 0
      %1129 = vmatpush1.bf16.msra.mxu0 %v1107
      %1130 = vmatprep.subr.bf16.mxu0 0
      %1131 = vmatpush1.bf16.msra.mxu0 %v1106
      %1132 = vmatprep.subr.bf16.mxu0 0
      %1133 = vmatpush1.bf16.msra.mxu0 %v1105
      %1134 = vmatprep.subr.bf16.mxu0 0
      %1135 = vmatpush1.bf16.msra.mxu0 %v1104
      %1136 = vmatprep.subr.bf16.mxu0 0
      %1137 = vmatpush2.bf16.msra.mxu0 0
      %1138 = vmatprep.subr.bf16.mxu0 0
      %1139 = vmatpush2.bf16.msra.mxu0 0
      %1140 = vmatprep.subr.bf16.mxu0 0
      %1141 = vmatpush2.bf16.msra.mxu0 0
      %1142 = vmatprep.subr.bf16.mxu0 0
      %1143 = vmatpush2.bf16.msra.mxu0 0
      %1144 = vmatprep.subr.bf16.mxu0 0
      %1145 = vmatpush2.bf16.msra.mxu0 0
      %1146 = vmatprep.subr.bf16.mxu0 0
      %1147 = vmatpush2.bf16.msra.mxu0 0
      %1148 = vmatprep.subr.bf16.mxu0 0
      %1149 = vmatpush2.bf16.msra.mxu0 0
      %1150 = vmatprep.subr.bf16.mxu0 0
      %1151 = vmatpush2.bf16.msra.mxu0 0
      %1152 = vmatprep.mubr.bf16.mxu0 0
      %1153 = vmatmul.mubr.bf16.gmra.mxu0 %v1018
      %v1154 = vpop.f32.mrf.mxu0
      %v1155 = vadd.f32 %v798, %v1154
      %v1156 = vpop.f32.mrf.mxu0
      %v1157 = vpop.f32.mrf.mxu0
      %v1158 = vadd.f32 %v801, %v1157
      %v1159 = vpop.f32.mrf.mxu0
      %1160 = vmatprep.mubr.bf16.mxu0 0
      %1161 = vmatmul.mubr.bf16.gmra.mxu0 %v1019
      %v1162 = vpop.f32.mrf.mxu0
      %v1163 = vadd.f32 %v806, %v1162
      %v1164 = vpop.f32.mrf.mxu0
      %v1165 = vpop.f32.mrf.mxu0
      %v1166 = vadd.f32 %v809, %v1165
      %v1167 = vpop.f32.mrf.mxu0
      %1168 = vmatprep.mubr.bf16.mxu0 0
      %1169 = vmatmul.mubr.bf16.gmra.mxu0 %v1020
      %v1170 = vpop.f32.mrf.mxu0
      %v1171 = vadd.f32 %v814, %v1170
      %v1172 = vpop.f32.mrf.mxu0
      %v1173 = vpop.f32.mrf.mxu0
      %v1174 = vadd.f32 %v817, %v1173
      %v1175 = vpop.f32.mrf.mxu0
      %1176 = vmatprep.mubr.bf16.mxu0 0
      %1177 = vmatmul.mubr.bf16.gmra.mxu0 %v1021
      %v1178 = vpop.f32.mrf.mxu0
      %v1179 = vadd.f32 %v822, %v1178
      %v1180 = vpop.f32.mrf.mxu0
      %v1181 = vpop.f32.mrf.mxu0
      %v1182 = vadd.f32 %v825, %v1181
      %v1183 = vpop.f32.mrf.mxu0
      %1184 = vmatprep.mubr.bf16.mxu0 0
      %1185 = vmatmul.mubr.bf16.gmra.mxu0 %v1022
      %v1186 = vpop.f32.mrf.mxu0
      %v1187 = vadd.f32 %v830, %v1186
      %v1188 = vpop.f32.mrf.mxu0
      %v1189 = vpop.f32.mrf.mxu0
      %v1190 = vadd.f32 %v833, %v1189
      %v1191 = vpop.f32.mrf.mxu0
      %1192 = vmatprep.mubr.bf16.mxu0 0
      %1193 = vmatmul.mubr.bf16.gmra.mxu0 %v1023
      %v1194 = vpop.f32.mrf.mxu0
      %v1195 = vadd.f32 %v838, %v1194
      %v1196 = vpop.f32.mrf.mxu0
      %v1197 = vpop.f32.mrf.mxu0
      %v1198 = vadd.f32 %v841, %v1197
      %v1199 = vpop.f32.mrf.mxu0
      %1200 = vmatprep.mubr.bf16.mxu0 0
      %1201 = vmatmul.mubr.bf16.gmra.mxu0 %v1024
      %v1202 = vpop.f32.mrf.mxu0
      %v1203 = vadd.f32 %v846, %v1202
      %v1204 = vpop.f32.mrf.mxu0
      %v1205 = vpop.f32.mrf.mxu0
      %v1206 = vadd.f32 %v849, %v1205
      %v1207 = vpop.f32.mrf.mxu0
      %1208 = vmatprep.mubr.bf16.mxu0 0
      %1209 = vmatmul.mubr.bf16.gmra.mxu0 %v1025
      %v1210 = vpop.f32.mrf.mxu0
      %v1211 = vadd.f32 %v854, %v1210
      %v1212 = vpop.f32.mrf.mxu0
      %v1213 = vpop.f32.mrf.mxu0
      %v1214 = vadd.f32 %v857, %v1213
      %v1215 = vpop.f32.mrf.mxu0
      %1216 = vmatprep.mubr.bf16.mxu0 0
      %1217 = vmatmul.mubr.bf16.gmra.mxu0 %v1026
      %v1218 = vpop.f32.mrf.mxu0
      %v1219 = vadd.f32 %v862, %v1218
      %v1220 = vpop.f32.mrf.mxu0
      %v1221 = vpop.f32.mrf.mxu0
      %v1222 = vadd.f32 %v865, %v1221
      %v1223 = vpop.f32.mrf.mxu0
      %1224 = vmatprep.mubr.bf16.mxu0 0
      %1225 = vmatmul.mubr.bf16.gmra.mxu0 %v1027
      %v1226 = vpop.f32.mrf.mxu0
      %v1227 = vadd.f32 %v870, %v1226
      %v1228 = vpop.f32.mrf.mxu0
      %v1229 = vpop.f32.mrf.mxu0
      %v1230 = vadd.f32 %v873, %v1229
      %v1231 = vpop.f32.mrf.mxu0
      %1232 = vmatprep.mubr.bf16.mxu0 0
      %1233 = vmatmul.mubr.bf16.gmra.mxu0 %v1028
      %v1234 = vpop.f32.mrf.mxu0
      %v1235 = vadd.f32 %v878, %v1234
      %v1236 = vpop.f32.mrf.mxu0
      %v1237 = vpop.f32.mrf.mxu0
      %v1238 = vadd.f32 %v881, %v1237
      %v1239 = vpop.f32.mrf.mxu0
      %1240 = vmatprep.mubr.bf16.mxu0 0
      %1241 = vmatmul.mubr.bf16.gmra.mxu0 %v1029
      %v1242 = vpop.f32.mrf.mxu0
      %v1243 = vadd.f32 %v886, %v1242
      %v1244 = vpop.f32.mrf.mxu0
      %v1245 = vpop.f32.mrf.mxu0
      %v1246 = vadd.f32 %v889, %v1245
      %v1247 = vpop.f32.mrf.mxu0
      %1248 = vmatprep.mubr.bf16.mxu0 0
      %1249 = vmatmul.mubr.bf16.gmra.mxu0 %v1030
      %v1250 = vpop.f32.mrf.mxu0
      %v1251 = vadd.f32 %v894, %v1250
      %v1252 = vpop.f32.mrf.mxu0
      %v1253 = vpop.f32.mrf.mxu0
      %v1254 = vadd.f32 %v897, %v1253
      %v1255 = vpop.f32.mrf.mxu0
      %1256 = vmatprep.mubr.bf16.mxu0 0
      %1257 = vmatmul.mubr.bf16.gmra.mxu0 %v1031
      %v1258 = vpop.f32.mrf.mxu0
      %v1259 = vadd.f32 %v902, %v1258
      %v1260 = vpop.f32.mrf.mxu0
      %v1261 = vpop.f32.mrf.mxu0
      %v1262 = vadd.f32 %v905, %v1261
      %v1263 = vpop.f32.mrf.mxu0
      %1264 = vmatprep.mubr.bf16.mxu0 0
      %1265 = vmatmul.mubr.bf16.gmra.mxu0 %v1032
      %v1266 = vpop.f32.mrf.mxu0
      %v1267 = vadd.f32 %v910, %v1266
      %v1268 = vpop.f32.mrf.mxu0
      %v1269 = vpop.f32.mrf.mxu0
      %v1270 = vadd.f32 %v913, %v1269
      %v1271 = vpop.f32.mrf.mxu0
      %1272 = vmatprep.mubr.bf16.mxu0 0
      %1273 = vmatmul.mubr.bf16.gmra.mxu0 %v1033
      %v1274 = vpop.f32.mrf.mxu0
      %v1275 = vadd.f32 %v918, %v1274
      %v1276 = vpop.f32.mrf.mxu0
      %v1277 = vpop.f32.mrf.mxu0
      %v1278 = vadd.f32 %v921, %v1277
      %v1279 = vpop.f32.mrf.mxu0
      %1280 = vmatprep.mubr.bf16.mxu0 0
      %1281 = vmatmul.mubr.bf16.gmra.mxu0 %v1034
      %v1282 = vpop.f32.mrf.mxu0
      %v1283 = vadd.f32 %v926, %v1282
      %v1284 = vpop.f32.mrf.mxu0
      %v1285 = vpop.f32.mrf.mxu0
      %v1286 = vadd.f32 %v929, %v1285
      %v1287 = vpop.f32.mrf.mxu0
      %1288 = vmatprep.mubr.bf16.mxu0 0
      %1289 = vmatmul.mubr.bf16.gmra.mxu0 %v1035
      %v1290 = vpop.f32.mrf.mxu0
      %v1291 = vadd.f32 %v934, %v1290
      %v1292 = vpop.f32.mrf.mxu0
      %v1293 = vpop.f32.mrf.mxu0
      %v1294 = vadd.f32 %v937, %v1293
      %v1295 = vpop.f32.mrf.mxu0
      %1296 = vmatprep.mubr.bf16.mxu0 0
      %1297 = vmatmul.mubr.bf16.gmra.mxu0 %v1036
      %v1298 = vpop.f32.mrf.mxu0
      %v1299 = vadd.f32 %v942, %v1298
      %v1300 = vpop.f32.mrf.mxu0
      %v1301 = vpop.f32.mrf.mxu0
      %v1302 = vadd.f32 %v945, %v1301
      %v1303 = vpop.f32.mrf.mxu0
      %1304 = vmatprep.mubr.bf16.mxu0 0
      %1305 = vmatmul.mubr.bf16.gmra.mxu0 %v1037
      %v1306 = vpop.f32.mrf.mxu0
      %v1307 = vadd.f32 %v950, %v1306
      %v1308 = vpop.f32.mrf.mxu0
      %v1309 = vpop.f32.mrf.mxu0
      %v1310 = vadd.f32 %v953, %v1309
      %v1311 = vpop.f32.mrf.mxu0
      %1312 = vmatprep.mubr.bf16.mxu0 0
      %1313 = vmatmul.mubr.bf16.gmra.mxu0 %v1038
      %v1314 = vpop.f32.mrf.mxu0
      %v1315 = vadd.f32 %v958, %v1314
      %v1316 = vpop.f32.mrf.mxu0
      %v1317 = vpop.f32.mrf.mxu0
      %v1318 = vadd.f32 %v961, %v1317
      %v1319 = vpop.f32.mrf.mxu0
      %1320 = vmatprep.mubr.bf16.mxu0 0
      %1321 = vmatmul.mubr.bf16.gmra.mxu0 %v1039
      %v1322 = vpop.f32.mrf.mxu0
      %v1323 = vadd.f32 %v966, %v1322
      %v1324 = vpop.f32.mrf.mxu0
      %v1325 = vpop.f32.mrf.mxu0
      %v1326 = vadd.f32 %v969, %v1325
      %v1327 = vpop.f32.mrf.mxu0
      %1328 = vmatprep.mubr.bf16.mxu0 0
      %1329 = vmatmul.mubr.bf16.gmra.mxu0 %v1040
      %v1330 = vpop.f32.mrf.mxu0
      %v1331 = vadd.f32 %v974, %v1330
      %v1332 = vpop.f32.mrf.mxu0
      %v1333 = vpop.f32.mrf.mxu0
      %v1334 = vadd.f32 %v977, %v1333
      %v1335 = vpop.f32.mrf.mxu0
      %1336 = vmatprep.mubr.bf16.mxu0 0
      %1337 = vmatmul.mubr.bf16.gmra.mxu0 %v1041
      %v1338 = vpop.f32.mrf.mxu0
      %v1339 = vadd.f32 %v982, %v1338
      %v1340 = vpop.f32.mrf.mxu0
      %v1341 = vpop.f32.mrf.mxu0
      %v1342 = vadd.f32 %v985, %v1341
      %v1343 = vpop.f32.mrf.mxu0
      %1344 = vmatprep.mubr.bf16.mxu0 0
      %1345 = vmatmul.mubr.bf16.gmra.mxu0 %v1042
      %v1346 = vpop.f32.mrf.mxu0
      %v1347 = vadd.f32 %v990, %v1346
      %v1348 = vpop.f32.mrf.mxu0
      %v1349 = vpop.f32.mrf.mxu0
      %v1350 = vadd.f32 %v993, %v1349
      %v1351 = vpop.f32.mrf.mxu0
      %1352 = vmatprep.mubr.bf16.mxu0 0
      %1353 = vmatmul.mubr.bf16.gmra.mxu0 %v1043
      %v1354 = vpop.f32.mrf.mxu0
      %v1355 = vadd.f32 %v998, %v1354
      %v1356 = vpop.f32.mrf.mxu0
      %v1357 = vpop.f32.mrf.mxu0
      %v1358 = vadd.f32 %v1001, %v1357
      %v1359 = vpop.f32.mrf.mxu0
      %1360 = vmatprep.mubr.bf16.mxu0 0
      %1361 = vmatmul.mubr.bf16.gmra.mxu0 %v1044
      %v1362 = vpop.f32.mrf.mxu0
      %v1363 = vadd.f32 %v1006, %v1362
      %v1364 = vpop.f32.mrf.mxu0
      %v1365 = vpop.f32.mrf.mxu0
      %v1366 = vadd.f32 %v1009, %v1365
      %v1367 = vpop.f32.mrf.mxu0
      %1368 = vdwg.mxu0
      %s1369 = scalar_lea.vmem %s1, 512
      %v1370 = vld [vmem:[%s1369] sm:$0xf]
      %v1371 = vld [vmem:[%s1369 + $0x4] sm:$0xf]
      %v1372 = vld [vmem:[%s1369 + $0x8] sm:$0xf]
      %v1373 = vld [vmem:[%s1369 + $0xc] sm:$0xf]
      %v1374 = vld [vmem:[%s1369 + $0x10] sm:$0xf]
      %v1375 = vld [vmem:[%s1369 + $0x14] sm:$0xf]
      %v1376 = vld [vmem:[%s1369 + $0x18] sm:$0xf]
      %v1377 = vld [vmem:[%s1369 + $0x1c] sm:$0xf]
      %v1378 = vld [vmem:[%s1369 + $0x20] sm:$0xf]
      %v1379 = vld [vmem:[%s1369 + $0x24] sm:$0xf]
      %v1380 = vld [vmem:[%s1369 + $0x28] sm:$0xf]
      %v1381 = vld [vmem:[%s1369 + $0x2c] sm:$0xf]
      %v1382 = vld [vmem:[%s1369 + $0x30] sm:$0xf]
      %v1383 = vld [vmem:[%s1369 + $0x34] sm:$0xf]
      %v1384 = vld [vmem:[%s1369 + $0x38] sm:$0xf]
      %v1385 = vld [vmem:[%s1369 + $0x3c] sm:$0xf]
      %v1389 = vunpack.c.l.b16 %v516
      %v1390 = vunpack.c.l.b16 %v517
      %v1391 = vunpack.c.l.b16 %v518
      %v1392 = vpack.c.b16 %v659, %v658
      %v1393 = vpack.c.b16 %v1389, %v660
      %v1394 = vpack.c.b16 %v1391, %v1390
      %v1414 = vunpack.c.l.b16 %v1370
      %v1415 = vunpack.c.l.b16 %v1371
      %v1416 = vunpack.c.l.b16 %v1372
      %v1417 = vunpack.c.l.b16 %v1373
      %v1418 = vunpack.c.l.b16 %v1374
      %v1419 = vunpack.c.l.b16 %v1375
      %v1420 = vunpack.c.l.b16 %v1376
      %v1421 = vunpack.c.l.b16 %v1377
      %v1422 = vunpack.c.l.b16 %v1378
      %v1423 = vunpack.c.l.b16 %v1379
      %v1424 = vunpack.c.l.b16 %v1380
      %v1425 = vunpack.c.l.b16 %v1381
      %v1426 = vunpack.c.l.b16 %v1382
      %v1427 = vunpack.c.l.b16 %v1383
      %v1428 = vunpack.c.l.b16 %v1384
      %v1429 = vunpack.c.l.b16 %v1385
      %v1430 = vpack.c.b16 %v1415, %v1414
      %v1431 = vpack.c.b16 %v1417, %v1416
      %v1432 = vpack.c.b16 %v1419, %v1418
      %v1433 = vpack.c.b16 %v1421, %v1420
      %v1434 = vpack.c.b16 %v1423, %v1422
      %v1435 = vpack.c.b16 %v1425, %v1424
      %v1436 = vpack.c.b16 %v1427, %v1426
      %v1437 = vpack.c.b16 %v1429, %v1428
      %1446 = vmatprep.subr.bf16.mxu0 0
      %1447 = vmatpush1.bf16.msra.mxu0 %v1437
      %1448 = vmatprep.subr.bf16.mxu0 0
      %1449 = vmatpush1.bf16.msra.mxu0 %v1436
      %1450 = vmatprep.subr.bf16.mxu0 0
      %1451 = vmatpush1.bf16.msra.mxu0 %v1435
      %1452 = vmatprep.subr.bf16.mxu0 0
      %1453 = vmatpush1.bf16.msra.mxu0 %v1434
      %1454 = vmatprep.subr.bf16.mxu0 0
      %1455 = vmatpush1.bf16.msra.mxu0 %v1433
      %1456 = vmatprep.subr.bf16.mxu0 0
      %1457 = vmatpush1.bf16.msra.mxu0 %v1432
      %1458 = vmatprep.subr.bf16.mxu0 0
      %1459 = vmatpush1.bf16.msra.mxu0 %v1431
      %1460 = vmatprep.subr.bf16.mxu0 0
      %1461 = vmatpush1.bf16.msra.mxu0 %v1430
      %1462 = vmatprep.subr.bf16.mxu0 0
      %1463 = vmatpush2.bf16.msra.mxu0 0
      %1464 = vmatprep.subr.bf16.mxu0 0
      %1465 = vmatpush2.bf16.msra.mxu0 0
      %1466 = vmatprep.subr.bf16.mxu0 0
      %1467 = vmatpush2.bf16.msra.mxu0 0
      %1468 = vmatprep.subr.bf16.mxu0 0
      %1469 = vmatpush2.bf16.msra.mxu0 0
      %1470 = vmatprep.subr.bf16.mxu0 0
      %1471 = vmatpush2.bf16.msra.mxu0 0
      %1472 = vmatprep.subr.bf16.mxu0 0
      %1473 = vmatpush2.bf16.msra.mxu0 0
      %1474 = vmatprep.subr.bf16.mxu0 0
      %1475 = vmatpush2.bf16.msra.mxu0 0
      %1476 = vmatprep.subr.bf16.mxu0 0
      %1477 = vmatpush2.bf16.msra.mxu0 0
      %1478 = vmatprep.mubr.bf16.mxu0 0
      %1479 = vmatmul.mubr.bf16.gmra.mxu0 %v1021
      %v1480 = vpop.f32.mrf.mxu0
      %v1481 = vadd.f32 0.0, %v1480
      %v1482 = vpop.f32.mrf.mxu0
      %v1483 = vpop.f32.mrf.mxu0
      %v1484 = vadd.f32 0.0, %v1483
      %v1485 = vpop.f32.mrf.mxu0
      %1486 = vmatprep.mubr.bf16.mxu0 0
      %1487 = vmatmul.mubr.bf16.gmra.mxu0 %v1022
      %v1488 = vpop.f32.mrf.mxu0
      %v1489 = vadd.f32 0.0, %v1488
      %v1490 = vpop.f32.mrf.mxu0
      %v1491 = vpop.f32.mrf.mxu0
      %v1492 = vadd.f32 0.0, %v1491
      %v1493 = vpop.f32.mrf.mxu0
      %1494 = vmatprep.mubr.bf16.mxu0 0
      %1495 = vmatmul.mubr.bf16.gmra.mxu0 %v1023
      %v1496 = vpop.f32.mrf.mxu0
      %v1497 = vadd.f32 0.0, %v1496
      %v1498 = vpop.f32.mrf.mxu0
      %v1499 = vpop.f32.mrf.mxu0
      %v1500 = vadd.f32 0.0, %v1499
      %v1501 = vpop.f32.mrf.mxu0
      %1502 = vmatprep.mubr.bf16.mxu0 0
      %1503 = vmatmul.mubr.bf16.gmra.mxu0 %v1024
      %v1504 = vpop.f32.mrf.mxu0
      %v1505 = vadd.f32 0.0, %v1504
      %v1506 = vpop.f32.mrf.mxu0
      %v1507 = vpop.f32.mrf.mxu0
      %v1508 = vadd.f32 0.0, %v1507
      %v1509 = vpop.f32.mrf.mxu0
      %1510 = vmatprep.mubr.bf16.mxu0 0
      %1511 = vmatmul.mubr.bf16.gmra.mxu0 %v1025
      %v1512 = vpop.f32.mrf.mxu0
      %v1513 = vadd.f32 0.0, %v1512
      %v1514 = vpop.f32.mrf.mxu0
      %v1515 = vpop.f32.mrf.mxu0
      %v1516 = vadd.f32 0.0, %v1515
      %v1517 = vpop.f32.mrf.mxu0
      %1518 = vmatprep.mubr.bf16.mxu0 0
      %1519 = vmatmul.mubr.bf16.gmra.mxu0 %v1026
      %v1520 = vpop.f32.mrf.mxu0
      %v1521 = vadd.f32 0.0, %v1520
      %v1522 = vpop.f32.mrf.mxu0
      %v1523 = vpop.f32.mrf.mxu0
      %v1524 = vadd.f32 0.0, %v1523
      %v1525 = vpop.f32.mrf.mxu0
      %1526 = vmatprep.mubr.bf16.mxu0 0
      %1527 = vmatmul.mubr.bf16.gmra.mxu0 %v1027
      %v1528 = vpop.f32.mrf.mxu0
      %v1529 = vadd.f32 0.0, %v1528
      %v1530 = vpop.f32.mrf.mxu0
      %v1531 = vpop.f32.mrf.mxu0
      %v1532 = vadd.f32 0.0, %v1531
      %v1533 = vpop.f32.mrf.mxu0
      %1534 = vmatprep.mubr.bf16.mxu0 0
      %1535 = vmatmul.mubr.bf16.gmra.mxu0 %v1028
      %v1536 = vpop.f32.mrf.mxu0
      %v1537 = vadd.f32 0.0, %v1536
      %v1538 = vpop.f32.mrf.mxu0
      %v1539 = vpop.f32.mrf.mxu0
      %v1540 = vadd.f32 0.0, %v1539
      %v1541 = vpop.f32.mrf.mxu0
      %1542 = vmatprep.mubr.bf16.mxu0 0
      %1543 = vmatmul.mubr.bf16.gmra.mxu0 %v1029
      %v1544 = vpop.f32.mrf.mxu0
      %v1545 = vadd.f32 0.0, %v1544
      %v1546 = vpop.f32.mrf.mxu0
      %v1547 = vpop.f32.mrf.mxu0
      %v1548 = vadd.f32 0.0, %v1547
      %v1549 = vpop.f32.mrf.mxu0
      %1550 = vmatprep.mubr.bf16.mxu0 0
      %1551 = vmatmul.mubr.bf16.gmra.mxu0 %v1030
      %v1552 = vpop.f32.mrf.mxu0
      %v1553 = vadd.f32 0.0, %v1552
      %v1554 = vpop.f32.mrf.mxu0
      %v1555 = vpop.f32.mrf.mxu0
      %v1556 = vadd.f32 0.0, %v1555
      %v1557 = vpop.f32.mrf.mxu0
      %1558 = vmatprep.mubr.bf16.mxu0 0
      %1559 = vmatmul.mubr.bf16.gmra.mxu0 %v1031
      %v1560 = vpop.f32.mrf.mxu0
      %v1561 = vadd.f32 0.0, %v1560
      %v1562 = vpop.f32.mrf.mxu0
      %v1563 = vpop.f32.mrf.mxu0
      %v1564 = vadd.f32 0.0, %v1563
      %v1565 = vpop.f32.mrf.mxu0
      %1566 = vmatprep.mubr.bf16.mxu0 0
      %1567 = vmatmul.mubr.bf16.gmra.mxu0 %v1032
      %v1568 = vpop.f32.mrf.mxu0
      %v1569 = vadd.f32 0.0, %v1568
      %v1570 = vpop.f32.mrf.mxu0
      %v1571 = vpop.f32.mrf.mxu0
      %v1572 = vadd.f32 0.0, %v1571
      %v1573 = vpop.f32.mrf.mxu0
      %1574 = vmatprep.mubr.bf16.mxu0 0
      %1575 = vmatmul.mubr.bf16.gmra.mxu0 %v1033
      %v1576 = vpop.f32.mrf.mxu0
      %v1577 = vadd.f32 0.0, %v1576
      %v1578 = vpop.f32.mrf.mxu0
      %v1579 = vpop.f32.mrf.mxu0
      %v1580 = vadd.f32 0.0, %v1579
      %v1581 = vpop.f32.mrf.mxu0
      %1582 = vmatprep.mubr.bf16.mxu0 0
      %1583 = vmatmul.mubr.bf16.gmra.mxu0 %v1034
      %v1584 = vpop.f32.mrf.mxu0
      %v1585 = vadd.f32 0.0, %v1584
      %v1586 = vpop.f32.mrf.mxu0
      %v1587 = vpop.f32.mrf.mxu0
      %v1588 = vadd.f32 0.0, %v1587
      %v1589 = vpop.f32.mrf.mxu0
      %1590 = vmatprep.mubr.bf16.mxu0 0
      %1591 = vmatmul.mubr.bf16.gmra.mxu0 %v1035
      %v1592 = vpop.f32.mrf.mxu0
      %v1593 = vadd.f32 0.0, %v1592
      %v1594 = vpop.f32.mrf.mxu0
      %v1595 = vpop.f32.mrf.mxu0
      %v1596 = vadd.f32 0.0, %v1595
      %v1597 = vpop.f32.mrf.mxu0
      %1598 = vmatprep.mubr.bf16.mxu0 0
      %1599 = vmatmul.mubr.bf16.gmra.mxu0 %v1036
      %v1600 = vpop.f32.mrf.mxu0
      %v1601 = vadd.f32 0.0, %v1600
      %v1602 = vpop.f32.mrf.mxu0
      %v1603 = vpop.f32.mrf.mxu0
      %v1604 = vadd.f32 0.0, %v1603
      %v1605 = vpop.f32.mrf.mxu0
      %1606 = vmatprep.mubr.bf16.mxu0 0
      %1607 = vmatmul.mubr.bf16.gmra.mxu0 %v1037
      %v1608 = vpop.f32.mrf.mxu0
      %v1609 = vadd.f32 0.0, %v1608
      %v1610 = vpop.f32.mrf.mxu0
      %v1611 = vpop.f32.mrf.mxu0
      %v1612 = vadd.f32 0.0, %v1611
      %v1613 = vpop.f32.mrf.mxu0
      %1614 = vmatprep.mubr.bf16.mxu0 0
      %1615 = vmatmul.mubr.bf16.gmra.mxu0 %v1038
      %v1616 = vpop.f32.mrf.mxu0
      %v1617 = vadd.f32 0.0, %v1616
      %v1618 = vpop.f32.mrf.mxu0
      %v1619 = vpop.f32.mrf.mxu0
      %v1620 = vadd.f32 0.0, %v1619
      %v1621 = vpop.f32.mrf.mxu0
      %1622 = vmatprep.mubr.bf16.mxu0 0
      %1623 = vmatmul.mubr.bf16.gmra.mxu0 %v1039
      %v1624 = vpop.f32.mrf.mxu0
      %v1625 = vadd.f32 0.0, %v1624
      %v1626 = vpop.f32.mrf.mxu0
      %v1627 = vpop.f32.mrf.mxu0
      %v1628 = vadd.f32 0.0, %v1627
      %v1629 = vpop.f32.mrf.mxu0
      %1630 = vmatprep.mubr.bf16.mxu0 0
      %1631 = vmatmul.mubr.bf16.gmra.mxu0 %v1040
      %v1632 = vpop.f32.mrf.mxu0
      %v1633 = vadd.f32 0.0, %v1632
      %v1634 = vpop.f32.mrf.mxu0
      %v1635 = vpop.f32.mrf.mxu0
      %v1636 = vadd.f32 0.0, %v1635
      %v1637 = vpop.f32.mrf.mxu0
      %1638 = vmatprep.mubr.bf16.mxu0 0
      %1639 = vmatmul.mubr.bf16.gmra.mxu0 %v1041
      %v1640 = vpop.f32.mrf.mxu0
      %v1641 = vadd.f32 0.0, %v1640
      %v1642 = vpop.f32.mrf.mxu0
      %v1643 = vpop.f32.mrf.mxu0
      %v1644 = vadd.f32 0.0, %v1643
      %v1645 = vpop.f32.mrf.mxu0
      %1646 = vmatprep.mubr.bf16.mxu0 0
      %1647 = vmatmul.mubr.bf16.gmra.mxu0 %v1042
      %v1648 = vpop.f32.mrf.mxu0
      %v1649 = vadd.f32 0.0, %v1648
      %v1650 = vpop.f32.mrf.mxu0
      %v1651 = vpop.f32.mrf.mxu0
      %v1652 = vadd.f32 0.0, %v1651
      %v1653 = vpop.f32.mrf.mxu0
      %1654 = vmatprep.mubr.bf16.mxu0 0
      %1655 = vmatmul.mubr.bf16.gmra.mxu0 %v1043
      %v1656 = vpop.f32.mrf.mxu0
      %v1657 = vadd.f32 0.0, %v1656
      %v1658 = vpop.f32.mrf.mxu0
      %v1659 = vpop.f32.mrf.mxu0
      %v1660 = vadd.f32 0.0, %v1659
      %v1661 = vpop.f32.mrf.mxu0
      %1662 = vmatprep.mubr.bf16.mxu0 0
      %1663 = vmatmul.mubr.bf16.gmra.mxu0 %v1044
      %v1664 = vpop.f32.mrf.mxu0
      %v1665 = vadd.f32 0.0, %v1664
      %v1666 = vpop.f32.mrf.mxu0
      %v1667 = vpop.f32.mrf.mxu0
      %v1668 = vadd.f32 0.0, %v1667
      %v1669 = vpop.f32.mrf.mxu0
      %1670 = vmatprep.mubr.bf16.mxu0 0
      %1671 = vmatmul.mubr.bf16.gmra.mxu0 %v1392
      %v1672 = vpop.f32.mrf.mxu0
      %v1673 = vadd.f32 0.0, %v1672
      %v1674 = vpop.f32.mrf.mxu0
      %v1675 = vpop.f32.mrf.mxu0
      %v1676 = vadd.f32 0.0, %v1675
      %v1677 = vpop.f32.mrf.mxu0
      %1678 = vmatprep.mubr.bf16.mxu0 0
      %1679 = vmatmul.mubr.bf16.gmra.mxu0 %v1393
      %v1680 = vpop.f32.mrf.mxu0
      %v1681 = vadd.f32 0.0, %v1680
      %v1682 = vpop.f32.mrf.mxu0
      %v1683 = vpop.f32.mrf.mxu0
      %v1684 = vadd.f32 0.0, %v1683
      %v1685 = vpop.f32.mrf.mxu0
      %1686 = vmatprep.mubr.bf16.mxu0 0
      %1687 = vmatmul.mubr.bf16.gmra.mxu0 %v1394
      %v1688 = vpop.f32.mrf.mxu0
      %v1689 = vadd.f32 0.0, %v1688
      %v1690 = vpop.f32.mrf.mxu0
      %v1691 = vpop.f32.mrf.mxu0
      %v1692 = vadd.f32 0.0, %v1691
      %v1693 = vpop.f32.mrf.mxu0
      %1694 = vdwg.mxu0
      %v1695 = vadd.f32 %v1155, %v1481
      %v1696 = vadd.f32 %v1158, %v1484
      %v1697 = vadd.f32 %v1163, %v1489
      %v1698 = vadd.f32 %v1166, %v1492
      %v1699 = vadd.f32 %v1171, %v1497
      %v1700 = vadd.f32 %v1174, %v1500
      %v1701 = vadd.f32 %v1179, %v1505
      %v1702 = vadd.f32 %v1182, %v1508
      %v1703 = vadd.f32 %v1187, %v1513
      %v1704 = vadd.f32 %v1190, %v1516
      %v1705 = vadd.f32 %v1195, %v1521
      %v1706 = vadd.f32 %v1198, %v1524
      %v1707 = vadd.f32 %v1203, %v1529
      %v1708 = vadd.f32 %v1206, %v1532
      %v1709 = vadd.f32 %v1211, %v1537
      %v1710 = vadd.f32 %v1214, %v1540
      %v1711 = vadd.f32 %v1219, %v1545
      %v1712 = vadd.f32 %v1222, %v1548
      %v1713 = vadd.f32 %v1227, %v1553
      %v1714 = vadd.f32 %v1230, %v1556
      %v1715 = vadd.f32 %v1235, %v1561
      %v1716 = vadd.f32 %v1238, %v1564
      %v1717 = vadd.f32 %v1243, %v1569
      %v1718 = vadd.f32 %v1246, %v1572
      %v1719 = vadd.f32 %v1251, %v1577
      %v1720 = vadd.f32 %v1254, %v1580
      %v1721 = vadd.f32 %v1259, %v1585
      %v1722 = vadd.f32 %v1262, %v1588
      %v1723 = vadd.f32 %v1267, %v1593
      %v1724 = vadd.f32 %v1270, %v1596
      %v1725 = vadd.f32 %v1275, %v1601
      %v1726 = vadd.f32 %v1278, %v1604
      %v1727 = vadd.f32 %v1283, %v1609
      %v1728 = vadd.f32 %v1286, %v1612
      %v1729 = vadd.f32 %v1291, %v1617
      %v1730 = vadd.f32 %v1294, %v1620
      %v1731 = vadd.f32 %v1299, %v1625
      %v1732 = vadd.f32 %v1302, %v1628
      %v1733 = vadd.f32 %v1307, %v1633
      %v1734 = vadd.f32 %v1310, %v1636
      %v1735 = vadd.f32 %v1315, %v1641
      %v1736 = vadd.f32 %v1318, %v1644
      %v1737 = vadd.f32 %v1323, %v1649
      %v1738 = vadd.f32 %v1326, %v1652
      %v1739 = vadd.f32 %v1331, %v1657
      %v1740 = vadd.f32 %v1334, %v1660
      %v1741 = vadd.f32 %v1339, %v1665
      %v1742 = vadd.f32 %v1342, %v1668
      %v1743 = vadd.f32 %v1347, %v1673
      %v1744 = vadd.f32 %v1350, %v1676
      %v1745 = vadd.f32 %v1355, %v1681
      %v1746 = vadd.f32 %v1358, %v1684
      %v1747 = vadd.f32 %v1363, %v1689
      %v1748 = vadd.f32 %v1366, %v1692
      %s1749 = scalar_lea.vmem %s1, 64
      %v1750 = vld [vmem:[%s1749] sm:$0xf]
      %v1751 = vld [vmem:[%s1749 + $0x4] sm:$0xf]
      %v1752 = vld [vmem:[%s1749 + $0x8] sm:$0xf]
      %v1753 = vld [vmem:[%s1749 + $0xc] sm:$0xf]
      %v1754 = vld [vmem:[%s1749 + $0x10] sm:$0xf]
      %v1755 = vld [vmem:[%s1749 + $0x14] sm:$0xf]
      %v1756 = vld [vmem:[%s1749 + $0x18] sm:$0xf]
      %v1757 = vld [vmem:[%s1749 + $0x1c] sm:$0xf]
      %v1758 = vld [vmem:[%s1749 + $0x20] sm:$0xf]
      %v1759 = vld [vmem:[%s1749 + $0x24] sm:$0xf]
      %v1760 = vld [vmem:[%s1749 + $0x28] sm:$0xf]
      %v1761 = vld [vmem:[%s1749 + $0x2c] sm:$0xf]
      %v1762 = vld [vmem:[%s1749 + $0x30] sm:$0xf]
      %v1763 = vld [vmem:[%s1749 + $0x34] sm:$0xf]
      %v1764 = vld [vmem:[%s1749 + $0x38] sm:$0xf]
      %v1765 = vld [vmem:[%s1749 + $0x3c] sm:$0xf]
      %s1766 = scalar_lea.vmem %s1, 256
      %v1767 = vld [vmem:[%s1766] sm:$0xf]
      %v1768 = vld [vmem:[%s1766 + $0x4] sm:$0xf]
      %v1769 = vld [vmem:[%s1766 + $0x8] sm:$0xf]
      %v1770 = vld [vmem:[%s1766 + $0xc] sm:$0xf]
      %v1771 = vld [vmem:[%s1766 + $0x10] sm:$0xf]
      %v1772 = vld [vmem:[%s1766 + $0x14] sm:$0xf]
      %v1773 = vld [vmem:[%s1766 + $0x18] sm:$0xf]
      %v1774 = vld [vmem:[%s1766 + $0x1c] sm:$0xf]
      %v1775 = vld [vmem:[%s1766 + $0x20] sm:$0xf]
      %v1776 = vld [vmem:[%s1766 + $0x24] sm:$0xf]
      %v1777 = vld [vmem:[%s1766 + $0x28] sm:$0xf]
      %v1778 = vld [vmem:[%s1766 + $0x2c] sm:$0xf]
      %v1779 = vld [vmem:[%s1766 + $0x30] sm:$0xf]
      %v1780 = vld [vmem:[%s1766 + $0x34] sm:$0xf]
      %v1781 = vld [vmem:[%s1766 + $0x38] sm:$0xf]
      %v1782 = vld [vmem:[%s1766 + $0x3c] sm:$0xf]
      %v1799 = vunpack.c.l.b16 %v1767
      %v1800 = vunpack.c.l.b16 %v1768
      %v1801 = vunpack.c.l.b16 %v1769
      %v1802 = vunpack.c.l.b16 %v1770
      %v1803 = vunpack.c.l.b16 %v1771
      %v1804 = vunpack.c.l.b16 %v1772
      %v1805 = vunpack.c.l.b16 %v1773
      %v1806 = vunpack.c.l.b16 %v1774
      %v1807 = vunpack.c.l.b16 %v1775
      %v1808 = vunpack.c.l.b16 %v1776
      %v1809 = vunpack.c.l.b16 %v1777
      %v1810 = vunpack.c.l.b16 %v1778
      %v1811 = vunpack.c.l.b16 %v1779
      %v1812 = vunpack.c.l.b16 %v1780
      %v1813 = vunpack.c.l.b16 %v1781
      %v1814 = vunpack.c.l.b16 %v1782
      %v1815 = vpack.c.b16 %v1800, %v1799
      %v1816 = vpack.c.b16 %v1802, %v1801
      %v1817 = vpack.c.b16 %v1804, %v1803
      %v1818 = vpack.c.b16 %v1806, %v1805
      %v1819 = vpack.c.b16 %v1808, %v1807
      %v1820 = vpack.c.b16 %v1810, %v1809
      %v1821 = vpack.c.b16 %v1812, %v1811
      %v1822 = vpack.c.b16 %v1814, %v1813
      %1831 = vmatprep.subr.bf16.mxu0 0
      %1832 = vmatpush1.bf16.msra.mxu0 %v1822
      %1833 = vmatprep.subr.bf16.mxu0 0
      %1834 = vmatpush1.bf16.msra.mxu0 %v1821
      %1835 = vmatprep.subr.bf16.mxu0 0
      %1836 = vmatpush1.bf16.msra.mxu0 %v1820
      %1837 = vmatprep.subr.bf16.mxu0 0
      %1838 = vmatpush1.bf16.msra.mxu0 %v1819
      %1839 = vmatprep.subr.bf16.mxu0 0
      %1840 = vmatpush1.bf16.msra.mxu0 %v1818
      %1841 = vmatprep.subr.bf16.mxu0 0
      %1842 = vmatpush1.bf16.msra.mxu0 %v1817
      %1843 = vmatprep.subr.bf16.mxu0 0
      %1844 = vmatpush1.bf16.msra.mxu0 %v1816
      %1845 = vmatprep.subr.bf16.mxu0 0
      %1846 = vmatpush1.bf16.msra.mxu0 %v1815
      %1847 = vmatprep.subr.bf16.mxu0 0
      %1848 = vmatpush2.bf16.msra.mxu0 0
      %1849 = vmatprep.subr.bf16.mxu0 0
      %1850 = vmatpush2.bf16.msra.mxu0 0
      %1851 = vmatprep.subr.bf16.mxu0 0
      %1852 = vmatpush2.bf16.msra.mxu0 0
      %1853 = vmatprep.subr.bf16.mxu0 0
      %1854 = vmatpush2.bf16.msra.mxu0 0
      %1855 = vmatprep.subr.bf16.mxu0 0
      %1856 = vmatpush2.bf16.msra.mxu0 0
      %1857 = vmatprep.subr.bf16.mxu0 0
      %1858 = vmatpush2.bf16.msra.mxu0 0
      %1859 = vmatprep.subr.bf16.mxu0 0
      %1860 = vmatpush2.bf16.msra.mxu0 0
      %1861 = vmatprep.subr.bf16.mxu0 0
      %1862 = vmatpush2.bf16.msra.mxu0 0
      %1863 = vmatprep.mubr.bf16.mxu0 0
      %1864 = vmatmul.mubr.bf16.gmra.mxu0 %v661
      %v1865 = vpop.f32.mrf.mxu0
      %v1866 = vadd.f32 0.0, %v1865
      %v1867 = vpop.f32.mrf.mxu0
      %v1868 = vpop.f32.mrf.mxu0
      %v1869 = vadd.f32 0.0, %v1868
      %v1870 = vpop.f32.mrf.mxu0
      %1871 = vmatprep.mubr.bf16.mxu0 0
      %1872 = vmatmul.mubr.bf16.gmra.mxu0 %v662
      %v1873 = vpop.f32.mrf.mxu0
      %v1874 = vadd.f32 0.0, %v1873
      %v1875 = vpop.f32.mrf.mxu0
      %v1876 = vpop.f32.mrf.mxu0
      %v1877 = vadd.f32 0.0, %v1876
      %v1878 = vpop.f32.mrf.mxu0
      %1879 = vmatprep.mubr.bf16.mxu0 0
      %1880 = vmatmul.mubr.bf16.gmra.mxu0 %v663
      %v1881 = vpop.f32.mrf.mxu0
      %v1882 = vadd.f32 0.0, %v1881
      %v1883 = vpop.f32.mrf.mxu0
      %v1884 = vpop.f32.mrf.mxu0
      %v1885 = vadd.f32 0.0, %v1884
      %v1886 = vpop.f32.mrf.mxu0
      %1887 = vmatprep.mubr.bf16.mxu0 0
      %1888 = vmatmul.mubr.bf16.gmra.mxu0 %v664
      %v1889 = vpop.f32.mrf.mxu0
      %v1890 = vadd.f32 0.0, %v1889
      %v1891 = vpop.f32.mrf.mxu0
      %v1892 = vpop.f32.mrf.mxu0
      %v1893 = vadd.f32 0.0, %v1892
      %v1894 = vpop.f32.mrf.mxu0
      %1895 = vmatprep.mubr.bf16.mxu0 0
      %1896 = vmatmul.mubr.bf16.gmra.mxu0 %v665
      %v1897 = vpop.f32.mrf.mxu0
      %v1898 = vadd.f32 0.0, %v1897
      %v1899 = vpop.f32.mrf.mxu0
      %v1900 = vpop.f32.mrf.mxu0
      %v1901 = vadd.f32 0.0, %v1900
      %v1902 = vpop.f32.mrf.mxu0
      %1903 = vmatprep.mubr.bf16.mxu0 0
      %1904 = vmatmul.mubr.bf16.gmra.mxu0 %v666
      %v1905 = vpop.f32.mrf.mxu0
      %v1906 = vadd.f32 0.0, %v1905
      %v1907 = vpop.f32.mrf.mxu0
      %v1908 = vpop.f32.mrf.mxu0
      %v1909 = vadd.f32 0.0, %v1908
      %v1910 = vpop.f32.mrf.mxu0
      %1911 = vmatprep.mubr.bf16.mxu0 0
      %1912 = vmatmul.mubr.bf16.gmra.mxu0 %v667
      %v1913 = vpop.f32.mrf.mxu0
      %v1914 = vadd.f32 0.0, %v1913
      %v1915 = vpop.f32.mrf.mxu0
      %v1916 = vpop.f32.mrf.mxu0
      %v1917 = vadd.f32 0.0, %v1916
      %v1918 = vpop.f32.mrf.mxu0
      %1919 = vmatprep.mubr.bf16.mxu0 0
      %1920 = vmatmul.mubr.bf16.gmra.mxu0 %v668
      %v1921 = vpop.f32.mrf.mxu0
      %v1922 = vadd.f32 0.0, %v1921
      %v1923 = vpop.f32.mrf.mxu0
      %v1924 = vpop.f32.mrf.mxu0
      %v1925 = vadd.f32 0.0, %v1924
      %v1926 = vpop.f32.mrf.mxu0
      %1927 = vmatprep.mubr.bf16.mxu0 0
      %1928 = vmatmul.mubr.bf16.gmra.mxu0 %v669
      %v1929 = vpop.f32.mrf.mxu0
      %v1930 = vadd.f32 0.0, %v1929
      %v1931 = vpop.f32.mrf.mxu0
      %v1932 = vpop.f32.mrf.mxu0
      %v1933 = vadd.f32 0.0, %v1932
      %v1934 = vpop.f32.mrf.mxu0
      %1935 = vmatprep.mubr.bf16.mxu0 0
      %1936 = vmatmul.mubr.bf16.gmra.mxu0 %v670
      %v1937 = vpop.f32.mrf.mxu0
      %v1938 = vadd.f32 0.0, %v1937
      %v1939 = vpop.f32.mrf.mxu0
      %v1940 = vpop.f32.mrf.mxu0
      %v1941 = vadd.f32 0.0, %v1940
      %v1942 = vpop.f32.mrf.mxu0
      %1943 = vmatprep.mubr.bf16.mxu0 0
      %1944 = vmatmul.mubr.bf16.gmra.mxu0 %v671
      %v1945 = vpop.f32.mrf.mxu0
      %v1946 = vadd.f32 0.0, %v1945
      %v1947 = vpop.f32.mrf.mxu0
      %v1948 = vpop.f32.mrf.mxu0
      %v1949 = vadd.f32 0.0, %v1948
      %v1950 = vpop.f32.mrf.mxu0
      %1951 = vmatprep.mubr.bf16.mxu0 0
      %1952 = vmatmul.mubr.bf16.gmra.mxu0 %v672
      %v1953 = vpop.f32.mrf.mxu0
      %v1954 = vadd.f32 0.0, %v1953
      %v1955 = vpop.f32.mrf.mxu0
      %v1956 = vpop.f32.mrf.mxu0
      %v1957 = vadd.f32 0.0, %v1956
      %v1958 = vpop.f32.mrf.mxu0
      %1959 = vmatprep.mubr.bf16.mxu0 0
      %1960 = vmatmul.mubr.bf16.gmra.mxu0 %v673
      %v1961 = vpop.f32.mrf.mxu0
      %v1962 = vadd.f32 0.0, %v1961
      %v1963 = vpop.f32.mrf.mxu0
      %v1964 = vpop.f32.mrf.mxu0
      %v1965 = vadd.f32 0.0, %v1964
      %v1966 = vpop.f32.mrf.mxu0
      %1967 = vmatprep.mubr.bf16.mxu0 0
      %1968 = vmatmul.mubr.bf16.gmra.mxu0 %v674
      %v1969 = vpop.f32.mrf.mxu0
      %v1970 = vadd.f32 0.0, %v1969
      %v1971 = vpop.f32.mrf.mxu0
      %v1972 = vpop.f32.mrf.mxu0
      %v1973 = vadd.f32 0.0, %v1972
      %v1974 = vpop.f32.mrf.mxu0
      %1975 = vmatprep.mubr.bf16.mxu0 0
      %1976 = vmatmul.mubr.bf16.gmra.mxu0 %v675
      %v1977 = vpop.f32.mrf.mxu0
      %v1978 = vadd.f32 0.0, %v1977
      %v1979 = vpop.f32.mrf.mxu0
      %v1980 = vpop.f32.mrf.mxu0
      %v1981 = vadd.f32 0.0, %v1980
      %v1982 = vpop.f32.mrf.mxu0
      %1983 = vmatprep.mubr.bf16.mxu0 0
      %1984 = vmatmul.mubr.bf16.gmra.mxu0 %v676
      %v1985 = vpop.f32.mrf.mxu0
      %v1986 = vadd.f32 0.0, %v1985
      %v1987 = vpop.f32.mrf.mxu0
      %v1988 = vpop.f32.mrf.mxu0
      %v1989 = vadd.f32 0.0, %v1988
      %v1990 = vpop.f32.mrf.mxu0
      %1991 = vmatprep.mubr.bf16.mxu0 0
      %1992 = vmatmul.mubr.bf16.gmra.mxu0 %v677
      %v1993 = vpop.f32.mrf.mxu0
      %v1994 = vadd.f32 0.0, %v1993
      %v1995 = vpop.f32.mrf.mxu0
      %v1996 = vpop.f32.mrf.mxu0
      %v1997 = vadd.f32 0.0, %v1996
      %v1998 = vpop.f32.mrf.mxu0
      %1999 = vmatprep.mubr.bf16.mxu0 0
      %2000 = vmatmul.mubr.bf16.gmra.mxu0 %v678
      %v2001 = vpop.f32.mrf.mxu0
      %v2002 = vadd.f32 0.0, %v2001
      %v2003 = vpop.f32.mrf.mxu0
      %v2004 = vpop.f32.mrf.mxu0
      %v2005 = vadd.f32 0.0, %v2004
      %v2006 = vpop.f32.mrf.mxu0
      %2007 = vmatprep.mubr.bf16.mxu0 0
      %2008 = vmatmul.mubr.bf16.gmra.mxu0 %v679
      %v2009 = vpop.f32.mrf.mxu0
      %v2010 = vadd.f32 0.0, %v2009
      %v2011 = vpop.f32.mrf.mxu0
      %v2012 = vpop.f32.mrf.mxu0
      %v2013 = vadd.f32 0.0, %v2012
      %v2014 = vpop.f32.mrf.mxu0
      %2015 = vmatprep.mubr.bf16.mxu0 0
      %2016 = vmatmul.mubr.bf16.gmra.mxu0 %v680
      %v2017 = vpop.f32.mrf.mxu0
      %v2018 = vadd.f32 0.0, %v2017
      %v2019 = vpop.f32.mrf.mxu0
      %v2020 = vpop.f32.mrf.mxu0
      %v2021 = vadd.f32 0.0, %v2020
      %v2022 = vpop.f32.mrf.mxu0
      %2023 = vmatprep.mubr.bf16.mxu0 0
      %2024 = vmatmul.mubr.bf16.gmra.mxu0 %v681
      %v2025 = vpop.f32.mrf.mxu0
      %v2026 = vadd.f32 0.0, %v2025
      %v2027 = vpop.f32.mrf.mxu0
      %v2028 = vpop.f32.mrf.mxu0
      %v2029 = vadd.f32 0.0, %v2028
      %v2030 = vpop.f32.mrf.mxu0
      %2031 = vmatprep.mubr.bf16.mxu0 0
      %2032 = vmatmul.mubr.bf16.gmra.mxu0 %v682
      %v2033 = vpop.f32.mrf.mxu0
      %v2034 = vadd.f32 0.0, %v2033
      %v2035 = vpop.f32.mrf.mxu0
      %v2036 = vpop.f32.mrf.mxu0
      %v2037 = vadd.f32 0.0, %v2036
      %v2038 = vpop.f32.mrf.mxu0
      %2039 = vmatprep.mubr.bf16.mxu0 0
      %2040 = vmatmul.mubr.bf16.gmra.mxu0 %v683
      %v2041 = vpop.f32.mrf.mxu0
      %v2042 = vadd.f32 0.0, %v2041
      %v2043 = vpop.f32.mrf.mxu0
      %v2044 = vpop.f32.mrf.mxu0
      %v2045 = vadd.f32 0.0, %v2044
      %v2046 = vpop.f32.mrf.mxu0
      %2047 = vmatprep.mubr.bf16.mxu0 0
      %2048 = vmatmul.mubr.bf16.gmra.mxu0 %v684
      %v2049 = vpop.f32.mrf.mxu0
      %v2050 = vadd.f32 0.0, %v2049
      %v2051 = vpop.f32.mrf.mxu0
      %v2052 = vpop.f32.mrf.mxu0
      %v2053 = vadd.f32 0.0, %v2052
      %v2054 = vpop.f32.mrf.mxu0
      %2055 = vmatprep.mubr.bf16.mxu0 0
      %2056 = vmatmul.mubr.bf16.gmra.mxu0 %v685
      %v2057 = vpop.f32.mrf.mxu0
      %v2058 = vadd.f32 0.0, %v2057
      %v2059 = vpop.f32.mrf.mxu0
      %v2060 = vpop.f32.mrf.mxu0
      %v2061 = vadd.f32 0.0, %v2060
      %v2062 = vpop.f32.mrf.mxu0
      %2063 = vmatprep.mubr.bf16.mxu0 0
      %2064 = vmatmul.mubr.bf16.gmra.mxu0 %v686
      %v2065 = vpop.f32.mrf.mxu0
      %v2066 = vadd.f32 0.0, %v2065
      %v2067 = vpop.f32.mrf.mxu0
      %v2068 = vpop.f32.mrf.mxu0
      %v2069 = vadd.f32 0.0, %v2068
      %v2070 = vpop.f32.mrf.mxu0
      %2071 = vmatprep.mubr.bf16.mxu0 0
      %2072 = vmatmul.mubr.bf16.gmra.mxu0 %v687
      %v2073 = vpop.f32.mrf.mxu0
      %v2074 = vadd.f32 0.0, %v2073
      %v2075 = vpop.f32.mrf.mxu0
      %v2076 = vpop.f32.mrf.mxu0
      %v2077 = vadd.f32 0.0, %v2076
      %v2078 = vpop.f32.mrf.mxu0
      %2079 = vdwg.mxu0
      %v2096 = vunpack.c.l.b16 %v1750
      %v2097 = vunpack.c.l.b16 %v1751
      %v2098 = vunpack.c.l.b16 %v1752
      %v2099 = vunpack.c.l.b16 %v1753
      %v2100 = vunpack.c.l.b16 %v1754
      %v2101 = vunpack.c.l.b16 %v1755
      %v2102 = vunpack.c.l.b16 %v1756
      %v2103 = vunpack.c.l.b16 %v1757
      %v2104 = vunpack.c.l.b16 %v1758
      %v2105 = vunpack.c.l.b16 %v1759
      %v2106 = vunpack.c.l.b16 %v1760
      %v2107 = vunpack.c.l.b16 %v1761
      %v2108 = vunpack.c.l.b16 %v1762
      %v2109 = vunpack.c.l.b16 %v1763
      %v2110 = vunpack.c.l.b16 %v1764
      %v2111 = vunpack.c.l.b16 %v1765
      %v2112 = vpack.c.b16 %v2097, %v2096
      %v2113 = vpack.c.b16 %v2099, %v2098
      %v2114 = vpack.c.b16 %v2101, %v2100
      %v2115 = vpack.c.b16 %v2103, %v2102
      %v2116 = vpack.c.b16 %v2105, %v2104
      %v2117 = vpack.c.b16 %v2107, %v2106
      %v2118 = vpack.c.b16 %v2109, %v2108
      %v2119 = vpack.c.b16 %v2111, %v2110
      %2128 = vmatprep.subr.bf16.mxu0 0
      %2129 = vmatpush1.bf16.msra.mxu0 %v2119
      %2130 = vmatprep.subr.bf16.mxu0 0
      %2131 = vmatpush1.bf16.msra.mxu0 %v2118
      %2132 = vmatprep.subr.bf16.mxu0 0
      %2133 = vmatpush1.bf16.msra.mxu0 %v2117
      %2134 = vmatprep.subr.bf16.mxu0 0
      %2135 = vmatpush1.bf16.msra.mxu0 %v2116
      %2136 = vmatprep.subr.bf16.mxu0 0
      %2137 = vmatpush1.bf16.msra.mxu0 %v2115
      %2138 = vmatprep.subr.bf16.mxu0 0
      %2139 = vmatpush1.bf16.msra.mxu0 %v2114
      %2140 = vmatprep.subr.bf16.mxu0 0
      %2141 = vmatpush1.bf16.msra.mxu0 %v2113
      %2142 = vmatprep.subr.bf16.mxu0 0
      %2143 = vmatpush1.bf16.msra.mxu0 %v2112
      %2144 = vmatprep.subr.bf16.mxu0 0
      %2145 = vmatpush2.bf16.msra.mxu0 0
      %2146 = vmatprep.subr.bf16.mxu0 0
      %2147 = vmatpush2.bf16.msra.mxu0 0
      %2148 = vmatprep.subr.bf16.mxu0 0
      %2149 = vmatpush2.bf16.msra.mxu0 0
      %2150 = vmatprep.subr.bf16.mxu0 0
      %2151 = vmatpush2.bf16.msra.mxu0 0
      %2152 = vmatprep.subr.bf16.mxu0 0
      %2153 = vmatpush2.bf16.msra.mxu0 0
      %2154 = vmatprep.subr.bf16.mxu0 0
      %2155 = vmatpush2.bf16.msra.mxu0 0
      %2156 = vmatprep.subr.bf16.mxu0 0
      %2157 = vmatpush2.bf16.msra.mxu0 0
      %2158 = vmatprep.subr.bf16.mxu0 0
      %2159 = vmatpush2.bf16.msra.mxu0 0
      %2160 = vmatprep.mubr.bf16.mxu0 0
      %2161 = vmatmul.mubr.bf16.gmra.mxu0 %v1018
      %v2162 = vpop.f32.mrf.mxu0
      %v2163 = vadd.f32 %v1866, %v2162
      %v2164 = vpop.f32.mrf.mxu0
      %v2165 = vpop.f32.mrf.mxu0
      %v2166 = vadd.f32 %v1869, %v2165
      %v2167 = vpop.f32.mrf.mxu0
      %2168 = vmatprep.mubr.bf16.mxu0 0
      %2169 = vmatmul.mubr.bf16.gmra.mxu0 %v1019
      %v2170 = vpop.f32.mrf.mxu0
      %v2171 = vadd.f32 %v1874, %v2170
      %v2172 = vpop.f32.mrf.mxu0
      %v2173 = vpop.f32.mrf.mxu0
      %v2174 = vadd.f32 %v1877, %v2173
      %v2175 = vpop.f32.mrf.mxu0
      %2176 = vmatprep.mubr.bf16.mxu0 0
      %2177 = vmatmul.mubr.bf16.gmra.mxu0 %v1020
      %v2178 = vpop.f32.mrf.mxu0
      %v2179 = vadd.f32 %v1882, %v2178
      %v2180 = vpop.f32.mrf.mxu0
      %v2181 = vpop.f32.mrf.mxu0
      %v2182 = vadd.f32 %v1885, %v2181
      %v2183 = vpop.f32.mrf.mxu0
      %2184 = vmatprep.mubr.bf16.mxu0 0
      %2185 = vmatmul.mubr.bf16.gmra.mxu0 %v1021
      %v2186 = vpop.f32.mrf.mxu0
      %v2187 = vadd.f32 %v1890, %v2186
      %v2188 = vpop.f32.mrf.mxu0
      %v2189 = vpop.f32.mrf.mxu0
      %v2190 = vadd.f32 %v1893, %v2189
      %v2191 = vpop.f32.mrf.mxu0
      %2192 = vmatprep.mubr.bf16.mxu0 0
      %2193 = vmatmul.mubr.bf16.gmra.mxu0 %v1022
      %v2194 = vpop.f32.mrf.mxu0
      %v2195 = vadd.f32 %v1898, %v2194
      %v2196 = vpop.f32.mrf.mxu0
      %v2197 = vpop.f32.mrf.mxu0
      %v2198 = vadd.f32 %v1901, %v2197
      %v2199 = vpop.f32.mrf.mxu0
      %2200 = vmatprep.mubr.bf16.mxu0 0
      %2201 = vmatmul.mubr.bf16.gmra.mxu0 %v1023
      %v2202 = vpop.f32.mrf.mxu0
      %v2203 = vadd.f32 %v1906, %v2202
      %v2204 = vpop.f32.mrf.mxu0
      %v2205 = vpop.f32.mrf.mxu0
      %v2206 = vadd.f32 %v1909, %v2205
      %v2207 = vpop.f32.mrf.mxu0
      %2208 = vmatprep.mubr.bf16.mxu0 0
      %2209 = vmatmul.mubr.bf16.gmra.mxu0 %v1024
      %v2210 = vpop.f32.mrf.mxu0
      %v2211 = vadd.f32 %v1914, %v2210
      %v2212 = vpop.f32.mrf.mxu0
      %v2213 = vpop.f32.mrf.mxu0
      %v2214 = vadd.f32 %v1917, %v2213
      %v2215 = vpop.f32.mrf.mxu0
      %2216 = vmatprep.mubr.bf16.mxu0 0
      %2217 = vmatmul.mubr.bf16.gmra.mxu0 %v1025
      %v2218 = vpop.f32.mrf.mxu0
      %v2219 = vadd.f32 %v1922, %v2218
      %v2220 = vpop.f32.mrf.mxu0
      %v2221 = vpop.f32.mrf.mxu0
      %v2222 = vadd.f32 %v1925, %v2221
      %v2223 = vpop.f32.mrf.mxu0
      %2224 = vmatprep.mubr.bf16.mxu0 0
      %2225 = vmatmul.mubr.bf16.gmra.mxu0 %v1026
      %v2226 = vpop.f32.mrf.mxu0
      %v2227 = vadd.f32 %v1930, %v2226
      %v2228 = vpop.f32.mrf.mxu0
      %v2229 = vpop.f32.mrf.mxu0
      %v2230 = vadd.f32 %v1933, %v2229
      %v2231 = vpop.f32.mrf.mxu0
      %2232 = vmatprep.mubr.bf16.mxu0 0
      %2233 = vmatmul.mubr.bf16.gmra.mxu0 %v1027
      %v2234 = vpop.f32.mrf.mxu0
      %v2235 = vadd.f32 %v1938, %v2234
      %v2236 = vpop.f32.mrf.mxu0
      %v2237 = vpop.f32.mrf.mxu0
      %v2238 = vadd.f32 %v1941, %v2237
      %v2239 = vpop.f32.mrf.mxu0
      %2240 = vmatprep.mubr.bf16.mxu0 0
      %2241 = vmatmul.mubr.bf16.gmra.mxu0 %v1028
      %v2242 = vpop.f32.mrf.mxu0
      %v2243 = vadd.f32 %v1946, %v2242
      %v2244 = vpop.f32.mrf.mxu0
      %v2245 = vpop.f32.mrf.mxu0
      %v2246 = vadd.f32 %v1949, %v2245
      %v2247 = vpop.f32.mrf.mxu0
      %2248 = vmatprep.mubr.bf16.mxu0 0
      %2249 = vmatmul.mubr.bf16.gmra.mxu0 %v1029
      %v2250 = vpop.f32.mrf.mxu0
      %v2251 = vadd.f32 %v1954, %v2250
      %v2252 = vpop.f32.mrf.mxu0
      %v2253 = vpop.f32.mrf.mxu0
      %v2254 = vadd.f32 %v1957, %v2253
      %v2255 = vpop.f32.mrf.mxu0
      %2256 = vmatprep.mubr.bf16.mxu0 0
      %2257 = vmatmul.mubr.bf16.gmra.mxu0 %v1030
      %v2258 = vpop.f32.mrf.mxu0
      %v2259 = vadd.f32 %v1962, %v2258
      %v2260 = vpop.f32.mrf.mxu0
      %v2261 = vpop.f32.mrf.mxu0
      %v2262 = vadd.f32 %v1965, %v2261
      %v2263 = vpop.f32.mrf.mxu0
      %2264 = vmatprep.mubr.bf16.mxu0 0
      %2265 = vmatmul.mubr.bf16.gmra.mxu0 %v1031
      %v2266 = vpop.f32.mrf.mxu0
      %v2267 = vadd.f32 %v1970, %v2266
      %v2268 = vpop.f32.mrf.mxu0
      %v2269 = vpop.f32.mrf.mxu0
      %v2270 = vadd.f32 %v1973, %v2269
      %v2271 = vpop.f32.mrf.mxu0
      %2272 = vmatprep.mubr.bf16.mxu0 0
      %2273 = vmatmul.mubr.bf16.gmra.mxu0 %v1032
      %v2274 = vpop.f32.mrf.mxu0
      %v2275 = vadd.f32 %v1978, %v2274
      %v2276 = vpop.f32.mrf.mxu0
      %v2277 = vpop.f32.mrf.mxu0
      %v2278 = vadd.f32 %v1981, %v2277
      %v2279 = vpop.f32.mrf.mxu0
      %2280 = vmatprep.mubr.bf16.mxu0 0
      %2281 = vmatmul.mubr.bf16.gmra.mxu0 %v1033
      %v2282 = vpop.f32.mrf.mxu0
      %v2283 = vadd.f32 %v1986, %v2282
      %v2284 = vpop.f32.mrf.mxu0
      %v2285 = vpop.f32.mrf.mxu0
      %v2286 = vadd.f32 %v1989, %v2285
      %v2287 = vpop.f32.mrf.mxu0
      %2288 = vmatprep.mubr.bf16.mxu0 0
      %2289 = vmatmul.mubr.bf16.gmra.mxu0 %v1034
      %v2290 = vpop.f32.mrf.mxu0
      %v2291 = vadd.f32 %v1994, %v2290
      %v2292 = vpop.f32.mrf.mxu0
      %v2293 = vpop.f32.mrf.mxu0
      %v2294 = vadd.f32 %v1997, %v2293
      %v2295 = vpop.f32.mrf.mxu0
      %2296 = vmatprep.mubr.bf16.mxu0 0
      %2297 = vmatmul.mubr.bf16.gmra.mxu0 %v1035
      %v2298 = vpop.f32.mrf.mxu0
      %v2299 = vadd.f32 %v2002, %v2298
      %v2300 = vpop.f32.mrf.mxu0
      %v2301 = vpop.f32.mrf.mxu0
      %v2302 = vadd.f32 %v2005, %v2301
      %v2303 = vpop.f32.mrf.mxu0
      %2304 = vmatprep.mubr.bf16.mxu0 0
      %2305 = vmatmul.mubr.bf16.gmra.mxu0 %v1036
      %v2306 = vpop.f32.mrf.mxu0
      %v2307 = vadd.f32 %v2010, %v2306
      %v2308 = vpop.f32.mrf.mxu0
      %v2309 = vpop.f32.mrf.mxu0
      %v2310 = vadd.f32 %v2013, %v2309
      %v2311 = vpop.f32.mrf.mxu0
      %2312 = vmatprep.mubr.bf16.mxu0 0
      %2313 = vmatmul.mubr.bf16.gmra.mxu0 %v1037
      %v2314 = vpop.f32.mrf.mxu0
      %v2315 = vadd.f32 %v2018, %v2314
      %v2316 = vpop.f32.mrf.mxu0
      %v2317 = vpop.f32.mrf.mxu0
      %v2318 = vadd.f32 %v2021, %v2317
      %v2319 = vpop.f32.mrf.mxu0
      %2320 = vmatprep.mubr.bf16.mxu0 0
      %2321 = vmatmul.mubr.bf16.gmra.mxu0 %v1038
      %v2322 = vpop.f32.mrf.mxu0
      %v2323 = vadd.f32 %v2026, %v2322
      %v2324 = vpop.f32.mrf.mxu0
      %v2325 = vpop.f32.mrf.mxu0
      %v2326 = vadd.f32 %v2029, %v2325
      %v2327 = vpop.f32.mrf.mxu0
      %2328 = vmatprep.mubr.bf16.mxu0 0
      %2329 = vmatmul.mubr.bf16.gmra.mxu0 %v1039
      %v2330 = vpop.f32.mrf.mxu0
      %v2331 = vadd.f32 %v2034, %v2330
      %v2332 = vpop.f32.mrf.mxu0
      %v2333 = vpop.f32.mrf.mxu0
      %v2334 = vadd.f32 %v2037, %v2333
      %v2335 = vpop.f32.mrf.mxu0
      %2336 = vmatprep.mubr.bf16.mxu0 0
      %2337 = vmatmul.mubr.bf16.gmra.mxu0 %v1040
      %v2338 = vpop.f32.mrf.mxu0
      %v2339 = vadd.f32 %v2042, %v2338
      %v2340 = vpop.f32.mrf.mxu0
      %v2341 = vpop.f32.mrf.mxu0
      %v2342 = vadd.f32 %v2045, %v2341
      %v2343 = vpop.f32.mrf.mxu0
      %2344 = vmatprep.mubr.bf16.mxu0 0
      %2345 = vmatmul.mubr.bf16.gmra.mxu0 %v1041
      %v2346 = vpop.f32.mrf.mxu0
      %v2347 = vadd.f32 %v2050, %v2346
      %v2348 = vpop.f32.mrf.mxu0
      %v2349 = vpop.f32.mrf.mxu0
      %v2350 = vadd.f32 %v2053, %v2349
      %v2351 = vpop.f32.mrf.mxu0
      %2352 = vmatprep.mubr.bf16.mxu0 0
      %2353 = vmatmul.mubr.bf16.gmra.mxu0 %v1042
      %v2354 = vpop.f32.mrf.mxu0
      %v2355 = vadd.f32 %v2058, %v2354
      %v2356 = vpop.f32.mrf.mxu0
      %v2357 = vpop.f32.mrf.mxu0
      %v2358 = vadd.f32 %v2061, %v2357
      %v2359 = vpop.f32.mrf.mxu0
      %2360 = vmatprep.mubr.bf16.mxu0 0
      %2361 = vmatmul.mubr.bf16.gmra.mxu0 %v1043
      %v2362 = vpop.f32.mrf.mxu0
      %v2363 = vadd.f32 %v2066, %v2362
      %v2364 = vpop.f32.mrf.mxu0
      %v2365 = vpop.f32.mrf.mxu0
      %v2366 = vadd.f32 %v2069, %v2365
      %v2367 = vpop.f32.mrf.mxu0
      %2368 = vmatprep.mubr.bf16.mxu0 0
      %2369 = vmatmul.mubr.bf16.gmra.mxu0 %v1044
      %v2370 = vpop.f32.mrf.mxu0
      %v2371 = vadd.f32 %v2074, %v2370
      %v2372 = vpop.f32.mrf.mxu0
      %v2373 = vpop.f32.mrf.mxu0
      %v2374 = vadd.f32 %v2077, %v2373
      %v2375 = vpop.f32.mrf.mxu0
      %2376 = vdwg.mxu0
      %s2377 = scalar_lea.vmem %s1, 448
      %v2378 = vld [vmem:[%s2377] sm:$0xf]
      %v2379 = vld [vmem:[%s2377 + $0x4] sm:$0xf]
      %v2380 = vld [vmem:[%s2377 + $0x8] sm:$0xf]
      %v2381 = vld [vmem:[%s2377 + $0xc] sm:$0xf]
      %v2382 = vld [vmem:[%s2377 + $0x10] sm:$0xf]
      %v2383 = vld [vmem:[%s2377 + $0x14] sm:$0xf]
      %v2384 = vld [vmem:[%s2377 + $0x18] sm:$0xf]
      %v2385 = vld [vmem:[%s2377 + $0x1c] sm:$0xf]
      %v2386 = vld [vmem:[%s2377 + $0x20] sm:$0xf]
      %v2387 = vld [vmem:[%s2377 + $0x24] sm:$0xf]
      %v2388 = vld [vmem:[%s2377 + $0x28] sm:$0xf]
      %v2389 = vld [vmem:[%s2377 + $0x2c] sm:$0xf]
      %v2390 = vld [vmem:[%s2377 + $0x30] sm:$0xf]
      %v2391 = vld [vmem:[%s2377 + $0x34] sm:$0xf]
      %v2392 = vld [vmem:[%s2377 + $0x38] sm:$0xf]
      %v2393 = vld [vmem:[%s2377 + $0x3c] sm:$0xf]
      %v2410 = vunpack.c.l.b16 %v2378
      %v2411 = vunpack.c.l.b16 %v2379
      %v2412 = vunpack.c.l.b16 %v2380
      %v2413 = vunpack.c.l.b16 %v2381
      %v2414 = vunpack.c.l.b16 %v2382
      %v2415 = vunpack.c.l.b16 %v2383
      %v2416 = vunpack.c.l.b16 %v2384
      %v2417 = vunpack.c.l.b16 %v2385
      %v2418 = vunpack.c.l.b16 %v2386
      %v2419 = vunpack.c.l.b16 %v2387
      %v2420 = vunpack.c.l.b16 %v2388
      %v2421 = vunpack.c.l.b16 %v2389
      %v2422 = vunpack.c.l.b16 %v2390
      %v2423 = vunpack.c.l.b16 %v2391
      %v2424 = vunpack.c.l.b16 %v2392
      %v2425 = vunpack.c.l.b16 %v2393
      %v2426 = vpack.c.b16 %v2411, %v2410
      %v2427 = vpack.c.b16 %v2413, %v2412
      %v2428 = vpack.c.b16 %v2415, %v2414
      %v2429 = vpack.c.b16 %v2417, %v2416
      %v2430 = vpack.c.b16 %v2419, %v2418
      %v2431 = vpack.c.b16 %v2421, %v2420
      %v2432 = vpack.c.b16 %v2423, %v2422
      %v2433 = vpack.c.b16 %v2425, %v2424
      %2442 = vmatprep.subr.bf16.mxu0 0
      %2443 = vmatpush1.bf16.msra.mxu0 %v2433
      %2444 = vmatprep.subr.bf16.mxu0 0
      %2445 = vmatpush1.bf16.msra.mxu0 %v2432
      %2446 = vmatprep.subr.bf16.mxu0 0
      %2447 = vmatpush1.bf16.msra.mxu0 %v2431
      %2448 = vmatprep.subr.bf16.mxu0 0
      %2449 = vmatpush1.bf16.msra.mxu0 %v2430
      %2450 = vmatprep.subr.bf16.mxu0 0
      %2451 = vmatpush1.bf16.msra.mxu0 %v2429
      %2452 = vmatprep.subr.bf16.mxu0 0
      %2453 = vmatpush1.bf16.msra.mxu0 %v2428
      %2454 = vmatprep.subr.bf16.mxu0 0
      %2455 = vmatpush1.bf16.msra.mxu0 %v2427
      %2456 = vmatprep.subr.bf16.mxu0 0
      %2457 = vmatpush1.bf16.msra.mxu0 %v2426
      %2458 = vmatprep.subr.bf16.mxu0 0
      %2459 = vmatpush2.bf16.msra.mxu0 0
      %2460 = vmatprep.subr.bf16.mxu0 0
      %2461 = vmatpush2.bf16.msra.mxu0 0
      %2462 = vmatprep.subr.bf16.mxu0 0
      %2463 = vmatpush2.bf16.msra.mxu0 0
      %2464 = vmatprep.subr.bf16.mxu0 0
      %2465 = vmatpush2.bf16.msra.mxu0 0
      %2466 = vmatprep.subr.bf16.mxu0 0
      %2467 = vmatpush2.bf16.msra.mxu0 0
      %2468 = vmatprep.subr.bf16.mxu0 0
      %2469 = vmatpush2.bf16.msra.mxu0 0
      %2470 = vmatprep.subr.bf16.mxu0 0
      %2471 = vmatpush2.bf16.msra.mxu0 0
      %2472 = vmatprep.subr.bf16.mxu0 0
      %2473 = vmatpush2.bf16.msra.mxu0 0
      %2474 = vmatprep.mubr.bf16.mxu0 0
      %2475 = vmatmul.mubr.bf16.gmra.mxu0 %v1021
      %v2476 = vpop.f32.mrf.mxu0
      %v2477 = vadd.f32 0.0, %v2476
      %v2478 = vpop.f32.mrf.mxu0
      %v2479 = vpop.f32.mrf.mxu0
      %v2480 = vadd.f32 0.0, %v2479
      %v2481 = vpop.f32.mrf.mxu0
      %2482 = vmatprep.mubr.bf16.mxu0 0
      %2483 = vmatmul.mubr.bf16.gmra.mxu0 %v1022
      %v2484 = vpop.f32.mrf.mxu0
      %v2485 = vadd.f32 0.0, %v2484
      %v2486 = vpop.f32.mrf.mxu0
      %v2487 = vpop.f32.mrf.mxu0
      %v2488 = vadd.f32 0.0, %v2487
      %v2489 = vpop.f32.mrf.mxu0
      %2490 = vmatprep.mubr.bf16.mxu0 0
      %2491 = vmatmul.mubr.bf16.gmra.mxu0 %v1023
      %v2492 = vpop.f32.mrf.mxu0
      %v2493 = vadd.f32 0.0, %v2492
      %v2494 = vpop.f32.mrf.mxu0
      %v2495 = vpop.f32.mrf.mxu0
      %v2496 = vadd.f32 0.0, %v2495
      %v2497 = vpop.f32.mrf.mxu0
      %2498 = vmatprep.mubr.bf16.mxu0 0
      %2499 = vmatmul.mubr.bf16.gmra.mxu0 %v1024
      %v2500 = vpop.f32.mrf.mxu0
      %v2501 = vadd.f32 0.0, %v2500
      %v2502 = vpop.f32.mrf.mxu0
      %v2503 = vpop.f32.mrf.mxu0
      %v2504 = vadd.f32 0.0, %v2503
      %v2505 = vpop.f32.mrf.mxu0
      %2506 = vmatprep.mubr.bf16.mxu0 0
      %2507 = vmatmul.mubr.bf16.gmra.mxu0 %v1025
      %v2508 = vpop.f32.mrf.mxu0
      %v2509 = vadd.f32 0.0, %v2508
      %v2510 = vpop.f32.mrf.mxu0
      %v2511 = vpop.f32.mrf.mxu0
      %v2512 = vadd.f32 0.0, %v2511
      %v2513 = vpop.f32.mrf.mxu0
      %2514 = vmatprep.mubr.bf16.mxu0 0
      %2515 = vmatmul.mubr.bf16.gmra.mxu0 %v1026
      %v2516 = vpop.f32.mrf.mxu0
      %v2517 = vadd.f32 0.0, %v2516
      %v2518 = vpop.f32.mrf.mxu0
      %v2519 = vpop.f32.mrf.mxu0
      %v2520 = vadd.f32 0.0, %v2519
      %v2521 = vpop.f32.mrf.mxu0
      %2522 = vmatprep.mubr.bf16.mxu0 0
      %2523 = vmatmul.mubr.bf16.gmra.mxu0 %v1027
      %v2524 = vpop.f32.mrf.mxu0
      %v2525 = vadd.f32 0.0, %v2524
      %v2526 = vpop.f32.mrf.mxu0
      %v2527 = vpop.f32.mrf.mxu0
      %v2528 = vadd.f32 0.0, %v2527
      %v2529 = vpop.f32.mrf.mxu0
      %2530 = vmatprep.mubr.bf16.mxu0 0
      %2531 = vmatmul.mubr.bf16.gmra.mxu0 %v1028
      %v2532 = vpop.f32.mrf.mxu0
      %v2533 = vadd.f32 0.0, %v2532
      %v2534 = vpop.f32.mrf.mxu0
      %v2535 = vpop.f32.mrf.mxu0
      %v2536 = vadd.f32 0.0, %v2535
      %v2537 = vpop.f32.mrf.mxu0
      %2538 = vmatprep.mubr.bf16.mxu0 0
      %2539 = vmatmul.mubr.bf16.gmra.mxu0 %v1029
      %v2540 = vpop.f32.mrf.mxu0
      %v2541 = vadd.f32 0.0, %v2540
      %v2542 = vpop.f32.mrf.mxu0
      %v2543 = vpop.f32.mrf.mxu0
      %v2544 = vadd.f32 0.0, %v2543
      %v2545 = vpop.f32.mrf.mxu0
      %2546 = vmatprep.mubr.bf16.mxu0 0
      %2547 = vmatmul.mubr.bf16.gmra.mxu0 %v1030
      %v2548 = vpop.f32.mrf.mxu0
      %v2549 = vadd.f32 0.0, %v2548
      %v2550 = vpop.f32.mrf.mxu0
      %v2551 = vpop.f32.mrf.mxu0
      %v2552 = vadd.f32 0.0, %v2551
      %v2553 = vpop.f32.mrf.mxu0
      %2554 = vmatprep.mubr.bf16.mxu0 0
      %2555 = vmatmul.mubr.bf16.gmra.mxu0 %v1031
      %v2556 = vpop.f32.mrf.mxu0
      %v2557 = vadd.f32 0.0, %v2556
      %v2558 = vpop.f32.mrf.mxu0
      %v2559 = vpop.f32.mrf.mxu0
      %v2560 = vadd.f32 0.0, %v2559
      %v2561 = vpop.f32.mrf.mxu0
      %2562 = vmatprep.mubr.bf16.mxu0 0
      %2563 = vmatmul.mubr.bf16.gmra.mxu0 %v1032
      %v2564 = vpop.f32.mrf.mxu0
      %v2565 = vadd.f32 0.0, %v2564
      %v2566 = vpop.f32.mrf.mxu0
      %v2567 = vpop.f32.mrf.mxu0
      %v2568 = vadd.f32 0.0, %v2567
      %v2569 = vpop.f32.mrf.mxu0
      %2570 = vmatprep.mubr.bf16.mxu0 0
      %2571 = vmatmul.mubr.bf16.gmra.mxu0 %v1033
      %v2572 = vpop.f32.mrf.mxu0
      %v2573 = vadd.f32 0.0, %v2572
      %v2574 = vpop.f32.mrf.mxu0
      %v2575 = vpop.f32.mrf.mxu0
      %v2576 = vadd.f32 0.0, %v2575
      %v2577 = vpop.f32.mrf.mxu0
      %2578 = vmatprep.mubr.bf16.mxu0 0
      %2579 = vmatmul.mubr.bf16.gmra.mxu0 %v1034
      %v2580 = vpop.f32.mrf.mxu0
      %v2581 = vadd.f32 0.0, %v2580
      %v2582 = vpop.f32.mrf.mxu0
      %v2583 = vpop.f32.mrf.mxu0
      %v2584 = vadd.f32 0.0, %v2583
      %v2585 = vpop.f32.mrf.mxu0
      %2586 = vmatprep.mubr.bf16.mxu0 0
      %2587 = vmatmul.mubr.bf16.gmra.mxu0 %v1035
      %v2588 = vpop.f32.mrf.mxu0
      %v2589 = vadd.f32 0.0, %v2588
      %v2590 = vpop.f32.mrf.mxu0
      %v2591 = vpop.f32.mrf.mxu0
      %v2592 = vadd.f32 0.0, %v2591
      %v2593 = vpop.f32.mrf.mxu0
      %2594 = vmatprep.mubr.bf16.mxu0 0
      %2595 = vmatmul.mubr.bf16.gmra.mxu0 %v1036
      %v2596 = vpop.f32.mrf.mxu0
      %v2597 = vadd.f32 0.0, %v2596
      %v2598 = vpop.f32.mrf.mxu0
      %v2599 = vpop.f32.mrf.mxu0
      %v2600 = vadd.f32 0.0, %v2599
      %v2601 = vpop.f32.mrf.mxu0
      %2602 = vmatprep.mubr.bf16.mxu0 0
      %2603 = vmatmul.mubr.bf16.gmra.mxu0 %v1037
      %v2604 = vpop.f32.mrf.mxu0
      %v2605 = vadd.f32 0.0, %v2604
      %v2606 = vpop.f32.mrf.mxu0
      %v2607 = vpop.f32.mrf.mxu0
      %v2608 = vadd.f32 0.0, %v2607
      %v2609 = vpop.f32.mrf.mxu0
      %2610 = vmatprep.mubr.bf16.mxu0 0
      %2611 = vmatmul.mubr.bf16.gmra.mxu0 %v1038
      %v2612 = vpop.f32.mrf.mxu0
      %v2613 = vadd.f32 0.0, %v2612
      %v2614 = vpop.f32.mrf.mxu0
      %v2615 = vpop.f32.mrf.mxu0
      %v2616 = vadd.f32 0.0, %v2615
      %v2617 = vpop.f32.mrf.mxu0
      %2618 = vmatprep.mubr.bf16.mxu0 0
      %2619 = vmatmul.mubr.bf16.gmra.mxu0 %v1039
      %v2620 = vpop.f32.mrf.mxu0
      %v2621 = vadd.f32 0.0, %v2620
      %v2622 = vpop.f32.mrf.mxu0
      %v2623 = vpop.f32.mrf.mxu0
      %v2624 = vadd.f32 0.0, %v2623
      %v2625 = vpop.f32.mrf.mxu0
      %2626 = vmatprep.mubr.bf16.mxu0 0
      %2627 = vmatmul.mubr.bf16.gmra.mxu0 %v1040
      %v2628 = vpop.f32.mrf.mxu0
      %v2629 = vadd.f32 0.0, %v2628
      %v2630 = vpop.f32.mrf.mxu0
      %v2631 = vpop.f32.mrf.mxu0
      %v2632 = vadd.f32 0.0, %v2631
      %v2633 = vpop.f32.mrf.mxu0
      %2634 = vmatprep.mubr.bf16.mxu0 0
      %2635 = vmatmul.mubr.bf16.gmra.mxu0 %v1041
      %v2636 = vpop.f32.mrf.mxu0
      %v2637 = vadd.f32 0.0, %v2636
      %v2638 = vpop.f32.mrf.mxu0
      %v2639 = vpop.f32.mrf.mxu0
      %v2640 = vadd.f32 0.0, %v2639
      %v2641 = vpop.f32.mrf.mxu0
      %2642 = vmatprep.mubr.bf16.mxu0 0
      %2643 = vmatmul.mubr.bf16.gmra.mxu0 %v1042
      %v2644 = vpop.f32.mrf.mxu0
      %v2645 = vadd.f32 0.0, %v2644
      %v2646 = vpop.f32.mrf.mxu0
      %v2647 = vpop.f32.mrf.mxu0
      %v2648 = vadd.f32 0.0, %v2647
      %v2649 = vpop.f32.mrf.mxu0
      %2650 = vmatprep.mubr.bf16.mxu0 0
      %2651 = vmatmul.mubr.bf16.gmra.mxu0 %v1043
      %v2652 = vpop.f32.mrf.mxu0
      %v2653 = vadd.f32 0.0, %v2652
      %v2654 = vpop.f32.mrf.mxu0
      %v2655 = vpop.f32.mrf.mxu0
      %v2656 = vadd.f32 0.0, %v2655
      %v2657 = vpop.f32.mrf.mxu0
      %2658 = vmatprep.mubr.bf16.mxu0 0
      %2659 = vmatmul.mubr.bf16.gmra.mxu0 %v1044
      %v2660 = vpop.f32.mrf.mxu0
      %v2661 = vadd.f32 0.0, %v2660
      %v2662 = vpop.f32.mrf.mxu0
      %v2663 = vpop.f32.mrf.mxu0
      %v2664 = vadd.f32 0.0, %v2663
      %v2665 = vpop.f32.mrf.mxu0
      %2666 = vmatprep.mubr.bf16.mxu0 0
      %2667 = vmatmul.mubr.bf16.gmra.mxu0 %v1392
      %v2668 = vpop.f32.mrf.mxu0
      %v2669 = vadd.f32 0.0, %v2668
      %v2670 = vpop.f32.mrf.mxu0
      %v2671 = vpop.f32.mrf.mxu0
      %v2672 = vadd.f32 0.0, %v2671
      %v2673 = vpop.f32.mrf.mxu0
      %2674 = vmatprep.mubr.bf16.mxu0 0
      %2675 = vmatmul.mubr.bf16.gmra.mxu0 %v1393
      %v2676 = vpop.f32.mrf.mxu0
      %v2677 = vadd.f32 0.0, %v2676
      %v2678 = vpop.f32.mrf.mxu0
      %v2679 = vpop.f32.mrf.mxu0
      %v2680 = vadd.f32 0.0, %v2679
      %v2681 = vpop.f32.mrf.mxu0
      %2682 = vmatprep.mubr.bf16.mxu0 0
      %2683 = vmatmul.mubr.bf16.gmra.mxu0 %v1394
      %v2684 = vpop.f32.mrf.mxu0
      %v2685 = vadd.f32 0.0, %v2684
      %v2686 = vpop.f32.mrf.mxu0
      %v2687 = vpop.f32.mrf.mxu0
      %v2688 = vadd.f32 0.0, %v2687
      %v2689 = vpop.f32.mrf.mxu0
      %2690 = vdwg.mxu0
      %v2691 = vadd.f32 %v2163, %v2477
      %v2692 = vadd.f32 %v2166, %v2480
      %v2693 = vadd.f32 %v2171, %v2485
      %v2694 = vadd.f32 %v2174, %v2488
      %v2695 = vadd.f32 %v2179, %v2493
      %v2696 = vadd.f32 %v2182, %v2496
      %v2697 = vadd.f32 %v2187, %v2501
      %v2698 = vadd.f32 %v2190, %v2504
      %v2699 = vadd.f32 %v2195, %v2509
      %v2700 = vadd.f32 %v2198, %v2512
      %v2701 = vadd.f32 %v2203, %v2517
      %v2702 = vadd.f32 %v2206, %v2520
      %v2703 = vadd.f32 %v2211, %v2525
      %v2704 = vadd.f32 %v2214, %v2528
      %v2705 = vadd.f32 %v2219, %v2533
      %v2706 = vadd.f32 %v2222, %v2536
      %v2707 = vadd.f32 %v2227, %v2541
      %v2708 = vadd.f32 %v2230, %v2544
      %v2709 = vadd.f32 %v2235, %v2549
      %v2710 = vadd.f32 %v2238, %v2552
      %v2711 = vadd.f32 %v2243, %v2557
      %v2712 = vadd.f32 %v2246, %v2560
      %v2713 = vadd.f32 %v2251, %v2565
      %v2714 = vadd.f32 %v2254, %v2568
      %v2715 = vadd.f32 %v2259, %v2573
      %v2716 = vadd.f32 %v2262, %v2576
      %v2717 = vadd.f32 %v2267, %v2581
      %v2718 = vadd.f32 %v2270, %v2584
      %v2719 = vadd.f32 %v2275, %v2589
      %v2720 = vadd.f32 %v2278, %v2592
      %v2721 = vadd.f32 %v2283, %v2597
      %v2722 = vadd.f32 %v2286, %v2600
      %v2723 = vadd.f32 %v2291, %v2605
      %v2724 = vadd.f32 %v2294, %v2608
      %v2725 = vadd.f32 %v2299, %v2613
      %v2726 = vadd.f32 %v2302, %v2616
      %v2727 = vadd.f32 %v2307, %v2621
      %v2728 = vadd.f32 %v2310, %v2624
      %v2729 = vadd.f32 %v2315, %v2629
      %v2730 = vadd.f32 %v2318, %v2632
      %v2731 = vadd.f32 %v2323, %v2637
      %v2732 = vadd.f32 %v2326, %v2640
      %v2733 = vadd.f32 %v2331, %v2645
      %v2734 = vadd.f32 %v2334, %v2648
      %v2735 = vadd.f32 %v2339, %v2653
      %v2736 = vadd.f32 %v2342, %v2656
      %v2737 = vadd.f32 %v2347, %v2661
      %v2738 = vadd.f32 %v2350, %v2664
      %v2739 = vadd.f32 %v2355, %v2669
      %v2740 = vadd.f32 %v2358, %v2672
      %v2741 = vadd.f32 %v2363, %v2677
      %v2742 = vadd.f32 %v2366, %v2680
      %v2743 = vadd.f32 %v2371, %v2685
      %v2744 = vadd.f32 %v2374, %v2688
      %v2745 = vrot.slane %v1695, 1
      %v2746 = vrot.slane %v1696, 1
      %v2747 = vrot.slane %v1697, 1
      %v2748 = vrot.slane %v1698, 1
      %v2749 = vrot.slane %v1699, 1
      %v2750 = vrot.slane %v1700, 1
      %v2751 = vrot.slane %v1701, 1
      %v2752 = vrot.slane %v1702, 1
      %v2753 = vrot.slane %v1703, 1
      %v2754 = vrot.slane %v1704, 1
      %v2755 = vrot.slane %v1705, 1
      %v2756 = vrot.slane %v1706, 1
      %v2757 = vrot.slane %v1707, 1
      %v2758 = vrot.slane %v1708, 1
      %v2759 = vrot.slane %v1709, 1
      %v2760 = vrot.slane %v1710, 1
      %v2761 = vrot.slane %v1711, 1
      %v2762 = vrot.slane %v1712, 1
      %v2763 = vrot.slane %v1713, 1
      %v2764 = vrot.slane %v1714, 1
      %v2765 = vrot.slane %v1715, 1
      %v2766 = vrot.slane %v1716, 1
      %v2767 = vrot.slane %v1717, 1
      %v2768 = vrot.slane %v1718, 1
      %v2769 = vrot.slane %v1719, 1
      %v2770 = vrot.slane %v1720, 1
      %v2771 = vrot.slane %v1721, 1
      %v2772 = vrot.slane %v1722, 1
      %v2773 = vrot.slane %v1723, 1
      %v2774 = vrot.slane %v1724, 1
      %v2775 = vrot.slane %v1725, 1
      %v2776 = vrot.slane %v1726, 1
      %v2777 = vrot.slane %v1727, 1
      %v2778 = vrot.slane %v1728, 1
      %v2779 = vrot.slane %v1729, 1
      %v2780 = vrot.slane %v1730, 1
      %v2781 = vrot.slane %v1731, 1
      %v2782 = vrot.slane %v1732, 1
      %v2783 = vrot.slane %v1733, 1
      %v2784 = vrot.slane %v1734, 1
      %v2785 = vrot.slane %v1735, 1
      %v2786 = vrot.slane %v1736, 1
      %v2787 = vrot.slane %v1737, 1
      %v2788 = vrot.slane %v1738, 1
      %v2789 = vrot.slane %v1739, 1
      %v2790 = vrot.slane %v1740, 1
      %v2791 = vrot.slane %v1741, 1
      %v2792 = vrot.slane %v1742, 1
      %v2793 = vrot.slane %v1743, 1
      %v2794 = vrot.slane %v1744, 1
      %v2795 = vrot.slane %v1745, 1
      %v2796 = vrot.slane %v1746, 1
      %v2797 = vrot.slane %v1747, 1
      %v2798 = vrot.slane %v1748, 1
      %v2799 = vlaneseq
      %v2800 = vshrl.u32 %v2799, 7
      %vm2801 = vcmp.lt.s32.totalorder %v2800, 7
      %v2802 = vsel %vm2801, %v2797, %v2798
      %v2803 = vsel %vm2801, %v2796, %v2797
      %v2804 = vsel %vm2801, %v2795, %v2796
      %v2805 = vsel %vm2801, %v2794, %v2795
      %v2806 = vsel %vm2801, %v2793, %v2794
      %v2807 = vsel %vm2801, %v2792, %v2793
      %v2808 = vsel %vm2801, %v2791, %v2792
      %v2809 = vsel %vm2801, %v2790, %v2791
      %v2810 = vsel %vm2801, %v2789, %v2790
      %v2811 = vsel %vm2801, %v2788, %v2789
      %v2812 = vsel %vm2801, %v2787, %v2788
      %v2813 = vsel %vm2801, %v2786, %v2787
      %v2814 = vsel %vm2801, %v2785, %v2786
      %v2815 = vsel %vm2801, %v2784, %v2785
      %v2816 = vsel %vm2801, %v2783, %v2784
      %v2817 = vsel %vm2801, %v2782, %v2783
      %v2818 = vsel %vm2801, %v2781, %v2782
      %v2819 = vsel %vm2801, %v2780, %v2781
      %v2820 = vsel %vm2801, %v2779, %v2780
      %v2821 = vsel %vm2801, %v2778, %v2779
      %v2822 = vsel %vm2801, %v2777, %v2778
      %v2823 = vsel %vm2801, %v2776, %v2777
      %v2824 = vsel %vm2801, %v2775, %v2776
      %v2825 = vsel %vm2801, %v2774, %v2775
      %v2826 = vsel %vm2801, %v2773, %v2774
      %v2827 = vsel %vm2801, %v2772, %v2773
      %v2828 = vsel %vm2801, %v2771, %v2772
      %v2829 = vsel %vm2801, %v2770, %v2771
      %v2830 = vsel %vm2801, %v2769, %v2770
      %v2831 = vsel %vm2801, %v2768, %v2769
      %v2832 = vsel %vm2801, %v2767, %v2768
      %v2833 = vsel %vm2801, %v2766, %v2767
      %v2834 = vsel %vm2801, %v2765, %v2766
      %v2835 = vsel %vm2801, %v2764, %v2765
      %v2836 = vsel %vm2801, %v2763, %v2764
      %v2837 = vsel %vm2801, %v2762, %v2763
      %v2838 = vsel %vm2801, %v2761, %v2762
      %v2839 = vsel %vm2801, %v2760, %v2761
      %v2840 = vsel %vm2801, %v2759, %v2760
      %v2841 = vsel %vm2801, %v2758, %v2759
      %v2842 = vsel %vm2801, %v2757, %v2758
      %v2843 = vsel %vm2801, %v2756, %v2757
      %v2844 = vsel %vm2801, %v2755, %v2756
      %v2845 = vsel %vm2801, %v2754, %v2755
      %v2846 = vsel %vm2801, %v2753, %v2754
      %v2847 = vsel %vm2801, %v2752, %v2753
      %v2848 = vsel %vm2801, %v2751, %v2752
      %v2849 = vsel %vm2801, %v2750, %v2751
      %v2850 = vsel %vm2801, %v2749, %v2750
      %v2851 = vsel %vm2801, %v2748, %v2749
      %v2852 = vsel %vm2801, %v2747, %v2748
      %v2853 = vsel %vm2801, %v2746, %v2747
      %v2854 = vsel %vm2801, %v2745, %v2746
      %v2855 = vsel %vm2801, %v2798, %v2745
      %v2856 = vadd.f32 %v2854, %v2691
      %v2857 = vadd.f32 %v2853, %v2692
      %v2858 = vadd.f32 %v2852, %v2693
      %v2859 = vadd.f32 %v2851, %v2694
      %v2860 = vadd.f32 %v2850, %v2695
      %v2861 = vadd.f32 %v2849, %v2696
      %v2862 = vadd.f32 %v2848, %v2697
      %v2863 = vadd.f32 %v2847, %v2698
      %v2864 = vadd.f32 %v2846, %v2699
      %v2865 = vadd.f32 %v2845, %v2700
      %v2866 = vadd.f32 %v2844, %v2701
      %v2867 = vadd.f32 %v2843, %v2702
      %v2868 = vadd.f32 %v2842, %v2703
      %v2869 = vadd.f32 %v2841, %v2704
      %v2870 = vadd.f32 %v2840, %v2705
      %v2871 = vadd.f32 %v2839, %v2706
      %v2872 = vadd.f32 %v2838, %v2707
      %v2873 = vadd.f32 %v2837, %v2708
      %v2874 = vadd.f32 %v2836, %v2709
      %v2875 = vadd.f32 %v2835, %v2710
      %v2876 = vadd.f32 %v2834, %v2711
      %v2877 = vadd.f32 %v2833, %v2712
      %v2878 = vadd.f32 %v2832, %v2713
      %v2879 = vadd.f32 %v2831, %v2714
      %v2880 = vadd.f32 %v2830, %v2715
      %v2881 = vadd.f32 %v2829, %v2716
      %v2882 = vadd.f32 %v2828, %v2717
      %v2883 = vadd.f32 %v2827, %v2718
      %v2884 = vadd.f32 %v2826, %v2719
      %v2885 = vadd.f32 %v2825, %v2720
      %v2886 = vadd.f32 %v2824, %v2721
      %v2887 = vadd.f32 %v2823, %v2722
      %v2888 = vadd.f32 %v2822, %v2723
      %v2889 = vadd.f32 %v2821, %v2724
      %v2890 = vadd.f32 %v2820, %v2725
      %v2891 = vadd.f32 %v2819, %v2726
      %v2892 = vadd.f32 %v2818, %v2727
      %v2893 = vadd.f32 %v2817, %v2728
      %v2894 = vadd.f32 %v2816, %v2729
      %v2895 = vadd.f32 %v2815, %v2730
      %v2896 = vadd.f32 %v2814, %v2731
      %v2897 = vadd.f32 %v2813, %v2732
      %v2898 = vadd.f32 %v2812, %v2733
      %v2899 = vadd.f32 %v2811, %v2734
      %v2900 = vadd.f32 %v2810, %v2735
      %v2901 = vadd.f32 %v2809, %v2736
      %v2902 = vadd.f32 %v2808, %v2737
      %v2903 = vadd.f32 %v2807, %v2738
      %v2904 = vadd.f32 %v2806, %v2739
      %v2905 = vadd.f32 %v2805, %v2740
      %v2906 = vadd.f32 %v2804, %v2741
      %v2907 = vadd.f32 %v2803, %v2742
      %v2908 = vadd.f32 %v2802, %v2743
      %v2909 = vadd.f32 %v2855, %v2744
      %v2910 = vld [vmem:[%s1] sm:$0xf]
      %v2911 = vld [vmem:[%s1 + $0x4] sm:$0xf]
      %v2912 = vld [vmem:[%s1 + $0x8] sm:$0xf]
      %v2913 = vld [vmem:[%s1 + $0xc] sm:$0xf]
      %v2914 = vld [vmem:[%s1 + $0x10] sm:$0xf]
      %v2915 = vld [vmem:[%s1 + $0x14] sm:$0xf]
      %v2916 = vld [vmem:[%s1 + $0x18] sm:$0xf]
      %v2917 = vld [vmem:[%s1 + $0x1c] sm:$0xf]
      %v2918 = vld [vmem:[%s1 + $0x20] sm:$0xf]
      %v2919 = vld [vmem:[%s1 + $0x24] sm:$0xf]
      %v2920 = vld [vmem:[%s1 + $0x28] sm:$0xf]
      %v2921 = vld [vmem:[%s1 + $0x2c] sm:$0xf]
      %v2922 = vld [vmem:[%s1 + $0x30] sm:$0xf]
      %v2923 = vld [vmem:[%s1 + $0x34] sm:$0xf]
      %v2924 = vld [vmem:[%s1 + $0x38] sm:$0xf]
      %v2925 = vld [vmem:[%s1 + $0x3c] sm:$0xf]
      %s2926 = scalar_lea.vmem %s1, 192
      %v2927 = vld [vmem:[%s2926] sm:$0xf]
      %v2928 = vld [vmem:[%s2926 + $0x4] sm:$0xf]
      %v2929 = vld [vmem:[%s2926 + $0x8] sm:$0xf]
      %v2930 = vld [vmem:[%s2926 + $0xc] sm:$0xf]
      %v2931 = vld [vmem:[%s2926 + $0x10] sm:$0xf]
      %v2932 = vld [vmem:[%s2926 + $0x14] sm:$0xf]
      %v2933 = vld [vmem:[%s2926 + $0x18] sm:$0xf]
      %v2934 = vld [vmem:[%s2926 + $0x1c] sm:$0xf]
      %v2935 = vld [vmem:[%s2926 + $0x20] sm:$0xf]
      %v2936 = vld [vmem:[%s2926 + $0x24] sm:$0xf]
      %v2937 = vld [vmem:[%s2926 + $0x28] sm:$0xf]
      %v2938 = vld [vmem:[%s2926 + $0x2c] sm:$0xf]
      %v2939 = vld [vmem:[%s2926 + $0x30] sm:$0xf]
      %v2940 = vld [vmem:[%s2926 + $0x34] sm:$0xf]
      %v2941 = vld [vmem:[%s2926 + $0x38] sm:$0xf]
      %v2942 = vld [vmem:[%s2926 + $0x3c] sm:$0xf]
      %v2959 = vunpack.c.l.b16 %v2927
      %v2960 = vunpack.c.l.b16 %v2928
      %v2961 = vunpack.c.l.b16 %v2929
      %v2962 = vunpack.c.l.b16 %v2930
      %v2963 = vunpack.c.l.b16 %v2931
      %v2964 = vunpack.c.l.b16 %v2932
      %v2965 = vunpack.c.l.b16 %v2933
      %v2966 = vunpack.c.l.b16 %v2934
      %v2967 = vunpack.c.l.b16 %v2935
      %v2968 = vunpack.c.l.b16 %v2936
      %v2969 = vunpack.c.l.b16 %v2937
      %v2970 = vunpack.c.l.b16 %v2938
      %v2971 = vunpack.c.l.b16 %v2939
      %v2972 = vunpack.c.l.b16 %v2940
      %v2973 = vunpack.c.l.b16 %v2941
      %v2974 = vunpack.c.l.b16 %v2942
      %v2975 = vpack.c.b16 %v2960, %v2959
      %v2976 = vpack.c.b16 %v2962, %v2961
      %v2977 = vpack.c.b16 %v2964, %v2963
      %v2978 = vpack.c.b16 %v2966, %v2965
      %v2979 = vpack.c.b16 %v2968, %v2967
      %v2980 = vpack.c.b16 %v2970, %v2969
      %v2981 = vpack.c.b16 %v2972, %v2971
      %v2982 = vpack.c.b16 %v2974, %v2973
      %2991 = vmatprep.subr.bf16.mxu0 0
      %2992 = vmatpush1.bf16.msra.mxu0 %v2982
      %2993 = vmatprep.subr.bf16.mxu0 0
      %2994 = vmatpush1.bf16.msra.mxu0 %v2981
      %2995 = vmatprep.subr.bf16.mxu0 0
      %2996 = vmatpush1.bf16.msra.mxu0 %v2980
      %2997 = vmatprep.subr.bf16.mxu0 0
      %2998 = vmatpush1.bf16.msra.mxu0 %v2979
      %2999 = vmatprep.subr.bf16.mxu0 0
      %3000 = vmatpush1.bf16.msra.mxu0 %v2978
      %3001 = vmatprep.subr.bf16.mxu0 0
      %3002 = vmatpush1.bf16.msra.mxu0 %v2977
      %3003 = vmatprep.subr.bf16.mxu0 0
      %3004 = vmatpush1.bf16.msra.mxu0 %v2976
      %3005 = vmatprep.subr.bf16.mxu0 0
      %3006 = vmatpush1.bf16.msra.mxu0 %v2975
      %3007 = vmatprep.subr.bf16.mxu0 0
      %3008 = vmatpush2.bf16.msra.mxu0 0
      %3009 = vmatprep.subr.bf16.mxu0 0
      %3010 = vmatpush2.bf16.msra.mxu0 0
      %3011 = vmatprep.subr.bf16.mxu0 0
      %3012 = vmatpush2.bf16.msra.mxu0 0
      %3013 = vmatprep.subr.bf16.mxu0 0
      %3014 = vmatpush2.bf16.msra.mxu0 0
      %3015 = vmatprep.subr.bf16.mxu0 0
      %3016 = vmatpush2.bf16.msra.mxu0 0
      %3017 = vmatprep.subr.bf16.mxu0 0
      %3018 = vmatpush2.bf16.msra.mxu0 0
      %3019 = vmatprep.subr.bf16.mxu0 0
      %3020 = vmatpush2.bf16.msra.mxu0 0
      %3021 = vmatprep.subr.bf16.mxu0 0
      %3022 = vmatpush2.bf16.msra.mxu0 0
      %3023 = vmatprep.mubr.bf16.mxu0 0
      %3024 = vmatmul.mubr.bf16.gmra.mxu0 %v661
      %v3025 = vpop.f32.mrf.mxu0
      %v3026 = vadd.f32 0.0, %v3025
      %v3027 = vpop.f32.mrf.mxu0
      %v3028 = vpop.f32.mrf.mxu0
      %v3029 = vadd.f32 0.0, %v3028
      %v3030 = vpop.f32.mrf.mxu0
      %3031 = vmatprep.mubr.bf16.mxu0 0
      %3032 = vmatmul.mubr.bf16.gmra.mxu0 %v662
      %v3033 = vpop.f32.mrf.mxu0
      %v3034 = vadd.f32 0.0, %v3033
      %v3035 = vpop.f32.mrf.mxu0
      %v3036 = vpop.f32.mrf.mxu0
      %v3037 = vadd.f32 0.0, %v3036
      %v3038 = vpop.f32.mrf.mxu0
      %3039 = vmatprep.mubr.bf16.mxu0 0
      %3040 = vmatmul.mubr.bf16.gmra.mxu0 %v663
      %v3041 = vpop.f32.mrf.mxu0
      %v3042 = vadd.f32 0.0, %v3041
      %v3043 = vpop.f32.mrf.mxu0
      %v3044 = vpop.f32.mrf.mxu0
      %v3045 = vadd.f32 0.0, %v3044
      %v3046 = vpop.f32.mrf.mxu0
      %3047 = vmatprep.mubr.bf16.mxu0 0
      %3048 = vmatmul.mubr.bf16.gmra.mxu0 %v664
      %v3049 = vpop.f32.mrf.mxu0
      %v3050 = vadd.f32 0.0, %v3049
      %v3051 = vpop.f32.mrf.mxu0
      %v3052 = vpop.f32.mrf.mxu0
      %v3053 = vadd.f32 0.0, %v3052
      %v3054 = vpop.f32.mrf.mxu0
      %3055 = vmatprep.mubr.bf16.mxu0 0
      %3056 = vmatmul.mubr.bf16.gmra.mxu0 %v665
      %v3057 = vpop.f32.mrf.mxu0
      %v3058 = vadd.f32 0.0, %v3057
      %v3059 = vpop.f32.mrf.mxu0
      %v3060 = vpop.f32.mrf.mxu0
      %v3061 = vadd.f32 0.0, %v3060
      %v3062 = vpop.f32.mrf.mxu0
      %3063 = vmatprep.mubr.bf16.mxu0 0
      %3064 = vmatmul.mubr.bf16.gmra.mxu0 %v666
      %v3065 = vpop.f32.mrf.mxu0
      %v3066 = vadd.f32 0.0, %v3065
      %v3067 = vpop.f32.mrf.mxu0
      %v3068 = vpop.f32.mrf.mxu0
      %v3069 = vadd.f32 0.0, %v3068
      %v3070 = vpop.f32.mrf.mxu0
      %3071 = vmatprep.mubr.bf16.mxu0 0
      %3072 = vmatmul.mubr.bf16.gmra.mxu0 %v667
      %v3073 = vpop.f32.mrf.mxu0
      %v3074 = vadd.f32 0.0, %v3073
      %v3075 = vpop.f32.mrf.mxu0
      %v3076 = vpop.f32.mrf.mxu0
      %v3077 = vadd.f32 0.0, %v3076
      %v3078 = vpop.f32.mrf.mxu0
      %3079 = vmatprep.mubr.bf16.mxu0 0
      %3080 = vmatmul.mubr.bf16.gmra.mxu0 %v668
      %v3081 = vpop.f32.mrf.mxu0
      %v3082 = vadd.f32 0.0, %v3081
      %v3083 = vpop.f32.mrf.mxu0
      %v3084 = vpop.f32.mrf.mxu0
      %v3085 = vadd.f32 0.0, %v3084
      %v3086 = vpop.f32.mrf.mxu0
      %3087 = vmatprep.mubr.bf16.mxu0 0
      %3088 = vmatmul.mubr.bf16.gmra.mxu0 %v669
      %v3089 = vpop.f32.mrf.mxu0
      %v3090 = vadd.f32 0.0, %v3089
      %v3091 = vpop.f32.mrf.mxu0
      %v3092 = vpop.f32.mrf.mxu0
      %v3093 = vadd.f32 0.0, %v3092
      %v3094 = vpop.f32.mrf.mxu0
      %3095 = vmatprep.mubr.bf16.mxu0 0
      %3096 = vmatmul.mubr.bf16.gmra.mxu0 %v670
      %v3097 = vpop.f32.mrf.mxu0
      %v3098 = vadd.f32 0.0, %v3097
      %v3099 = vpop.f32.mrf.mxu0
      %v3100 = vpop.f32.mrf.mxu0
      %v3101 = vadd.f32 0.0, %v3100
      %v3102 = vpop.f32.mrf.mxu0
      %3103 = vmatprep.mubr.bf16.mxu0 0
      %3104 = vmatmul.mubr.bf16.gmra.mxu0 %v671
      %v3105 = vpop.f32.mrf.mxu0
      %v3106 = vadd.f32 0.0, %v3105
      %v3107 = vpop.f32.mrf.mxu0
      %v3108 = vpop.f32.mrf.mxu0
      %v3109 = vadd.f32 0.0, %v3108
      %v3110 = vpop.f32.mrf.mxu0
      %3111 = vmatprep.mubr.bf16.mxu0 0
      %3112 = vmatmul.mubr.bf16.gmra.mxu0 %v672
      %v3113 = vpop.f32.mrf.mxu0
      %v3114 = vadd.f32 0.0, %v3113
      %v3115 = vpop.f32.mrf.mxu0
      %v3116 = vpop.f32.mrf.mxu0
      %v3117 = vadd.f32 0.0, %v3116
      %v3118 = vpop.f32.mrf.mxu0
      %3119 = vmatprep.mubr.bf16.mxu0 0
      %3120 = vmatmul.mubr.bf16.gmra.mxu0 %v673
      %v3121 = vpop.f32.mrf.mxu0
      %v3122 = vadd.f32 0.0, %v3121
      %v3123 = vpop.f32.mrf.mxu0
      %v3124 = vpop.f32.mrf.mxu0
      %v3125 = vadd.f32 0.0, %v3124
      %v3126 = vpop.f32.mrf.mxu0
      %3127 = vmatprep.mubr.bf16.mxu0 0
      %3128 = vmatmul.mubr.bf16.gmra.mxu0 %v674
      %v3129 = vpop.f32.mrf.mxu0
      %v3130 = vadd.f32 0.0, %v3129
      %v3131 = vpop.f32.mrf.mxu0
      %v3132 = vpop.f32.mrf.mxu0
      %v3133 = vadd.f32 0.0, %v3132
      %v3134 = vpop.f32.mrf.mxu0
      %3135 = vmatprep.mubr.bf16.mxu0 0
      %3136 = vmatmul.mubr.bf16.gmra.mxu0 %v675
      %v3137 = vpop.f32.mrf.mxu0
      %v3138 = vadd.f32 0.0, %v3137
      %v3139 = vpop.f32.mrf.mxu0
      %v3140 = vpop.f32.mrf.mxu0
      %v3141 = vadd.f32 0.0, %v3140
      %v3142 = vpop.f32.mrf.mxu0
      %3143 = vmatprep.mubr.bf16.mxu0 0
      %3144 = vmatmul.mubr.bf16.gmra.mxu0 %v676
      %v3145 = vpop.f32.mrf.mxu0
      %v3146 = vadd.f32 0.0, %v3145
      %v3147 = vpop.f32.mrf.mxu0
      %v3148 = vpop.f32.mrf.mxu0
      %v3149 = vadd.f32 0.0, %v3148
      %v3150 = vpop.f32.mrf.mxu0
      %3151 = vmatprep.mubr.bf16.mxu0 0
      %3152 = vmatmul.mubr.bf16.gmra.mxu0 %v677
      %v3153 = vpop.f32.mrf.mxu0
      %v3154 = vadd.f32 0.0, %v3153
      %v3155 = vpop.f32.mrf.mxu0
      %v3156 = vpop.f32.mrf.mxu0
      %v3157 = vadd.f32 0.0, %v3156
      %v3158 = vpop.f32.mrf.mxu0
      %3159 = vmatprep.mubr.bf16.mxu0 0
      %3160 = vmatmul.mubr.bf16.gmra.mxu0 %v678
      %v3161 = vpop.f32.mrf.mxu0
      %v3162 = vadd.f32 0.0, %v3161
      %v3163 = vpop.f32.mrf.mxu0
      %v3164 = vpop.f32.mrf.mxu0
      %v3165 = vadd.f32 0.0, %v3164
      %v3166 = vpop.f32.mrf.mxu0
      %3167 = vmatprep.mubr.bf16.mxu0 0
      %3168 = vmatmul.mubr.bf16.gmra.mxu0 %v679
      %v3169 = vpop.f32.mrf.mxu0
      %v3170 = vadd.f32 0.0, %v3169
      %v3171 = vpop.f32.mrf.mxu0
      %v3172 = vpop.f32.mrf.mxu0
      %v3173 = vadd.f32 0.0, %v3172
      %v3174 = vpop.f32.mrf.mxu0
      %3175 = vmatprep.mubr.bf16.mxu0 0
      %3176 = vmatmul.mubr.bf16.gmra.mxu0 %v680
      %v3177 = vpop.f32.mrf.mxu0
      %v3178 = vadd.f32 0.0, %v3177
      %v3179 = vpop.f32.mrf.mxu0
      %v3180 = vpop.f32.mrf.mxu0
      %v3181 = vadd.f32 0.0, %v3180
      %v3182 = vpop.f32.mrf.mxu0
      %3183 = vmatprep.mubr.bf16.mxu0 0
      %3184 = vmatmul.mubr.bf16.gmra.mxu0 %v681
      %v3185 = vpop.f32.mrf.mxu0
      %v3186 = vadd.f32 0.0, %v3185
      %v3187 = vpop.f32.mrf.mxu0
      %v3188 = vpop.f32.mrf.mxu0
      %v3189 = vadd.f32 0.0, %v3188
      %v3190 = vpop.f32.mrf.mxu0
      %3191 = vmatprep.mubr.bf16.mxu0 0
      %3192 = vmatmul.mubr.bf16.gmra.mxu0 %v682
      %v3193 = vpop.f32.mrf.mxu0
      %v3194 = vadd.f32 0.0, %v3193
      %v3195 = vpop.f32.mrf.mxu0
      %v3196 = vpop.f32.mrf.mxu0
      %v3197 = vadd.f32 0.0, %v3196
      %v3198 = vpop.f32.mrf.mxu0
      %3199 = vmatprep.mubr.bf16.mxu0 0
      %3200 = vmatmul.mubr.bf16.gmra.mxu0 %v683
      %v3201 = vpop.f32.mrf.mxu0
      %v3202 = vadd.f32 0.0, %v3201
      %v3203 = vpop.f32.mrf.mxu0
      %v3204 = vpop.f32.mrf.mxu0
      %v3205 = vadd.f32 0.0, %v3204
      %v3206 = vpop.f32.mrf.mxu0
      %3207 = vmatprep.mubr.bf16.mxu0 0
      %3208 = vmatmul.mubr.bf16.gmra.mxu0 %v684
      %v3209 = vpop.f32.mrf.mxu0
      %v3210 = vadd.f32 0.0, %v3209
      %v3211 = vpop.f32.mrf.mxu0
      %v3212 = vpop.f32.mrf.mxu0
      %v3213 = vadd.f32 0.0, %v3212
      %v3214 = vpop.f32.mrf.mxu0
      %3215 = vmatprep.mubr.bf16.mxu0 0
      %3216 = vmatmul.mubr.bf16.gmra.mxu0 %v685
      %v3217 = vpop.f32.mrf.mxu0
      %v3218 = vadd.f32 0.0, %v3217
      %v3219 = vpop.f32.mrf.mxu0
      %v3220 = vpop.f32.mrf.mxu0
      %v3221 = vadd.f32 0.0, %v3220
      %v3222 = vpop.f32.mrf.mxu0
      %3223 = vmatprep.mubr.bf16.mxu0 0
      %3224 = vmatmul.mubr.bf16.gmra.mxu0 %v686
      %v3225 = vpop.f32.mrf.mxu0
      %v3226 = vadd.f32 0.0, %v3225
      %v3227 = vpop.f32.mrf.mxu0
      %v3228 = vpop.f32.mrf.mxu0
      %v3229 = vadd.f32 0.0, %v3228
      %v3230 = vpop.f32.mrf.mxu0
      %3231 = vmatprep.mubr.bf16.mxu0 0
      %3232 = vmatmul.mubr.bf16.gmra.mxu0 %v687
      %v3233 = vpop.f32.mrf.mxu0
      %v3234 = vadd.f32 0.0, %v3233
      %v3235 = vpop.f32.mrf.mxu0
      %v3236 = vpop.f32.mrf.mxu0
      %v3237 = vadd.f32 0.0, %v3236
      %v3238 = vpop.f32.mrf.mxu0
      %3239 = vdwg.mxu0
      %v3256 = vunpack.c.l.b16 %v2910
      %v3257 = vunpack.c.l.b16 %v2911
      %v3258 = vunpack.c.l.b16 %v2912
      %v3259 = vunpack.c.l.b16 %v2913
      %v3260 = vunpack.c.l.b16 %v2914
      %v3261 = vunpack.c.l.b16 %v2915
      %v3262 = vunpack.c.l.b16 %v2916
      %v3263 = vunpack.c.l.b16 %v2917
      %v3264 = vunpack.c.l.b16 %v2918
      %v3265 = vunpack.c.l.b16 %v2919
      %v3266 = vunpack.c.l.b16 %v2920
      %v3267 = vunpack.c.l.b16 %v2921
      %v3268 = vunpack.c.l.b16 %v2922
      %v3269 = vunpack.c.l.b16 %v2923
      %v3270 = vunpack.c.l.b16 %v2924
      %v3271 = vunpack.c.l.b16 %v2925
      %v3272 = vpack.c.b16 %v3257, %v3256
      %v3273 = vpack.c.b16 %v3259, %v3258
      %v3274 = vpack.c.b16 %v3261, %v3260
      %v3275 = vpack.c.b16 %v3263, %v3262
      %v3276 = vpack.c.b16 %v3265, %v3264
      %v3277 = vpack.c.b16 %v3267, %v3266
      %v3278 = vpack.c.b16 %v3269, %v3268
      %v3279 = vpack.c.b16 %v3271, %v3270
      %3288 = vmatprep.subr.bf16.mxu0 0
      %3289 = vmatpush1.bf16.msra.mxu0 %v3279
      %3290 = vmatprep.subr.bf16.mxu0 0
      %3291 = vmatpush1.bf16.msra.mxu0 %v3278
      %3292 = vmatprep.subr.bf16.mxu0 0
      %3293 = vmatpush1.bf16.msra.mxu0 %v3277
      %3294 = vmatprep.subr.bf16.mxu0 0
      %3295 = vmatpush1.bf16.msra.mxu0 %v3276
      %3296 = vmatprep.subr.bf16.mxu0 0
      %3297 = vmatpush1.bf16.msra.mxu0 %v3275
      %3298 = vmatprep.subr.bf16.mxu0 0
      %3299 = vmatpush1.bf16.msra.mxu0 %v3274
      %3300 = vmatprep.subr.bf16.mxu0 0
      %3301 = vmatpush1.bf16.msra.mxu0 %v3273
      %3302 = vmatprep.subr.bf16.mxu0 0
      %3303 = vmatpush1.bf16.msra.mxu0 %v3272
      %3304 = vmatprep.subr.bf16.mxu0 0
      %3305 = vmatpush2.bf16.msra.mxu0 0
      %3306 = vmatprep.subr.bf16.mxu0 0
      %3307 = vmatpush2.bf16.msra.mxu0 0
      %3308 = vmatprep.subr.bf16.mxu0 0
      %3309 = vmatpush2.bf16.msra.mxu0 0
      %3310 = vmatprep.subr.bf16.mxu0 0
      %3311 = vmatpush2.bf16.msra.mxu0 0
      %3312 = vmatprep.subr.bf16.mxu0 0
      %3313 = vmatpush2.bf16.msra.mxu0 0
      %3314 = vmatprep.subr.bf16.mxu0 0
      %3315 = vmatpush2.bf16.msra.mxu0 0
      %3316 = vmatprep.subr.bf16.mxu0 0
      %3317 = vmatpush2.bf16.msra.mxu0 0
      %3318 = vmatprep.subr.bf16.mxu0 0
      %3319 = vmatpush2.bf16.msra.mxu0 0
      %3320 = vmatprep.mubr.bf16.mxu0 0
      %3321 = vmatmul.mubr.bf16.gmra.mxu0 %v1018
      %v3322 = vpop.f32.mrf.mxu0
      %v3323 = vadd.f32 %v3026, %v3322
      %v3324 = vpop.f32.mrf.mxu0
      %v3325 = vpop.f32.mrf.mxu0
      %v3326 = vadd.f32 %v3029, %v3325
      %v3327 = vpop.f32.mrf.mxu0
      %3328 = vmatprep.mubr.bf16.mxu0 0
      %3329 = vmatmul.mubr.bf16.gmra.mxu0 %v1019
      %v3330 = vpop.f32.mrf.mxu0
      %v3331 = vadd.f32 %v3034, %v3330
      %v3332 = vpop.f32.mrf.mxu0
      %v3333 = vpop.f32.mrf.mxu0
      %v3334 = vadd.f32 %v3037, %v3333
      %v3335 = vpop.f32.mrf.mxu0
      %3336 = vmatprep.mubr.bf16.mxu0 0
      %3337 = vmatmul.mubr.bf16.gmra.mxu0 %v1020
      %v3338 = vpop.f32.mrf.mxu0
      %v3339 = vadd.f32 %v3042, %v3338
      %v3340 = vpop.f32.mrf.mxu0
      %v3341 = vpop.f32.mrf.mxu0
      %v3342 = vadd.f32 %v3045, %v3341
      %v3343 = vpop.f32.mrf.mxu0
      %3344 = vmatprep.mubr.bf16.mxu0 0
      %3345 = vmatmul.mubr.bf16.gmra.mxu0 %v1021
      %v3346 = vpop.f32.mrf.mxu0
      %v3347 = vadd.f32 %v3050, %v3346
      %v3348 = vpop.f32.mrf.mxu0
      %v3349 = vpop.f32.mrf.mxu0
      %v3350 = vadd.f32 %v3053, %v3349
      %v3351 = vpop.f32.mrf.mxu0
      %3352 = vmatprep.mubr.bf16.mxu0 0
      %3353 = vmatmul.mubr.bf16.gmra.mxu0 %v1022
      %v3354 = vpop.f32.mrf.mxu0
      %v3355 = vadd.f32 %v3058, %v3354
      %v3356 = vpop.f32.mrf.mxu0
      %v3357 = vpop.f32.mrf.mxu0
      %v3358 = vadd.f32 %v3061, %v3357
      %v3359 = vpop.f32.mrf.mxu0
      %3360 = vmatprep.mubr.bf16.mxu0 0
      %3361 = vmatmul.mubr.bf16.gmra.mxu0 %v1023
      %v3362 = vpop.f32.mrf.mxu0
      %v3363 = vadd.f32 %v3066, %v3362
      %v3364 = vpop.f32.mrf.mxu0
      %v3365 = vpop.f32.mrf.mxu0
      %v3366 = vadd.f32 %v3069, %v3365
      %v3367 = vpop.f32.mrf.mxu0
      %3368 = vmatprep.mubr.bf16.mxu0 0
      %3369 = vmatmul.mubr.bf16.gmra.mxu0 %v1024
      %v3370 = vpop.f32.mrf.mxu0
      %v3371 = vadd.f32 %v3074, %v3370
      %v3372 = vpop.f32.mrf.mxu0
      %v3373 = vpop.f32.mrf.mxu0
      %v3374 = vadd.f32 %v3077, %v3373
      %v3375 = vpop.f32.mrf.mxu0
      %3376 = vmatprep.mubr.bf16.mxu0 0
      %3377 = vmatmul.mubr.bf16.gmra.mxu0 %v1025
      %v3378 = vpop.f32.mrf.mxu0
      %v3379 = vadd.f32 %v3082, %v3378
      %v3380 = vpop.f32.mrf.mxu0
      %v3381 = vpop.f32.mrf.mxu0
      %v3382 = vadd.f32 %v3085, %v3381
      %v3383 = vpop.f32.mrf.mxu0
      %3384 = vmatprep.mubr.bf16.mxu0 0
      %3385 = vmatmul.mubr.bf16.gmra.mxu0 %v1026
      %v3386 = vpop.f32.mrf.mxu0
      %v3387 = vadd.f32 %v3090, %v3386
      %v3388 = vpop.f32.mrf.mxu0
      %v3389 = vpop.f32.mrf.mxu0
      %v3390 = vadd.f32 %v3093, %v3389
      %v3391 = vpop.f32.mrf.mxu0
      %3392 = vmatprep.mubr.bf16.mxu0 0
      %3393 = vmatmul.mubr.bf16.gmra.mxu0 %v1027
      %v3394 = vpop.f32.mrf.mxu0
      %v3395 = vadd.f32 %v3098, %v3394
      %v3396 = vpop.f32.mrf.mxu0
      %v3397 = vpop.f32.mrf.mxu0
      %v3398 = vadd.f32 %v3101, %v3397
      %v3399 = vpop.f32.mrf.mxu0
      %3400 = vmatprep.mubr.bf16.mxu0 0
      %3401 = vmatmul.mubr.bf16.gmra.mxu0 %v1028
      %v3402 = vpop.f32.mrf.mxu0
      %v3403 = vadd.f32 %v3106, %v3402
      %v3404 = vpop.f32.mrf.mxu0
      %v3405 = vpop.f32.mrf.mxu0
      %v3406 = vadd.f32 %v3109, %v3405
      %v3407 = vpop.f32.mrf.mxu0
      %3408 = vmatprep.mubr.bf16.mxu0 0
      %3409 = vmatmul.mubr.bf16.gmra.mxu0 %v1029
      %v3410 = vpop.f32.mrf.mxu0
      %v3411 = vadd.f32 %v3114, %v3410
      %v3412 = vpop.f32.mrf.mxu0
      %v3413 = vpop.f32.mrf.mxu0
      %v3414 = vadd.f32 %v3117, %v3413
      %v3415 = vpop.f32.mrf.mxu0
      %3416 = vmatprep.mubr.bf16.mxu0 0
      %3417 = vmatmul.mubr.bf16.gmra.mxu0 %v1030
      %v3418 = vpop.f32.mrf.mxu0
      %v3419 = vadd.f32 %v3122, %v3418
      %v3420 = vpop.f32.mrf.mxu0
      %v3421 = vpop.f32.mrf.mxu0
      %v3422 = vadd.f32 %v3125, %v3421
      %v3423 = vpop.f32.mrf.mxu0
      %3424 = vmatprep.mubr.bf16.mxu0 0
      %3425 = vmatmul.mubr.bf16.gmra.mxu0 %v1031
      %v3426 = vpop.f32.mrf.mxu0
      %v3427 = vadd.f32 %v3130, %v3426
      %v3428 = vpop.f32.mrf.mxu0
      %v3429 = vpop.f32.mrf.mxu0
      %v3430 = vadd.f32 %v3133, %v3429
      %v3431 = vpop.f32.mrf.mxu0
      %3432 = vmatprep.mubr.bf16.mxu0 0
      %3433 = vmatmul.mubr.bf16.gmra.mxu0 %v1032
      %v3434 = vpop.f32.mrf.mxu0
      %v3435 = vadd.f32 %v3138, %v3434
      %v3436 = vpop.f32.mrf.mxu0
      %v3437 = vpop.f32.mrf.mxu0
      %v3438 = vadd.f32 %v3141, %v3437
      %v3439 = vpop.f32.mrf.mxu0
      %3440 = vmatprep.mubr.bf16.mxu0 0
      %3441 = vmatmul.mubr.bf16.gmra.mxu0 %v1033
      %v3442 = vpop.f32.mrf.mxu0
      %v3443 = vadd.f32 %v3146, %v3442
      %v3444 = vpop.f32.mrf.mxu0
      %v3445 = vpop.f32.mrf.mxu0
      %v3446 = vadd.f32 %v3149, %v3445
      %v3447 = vpop.f32.mrf.mxu0
      %3448 = vmatprep.mubr.bf16.mxu0 0
      %3449 = vmatmul.mubr.bf16.gmra.mxu0 %v1034
      %v3450 = vpop.f32.mrf.mxu0
      %v3451 = vadd.f32 %v3154, %v3450
      %v3452 = vpop.f32.mrf.mxu0
      %v3453 = vpop.f32.mrf.mxu0
      %v3454 = vadd.f32 %v3157, %v3453
      %v3455 = vpop.f32.mrf.mxu0
      %3456 = vmatprep.mubr.bf16.mxu0 0
      %3457 = vmatmul.mubr.bf16.gmra.mxu0 %v1035
      %v3458 = vpop.f32.mrf.mxu0
      %v3459 = vadd.f32 %v3162, %v3458
      %v3460 = vpop.f32.mrf.mxu0
      %v3461 = vpop.f32.mrf.mxu0
      %v3462 = vadd.f32 %v3165, %v3461
      %v3463 = vpop.f32.mrf.mxu0
      %3464 = vmatprep.mubr.bf16.mxu0 0
      %3465 = vmatmul.mubr.bf16.gmra.mxu0 %v1036
      %v3466 = vpop.f32.mrf.mxu0
      %v3467 = vadd.f32 %v3170, %v3466
      %v3468 = vpop.f32.mrf.mxu0
      %v3469 = vpop.f32.mrf.mxu0
      %v3470 = vadd.f32 %v3173, %v3469
      %v3471 = vpop.f32.mrf.mxu0
      %3472 = vmatprep.mubr.bf16.mxu0 0
      %3473 = vmatmul.mubr.bf16.gmra.mxu0 %v1037
      %v3474 = vpop.f32.mrf.mxu0
      %v3475 = vadd.f32 %v3178, %v3474
      %v3476 = vpop.f32.mrf.mxu0
      %v3477 = vpop.f32.mrf.mxu0
      %v3478 = vadd.f32 %v3181, %v3477
      %v3479 = vpop.f32.mrf.mxu0
      %3480 = vmatprep.mubr.bf16.mxu0 0
      %3481 = vmatmul.mubr.bf16.gmra.mxu0 %v1038
      %v3482 = vpop.f32.mrf.mxu0
      %v3483 = vadd.f32 %v3186, %v3482
      %v3484 = vpop.f32.mrf.mxu0
      %v3485 = vpop.f32.mrf.mxu0
      %v3486 = vadd.f32 %v3189, %v3485
      %v3487 = vpop.f32.mrf.mxu0
      %3488 = vmatprep.mubr.bf16.mxu0 0
      %3489 = vmatmul.mubr.bf16.gmra.mxu0 %v1039
      %v3490 = vpop.f32.mrf.mxu0
      %v3491 = vadd.f32 %v3194, %v3490
      %v3492 = vpop.f32.mrf.mxu0
      %v3493 = vpop.f32.mrf.mxu0
      %v3494 = vadd.f32 %v3197, %v3493
      %v3495 = vpop.f32.mrf.mxu0
      %3496 = vmatprep.mubr.bf16.mxu0 0
      %3497 = vmatmul.mubr.bf16.gmra.mxu0 %v1040
      %v3498 = vpop.f32.mrf.mxu0
      %v3499 = vadd.f32 %v3202, %v3498
      %v3500 = vpop.f32.mrf.mxu0
      %v3501 = vpop.f32.mrf.mxu0
      %v3502 = vadd.f32 %v3205, %v3501
      %v3503 = vpop.f32.mrf.mxu0
      %3504 = vmatprep.mubr.bf16.mxu0 0
      %3505 = vmatmul.mubr.bf16.gmra.mxu0 %v1041
      %v3506 = vpop.f32.mrf.mxu0
      %v3507 = vadd.f32 %v3210, %v3506
      %v3508 = vpop.f32.mrf.mxu0
      %v3509 = vpop.f32.mrf.mxu0
      %v3510 = vadd.f32 %v3213, %v3509
      %v3511 = vpop.f32.mrf.mxu0
      %3512 = vmatprep.mubr.bf16.mxu0 0
      %3513 = vmatmul.mubr.bf16.gmra.mxu0 %v1042
      %v3514 = vpop.f32.mrf.mxu0
      %v3515 = vadd.f32 %v3218, %v3514
      %v3516 = vpop.f32.mrf.mxu0
      %v3517 = vpop.f32.mrf.mxu0
      %v3518 = vadd.f32 %v3221, %v3517
      %v3519 = vpop.f32.mrf.mxu0
      %3520 = vmatprep.mubr.bf16.mxu0 0
      %3521 = vmatmul.mubr.bf16.gmra.mxu0 %v1043
      %v3522 = vpop.f32.mrf.mxu0
      %v3523 = vadd.f32 %v3226, %v3522
      %v3524 = vpop.f32.mrf.mxu0
      %v3525 = vpop.f32.mrf.mxu0
      %v3526 = vadd.f32 %v3229, %v3525
      %v3527 = vpop.f32.mrf.mxu0
      %3528 = vmatprep.mubr.bf16.mxu0 0
      %3529 = vmatmul.mubr.bf16.gmra.mxu0 %v1044
      %v3530 = vpop.f32.mrf.mxu0
      %v3531 = vadd.f32 %v3234, %v3530
      %v3532 = vpop.f32.mrf.mxu0
      %v3533 = vpop.f32.mrf.mxu0
      %v3534 = vadd.f32 %v3237, %v3533
      %v3535 = vpop.f32.mrf.mxu0
      %3536 = vdwg.mxu0
      %s3537 = scalar_lea.vmem %s1, 384
      %v3538 = vld [vmem:[%s3537] sm:$0xf]
      %v3539 = vld [vmem:[%s3537 + $0x4] sm:$0xf]
      %v3540 = vld [vmem:[%s3537 + $0x8] sm:$0xf]
      %v3541 = vld [vmem:[%s3537 + $0xc] sm:$0xf]
      %v3542 = vld [vmem:[%s3537 + $0x10] sm:$0xf]
      %v3543 = vld [vmem:[%s3537 + $0x14] sm:$0xf]
      %v3544 = vld [vmem:[%s3537 + $0x18] sm:$0xf]
      %v3545 = vld [vmem:[%s3537 + $0x1c] sm:$0xf]
      %v3546 = vld [vmem:[%s3537 + $0x20] sm:$0xf]
      %v3547 = vld [vmem:[%s3537 + $0x24] sm:$0xf]
      %v3548 = vld [vmem:[%s3537 + $0x28] sm:$0xf]
      %v3549 = vld [vmem:[%s3537 + $0x2c] sm:$0xf]
      %v3550 = vld [vmem:[%s3537 + $0x30] sm:$0xf]
      %v3551 = vld [vmem:[%s3537 + $0x34] sm:$0xf]
      %v3552 = vld [vmem:[%s3537 + $0x38] sm:$0xf]
      %v3553 = vld [vmem:[%s3537 + $0x3c] sm:$0xf]
      %v3570 = vunpack.c.l.b16 %v3538
      %v3571 = vunpack.c.l.b16 %v3539
      %v3572 = vunpack.c.l.b16 %v3540
      %v3573 = vunpack.c.l.b16 %v3541
      %v3574 = vunpack.c.l.b16 %v3542
      %v3575 = vunpack.c.l.b16 %v3543
      %v3576 = vunpack.c.l.b16 %v3544
      %v3577 = vunpack.c.l.b16 %v3545
      %v3578 = vunpack.c.l.b16 %v3546
      %v3579 = vunpack.c.l.b16 %v3547
      %v3580 = vunpack.c.l.b16 %v3548
      %v3581 = vunpack.c.l.b16 %v3549
      %v3582 = vunpack.c.l.b16 %v3550
      %v3583 = vunpack.c.l.b16 %v3551
      %v3584 = vunpack.c.l.b16 %v3552
      %v3585 = vunpack.c.l.b16 %v3553
      %v3586 = vpack.c.b16 %v3571, %v3570
      %v3587 = vpack.c.b16 %v3573, %v3572
      %v3588 = vpack.c.b16 %v3575, %v3574
      %v3589 = vpack.c.b16 %v3577, %v3576
      %v3590 = vpack.c.b16 %v3579, %v3578
      %v3591 = vpack.c.b16 %v3581, %v3580
      %v3592 = vpack.c.b16 %v3583, %v3582
      %v3593 = vpack.c.b16 %v3585, %v3584
      %3602 = vmatprep.subr.bf16.mxu0 0
      %3603 = vmatpush1.bf16.msra.mxu0 %v3593
      %3604 = vmatprep.subr.bf16.mxu0 0
      %3605 = vmatpush1.bf16.msra.mxu0 %v3592
      %3606 = vmatprep.subr.bf16.mxu0 0
      %3607 = vmatpush1.bf16.msra.mxu0 %v3591
      %3608 = vmatprep.subr.bf16.mxu0 0
      %3609 = vmatpush1.bf16.msra.mxu0 %v3590
      %3610 = vmatprep.subr.bf16.mxu0 0
      %3611 = vmatpush1.bf16.msra.mxu0 %v3589
      %3612 = vmatprep.subr.bf16.mxu0 0
      %3613 = vmatpush1.bf16.msra.mxu0 %v3588
      %3614 = vmatprep.subr.bf16.mxu0 0
      %3615 = vmatpush1.bf16.msra.mxu0 %v3587
      %3616 = vmatprep.subr.bf16.mxu0 0
      %3617 = vmatpush1.bf16.msra.mxu0 %v3586
      %3618 = vmatprep.subr.bf16.mxu0 0
      %3619 = vmatpush2.bf16.msra.mxu0 0
      %3620 = vmatprep.subr.bf16.mxu0 0
      %3621 = vmatpush2.bf16.msra.mxu0 0
      %3622 = vmatprep.subr.bf16.mxu0 0
      %3623 = vmatpush2.bf16.msra.mxu0 0
      %3624 = vmatprep.subr.bf16.mxu0 0
      %3625 = vmatpush2.bf16.msra.mxu0 0
      %3626 = vmatprep.subr.bf16.mxu0 0
      %3627 = vmatpush2.bf16.msra.mxu0 0
      %3628 = vmatprep.subr.bf16.mxu0 0
      %3629 = vmatpush2.bf16.msra.mxu0 0
      %3630 = vmatprep.subr.bf16.mxu0 0
      %3631 = vmatpush2.bf16.msra.mxu0 0
      %3632 = vmatprep.subr.bf16.mxu0 0
      %3633 = vmatpush2.bf16.msra.mxu0 0
      %3634 = vmatprep.mubr.bf16.mxu0 0
      %3635 = vmatmul.mubr.bf16.gmra.mxu0 %v1021
      %v3636 = vpop.f32.mrf.mxu0
      %v3637 = vadd.f32 0.0, %v3636
      %v3638 = vpop.f32.mrf.mxu0
      %v3639 = vpop.f32.mrf.mxu0
      %v3640 = vadd.f32 0.0, %v3639
      %v3641 = vpop.f32.mrf.mxu0
      %3642 = vmatprep.mubr.bf16.mxu0 0
      %3643 = vmatmul.mubr.bf16.gmra.mxu0 %v1022
      %v3644 = vpop.f32.mrf.mxu0
      %v3645 = vadd.f32 0.0, %v3644
      %v3646 = vpop.f32.mrf.mxu0
      %v3647 = vpop.f32.mrf.mxu0
      %v3648 = vadd.f32 0.0, %v3647
      %v3649 = vpop.f32.mrf.mxu0
      %3650 = vmatprep.mubr.bf16.mxu0 0
      %3651 = vmatmul.mubr.bf16.gmra.mxu0 %v1023
      %v3652 = vpop.f32.mrf.mxu0
      %v3653 = vadd.f32 0.0, %v3652
      %v3654 = vpop.f32.mrf.mxu0
      %v3655 = vpop.f32.mrf.mxu0
      %v3656 = vadd.f32 0.0, %v3655
      %v3657 = vpop.f32.mrf.mxu0
      %3658 = vmatprep.mubr.bf16.mxu0 0
      %3659 = vmatmul.mubr.bf16.gmra.mxu0 %v1024
      %v3660 = vpop.f32.mrf.mxu0
      %v3661 = vadd.f32 0.0, %v3660
      %v3662 = vpop.f32.mrf.mxu0
      %v3663 = vpop.f32.mrf.mxu0
      %v3664 = vadd.f32 0.0, %v3663
      %v3665 = vpop.f32.mrf.mxu0
      %3666 = vmatprep.mubr.bf16.mxu0 0
      %3667 = vmatmul.mubr.bf16.gmra.mxu0 %v1025
      %v3668 = vpop.f32.mrf.mxu0
      %v3669 = vadd.f32 0.0, %v3668
      %v3670 = vpop.f32.mrf.mxu0
      %v3671 = vpop.f32.mrf.mxu0
      %v3672 = vadd.f32 0.0, %v3671
      %v3673 = vpop.f32.mrf.mxu0
      %3674 = vmatprep.mubr.bf16.mxu0 0
      %3675 = vmatmul.mubr.bf16.gmra.mxu0 %v1026
      %v3676 = vpop.f32.mrf.mxu0
      %v3677 = vadd.f32 0.0, %v3676
      %v3678 = vpop.f32.mrf.mxu0
      %v3679 = vpop.f32.mrf.mxu0
      %v3680 = vadd.f32 0.0, %v3679
      %v3681 = vpop.f32.mrf.mxu0
      %3682 = vmatprep.mubr.bf16.mxu0 0
      %3683 = vmatmul.mubr.bf16.gmra.mxu0 %v1027
      %v3684 = vpop.f32.mrf.mxu0
      %v3685 = vadd.f32 0.0, %v3684
      %v3686 = vpop.f32.mrf.mxu0
      %v3687 = vpop.f32.mrf.mxu0
      %v3688 = vadd.f32 0.0, %v3687
      %v3689 = vpop.f32.mrf.mxu0
      %3690 = vmatprep.mubr.bf16.mxu0 0
      %3691 = vmatmul.mubr.bf16.gmra.mxu0 %v1028
      %v3692 = vpop.f32.mrf.mxu0
      %v3693 = vadd.f32 0.0, %v3692
      %v3694 = vpop.f32.mrf.mxu0
      %v3695 = vpop.f32.mrf.mxu0
      %v3696 = vadd.f32 0.0, %v3695
      %v3697 = vpop.f32.mrf.mxu0
      %3698 = vmatprep.mubr.bf16.mxu0 0
      %3699 = vmatmul.mubr.bf16.gmra.mxu0 %v1029
      %v3700 = vpop.f32.mrf.mxu0
      %v3701 = vadd.f32 0.0, %v3700
      %v3702 = vpop.f32.mrf.mxu0
      %v3703 = vpop.f32.mrf.mxu0
      %v3704 = vadd.f32 0.0, %v3703
      %v3705 = vpop.f32.mrf.mxu0
      %3706 = vmatprep.mubr.bf16.mxu0 0
      %3707 = vmatmul.mubr.bf16.gmra.mxu0 %v1030
      %v3708 = vpop.f32.mrf.mxu0
      %v3709 = vadd.f32 0.0, %v3708
      %v3710 = vpop.f32.mrf.mxu0
      %v3711 = vpop.f32.mrf.mxu0
      %v3712 = vadd.f32 0.0, %v3711
      %v3713 = vpop.f32.mrf.mxu0
      %3714 = vmatprep.mubr.bf16.mxu0 0
      %3715 = vmatmul.mubr.bf16.gmra.mxu0 %v1031
      %v3716 = vpop.f32.mrf.mxu0
      %v3717 = vadd.f32 0.0, %v3716
      %v3718 = vpop.f32.mrf.mxu0
      %v3719 = vpop.f32.mrf.mxu0
      %v3720 = vadd.f32 0.0, %v3719
      %v3721 = vpop.f32.mrf.mxu0
      %3722 = vmatprep.mubr.bf16.mxu0 0
      %3723 = vmatmul.mubr.bf16.gmra.mxu0 %v1032
      %v3724 = vpop.f32.mrf.mxu0
      %v3725 = vadd.f32 0.0, %v3724
      %v3726 = vpop.f32.mrf.mxu0
      %v3727 = vpop.f32.mrf.mxu0
      %v3728 = vadd.f32 0.0, %v3727
      %v3729 = vpop.f32.mrf.mxu0
      %3730 = vmatprep.mubr.bf16.mxu0 0
      %3731 = vmatmul.mubr.bf16.gmra.mxu0 %v1033
      %v3732 = vpop.f32.mrf.mxu0
      %v3733 = vadd.f32 0.0, %v3732
      %v3734 = vpop.f32.mrf.mxu0
      %v3735 = vpop.f32.mrf.mxu0
      %v3736 = vadd.f32 0.0, %v3735
      %v3737 = vpop.f32.mrf.mxu0
      %3738 = vmatprep.mubr.bf16.mxu0 0
      %3739 = vmatmul.mubr.bf16.gmra.mxu0 %v1034
      %v3740 = vpop.f32.mrf.mxu0
      %v3741 = vadd.f32 0.0, %v3740
      %v3742 = vpop.f32.mrf.mxu0
      %v3743 = vpop.f32.mrf.mxu0
      %v3744 = vadd.f32 0.0, %v3743
      %v3745 = vpop.f32.mrf.mxu0
      %3746 = vmatprep.mubr.bf16.mxu0 0
      %3747 = vmatmul.mubr.bf16.gmra.mxu0 %v1035
      %v3748 = vpop.f32.mrf.mxu0
      %v3749 = vadd.f32 0.0, %v3748
      %v3750 = vpop.f32.mrf.mxu0
      %v3751 = vpop.f32.mrf.mxu0
      %v3752 = vadd.f32 0.0, %v3751
      %v3753 = vpop.f32.mrf.mxu0
      %3754 = vmatprep.mubr.bf16.mxu0 0
      %3755 = vmatmul.mubr.bf16.gmra.mxu0 %v1036
      %v3756 = vpop.f32.mrf.mxu0
      %v3757 = vadd.f32 0.0, %v3756
      %v3758 = vpop.f32.mrf.mxu0
      %v3759 = vpop.f32.mrf.mxu0
      %v3760 = vadd.f32 0.0, %v3759
      %v3761 = vpop.f32.mrf.mxu0
      %3762 = vmatprep.mubr.bf16.mxu0 0
      %3763 = vmatmul.mubr.bf16.gmra.mxu0 %v1037
      %v3764 = vpop.f32.mrf.mxu0
      %v3765 = vadd.f32 0.0, %v3764
      %v3766 = vpop.f32.mrf.mxu0
      %v3767 = vpop.f32.mrf.mxu0
      %v3768 = vadd.f32 0.0, %v3767
      %v3769 = vpop.f32.mrf.mxu0
      %3770 = vmatprep.mubr.bf16.mxu0 0
      %3771 = vmatmul.mubr.bf16.gmra.mxu0 %v1038
      %v3772 = vpop.f32.mrf.mxu0
      %v3773 = vadd.f32 0.0, %v3772
      %v3774 = vpop.f32.mrf.mxu0
      %v3775 = vpop.f32.mrf.mxu0
      %v3776 = vadd.f32 0.0, %v3775
      %v3777 = vpop.f32.mrf.mxu0
      %3778 = vmatprep.mubr.bf16.mxu0 0
      %3779 = vmatmul.mubr.bf16.gmra.mxu0 %v1039
      %v3780 = vpop.f32.mrf.mxu0
      %v3781 = vadd.f32 0.0, %v3780
      %v3782 = vpop.f32.mrf.mxu0
      %v3783 = vpop.f32.mrf.mxu0
      %v3784 = vadd.f32 0.0, %v3783
      %v3785 = vpop.f32.mrf.mxu0
      %3786 = vmatprep.mubr.bf16.mxu0 0
      %3787 = vmatmul.mubr.bf16.gmra.mxu0 %v1040
      %v3788 = vpop.f32.mrf.mxu0
      %v3789 = vadd.f32 0.0, %v3788
      %v3790 = vpop.f32.mrf.mxu0
      %v3791 = vpop.f32.mrf.mxu0
      %v3792 = vadd.f32 0.0, %v3791
      %v3793 = vpop.f32.mrf.mxu0
      %3794 = vmatprep.mubr.bf16.mxu0 0
      %3795 = vmatmul.mubr.bf16.gmra.mxu0 %v1041
      %v3796 = vpop.f32.mrf.mxu0
      %v3797 = vadd.f32 0.0, %v3796
      %v3798 = vpop.f32.mrf.mxu0
      %v3799 = vpop.f32.mrf.mxu0
      %v3800 = vadd.f32 0.0, %v3799
      %v3801 = vpop.f32.mrf.mxu0
      %3802 = vmatprep.mubr.bf16.mxu0 0
      %3803 = vmatmul.mubr.bf16.gmra.mxu0 %v1042
      %v3804 = vpop.f32.mrf.mxu0
      %v3805 = vadd.f32 0.0, %v3804
      %v3806 = vpop.f32.mrf.mxu0
      %v3807 = vpop.f32.mrf.mxu0
      %v3808 = vadd.f32 0.0, %v3807
      %v3809 = vpop.f32.mrf.mxu0
      %3810 = vmatprep.mubr.bf16.mxu0 0
      %3811 = vmatmul.mubr.bf16.gmra.mxu0 %v1043
      %v3812 = vpop.f32.mrf.mxu0
      %v3813 = vadd.f32 0.0, %v3812
      %v3814 = vpop.f32.mrf.mxu0
      %v3815 = vpop.f32.mrf.mxu0
      %v3816 = vadd.f32 0.0, %v3815
      %v3817 = vpop.f32.mrf.mxu0
      %3818 = vmatprep.mubr.bf16.mxu0 0
      %3819 = vmatmul.mubr.bf16.gmra.mxu0 %v1044
      %v3820 = vpop.f32.mrf.mxu0
      %v3821 = vadd.f32 0.0, %v3820
      %v3822 = vpop.f32.mrf.mxu0
      %v3823 = vpop.f32.mrf.mxu0
      %v3824 = vadd.f32 0.0, %v3823
      %v3825 = vpop.f32.mrf.mxu0
      %3826 = vmatprep.mubr.bf16.mxu0 0
      %3827 = vmatmul.mubr.bf16.gmra.mxu0 %v1392
      %v3828 = vpop.f32.mrf.mxu0
      %v3829 = vadd.f32 0.0, %v3828
      %v3830 = vpop.f32.mrf.mxu0
      %v3831 = vpop.f32.mrf.mxu0
      %v3832 = vadd.f32 0.0, %v3831
      %v3833 = vpop.f32.mrf.mxu0
      %3834 = vmatprep.mubr.bf16.mxu0 0
      %3835 = vmatmul.mubr.bf16.gmra.mxu0 %v1393
      %v3836 = vpop.f32.mrf.mxu0
      %v3837 = vadd.f32 0.0, %v3836
      %v3838 = vpop.f32.mrf.mxu0
      %v3839 = vpop.f32.mrf.mxu0
      %v3840 = vadd.f32 0.0, %v3839
      %v3841 = vpop.f32.mrf.mxu0
      %3842 = vmatprep.mubr.bf16.mxu0 0
      %3843 = vmatmul.mubr.bf16.gmra.mxu0 %v1394
      %v3844 = vpop.f32.mrf.mxu0
      %v3845 = vadd.f32 0.0, %v3844
      %v3846 = vpop.f32.mrf.mxu0
      %v3847 = vpop.f32.mrf.mxu0
      %v3848 = vadd.f32 0.0, %v3847
      %v3849 = vpop.f32.mrf.mxu0
      %3850 = vdwg.mxu0
      %v3851 = vadd.f32 %v3323, %v3637
      %v3852 = vadd.f32 %v3326, %v3640
      %v3853 = vadd.f32 %v3331, %v3645
      %v3854 = vadd.f32 %v3334, %v3648
      %v3855 = vadd.f32 %v3339, %v3653
      %v3856 = vadd.f32 %v3342, %v3656
      %v3857 = vadd.f32 %v3347, %v3661
      %v3858 = vadd.f32 %v3350, %v3664
      %v3859 = vadd.f32 %v3355, %v3669
      %v3860 = vadd.f32 %v3358, %v3672
      %v3861 = vadd.f32 %v3363, %v3677
      %v3862 = vadd.f32 %v3366, %v3680
      %v3863 = vadd.f32 %v3371, %v3685
      %v3864 = vadd.f32 %v3374, %v3688
      %v3865 = vadd.f32 %v3379, %v3693
      %v3866 = vadd.f32 %v3382, %v3696
      %v3867 = vadd.f32 %v3387, %v3701
      %v3868 = vadd.f32 %v3390, %v3704
      %v3869 = vadd.f32 %v3395, %v3709
      %v3870 = vadd.f32 %v3398, %v3712
      %v3871 = vadd.f32 %v3403, %v3717
      %v3872 = vadd.f32 %v3406, %v3720
      %v3873 = vadd.f32 %v3411, %v3725
      %v3874 = vadd.f32 %v3414, %v3728
      %v3875 = vadd.f32 %v3419, %v3733
      %v3876 = vadd.f32 %v3422, %v3736
      %v3877 = vadd.f32 %v3427, %v3741
      %v3878 = vadd.f32 %v3430, %v3744
      %v3879 = vadd.f32 %v3435, %v3749
      %v3880 = vadd.f32 %v3438, %v3752
      %v3881 = vadd.f32 %v3443, %v3757
      %v3882 = vadd.f32 %v3446, %v3760
      %v3883 = vadd.f32 %v3451, %v3765
      %v3884 = vadd.f32 %v3454, %v3768
      %v3885 = vadd.f32 %v3459, %v3773
      %v3886 = vadd.f32 %v3462, %v3776
      %v3887 = vadd.f32 %v3467, %v3781
      %v3888 = vadd.f32 %v3470, %v3784
      %v3889 = vadd.f32 %v3475, %v3789
      %v3890 = vadd.f32 %v3478, %v3792
      %v3891 = vadd.f32 %v3483, %v3797
      %v3892 = vadd.f32 %v3486, %v3800
      %v3893 = vadd.f32 %v3491, %v3805
      %v3894 = vadd.f32 %v3494, %v3808
      %v3895 = vadd.f32 %v3499, %v3813
      %v3896 = vadd.f32 %v3502, %v3816
      %v3897 = vadd.f32 %v3507, %v3821
      %v3898 = vadd.f32 %v3510, %v3824
      %v3899 = vadd.f32 %v3515, %v3829
      %v3900 = vadd.f32 %v3518, %v3832
      %v3901 = vadd.f32 %v3523, %v3837
      %v3902 = vadd.f32 %v3526, %v3840
      %v3903 = vadd.f32 %v3531, %v3845
      %v3904 = vadd.f32 %v3534, %v3848
      %v3905 = vrot.slane %v2856, 1
      %v3906 = vrot.slane %v2857, 1
      %v3907 = vrot.slane %v2858, 1
      %v3908 = vrot.slane %v2859, 1
      %v3909 = vrot.slane %v2860, 1
      %v3910 = vrot.slane %v2861, 1
      %v3911 = vrot.slane %v2862, 1
      %v3912 = vrot.slane %v2863, 1
      %v3913 = vrot.slane %v2864, 1
      %v3914 = vrot.slane %v2865, 1
      %v3915 = vrot.slane %v2866, 1
      %v3916 = vrot.slane %v2867, 1
      %v3917 = vrot.slane %v2868, 1
      %v3918 = vrot.slane %v2869, 1
      %v3919 = vrot.slane %v2870, 1
      %v3920 = vrot.slane %v2871, 1
      %v3921 = vrot.slane %v2872, 1
      %v3922 = vrot.slane %v2873, 1
      %v3923 = vrot.slane %v2874, 1
      %v3924 = vrot.slane %v2875, 1
      %v3925 = vrot.slane %v2876, 1
      %v3926 = vrot.slane %v2877, 1
      %v3927 = vrot.slane %v2878, 1
      %v3928 = vrot.slane %v2879, 1
      %v3929 = vrot.slane %v2880, 1
      %v3930 = vrot.slane %v2881, 1
      %v3931 = vrot.slane %v2882, 1
      %v3932 = vrot.slane %v2883, 1
      %v3933 = vrot.slane %v2884, 1
      %v3934 = vrot.slane %v2885, 1
      %v3935 = vrot.slane %v2886, 1
      %v3936 = vrot.slane %v2887, 1
      %v3937 = vrot.slane %v2888, 1
      %v3938 = vrot.slane %v2889, 1
      %v3939 = vrot.slane %v2890, 1
      %v3940 = vrot.slane %v2891, 1
      %v3941 = vrot.slane %v2892, 1
      %v3942 = vrot.slane %v2893, 1
      %v3943 = vrot.slane %v2894, 1
      %v3944 = vrot.slane %v2895, 1
      %v3945 = vrot.slane %v2896, 1
      %v3946 = vrot.slane %v2897, 1
      %v3947 = vrot.slane %v2898, 1
      %v3948 = vrot.slane %v2899, 1
      %v3949 = vrot.slane %v2900, 1
      %v3950 = vrot.slane %v2901, 1
      %v3951 = vrot.slane %v2902, 1
      %v3952 = vrot.slane %v2903, 1
      %v3953 = vrot.slane %v2904, 1
      %v3954 = vrot.slane %v2905, 1
      %v3955 = vrot.slane %v2906, 1
      %v3956 = vrot.slane %v2907, 1
      %v3957 = vrot.slane %v2908, 1
      %v3958 = vrot.slane %v2909, 1
      %v3959 = vsel %vm2801, %v3957, %v3958
      %v3960 = vsel %vm2801, %v3956, %v3957
      %v3961 = vsel %vm2801, %v3955, %v3956
      %v3962 = vsel %vm2801, %v3954, %v3955
      %v3963 = vsel %vm2801, %v3953, %v3954
      %v3964 = vsel %vm2801, %v3952, %v3953
      %v3965 = vsel %vm2801, %v3951, %v3952
      %v3966 = vsel %vm2801, %v3950, %v3951
      %v3967 = vsel %vm2801, %v3949, %v3950
      %v3968 = vsel %vm2801, %v3948, %v3949
      %v3969 = vsel %vm2801, %v3947, %v3948
      %v3970 = vsel %vm2801, %v3946, %v3947
      %v3971 = vsel %vm2801, %v3945, %v3946
      %v3972 = vsel %vm2801, %v3944, %v3945
      %v3973 = vsel %vm2801, %v3943, %v3944
      %v3974 = vsel %vm2801, %v3942, %v3943
      %v3975 = vsel %vm2801, %v3941, %v3942
      %v3976 = vsel %vm2801, %v3940, %v3941
      %v3977 = vsel %vm2801, %v3939, %v3940
      %v3978 = vsel %vm2801, %v3938, %v3939
      %v3979 = vsel %vm2801, %v3937, %v3938
      %v3980 = vsel %vm2801, %v3936, %v3937
      %v3981 = vsel %vm2801, %v3935, %v3936
      %v3982 = vsel %vm2801, %v3934, %v3935
      %v3983 = vsel %vm2801, %v3933, %v3934
      %v3984 = vsel %vm2801, %v3932, %v3933
      %v3985 = vsel %vm2801, %v3931, %v3932
      %v3986 = vsel %vm2801, %v3930, %v3931
      %v3987 = vsel %vm2801, %v3929, %v3930
      %v3988 = vsel %vm2801, %v3928, %v3929
      %v3989 = vsel %vm2801, %v3927, %v3928
      %v3990 = vsel %vm2801, %v3926, %v3927
      %v3991 = vsel %vm2801, %v3925, %v3926
      %v3992 = vsel %vm2801, %v3924, %v3925
      %v3993 = vsel %vm2801, %v3923, %v3924
      %v3994 = vsel %vm2801, %v3922, %v3923
      %v3995 = vsel %vm2801, %v3921, %v3922
      %v3996 = vsel %vm2801, %v3920, %v3921
      %v3997 = vsel %vm2801, %v3919, %v3920
      %v3998 = vsel %vm2801, %v3918, %v3919
      %v3999 = vsel %vm2801, %v3917, %v3918
      %v4000 = vsel %vm2801, %v3916, %v3917
      %v4001 = vsel %vm2801, %v3915, %v3916
      %v4002 = vsel %vm2801, %v3914, %v3915
      %v4003 = vsel %vm2801, %v3913, %v3914
      %v4004 = vsel %vm2801, %v3912, %v3913
      %v4005 = vsel %vm2801, %v3911, %v3912
      %v4006 = vsel %vm2801, %v3910, %v3911
      %v4007 = vsel %vm2801, %v3909, %v3910
      %v4008 = vsel %vm2801, %v3908, %v3909
      %v4009 = vsel %vm2801, %v3907, %v3908
      %v4010 = vsel %vm2801, %v3906, %v3907
      %v4011 = vsel %vm2801, %v3905, %v3906
      %v4012 = vsel %vm2801, %v3958, %v3905
      %v4013 = vadd.f32 %v4011, %v3851
      %v4014 = vadd.f32 %v4010, %v3852
      %v4015 = vadd.f32 %v4009, %v3853
      %v4016 = vadd.f32 %v4008, %v3854
      %v4017 = vadd.f32 %v4007, %v3855
      %v4018 = vadd.f32 %v4006, %v3856
      %v4019 = vadd.f32 %v4005, %v3857
      %v4020 = vadd.f32 %v4004, %v3858
      %v4021 = vadd.f32 %v4003, %v3859
      %v4022 = vadd.f32 %v4002, %v3860
      %v4023 = vadd.f32 %v4001, %v3861
      %v4024 = vadd.f32 %v4000, %v3862
      %v4025 = vadd.f32 %v3999, %v3863
      %v4026 = vadd.f32 %v3998, %v3864
      %v4027 = vadd.f32 %v3997, %v3865
      %v4028 = vadd.f32 %v3996, %v3866
      %v4029 = vadd.f32 %v3995, %v3867
      %v4030 = vadd.f32 %v3994, %v3868
      %v4031 = vadd.f32 %v3993, %v3869
      %v4032 = vadd.f32 %v3992, %v3870
      %v4033 = vadd.f32 %v3991, %v3871
      %v4034 = vadd.f32 %v3990, %v3872
      %v4035 = vadd.f32 %v3989, %v3873
      %v4036 = vadd.f32 %v3988, %v3874
      %v4037 = vadd.f32 %v3987, %v3875
      %v4038 = vadd.f32 %v3986, %v3876
      %v4039 = vadd.f32 %v3985, %v3877
      %v4040 = vadd.f32 %v3984, %v3878
      %v4041 = vadd.f32 %v3983, %v3879
      %v4042 = vadd.f32 %v3982, %v3880
      %v4043 = vadd.f32 %v3981, %v3881
      %v4044 = vadd.f32 %v3980, %v3882
      %v4045 = vadd.f32 %v3979, %v3883
      %v4046 = vadd.f32 %v3978, %v3884
      %v4047 = vadd.f32 %v3977, %v3885
      %v4048 = vadd.f32 %v3976, %v3886
      %v4049 = vadd.f32 %v3975, %v3887
      %v4050 = vadd.f32 %v3974, %v3888
      %v4051 = vadd.f32 %v3973, %v3889
      %v4052 = vadd.f32 %v3972, %v3890
      %v4053 = vadd.f32 %v3971, %v3891
      %v4054 = vadd.f32 %v3970, %v3892
      %v4055 = vadd.f32 %v3969, %v3893
      %v4056 = vadd.f32 %v3968, %v3894
      %v4057 = vadd.f32 %v3967, %v3895
      %v4058 = vadd.f32 %v3966, %v3896
      %v4059 = vadd.f32 %v3965, %v3897
      %v4060 = vadd.f32 %v3964, %v3898
      %v4061 = vadd.f32 %v3963, %v3899
      %v4062 = vadd.f32 %v3962, %v3900
      %v4063 = vadd.f32 %v3961, %v3901
      %v4064 = vadd.f32 %v3960, %v3902
      %v4065 = vadd.f32 %v3959, %v3903
      %v4066 = vadd.f32 %v4012, %v3904
      %v4067 = vld [vmem:[%s2] sm:$0x1]
      %v4069 = vlaneseq
      %v4070 = vshrl.u32 %v4069, 7
      %v4071 = vsub.s32 0, %v4070
      %v4072 = vrot.slane %v4067, %v4071
      %v4074 = vadd.f32 %v4013, %v4072
      %v4075 = vadd.f32 %v4014, %v4072
      %v4076 = vadd.f32 %v4015, %v4072
      %v4077 = vadd.f32 %v4016, %v4072
      %v4078 = vadd.f32 %v4017, %v4072
      %v4079 = vadd.f32 %v4018, %v4072
      %v4080 = vadd.f32 %v4019, %v4072
      %v4081 = vadd.f32 %v4020, %v4072
      %v4082 = vadd.f32 %v4021, %v4072
      %v4083 = vadd.f32 %v4022, %v4072
      %v4084 = vadd.f32 %v4023, %v4072
      %v4085 = vadd.f32 %v4024, %v4072
      %v4086 = vadd.f32 %v4025, %v4072
      %v4087 = vadd.f32 %v4026, %v4072
      %v4088 = vadd.f32 %v4027, %v4072
      %v4089 = vadd.f32 %v4028, %v4072
      %v4090 = vadd.f32 %v4029, %v4072
      %v4091 = vadd.f32 %v4030, %v4072
      %v4092 = vadd.f32 %v4031, %v4072
      %v4093 = vadd.f32 %v4032, %v4072
      %v4094 = vadd.f32 %v4033, %v4072
      %v4095 = vadd.f32 %v4034, %v4072
      %v4096 = vadd.f32 %v4035, %v4072
      %v4097 = vadd.f32 %v4036, %v4072
      %v4098 = vadd.f32 %v4037, %v4072
      %v4099 = vadd.f32 %v4038, %v4072
      %v4100 = vadd.f32 %v4039, %v4072
      %v4101 = vadd.f32 %v4040, %v4072
      %v4102 = vadd.f32 %v4041, %v4072
      %v4103 = vadd.f32 %v4042, %v4072
      %v4104 = vadd.f32 %v4043, %v4072
      %v4105 = vadd.f32 %v4044, %v4072
      %v4106 = vadd.f32 %v4045, %v4072
      %v4107 = vadd.f32 %v4046, %v4072
      %v4108 = vadd.f32 %v4047, %v4072
      %v4109 = vadd.f32 %v4048, %v4072
      %v4110 = vadd.f32 %v4049, %v4072
      %v4111 = vadd.f32 %v4050, %v4072
      %v4112 = vadd.f32 %v4051, %v4072
      %v4113 = vadd.f32 %v4052, %v4072
      %v4114 = vadd.f32 %v4053, %v4072
      %v4115 = vadd.f32 %v4054, %v4072
      %v4116 = vadd.f32 %v4055, %v4072
      %v4117 = vadd.f32 %v4056, %v4072
      %v4118 = vadd.f32 %v4057, %v4072
      %v4119 = vadd.f32 %v4058, %v4072
      %v4120 = vadd.f32 %v4059, %v4072
      %v4121 = vadd.f32 %v4060, %v4072
      %v4122 = vadd.f32 %v4061, %v4072
      %v4123 = vadd.f32 %v4062, %v4072
      %v4124 = vadd.f32 %v4063, %v4072
      %v4125 = vadd.f32 %v4064, %v4072
      %v4126 = vadd.f32 %v4065, %v4072
      %v4127 = vadd.f32 %v4066, %v4072
      %v4128 = vmax.f32 %v4074, 0.0
      %v4129 = vmax.f32 %v4075, 0.0
      %v4130 = vmax.f32 %v4076, 0.0
      %v4131 = vmax.f32 %v4077, 0.0
      %v4132 = vmax.f32 %v4078, 0.0
      %v4133 = vmax.f32 %v4079, 0.0
      %v4134 = vmax.f32 %v4080, 0.0
      %v4135 = vmax.f32 %v4081, 0.0
      %v4136 = vmax.f32 %v4082, 0.0
      %v4137 = vmax.f32 %v4083, 0.0
      %v4138 = vmax.f32 %v4084, 0.0
      %v4139 = vmax.f32 %v4085, 0.0
      %v4140 = vmax.f32 %v4086, 0.0
      %v4141 = vmax.f32 %v4087, 0.0
      %v4142 = vmax.f32 %v4088, 0.0
      %v4143 = vmax.f32 %v4089, 0.0
      %v4144 = vmax.f32 %v4090, 0.0
      %v4145 = vmax.f32 %v4091, 0.0
      %v4146 = vmax.f32 %v4092, 0.0
      %v4147 = vmax.f32 %v4093, 0.0
      %v4148 = vmax.f32 %v4094, 0.0
      %v4149 = vmax.f32 %v4095, 0.0
      %v4150 = vmax.f32 %v4096, 0.0
      %v4151 = vmax.f32 %v4097, 0.0
      %v4152 = vmax.f32 %v4098, 0.0
      %v4153 = vmax.f32 %v4099, 0.0
      %v4154 = vmax.f32 %v4100, 0.0
      %v4155 = vmax.f32 %v4101, 0.0
      %v4156 = vmax.f32 %v4102, 0.0
      %v4157 = vmax.f32 %v4103, 0.0
      %v4158 = vmax.f32 %v4104, 0.0
      %v4159 = vmax.f32 %v4105, 0.0
      %v4160 = vmax.f32 %v4106, 0.0
      %v4161 = vmax.f32 %v4107, 0.0
      %v4162 = vmax.f32 %v4108, 0.0
      %v4163 = vmax.f32 %v4109, 0.0
      %v4164 = vmax.f32 %v4110, 0.0
      %v4165 = vmax.f32 %v4111, 0.0
      %v4166 = vmax.f32 %v4112, 0.0
      %v4167 = vmax.f32 %v4113, 0.0
      %v4168 = vmax.f32 %v4114, 0.0
      %v4169 = vmax.f32 %v4115, 0.0
      %v4170 = vmax.f32 %v4116, 0.0
      %v4171 = vmax.f32 %v4117, 0.0
      %v4172 = vmax.f32 %v4118, 0.0
      %v4173 = vmax.f32 %v4119, 0.0
      %v4174 = vmax.f32 %v4120, 0.0
      %v4175 = vmax.f32 %v4121, 0.0
      %v4176 = vmax.f32 %v4122, 0.0
      %v4177 = vmax.f32 %v4123, 0.0
      %v4178 = vmax.f32 %v4124, 0.0
      %v4179 = vmax.f32 %v4125, 0.0
      %v4180 = vmax.f32 %v4126, 0.0
      %v4181 = vmax.f32 %v4127, 0.0
      %v4182 = vadd.s32 %v2800, 8
      %v4183 = vadd.s32 %v2800, 16
      %v4184 = vstv %s449
      %v4185 = vadd.s32 %v4184, 2
      %v4186 = vadd.s32 %v4184, 3
      %v4187 = vadd.s32 %v4184, 4
      %v4188 = vadd.s32 %v4184, 5
      %v4189 = vadd.s32 %v4184, 6
      %v4190 = vadd.s32 %v4184, 7
      %v4191 = vadd.s32 %v4184, 8
      %v4192 = vadd.s32 %v4184, 9
      %v4193 = vadd.s32 %v4184, 10
      %v4194 = vadd.s32 %v4184, 11
      %v4195 = vadd.s32 %v4184, 12
      %v4196 = vadd.s32 %v4184, 13
      %v4197 = vadd.s32 %v4184, 14
      %v4198 = vadd.s32 %v4184, 15
      %v4199 = vadd.s32 %v4184, 16
      %v4200 = vadd.s32 %v4184, 17
      %v4201 = vsub.s32 %v4184, 1
      %v4202 = vsub.s32 %v4185, 1
      %v4203 = vsub.s32 %v4186, 1
      %v4204 = vsub.s32 %v4187, 1
      %v4205 = vsub.s32 %v4188, 1
      %v4206 = vsub.s32 %v4189, 1
      %v4207 = vsub.s32 %v4190, 1
      %v4208 = vsub.s32 %v4191, 1
      %v4209 = vsub.s32 %v4192, 1
      %v4210 = vsub.s32 %v4193, 1
      %v4211 = vsub.s32 %v4194, 1
      %v4212 = vsub.s32 %v4195, 1
      %v4213 = vsub.s32 %v4196, 1
      %v4214 = vsub.s32 %v4197, 1
      %v4215 = vsub.s32 %v4198, 1
      %v4216 = vsub.s32 %v4199, 1
      %v4217 = vsub.s32 %v4200, 1
      %vm4218 = vcmp.ge.s32.totalorder %v4201, 0
      %vm4219 = vcmp.ge.s32.totalorder %v4184, 0
      %vm4220 = vcmp.ge.s32.totalorder %v4202, 0
      %vm4221 = vcmp.ge.s32.totalorder %v4203, 0
      %vm4222 = vcmp.ge.s32.totalorder %v4204, 0
      %vm4223 = vcmp.ge.s32.totalorder %v4205, 0
      %vm4224 = vcmp.ge.s32.totalorder %v4206, 0
      %vm4225 = vcmp.ge.s32.totalorder %v4207, 0
      %vm4226 = vcmp.ge.s32.totalorder %v4208, 0
      %vm4227 = vcmp.ge.s32.totalorder %v4209, 0
      %vm4228 = vcmp.ge.s32.totalorder %v4210, 0
      %vm4229 = vcmp.ge.s32.totalorder %v4211, 0
      %vm4230 = vcmp.ge.s32.totalorder %v4212, 0
      %vm4231 = vcmp.ge.s32.totalorder %v4213, 0
      %vm4232 = vcmp.ge.s32.totalorder %v4214, 0
      %vm4233 = vcmp.ge.s32.totalorder %v4215, 0
      %vm4234 = vcmp.ge.s32.totalorder %v4216, 0
      %vm4235 = vcmp.ge.s32.totalorder %v4217, 0
      %vm4236 = vcmp.lt.s32.totalorder %v4201, 16
      %vm4237 = vcmp.lt.s32.totalorder %v4184, 16
      %vm4238 = vcmp.lt.s32.totalorder %v4202, 16
      %vm4239 = vcmp.lt.s32.totalorder %v4203, 16
      %vm4240 = vcmp.lt.s32.totalorder %v4204, 16
      %vm4241 = vcmp.lt.s32.totalorder %v4205, 16
      %vm4242 = vcmp.lt.s32.totalorder %v4206, 16
      %vm4243 = vcmp.lt.s32.totalorder %v4207, 16
      %vm4244 = vcmp.lt.s32.totalorder %v4208, 16
      %vm4245 = vcmp.lt.s32.totalorder %v4209, 16
      %vm4246 = vcmp.lt.s32.totalorder %v4210, 16
      %vm4247 = vcmp.lt.s32.totalorder %v4211, 16
      %vm4248 = vcmp.lt.s32.totalorder %v4212, 16
      %vm4249 = vcmp.lt.s32.totalorder %v4213, 16
      %vm4250 = vcmp.lt.s32.totalorder %v4214, 16
      %vm4251 = vcmp.lt.s32.totalorder %v4215, 16
      %vm4252 = vcmp.lt.s32.totalorder %v4216, 16
      %vm4253 = vcmp.lt.s32.totalorder %v4217, 16
      %vm4254 = vmand %vm4218, %vm4236
      %vm4255 = vmand %vm4219, %vm4237
      %vm4256 = vmand %vm4220, %vm4238
      %vm4257 = vmand %vm4221, %vm4239
      %vm4258 = vmand %vm4222, %vm4240
      %vm4259 = vmand %vm4223, %vm4241
      %vm4260 = vmand %vm4224, %vm4242
      %vm4261 = vmand %vm4225, %vm4243
      %vm4262 = vmand %vm4226, %vm4244
      %vm4263 = vmand %vm4227, %vm4245
      %vm4264 = vmand %vm4228, %vm4246
      %vm4265 = vmand %vm4229, %vm4247
      %vm4266 = vmand %vm4230, %vm4248
      %vm4267 = vmand %vm4231, %vm4249
      %vm4268 = vmand %vm4232, %vm4250
      %vm4269 = vmand %vm4233, %vm4251
      %vm4270 = vmand %vm4234, %vm4252
      %vm4271 = vmand %vm4235, %vm4253
      %vm4272 = vcmp.ge.s32.totalorder %v2800, 1
      %vm4273 = vcmp.ge.s32.totalorder %v4182, 1
      %vm4274 = vcmp.ge.s32.totalorder %v4183, 1
      %vm4275 = vmand %vm4254, %vm4272
      %vm4276 = vmand %vm4254, %vm4273
      %vm4277 = vmand %vm4254, %vm4274
      %vm4278 = vmand %vm4255, %vm4272
      %vm4279 = vmand %vm4255, %vm4273
      %vm4280 = vmand %vm4255, %vm4274
      %vm4281 = vmand %vm4256, %vm4272
      %vm4282 = vmand %vm4256, %vm4273
      %vm4283 = vmand %vm4256, %vm4274
      %vm4284 = vmand %vm4257, %vm4272
      %vm4285 = vmand %vm4257, %vm4273
      %vm4286 = vmand %vm4257, %vm4274
      %vm4287 = vmand %vm4258, %vm4272
      %vm4288 = vmand %vm4258, %vm4273
      %vm4289 = vmand %vm4258, %vm4274
      %vm4290 = vmand %vm4259, %vm4272
      %vm4291 = vmand %vm4259, %vm4273
      %vm4292 = vmand %vm4259, %vm4274
      %vm4293 = vmand %vm4260, %vm4272
      %vm4294 = vmand %vm4260, %vm4273
      %vm4295 = vmand %vm4260, %vm4274
      %vm4296 = vmand %vm4261, %vm4272
      %vm4297 = vmand %vm4261, %vm4273
      %vm4298 = vmand %vm4261, %vm4274
      %vm4299 = vmand %vm4262, %vm4272
      %vm4300 = vmand %vm4262, %vm4273
      %vm4301 = vmand %vm4262, %vm4274
      %vm4302 = vmand %vm4263, %vm4272
      %vm4303 = vmand %vm4263, %vm4273
      %vm4304 = vmand %vm4263, %vm4274
      %vm4305 = vmand %vm4264, %vm4272
      %vm4306 = vmand %vm4264, %vm4273
      %vm4307 = vmand %vm4264, %vm4274
      %vm4308 = vmand %vm4265, %vm4272
      %vm4309 = vmand %vm4265, %vm4273
      %vm4310 = vmand %vm4265, %vm4274
      %vm4311 = vmand %vm4266, %vm4272
      %vm4312 = vmand %vm4266, %vm4273
      %vm4313 = vmand %vm4266, %vm4274
      %vm4314 = vmand %vm4267, %vm4272
      %vm4315 = vmand %vm4267, %vm4273
      %vm4316 = vmand %vm4267, %vm4274
      %vm4317 = vmand %vm4268, %vm4272
      %vm4318 = vmand %vm4268, %vm4273
      %vm4319 = vmand %vm4268, %vm4274
      %vm4320 = vmand %vm4269, %vm4272
      %vm4321 = vmand %vm4269, %vm4273
      %vm4322 = vmand %vm4269, %vm4274
      %vm4323 = vmand %vm4270, %vm4272
      %vm4324 = vmand %vm4270, %vm4273
      %vm4325 = vmand %vm4270, %vm4274
      %vm4326 = vmand %vm4271, %vm4272
      %vm4327 = vmand %vm4271, %vm4273
      %vm4328 = vmand %vm4271, %vm4274
      %vm4329 = vcmp.le.s32.totalorder %v2800, 16
      %vm4330 = vcmp.le.s32.totalorder %v4182, 16
      %vm4331 = vcmp.le.s32.totalorder %v4183, 16
      %vm4332 = vmand %vm4275, %vm4329
      %vm4333 = vmand %vm4276, %vm4330
      %vm4334 = vmand %vm4277, %vm4331
      %vm4335 = vmand %vm4278, %vm4329
      %vm4336 = vmand %vm4279, %vm4330
      %vm4337 = vmand %vm4280, %vm4331
      %vm4338 = vmand %vm4281, %vm4329
      %vm4339 = vmand %vm4282, %vm4330
      %vm4340 = vmand %vm4283, %vm4331
      %vm4341 = vmand %vm4284, %vm4329
      %vm4342 = vmand %vm4285, %vm4330
      %vm4343 = vmand %vm4286, %vm4331
      %vm4344 = vmand %vm4287, %vm4329
      %vm4345 = vmand %vm4288, %vm4330
      %vm4346 = vmand %vm4289, %vm4331
      %vm4347 = vmand %vm4290, %vm4329
      %vm4348 = vmand %vm4291, %vm4330
      %vm4349 = vmand %vm4292, %vm4331
      %vm4350 = vmand %vm4293, %vm4329
      %vm4351 = vmand %vm4294, %vm4330
      %vm4352 = vmand %vm4295, %vm4331
      %vm4353 = vmand %vm4296, %vm4329
      %vm4354 = vmand %vm4297, %vm4330
      %vm4355 = vmand %vm4298, %vm4331
      %vm4356 = vmand %vm4299, %vm4329
      %vm4357 = vmand %vm4300, %vm4330
      %vm4358 = vmand %vm4301, %vm4331
      %vm4359 = vmand %vm4302, %vm4329
      %vm4360 = vmand %vm4303, %vm4330
      %vm4361 = vmand %vm4304, %vm4331
      %vm4362 = vmand %vm4305, %vm4329
      %vm4363 = vmand %vm4306, %vm4330
      %vm4364 = vmand %vm4307, %vm4331
      %vm4365 = vmand %vm4308, %vm4329
      %vm4366 = vmand %vm4309, %vm4330
      %vm4367 = vmand %vm4310, %vm4331
      %vm4368 = vmand %vm4311, %vm4329
      %vm4369 = vmand %vm4312, %vm4330
      %vm4370 = vmand %vm4313, %vm4331
      %vm4371 = vmand %vm4314, %vm4329
      %vm4372 = vmand %vm4315, %vm4330
      %vm4373 = vmand %vm4316, %vm4331
      %vm4374 = vmand %vm4317, %vm4329
      %vm4375 = vmand %vm4318, %vm4330
      %vm4376 = vmand %vm4319, %vm4331
      %vm4377 = vmand %vm4320, %vm4329
      %vm4378 = vmand %vm4321, %vm4330
      %vm4379 = vmand %vm4322, %vm4331
      %vm4380 = vmand %vm4323, %vm4329
      %vm4381 = vmand %vm4324, %vm4330
      %vm4382 = vmand %vm4325, %vm4331
      %vm4383 = vmand %vm4326, %vm4329
      %vm4384 = vmand %vm4327, %vm4330
      %vm4385 = vmand %vm4328, %vm4331
      %v4386 = vsel %vm4332, 1, 0
      %v4387 = vsel %vm4333, 1, 0
      %v4388 = vsel %vm4334, 1, 0
      %v4389 = vsel %vm4335, 1, 0
      %v4390 = vsel %vm4336, 1, 0
      %v4391 = vsel %vm4337, 1, 0
      %v4392 = vsel %vm4338, 1, 0
      %v4393 = vsel %vm4339, 1, 0
      %v4394 = vsel %vm4340, 1, 0
      %v4395 = vsel %vm4341, 1, 0
      %v4396 = vsel %vm4342, 1, 0
      %v4397 = vsel %vm4343, 1, 0
      %v4398 = vsel %vm4344, 1, 0
      %v4399 = vsel %vm4345, 1, 0
      %v4400 = vsel %vm4346, 1, 0
      %v4401 = vsel %vm4347, 1, 0
      %v4402 = vsel %vm4348, 1, 0
      %v4403 = vsel %vm4349, 1, 0
      %v4404 = vsel %vm4350, 1, 0
      %v4405 = vsel %vm4351, 1, 0
      %v4406 = vsel %vm4352, 1, 0
      %v4407 = vsel %vm4353, 1, 0
      %v4408 = vsel %vm4354, 1, 0
      %v4409 = vsel %vm4355, 1, 0
      %v4410 = vsel %vm4356, 1, 0
      %v4411 = vsel %vm4357, 1, 0
      %v4412 = vsel %vm4358, 1, 0
      %v4413 = vsel %vm4359, 1, 0
      %v4414 = vsel %vm4360, 1, 0
      %v4415 = vsel %vm4361, 1, 0
      %v4416 = vsel %vm4362, 1, 0
      %v4417 = vsel %vm4363, 1, 0
      %v4418 = vsel %vm4364, 1, 0
      %v4419 = vsel %vm4365, 1, 0
      %v4420 = vsel %vm4366, 1, 0
      %v4421 = vsel %vm4367, 1, 0
      %v4422 = vsel %vm4368, 1, 0
      %v4423 = vsel %vm4369, 1, 0
      %v4424 = vsel %vm4370, 1, 0
      %v4425 = vsel %vm4371, 1, 0
      %v4426 = vsel %vm4372, 1, 0
      %v4427 = vsel %vm4373, 1, 0
      %v4428 = vsel %vm4374, 1, 0
      %v4429 = vsel %vm4375, 1, 0
      %v4430 = vsel %vm4376, 1, 0
      %v4431 = vsel %vm4377, 1, 0
      %v4432 = vsel %vm4378, 1, 0
      %v4433 = vsel %vm4379, 1, 0
      %v4434 = vsel %vm4380, 1, 0
      %v4435 = vsel %vm4381, 1, 0
      %v4436 = vsel %vm4382, 1, 0
      %v4437 = vsel %vm4383, 1, 0
      %v4438 = vsel %vm4384, 1, 0
      %v4439 = vsel %vm4385, 1, 0
      %vm4440 = vcmp.eq.s32.totalorder %v4386, 1
      %vm4441 = vcmp.eq.s32.totalorder %v4387, 1
      %vm4442 = vcmp.eq.s32.totalorder %v4388, 1
      %vm4443 = vcmp.eq.s32.totalorder %v4389, 1
      %vm4444 = vcmp.eq.s32.totalorder %v4390, 1
      %vm4445 = vcmp.eq.s32.totalorder %v4391, 1
      %vm4446 = vcmp.eq.s32.totalorder %v4392, 1
      %vm4447 = vcmp.eq.s32.totalorder %v4393, 1
      %vm4448 = vcmp.eq.s32.totalorder %v4394, 1
      %vm4449 = vcmp.eq.s32.totalorder %v4395, 1
      %vm4450 = vcmp.eq.s32.totalorder %v4396, 1
      %vm4451 = vcmp.eq.s32.totalorder %v4397, 1
      %vm4452 = vcmp.eq.s32.totalorder %v4398, 1
      %vm4453 = vcmp.eq.s32.totalorder %v4399, 1
      %vm4454 = vcmp.eq.s32.totalorder %v4400, 1
      %vm4455 = vcmp.eq.s32.totalorder %v4401, 1
      %vm4456 = vcmp.eq.s32.totalorder %v4402, 1
      %vm4457 = vcmp.eq.s32.totalorder %v4403, 1
      %vm4458 = vcmp.eq.s32.totalorder %v4404, 1
      %vm4459 = vcmp.eq.s32.totalorder %v4405, 1
      %vm4460 = vcmp.eq.s32.totalorder %v4406, 1
      %vm4461 = vcmp.eq.s32.totalorder %v4407, 1
      %vm4462 = vcmp.eq.s32.totalorder %v4408, 1
      %vm4463 = vcmp.eq.s32.totalorder %v4409, 1
      %vm4464 = vcmp.eq.s32.totalorder %v4410, 1
      %vm4465 = vcmp.eq.s32.totalorder %v4411, 1
      %vm4466 = vcmp.eq.s32.totalorder %v4412, 1
      %vm4467 = vcmp.eq.s32.totalorder %v4413, 1
      %vm4468 = vcmp.eq.s32.totalorder %v4414, 1
      %vm4469 = vcmp.eq.s32.totalorder %v4415, 1
      %vm4470 = vcmp.eq.s32.totalorder %v4416, 1
      %vm4471 = vcmp.eq.s32.totalorder %v4417, 1
      %vm4472 = vcmp.eq.s32.totalorder %v4418, 1
      %vm4473 = vcmp.eq.s32.totalorder %v4419, 1
      %vm4474 = vcmp.eq.s32.totalorder %v4420, 1
      %vm4475 = vcmp.eq.s32.totalorder %v4421, 1
      %vm4476 = vcmp.eq.s32.totalorder %v4422, 1
      %vm4477 = vcmp.eq.s32.totalorder %v4423, 1
      %vm4478 = vcmp.eq.s32.totalorder %v4424, 1
      %vm4479 = vcmp.eq.s32.totalorder %v4425, 1
      %vm4480 = vcmp.eq.s32.totalorder %v4426, 1
      %vm4481 = vcmp.eq.s32.totalorder %v4427, 1
      %vm4482 = vcmp.eq.s32.totalorder %v4428, 1
      %vm4483 = vcmp.eq.s32.totalorder %v4429, 1
      %vm4484 = vcmp.eq.s32.totalorder %v4430, 1
      %vm4485 = vcmp.eq.s32.totalorder %v4431, 1
      %vm4486 = vcmp.eq.s32.totalorder %v4432, 1
      %vm4487 = vcmp.eq.s32.totalorder %v4433, 1
      %vm4488 = vcmp.eq.s32.totalorder %v4434, 1
      %vm4489 = vcmp.eq.s32.totalorder %v4435, 1
      %vm4490 = vcmp.eq.s32.totalorder %v4436, 1
      %vm4491 = vcmp.eq.s32.totalorder %v4437, 1
      %vm4492 = vcmp.eq.s32.totalorder %v4438, 1
      %vm4493 = vcmp.eq.s32.totalorder %v4439, 1
      %v4494 = vsel %vm4440, %v4128, 0.0
      %v4495 = vsel %vm4441, %v4129, 0.0
      %v4496 = vsel %vm4442, %v4130, 0.0
      %v4497 = vsel %vm4443, %v4131, 0.0
      %v4498 = vsel %vm4444, %v4132, 0.0
      %v4499 = vsel %vm4445, %v4133, 0.0
      %v4500 = vsel %vm4446, %v4134, 0.0
      %v4501 = vsel %vm4447, %v4135, 0.0
      %v4502 = vsel %vm4448, %v4136, 0.0
      %v4503 = vsel %vm4449, %v4137, 0.0
      %v4504 = vsel %vm4450, %v4138, 0.0
      %v4505 = vsel %vm4451, %v4139, 0.0
      %v4506 = vsel %vm4452, %v4140, 0.0
      %v4507 = vsel %vm4453, %v4141, 0.0
      %v4508 = vsel %vm4454, %v4142, 0.0
      %v4509 = vsel %vm4455, %v4143, 0.0
      %v4510 = vsel %vm4456, %v4144, 0.0
      %v4511 = vsel %vm4457, %v4145, 0.0
      %v4512 = vsel %vm4458, %v4146, 0.0
      %v4513 = vsel %vm4459, %v4147, 0.0
      %v4514 = vsel %vm4460, %v4148, 0.0
      %v4515 = vsel %vm4461, %v4149, 0.0
      %v4516 = vsel %vm4462, %v4150, 0.0
      %v4517 = vsel %vm4463, %v4151, 0.0
      %v4518 = vsel %vm4464, %v4152, 0.0
      %v4519 = vsel %vm4465, %v4153, 0.0
      %v4520 = vsel %vm4466, %v4154, 0.0
      %v4521 = vsel %vm4467, %v4155, 0.0
      %v4522 = vsel %vm4468, %v4156, 0.0
      %v4523 = vsel %vm4469, %v4157, 0.0
      %v4524 = vsel %vm4470, %v4158, 0.0
      %v4525 = vsel %vm4471, %v4159, 0.0
      %v4526 = vsel %vm4472, %v4160, 0.0
      %v4527 = vsel %vm4473, %v4161, 0.0
      %v4528 = vsel %vm4474, %v4162, 0.0
      %v4529 = vsel %vm4475, %v4163, 0.0
      %v4530 = vsel %vm4476, %v4164, 0.0
      %v4531 = vsel %vm4477, %v4165, 0.0
      %v4532 = vsel %vm4478, %v4166, 0.0
      %v4533 = vsel %vm4479, %v4167, 0.0
      %v4534 = vsel %vm4480, %v4168, 0.0
      %v4535 = vsel %vm4481, %v4169, 0.0
      %v4536 = vsel %vm4482, %v4170, 0.0
      %v4537 = vsel %vm4483, %v4171, 0.0
      %v4538 = vsel %vm4484, %v4172, 0.0
      %v4539 = vsel %vm4485, %v4173, 0.0
      %v4540 = vsel %vm4486, %v4174, 0.0
      %v4541 = vsel %vm4487, %v4175, 0.0
      %v4542 = vsel %vm4488, %v4176, 0.0
      %v4543 = vsel %vm4489, %v4177, 0.0
      %v4544 = vsel %vm4490, %v4178, 0.0
      %v4545 = vsel %vm4491, %v4179, 0.0
      %v4546 = vsel %vm4492, %v4180, 0.0
      %v4547 = vsel %vm4493, %v4181, 0.0
      %v4548 = vpack.c.bf16 %v4495, %v4494
      %v4549 = vpack.c.bf16 %v4496, %v4496
      %v4550 = vpack.c.bf16 %v4498, %v4497
      %v4551 = vpack.c.bf16 %v4499, %v4499
      %v4552 = vpack.c.bf16 %v4501, %v4500
      %v4553 = vpack.c.bf16 %v4502, %v4502
      %v4554 = vpack.c.bf16 %v4504, %v4503
      %v4555 = vpack.c.bf16 %v4505, %v4505
      %v4556 = vpack.c.bf16 %v4507, %v4506
      %v4557 = vpack.c.bf16 %v4508, %v4508
      %v4558 = vpack.c.bf16 %v4510, %v4509
      %v4559 = vpack.c.bf16 %v4511, %v4511
      %v4560 = vpack.c.bf16 %v4513, %v4512
      %v4561 = vpack.c.bf16 %v4514, %v4514
      %v4562 = vpack.c.bf16 %v4516, %v4515
      %v4563 = vpack.c.bf16 %v4517, %v4517
      %v4564 = vpack.c.bf16 %v4519, %v4518
      %v4565 = vpack.c.bf16 %v4520, %v4520
      %v4566 = vpack.c.bf16 %v4522, %v4521
      %v4567 = vpack.c.bf16 %v4523, %v4523
      %v4568 = vpack.c.bf16 %v4525, %v4524
      %v4569 = vpack.c.bf16 %v4526, %v4526
      %v4570 = vpack.c.bf16 %v4528, %v4527
      %v4571 = vpack.c.bf16 %v4529, %v4529
      %v4572 = vpack.c.bf16 %v4531, %v4530
      %v4573 = vpack.c.bf16 %v4532, %v4532
      %v4574 = vpack.c.bf16 %v4534, %v4533
      %v4575 = vpack.c.bf16 %v4535, %v4535
      %v4576 = vpack.c.bf16 %v4537, %v4536
      %v4577 = vpack.c.bf16 %v4538, %v4538
      %v4578 = vpack.c.bf16 %v4540, %v4539
      %v4579 = vpack.c.bf16 %v4541, %v4541
      %v4580 = vpack.c.bf16 %v4543, %v4542
      %v4581 = vpack.c.bf16 %v4544, %v4544
      %v4582 = vpack.c.bf16 %v4546, %v4545
      %v4583 = vpack.c.bf16 %v4547, %v4547
      %v4620 = vunpack.c.l.b16 %v4548
      %v4621 = vunpack.c.h.b16 %v4548
      %v4622 = vunpack.c.l.b16 %v4549
      %v4623 = vunpack.c.l.b16 %v4550
      %v4624 = vunpack.c.h.b16 %v4550
      %v4625 = vunpack.c.l.b16 %v4551
      %v4626 = vunpack.c.l.b16 %v4552
      %v4627 = vunpack.c.h.b16 %v4552
      %v4628 = vunpack.c.l.b16 %v4553
      %v4629 = vunpack.c.l.b16 %v4554
      %v4630 = vunpack.c.h.b16 %v4554
      %v4631 = vunpack.c.l.b16 %v4555
      %v4632 = vunpack.c.l.b16 %v4556
      %v4633 = vunpack.c.h.b16 %v4556
      %v4634 = vunpack.c.l.b16 %v4557
      %v4635 = vunpack.c.l.b16 %v4558
      %v4636 = vunpack.c.h.b16 %v4558
      %v4637 = vunpack.c.l.b16 %v4559
      %v4638 = vunpack.c.l.b16 %v4560
      %v4639 = vunpack.c.h.b16 %v4560
      %v4640 = vunpack.c.l.b16 %v4561
      %v4641 = vunpack.c.l.b16 %v4562
      %v4642 = vunpack.c.h.b16 %v4562
      %v4643 = vunpack.c.l.b16 %v4563
      %v4644 = vunpack.c.l.b16 %v4564
      %v4645 = vunpack.c.h.b16 %v4564
      %v4646 = vunpack.c.l.b16 %v4565
      %v4647 = vunpack.c.l.b16 %v4566
      %v4648 = vunpack.c.h.b16 %v4566
      %v4649 = vunpack.c.l.b16 %v4567
      %v4650 = vunpack.c.l.b16 %v4568
      %v4651 = vunpack.c.h.b16 %v4568
      %v4652 = vunpack.c.l.b16 %v4569
      %v4653 = vunpack.c.l.b16 %v4570
      %v4654 = vunpack.c.h.b16 %v4570
      %v4655 = vunpack.c.l.b16 %v4571
      %v4656 = vunpack.c.l.b16 %v4572
      %v4657 = vunpack.c.h.b16 %v4572
      %v4658 = vunpack.c.l.b16 %v4573
      %v4659 = vunpack.c.l.b16 %v4574
      %v4660 = vunpack.c.h.b16 %v4574
      %v4661 = vunpack.c.l.b16 %v4575
      %v4662 = vunpack.c.l.b16 %v4576
      %v4663 = vunpack.c.h.b16 %v4576
      %v4664 = vunpack.c.l.b16 %v4577
      %v4665 = vunpack.c.l.b16 %v4578
      %v4666 = vunpack.c.h.b16 %v4578
      %v4667 = vunpack.c.l.b16 %v4579
      %v4668 = vunpack.c.l.b16 %v4580
      %v4669 = vunpack.c.h.b16 %v4580
      %v4670 = vunpack.c.l.b16 %v4581
      %v4671 = vunpack.c.l.b16 %v4582
      %v4672 = vunpack.c.h.b16 %v4582
      %v4673 = vunpack.c.l.b16 %v4583
      %v4674 = vpack.c.b16 %v4620, %v4620
      %v4675 = vpack.c.b16 %v4621, %v4621
      %v4676 = vpack.c.b16 %v4622, %v4622
      %v4677 = vpack.c.b16 %v4623, %v4623
      %v4678 = vpack.c.b16 %v4624, %v4624
      %v4679 = vpack.c.b16 %v4625, %v4625
      %v4680 = vpack.c.b16 %v4626, %v4626
      %v4681 = vpack.c.b16 %v4627, %v4627
      %v4682 = vpack.c.b16 %v4628, %v4628
      %v4683 = vpack.c.b16 %v4629, %v4629
      %v4684 = vpack.c.b16 %v4630, %v4630
      %v4685 = vpack.c.b16 %v4631, %v4631
      %v4686 = vpack.c.b16 %v4632, %v4632
      %v4687 = vpack.c.b16 %v4633, %v4633
      %v4688 = vpack.c.b16 %v4634, %v4634
      %v4689 = vpack.c.b16 %v4635, %v4635
      %v4690 = vpack.c.b16 %v4636, %v4636
      %v4691 = vpack.c.b16 %v4637, %v4637
      %v4692 = vpack.c.b16 %v4638, %v4638
      %v4693 = vpack.c.b16 %v4639, %v4639
      %v4694 = vpack.c.b16 %v4640, %v4640
      %v4695 = vpack.c.b16 %v4641, %v4641
      %v4696 = vpack.c.b16 %v4642, %v4642
      %v4697 = vpack.c.b16 %v4643, %v4643
      %v4698 = vpack.c.b16 %v4644, %v4644
      %v4699 = vpack.c.b16 %v4645, %v4645
      %v4700 = vpack.c.b16 %v4646, %v4646
      %v4701 = vpack.c.b16 %v4647, %v4647
      %v4702 = vpack.c.b16 %v4648, %v4648
      %v4703 = vpack.c.b16 %v4649, %v4649
      %v4704 = vpack.c.b16 %v4650, %v4650
      %v4705 = vpack.c.b16 %v4651, %v4651
      %v4706 = vpack.c.b16 %v4652, %v4652
      %v4707 = vpack.c.b16 %v4653, %v4653
      %v4708 = vpack.c.b16 %v4654, %v4654
      %v4709 = vpack.c.b16 %v4655, %v4655
      %v4710 = vpack.c.b16 %v4656, %v4656
      %v4711 = vpack.c.b16 %v4657, %v4657
      %v4712 = vpack.c.b16 %v4658, %v4658
      %v4713 = vpack.c.b16 %v4659, %v4659
      %v4714 = vpack.c.b16 %v4660, %v4660
      %v4715 = vpack.c.b16 %v4661, %v4661
      %v4716 = vpack.c.b16 %v4662, %v4662
      %v4717 = vpack.c.b16 %v4663, %v4663
      %v4718 = vpack.c.b16 %v4664, %v4664
      %v4719 = vpack.c.b16 %v4665, %v4665
      %v4720 = vpack.c.b16 %v4666, %v4666
      %v4721 = vpack.c.b16 %v4667, %v4667
      %v4722 = vpack.c.b16 %v4668, %v4668
      %v4723 = vpack.c.b16 %v4669, %v4669
      %v4724 = vpack.c.b16 %v4670, %v4670
      %v4725 = vpack.c.b16 %v4671, %v4671
      %v4726 = vpack.c.b16 %v4672, %v4672
      %v4727 = vpack.c.b16 %v4673, %v4673
      %4782 = vst [vmem:[#allocation3] sm:$0xf] %v4674
      %4783 = vst [vmem:[#allocation3 + $0x4] sm:$0xf] %v4675
      %4784 = vst [vmem:[#allocation3 + $0x8] sm:$0xf] %v4676
      %4785 = vst [vmem:[#allocation3 + $0xc] sm:$0xf] %v4677
      %4786 = vst [vmem:[#allocation3 + $0x10] sm:$0xf] %v4678
      %4787 = vst [vmem:[#allocation3 + $0x14] sm:$0xf] %v4679
      %4788 = vst [vmem:[#allocation3 + $0x18] sm:$0xf] %v4680
      %4789 = vst [vmem:[#allocation3 + $0x1c] sm:$0xf] %v4681
      %4790 = vst [vmem:[#allocation3 + $0x20] sm:$0xf] %v4682
      %4791 = vst [vmem:[#allocation3 + $0x24] sm:$0xf] %v4683
      %4792 = vst [vmem:[#allocation3 + $0x28] sm:$0xf] %v4684
      %4793 = vst [vmem:[#allocation3 + $0x2c] sm:$0xf] %v4685
      %4794 = vst [vmem:[#allocation3 + $0x30] sm:$0xf] %v4686
      %4795 = vst [vmem:[#allocation3 + $0x34] sm:$0xf] %v4687
      %4796 = vst [vmem:[#allocation3 + $0x38] sm:$0xf] %v4688
      %4797 = vst [vmem:[#allocation3 + $0x3c] sm:$0xf] %v4689
      %4798 = vst [vmem:[#allocation3 + $0x40] sm:$0xf] %v4690
      %4799 = vst [vmem:[#allocation3 + $0x44] sm:$0xf] %v4691
      %4800 = vst [vmem:[#allocation3 + $0x48] sm:$0xf] %v4692
      %4801 = vst [vmem:[#allocation3 + $0x4c] sm:$0xf] %v4693
      %4802 = vst [vmem:[#allocation3 + $0x50] sm:$0xf] %v4694
      %4803 = vst [vmem:[#allocation3 + $0x54] sm:$0xf] %v4695
      %4804 = vst [vmem:[#allocation3 + $0x58] sm:$0xf] %v4696
      %4805 = vst [vmem:[#allocation3 + $0x5c] sm:$0xf] %v4697
      %4806 = vst [vmem:[#allocation3 + $0x60] sm:$0xf] %v4698
      %4807 = vst [vmem:[#allocation3 + $0x64] sm:$0xf] %v4699
      %4808 = vst [vmem:[#allocation3 + $0x68] sm:$0xf] %v4700
      %4809 = vst [vmem:[#allocation3 + $0x6c] sm:$0xf] %v4701
      %4810 = vst [vmem:[#allocation3 + $0x70] sm:$0xf] %v4702
      %4811 = vst [vmem:[#allocation3 + $0x74] sm:$0xf] %v4703
      %4812 = vst [vmem:[#allocation3 + $0x78] sm:$0xf] %v4704
      %4813 = vst [vmem:[#allocation3 + $0x7c] sm:$0xf] %v4705
      %4814 = vst [vmem:[#allocation3 + $0x80] sm:$0xf] %v4706
      %4815 = vst [vmem:[#allocation3 + $0x84] sm:$0xf] %v4707
      %4816 = vst [vmem:[#allocation3 + $0x88] sm:$0xf] %v4708
      %4817 = vst [vmem:[#allocation3 + $0x8c] sm:$0xf] %v4709
      %4818 = vst [vmem:[#allocation3 + $0x90] sm:$0xf] %v4710
      %4819 = vst [vmem:[#allocation3 + $0x94] sm:$0xf] %v4711
      %4820 = vst [vmem:[#allocation3 + $0x98] sm:$0xf] %v4712
      %4821 = vst [vmem:[#allocation3 + $0x9c] sm:$0xf] %v4713
      %4822 = vst [vmem:[#allocation3 + $0xa0] sm:$0xf] %v4714
      %4823 = vst [vmem:[#allocation3 + $0xa4] sm:$0xf] %v4715
      %4824 = vst [vmem:[#allocation3 + $0xa8] sm:$0xf] %v4716
      %4825 = vst [vmem:[#allocation3 + $0xac] sm:$0xf] %v4717
      %4826 = vst [vmem:[#allocation3 + $0xb0] sm:$0xf] %v4718
      %4827 = vst [vmem:[#allocation3 + $0xb4] sm:$0xf] %v4719
      %4828 = vst [vmem:[#allocation3 + $0xb8] sm:$0xf] %v4720
      %4829 = vst [vmem:[#allocation3 + $0xbc] sm:$0xf] %v4721
      %4830 = vst [vmem:[#allocation3 + $0xc0] sm:$0xf] %v4722
      %4831 = vst [vmem:[#allocation3 + $0xc4] sm:$0xf] %v4723
      %4832 = vst [vmem:[#allocation3 + $0xc8] sm:$0xf] %v4724
      %4833 = vst [vmem:[#allocation3 + $0xcc] sm:$0xf] %v4725
      %4834 = vst [vmem:[#allocation3 + $0xd0] sm:$0xf] %v4726
      %4835 = vst [vmem:[#allocation3 + $0xd4] sm:$0xf] %v4727
      %v4836 = vld [vmem:[#allocation3] sm:$0xf]
      %v4837 = vld [vmem:[#allocation3 + $0x4] sm:$0xf]
      %v4838 = vld [vmem:[#allocation3 + $0x8] sm:$0xf]
      %v4839 = vld [vmem:[#allocation3 + $0xc] sm:$0xf]
      %v4840 = vld [vmem:[#allocation3 + $0x10] sm:$0xf]
      %v4841 = vld [vmem:[#allocation3 + $0x14] sm:$0xf]
      %v4842 = vld [vmem:[#allocation3 + $0x18] sm:$0xf]
      %v4843 = vld [vmem:[#allocation3 + $0x1c] sm:$0xf]
      %v4844 = vld [vmem:[#allocation3 + $0x20] sm:$0xf]
      %v4845 = vld [vmem:[#allocation3 + $0x24] sm:$0xf]
      %v4846 = vld [vmem:[#allocation3 + $0x28] sm:$0xf]
      %v4847 = vld [vmem:[#allocation3 + $0x2c] sm:$0xf]
      %v4848 = vld [vmem:[#allocation3 + $0x30] sm:$0xf]
      %v4849 = vld [vmem:[#allocation3 + $0x34] sm:$0xf]
      %v4850 = vld [vmem:[#allocation3 + $0x38] sm:$0xf]
      %v4851 = vld [vmem:[#allocation3 + $0x3c] sm:$0xf]
      %v4852 = vld [vmem:[#allocation3 + $0x40] sm:$0xf]
      %v4853 = vld [vmem:[#allocation3 + $0x44] sm:$0xf]
      %v4854 = vld [vmem:[#allocation3 + $0x48] sm:$0xf]
      %v4855 = vld [vmem:[#allocation3 + $0x4c] sm:$0xf]
      %v4856 = vld [vmem:[#allocation3 + $0x50] sm:$0xf]
      %v4857 = vld [vmem:[#allocation3 + $0x54] sm:$0xf]
      %v4858 = vld [vmem:[#allocation3 + $0x58] sm:$0xf]
      %v4859 = vld [vmem:[#allocation3 + $0x5c] sm:$0xf]
      %v4860 = vld [vmem:[#allocation3 + $0x60] sm:$0xf]
      %v4861 = vld [vmem:[#allocation3 + $0x64] sm:$0xf]
      %v4862 = vld [vmem:[#allocation3 + $0x68] sm:$0xf]
      %v4863 = vld [vmem:[#allocation3 + $0x6c] sm:$0xf]
      %v4864 = vld [vmem:[#allocation3 + $0x70] sm:$0xf]
      %v4865 = vld [vmem:[#allocation3 + $0x74] sm:$0xf]
      %v4866 = vld [vmem:[#allocation3 + $0x78] sm:$0xf]
      %v4867 = vld [vmem:[#allocation3 + $0x7c] sm:$0xf]
      %v4868 = vld [vmem:[#allocation3 + $0x80] sm:$0xf]
      %v4869 = vld [vmem:[#allocation3 + $0x84] sm:$0xf]
      %v4870 = vld [vmem:[#allocation3 + $0x88] sm:$0xf]
      %v4871 = vld [vmem:[#allocation3 + $0x8c] sm:$0xf]
      %v4872 = vld [vmem:[#allocation3 + $0x90] sm:$0xf]
      %v4873 = vld [vmem:[#allocation3 + $0x94] sm:$0xf]
      %v4874 = vld [vmem:[#allocation3 + $0x98] sm:$0xf]
      %v4875 = vld [vmem:[#allocation3 + $0x9c] sm:$0xf]
      %v4876 = vld [vmem:[#allocation3 + $0xa0] sm:$0xf]
      %v4877 = vld [vmem:[#allocation3 + $0xa4] sm:$0xf]
      %v4878 = vld [vmem:[#allocation3 + $0xa8] sm:$0xf]
      %v4879 = vld [vmem:[#allocation3 + $0xac] sm:$0xf]
      %v4880 = vld [vmem:[#allocation3 + $0xb0] sm:$0xf]
      %v4881 = vld [vmem:[#allocation3 + $0xb4] sm:$0xf]
      %v4882 = vld [vmem:[#allocation3 + $0xb8] sm:$0xf]
      %v4883 = vld [vmem:[#allocation3 + $0xbc] sm:$0xf]
      %v4884 = vld [vmem:[#allocation3 + $0xc0] sm:$0xf]
      %v4885 = vld [vmem:[#allocation3 + $0xc4] sm:$0xf]
      %v4886 = vld [vmem:[#allocation3 + $0xc8] sm:$0xf]
      %v4887 = vld [vmem:[#allocation3 + $0xcc] sm:$0xf]
      %v4888 = vld [vmem:[#allocation3 + $0xd0] sm:$0xf]
      %v4889 = vld [vmem:[#allocation3 + $0xd4] sm:$0xf]
      %s4890 = scalar_lea.vmem %s3, 128
      %v4891 = vld [vmem:[%s4890] sm:$0xf]
      %v4892 = vld [vmem:[%s4890 + $0x4] sm:$0xf]
      %v4893 = vld [vmem:[%s4890 + $0x8] sm:$0xf]
      %v4894 = vld [vmem:[%s4890 + $0xc] sm:$0xf]
      %v4895 = vld [vmem:[%s4890 + $0x10] sm:$0xf]
      %v4896 = vld [vmem:[%s4890 + $0x14] sm:$0xf]
      %v4897 = vld [vmem:[%s4890 + $0x18] sm:$0xf]
      %v4898 = vld [vmem:[%s4890 + $0x1c] sm:$0xf]
      %v4899 = vld [vmem:[%s4890 + $0x20] sm:$0xf]
      %v4900 = vld [vmem:[%s4890 + $0x24] sm:$0xf]
      %v4901 = vld [vmem:[%s4890 + $0x28] sm:$0xf]
      %v4902 = vld [vmem:[%s4890 + $0x2c] sm:$0xf]
      %v4903 = vld [vmem:[%s4890 + $0x30] sm:$0xf]
      %v4904 = vld [vmem:[%s4890 + $0x34] sm:$0xf]
      %v4905 = vld [vmem:[%s4890 + $0x38] sm:$0xf]
      %v4906 = vld [vmem:[%s4890 + $0x3c] sm:$0xf]
      %s4907 = scalar_lea.vmem %s3, 320
      %v4908 = vld [vmem:[%s4907] sm:$0xf]
      %v4909 = vld [vmem:[%s4907 + $0x4] sm:$0xf]
      %v4910 = vld [vmem:[%s4907 + $0x8] sm:$0xf]
      %v4911 = vld [vmem:[%s4907 + $0xc] sm:$0xf]
      %v4912 = vld [vmem:[%s4907 + $0x10] sm:$0xf]
      %v4913 = vld [vmem:[%s4907 + $0x14] sm:$0xf]
      %v4914 = vld [vmem:[%s4907 + $0x18] sm:$0xf]
      %v4915 = vld [vmem:[%s4907 + $0x1c] sm:$0xf]
      %v4916 = vld [vmem:[%s4907 + $0x20] sm:$0xf]
      %v4917 = vld [vmem:[%s4907 + $0x24] sm:$0xf]
      %v4918 = vld [vmem:[%s4907 + $0x28] sm:$0xf]
      %v4919 = vld [vmem:[%s4907 + $0x2c] sm:$0xf]
      %v4920 = vld [vmem:[%s4907 + $0x30] sm:$0xf]
      %v4921 = vld [vmem:[%s4907 + $0x34] sm:$0xf]
      %v4922 = vld [vmem:[%s4907 + $0x38] sm:$0xf]
      %v4923 = vld [vmem:[%s4907 + $0x3c] sm:$0xf]
      %v4972 = vunpack.c.l.b16 %v4839
      %v4973 = vunpack.c.l.b16 %v4840
      %v4974 = vunpack.c.l.b16 %v4841
      %v4975 = vunpack.c.l.b16 %v4842
      %v4976 = vunpack.c.l.b16 %v4843
      %v4977 = vunpack.c.l.b16 %v4844
      %v4978 = vunpack.c.l.b16 %v4845
      %v4979 = vunpack.c.l.b16 %v4846
      %v4980 = vunpack.c.l.b16 %v4847
      %v4981 = vunpack.c.l.b16 %v4848
      %v4982 = vunpack.c.l.b16 %v4849
      %v4983 = vunpack.c.l.b16 %v4850
      %v4984 = vunpack.c.l.b16 %v4851
      %v4985 = vunpack.c.l.b16 %v4852
      %v4986 = vunpack.c.l.b16 %v4853
      %v4987 = vunpack.c.l.b16 %v4854
      %v4988 = vunpack.c.l.b16 %v4855
      %v4989 = vunpack.c.l.b16 %v4856
      %v4990 = vunpack.c.l.b16 %v4857
      %v4991 = vunpack.c.l.b16 %v4858
      %v4992 = vunpack.c.l.b16 %v4859
      %v4993 = vunpack.c.l.b16 %v4860
      %v4994 = vunpack.c.l.b16 %v4861
      %v4995 = vunpack.c.l.b16 %v4862
      %v4996 = vunpack.c.l.b16 %v4863
      %v4997 = vunpack.c.l.b16 %v4864
      %v4998 = vunpack.c.l.b16 %v4865
      %v4999 = vunpack.c.l.b16 %v4866
      %v5000 = vunpack.c.l.b16 %v4867
      %v5001 = vunpack.c.l.b16 %v4868
      %v5002 = vunpack.c.l.b16 %v4869
      %v5003 = vunpack.c.l.b16 %v4870
      %v5004 = vunpack.c.l.b16 %v4871
      %v5005 = vunpack.c.l.b16 %v4872
      %v5006 = vunpack.c.l.b16 %v4873
      %v5007 = vunpack.c.l.b16 %v4874
      %v5008 = vunpack.c.l.b16 %v4875
      %v5009 = vunpack.c.l.b16 %v4876
      %v5010 = vunpack.c.l.b16 %v4877
      %v5011 = vunpack.c.l.b16 %v4878
      %v5012 = vunpack.c.l.b16 %v4879
      %v5013 = vunpack.c.l.b16 %v4880
      %v5014 = vunpack.c.l.b16 %v4881
      %v5015 = vunpack.c.l.b16 %v4882
      %v5016 = vunpack.c.l.b16 %v4883
      %v5017 = vunpack.c.l.b16 %v4884
      %v5018 = vunpack.c.l.b16 %v4885
      %v5019 = vunpack.c.l.b16 %v4886
      %v5020 = vpack.c.b16 %v4973, %v4972
      %v5021 = vpack.c.b16 %v4975, %v4974
      %v5022 = vpack.c.b16 %v4977, %v4976
      %v5023 = vpack.c.b16 %v4979, %v4978
      %v5024 = vpack.c.b16 %v4981, %v4980
      %v5025 = vpack.c.b16 %v4983, %v4982
      %v5026 = vpack.c.b16 %v4985, %v4984
      %v5027 = vpack.c.b16 %v4987, %v4986
      %v5028 = vpack.c.b16 %v4989, %v4988
      %v5029 = vpack.c.b16 %v4991, %v4990
      %v5030 = vpack.c.b16 %v4993, %v4992
      %v5031 = vpack.c.b16 %v4995, %v4994
      %v5032 = vpack.c.b16 %v4997, %v4996
      %v5033 = vpack.c.b16 %v4999, %v4998
      %v5034 = vpack.c.b16 %v5001, %v5000
      %v5035 = vpack.c.b16 %v5003, %v5002
      %v5036 = vpack.c.b16 %v5005, %v5004
      %v5037 = vpack.c.b16 %v5007, %v5006
      %v5038 = vpack.c.b16 %v5009, %v5008
      %v5039 = vpack.c.b16 %v5011, %v5010
      %v5040 = vpack.c.b16 %v5013, %v5012
      %v5041 = vpack.c.b16 %v5015, %v5014
      %v5042 = vpack.c.b16 %v5017, %v5016
      %v5043 = vpack.c.b16 %v5019, %v5018
      %v5084 = vunpack.c.l.b16 %v4908
      %v5085 = vunpack.c.l.b16 %v4909
      %v5086 = vunpack.c.l.b16 %v4910
      %v5087 = vunpack.c.l.b16 %v4911
      %v5088 = vunpack.c.l.b16 %v4912
      %v5089 = vunpack.c.l.b16 %v4913
      %v5090 = vunpack.c.l.b16 %v4914
      %v5091 = vunpack.c.l.b16 %v4915
      %v5092 = vunpack.c.l.b16 %v4916
      %v5093 = vunpack.c.l.b16 %v4917
      %v5094 = vunpack.c.l.b16 %v4918
      %v5095 = vunpack.c.l.b16 %v4919
      %v5096 = vunpack.c.l.b16 %v4920
      %v5097 = vunpack.c.l.b16 %v4921
      %v5098 = vunpack.c.l.b16 %v4922
      %v5099 = vunpack.c.l.b16 %v4923
      %v5100 = vpack.c.b16 %v5085, %v5084
      %v5101 = vpack.c.b16 %v5087, %v5086
      %v5102 = vpack.c.b16 %v5089, %v5088
      %v5103 = vpack.c.b16 %v5091, %v5090
      %v5104 = vpack.c.b16 %v5093, %v5092
      %v5105 = vpack.c.b16 %v5095, %v5094
      %v5106 = vpack.c.b16 %v5097, %v5096
      %v5107 = vpack.c.b16 %v5099, %v5098
      %5116 = vmatprep.subr.bf16.mxu0 0
      %5117 = vmatpush1.bf16.msra.mxu0 %v5107
      %5118 = vmatprep.subr.bf16.mxu0 0
      %5119 = vmatpush1.bf16.msra.mxu0 %v5106
      %5120 = vmatprep.subr.bf16.mxu0 0
      %5121 = vmatpush1.bf16.msra.mxu0 %v5105
      %5122 = vmatprep.subr.bf16.mxu0 0
      %5123 = vmatpush1.bf16.msra.mxu0 %v5104
      %5124 = vmatprep.subr.bf16.mxu0 0
      %5125 = vmatpush1.bf16.msra.mxu0 %v5103
      %5126 = vmatprep.subr.bf16.mxu0 0
      %5127 = vmatpush1.bf16.msra.mxu0 %v5102
      %5128 = vmatprep.subr.bf16.mxu0 0
      %5129 = vmatpush1.bf16.msra.mxu0 %v5101
      %5130 = vmatprep.subr.bf16.mxu0 0
      %5131 = vmatpush1.bf16.msra.mxu0 %v5100
      %5132 = vmatprep.subr.bf16.mxu0 0
      %5133 = vmatpush2.bf16.msra.mxu0 0
      %5134 = vmatprep.subr.bf16.mxu0 0
      %5135 = vmatpush2.bf16.msra.mxu0 0
      %5136 = vmatprep.subr.bf16.mxu0 0
      %5137 = vmatpush2.bf16.msra.mxu0 0
      %5138 = vmatprep.subr.bf16.mxu0 0
      %5139 = vmatpush2.bf16.msra.mxu0 0
      %5140 = vmatprep.subr.bf16.mxu0 0
      %5141 = vmatpush2.bf16.msra.mxu0 0
      %5142 = vmatprep.subr.bf16.mxu0 0
      %5143 = vmatpush2.bf16.msra.mxu0 0
      %5144 = vmatprep.subr.bf16.mxu0 0
      %5145 = vmatpush2.bf16.msra.mxu0 0
      %5146 = vmatprep.subr.bf16.mxu0 0
      %5147 = vmatpush2.bf16.msra.mxu0 0
      %5148 = vmatprep.mubr.bf16.mxu0 0
      %5149 = vmatmul.mubr.bf16.gmra.mxu0 %v5020
      %v5150 = vpop.f32.mrf.mxu0
      %v5151 = vadd.f32 0.0, %v5150
      %v5152 = vpop.f32.mrf.mxu0
      %v5153 = vpop.f32.mrf.mxu0
      %v5154 = vadd.f32 0.0, %v5153
      %v5155 = vpop.f32.mrf.mxu0
      %5156 = vmatprep.mubr.bf16.mxu0 0
      %5157 = vmatmul.mubr.bf16.gmra.mxu0 %v5021
      %v5158 = vpop.f32.mrf.mxu0
      %v5159 = vadd.f32 0.0, %v5158
      %v5160 = vpop.f32.mrf.mxu0
      %v5161 = vpop.f32.mrf.mxu0
      %v5162 = vadd.f32 0.0, %v5161
      %v5163 = vpop.f32.mrf.mxu0
      %5164 = vmatprep.mubr.bf16.mxu0 0
      %5165 = vmatmul.mubr.bf16.gmra.mxu0 %v5022
      %v5166 = vpop.f32.mrf.mxu0
      %v5167 = vadd.f32 0.0, %v5166
      %v5168 = vpop.f32.mrf.mxu0
      %v5169 = vpop.f32.mrf.mxu0
      %v5170 = vadd.f32 0.0, %v5169
      %v5171 = vpop.f32.mrf.mxu0
      %5172 = vmatprep.mubr.bf16.mxu0 0
      %5173 = vmatmul.mubr.bf16.gmra.mxu0 %v5023
      %v5174 = vpop.f32.mrf.mxu0
      %v5175 = vadd.f32 0.0, %v5174
      %v5176 = vpop.f32.mrf.mxu0
      %v5177 = vpop.f32.mrf.mxu0
      %v5178 = vadd.f32 0.0, %v5177
      %v5179 = vpop.f32.mrf.mxu0
      %5180 = vmatprep.mubr.bf16.mxu0 0
      %5181 = vmatmul.mubr.bf16.gmra.mxu0 %v5024
      %v5182 = vpop.f32.mrf.mxu0
      %v5183 = vadd.f32 0.0, %v5182
      %v5184 = vpop.f32.mrf.mxu0
      %v5185 = vpop.f32.mrf.mxu0
      %v5186 = vadd.f32 0.0, %v5185
      %v5187 = vpop.f32.mrf.mxu0
      %5188 = vmatprep.mubr.bf16.mxu0 0
      %5189 = vmatmul.mubr.bf16.gmra.mxu0 %v5025
      %v5190 = vpop.f32.mrf.mxu0
      %v5191 = vadd.f32 0.0, %v5190
      %v5192 = vpop.f32.mrf.mxu0
      %v5193 = vpop.f32.mrf.mxu0
      %v5194 = vadd.f32 0.0, %v5193
      %v5195 = vpop.f32.mrf.mxu0
      %5196 = vmatprep.mubr.bf16.mxu0 0
      %5197 = vmatmul.mubr.bf16.gmra.mxu0 %v5026
      %v5198 = vpop.f32.mrf.mxu0
      %v5199 = vadd.f32 0.0, %v5198
      %v5200 = vpop.f32.mrf.mxu0
      %v5201 = vpop.f32.mrf.mxu0
      %v5202 = vadd.f32 0.0, %v5201
      %v5203 = vpop.f32.mrf.mxu0
      %5204 = vmatprep.mubr.bf16.mxu0 0
      %5205 = vmatmul.mubr.bf16.gmra.mxu0 %v5027
      %v5206 = vpop.f32.mrf.mxu0
      %v5207 = vadd.f32 0.0, %v5206
      %v5208 = vpop.f32.mrf.mxu0
      %v5209 = vpop.f32.mrf.mxu0
      %v5210 = vadd.f32 0.0, %v5209
      %v5211 = vpop.f32.mrf.mxu0
      %5212 = vmatprep.mubr.bf16.mxu0 0
      %5213 = vmatmul.mubr.bf16.gmra.mxu0 %v5028
      %v5214 = vpop.f32.mrf.mxu0
      %v5215 = vadd.f32 0.0, %v5214
      %v5216 = vpop.f32.mrf.mxu0
      %v5217 = vpop.f32.mrf.mxu0
      %v5218 = vadd.f32 0.0, %v5217
      %v5219 = vpop.f32.mrf.mxu0
      %5220 = vmatprep.mubr.bf16.mxu0 0
      %5221 = vmatmul.mubr.bf16.gmra.mxu0 %v5029
      %v5222 = vpop.f32.mrf.mxu0
      %v5223 = vadd.f32 0.0, %v5222
      %v5224 = vpop.f32.mrf.mxu0
      %v5225 = vpop.f32.mrf.mxu0
      %v5226 = vadd.f32 0.0, %v5225
      %v5227 = vpop.f32.mrf.mxu0
      %5228 = vmatprep.mubr.bf16.mxu0 0
      %5229 = vmatmul.mubr.bf16.gmra.mxu0 %v5030
      %v5230 = vpop.f32.mrf.mxu0
      %v5231 = vadd.f32 0.0, %v5230
      %v5232 = vpop.f32.mrf.mxu0
      %v5233 = vpop.f32.mrf.mxu0
      %v5234 = vadd.f32 0.0, %v5233
      %v5235 = vpop.f32.mrf.mxu0
      %5236 = vmatprep.mubr.bf16.mxu0 0
      %5237 = vmatmul.mubr.bf16.gmra.mxu0 %v5031
      %v5238 = vpop.f32.mrf.mxu0
      %v5239 = vadd.f32 0.0, %v5238
      %v5240 = vpop.f32.mrf.mxu0
      %v5241 = vpop.f32.mrf.mxu0
      %v5242 = vadd.f32 0.0, %v5241
      %v5243 = vpop.f32.mrf.mxu0
      %5244 = vmatprep.mubr.bf16.mxu0 0
      %5245 = vmatmul.mubr.bf16.gmra.mxu0 %v5032
      %v5246 = vpop.f32.mrf.mxu0
      %v5247 = vadd.f32 0.0, %v5246
      %v5248 = vpop.f32.mrf.mxu0
      %v5249 = vpop.f32.mrf.mxu0
      %v5250 = vadd.f32 0.0, %v5249
      %v5251 = vpop.f32.mrf.mxu0
      %5252 = vmatprep.mubr.bf16.mxu0 0
      %5253 = vmatmul.mubr.bf16.gmra.mxu0 %v5033
      %v5254 = vpop.f32.mrf.mxu0
      %v5255 = vadd.f32 0.0, %v5254
      %v5256 = vpop.f32.mrf.mxu0
      %v5257 = vpop.f32.mrf.mxu0
      %v5258 = vadd.f32 0.0, %v5257
      %v5259 = vpop.f32.mrf.mxu0
      %5260 = vmatprep.mubr.bf16.mxu0 0
      %5261 = vmatmul.mubr.bf16.gmra.mxu0 %v5034
      %v5262 = vpop.f32.mrf.mxu0
      %v5263 = vadd.f32 0.0, %v5262
      %v5264 = vpop.f32.mrf.mxu0
      %v5265 = vpop.f32.mrf.mxu0
      %v5266 = vadd.f32 0.0, %v5265
      %v5267 = vpop.f32.mrf.mxu0
      %5268 = vmatprep.mubr.bf16.mxu0 0
      %5269 = vmatmul.mubr.bf16.gmra.mxu0 %v5035
      %v5270 = vpop.f32.mrf.mxu0
      %v5271 = vadd.f32 0.0, %v5270
      %v5272 = vpop.f32.mrf.mxu0
      %v5273 = vpop.f32.mrf.mxu0
      %v5274 = vadd.f32 0.0, %v5273
      %v5275 = vpop.f32.mrf.mxu0
      %5276 = vmatprep.mubr.bf16.mxu0 0
      %5277 = vmatmul.mubr.bf16.gmra.mxu0 %v5036
      %v5278 = vpop.f32.mrf.mxu0
      %v5279 = vadd.f32 0.0, %v5278
      %v5280 = vpop.f32.mrf.mxu0
      %v5281 = vpop.f32.mrf.mxu0
      %v5282 = vadd.f32 0.0, %v5281
      %v5283 = vpop.f32.mrf.mxu0
      %5284 = vmatprep.mubr.bf16.mxu0 0
      %5285 = vmatmul.mubr.bf16.gmra.mxu0 %v5037
      %v5286 = vpop.f32.mrf.mxu0
      %v5287 = vadd.f32 0.0, %v5286
      %v5288 = vpop.f32.mrf.mxu0
      %v5289 = vpop.f32.mrf.mxu0
      %v5290 = vadd.f32 0.0, %v5289
      %v5291 = vpop.f32.mrf.mxu0
      %5292 = vmatprep.mubr.bf16.mxu0 0
      %5293 = vmatmul.mubr.bf16.gmra.mxu0 %v5038
      %v5294 = vpop.f32.mrf.mxu0
      %v5295 = vadd.f32 0.0, %v5294
      %v5296 = vpop.f32.mrf.mxu0
      %v5297 = vpop.f32.mrf.mxu0
      %v5298 = vadd.f32 0.0, %v5297
      %v5299 = vpop.f32.mrf.mxu0
      %5300 = vmatprep.mubr.bf16.mxu0 0
      %5301 = vmatmul.mubr.bf16.gmra.mxu0 %v5039
      %v5302 = vpop.f32.mrf.mxu0
      %v5303 = vadd.f32 0.0, %v5302
      %v5304 = vpop.f32.mrf.mxu0
      %v5305 = vpop.f32.mrf.mxu0
      %v5306 = vadd.f32 0.0, %v5305
      %v5307 = vpop.f32.mrf.mxu0
      %5308 = vmatprep.mubr.bf16.mxu0 0
      %5309 = vmatmul.mubr.bf16.gmra.mxu0 %v5040
      %v5310 = vpop.f32.mrf.mxu0
      %v5311 = vadd.f32 0.0, %v5310
      %v5312 = vpop.f32.mrf.mxu0
      %v5313 = vpop.f32.mrf.mxu0
      %v5314 = vadd.f32 0.0, %v5313
      %v5315 = vpop.f32.mrf.mxu0
      %5316 = vmatprep.mubr.bf16.mxu0 0
      %5317 = vmatmul.mubr.bf16.gmra.mxu0 %v5041
      %v5318 = vpop.f32.mrf.mxu0
      %v5319 = vadd.f32 0.0, %v5318
      %v5320 = vpop.f32.mrf.mxu0
      %v5321 = vpop.f32.mrf.mxu0
      %v5322 = vadd.f32 0.0, %v5321
      %v5323 = vpop.f32.mrf.mxu0
      %5324 = vmatprep.mubr.bf16.mxu0 0
      %5325 = vmatmul.mubr.bf16.gmra.mxu0 %v5042
      %v5326 = vpop.f32.mrf.mxu0
      %v5327 = vadd.f32 0.0, %v5326
      %v5328 = vpop.f32.mrf.mxu0
      %v5329 = vpop.f32.mrf.mxu0
      %v5330 = vadd.f32 0.0, %v5329
      %v5331 = vpop.f32.mrf.mxu0
      %5332 = vmatprep.mubr.bf16.mxu0 0
      %5333 = vmatmul.mubr.bf16.gmra.mxu0 %v5043
      %v5334 = vpop.f32.mrf.mxu0
      %v5335 = vadd.f32 0.0, %v5334
      %v5336 = vpop.f32.mrf.mxu0
      %v5337 = vpop.f32.mrf.mxu0
      %v5338 = vadd.f32 0.0, %v5337
      %v5339 = vpop.f32.mrf.mxu0
      %5340 = vdwg.mxu0
      %v5344 = vunpack.c.l.b16 %v4836
      %v5345 = vunpack.c.l.b16 %v4837
      %v5346 = vunpack.c.l.b16 %v4838
      %v5347 = vpack.c.b16 %v5345, %v5344
      %v5348 = vpack.c.b16 %v4972, %v5346
      %v5349 = vpack.c.b16 %v4974, %v4973
      %v5350 = vpack.c.b16 %v4976, %v4975
      %v5351 = vpack.c.b16 %v4978, %v4977
      %v5352 = vpack.c.b16 %v4980, %v4979
      %v5353 = vpack.c.b16 %v4982, %v4981
      %v5354 = vpack.c.b16 %v4984, %v4983
      %v5355 = vpack.c.b16 %v4986, %v4985
      %v5356 = vpack.c.b16 %v4988, %v4987
      %v5357 = vpack.c.b16 %v4990, %v4989
      %v5358 = vpack.c.b16 %v4992, %v4991
      %v5359 = vpack.c.b16 %v4994, %v4993
      %v5360 = vpack.c.b16 %v4996, %v4995
      %v5361 = vpack.c.b16 %v4998, %v4997
      %v5362 = vpack.c.b16 %v5000, %v4999
      %v5363 = vpack.c.b16 %v5002, %v5001
      %v5364 = vpack.c.b16 %v5004, %v5003
      %v5365 = vpack.c.b16 %v5006, %v5005
      %v5366 = vpack.c.b16 %v5008, %v5007
      %v5367 = vpack.c.b16 %v5010, %v5009
      %v5368 = vpack.c.b16 %v5012, %v5011
      %v5369 = vpack.c.b16 %v5014, %v5013
      %v5370 = vpack.c.b16 %v5016, %v5015
      %v5411 = vunpack.c.l.b16 %v4891
      %v5412 = vunpack.c.l.b16 %v4892
      %v5413 = vunpack.c.l.b16 %v4893
      %v5414 = vunpack.c.l.b16 %v4894
      %v5415 = vunpack.c.l.b16 %v4895
      %v5416 = vunpack.c.l.b16 %v4896
      %v5417 = vunpack.c.l.b16 %v4897
      %v5418 = vunpack.c.l.b16 %v4898
      %v5419 = vunpack.c.l.b16 %v4899
      %v5420 = vunpack.c.l.b16 %v4900
      %v5421 = vunpack.c.l.b16 %v4901
      %v5422 = vunpack.c.l.b16 %v4902
      %v5423 = vunpack.c.l.b16 %v4903
      %v5424 = vunpack.c.l.b16 %v4904
      %v5425 = vunpack.c.l.b16 %v4905
      %v5426 = vunpack.c.l.b16 %v4906
      %v5427 = vpack.c.b16 %v5412, %v5411
      %v5428 = vpack.c.b16 %v5414, %v5413
      %v5429 = vpack.c.b16 %v5416, %v5415
      %v5430 = vpack.c.b16 %v5418, %v5417
      %v5431 = vpack.c.b16 %v5420, %v5419
      %v5432 = vpack.c.b16 %v5422, %v5421
      %v5433 = vpack.c.b16 %v5424, %v5423
      %v5434 = vpack.c.b16 %v5426, %v5425
      %5443 = vmatprep.subr.bf16.mxu0 0
      %5444 = vmatpush1.bf16.msra.mxu0 %v5434
      %5445 = vmatprep.subr.bf16.mxu0 0
      %5446 = vmatpush1.bf16.msra.mxu0 %v5433
      %5447 = vmatprep.subr.bf16.mxu0 0
      %5448 = vmatpush1.bf16.msra.mxu0 %v5432
      %5449 = vmatprep.subr.bf16.mxu0 0
      %5450 = vmatpush1.bf16.msra.mxu0 %v5431
      %5451 = vmatprep.subr.bf16.mxu0 0
      %5452 = vmatpush1.bf16.msra.mxu0 %v5430
      %5453 = vmatprep.subr.bf16.mxu0 0
      %5454 = vmatpush1.bf16.msra.mxu0 %v5429
      %5455 = vmatprep.subr.bf16.mxu0 0
      %5456 = vmatpush1.bf16.msra.mxu0 %v5428
      %5457 = vmatprep.subr.bf16.mxu0 0
      %5458 = vmatpush1.bf16.msra.mxu0 %v5427
      %5459 = vmatprep.subr.bf16.mxu0 0
      %5460 = vmatpush2.bf16.msra.mxu0 0
      %5461 = vmatprep.subr.bf16.mxu0 0
      %5462 = vmatpush2.bf16.msra.mxu0 0
      %5463 = vmatprep.subr.bf16.mxu0 0
      %5464 = vmatpush2.bf16.msra.mxu0 0
      %5465 = vmatprep.subr.bf16.mxu0 0
      %5466 = vmatpush2.bf16.msra.mxu0 0
      %5467 = vmatprep.subr.bf16.mxu0 0
      %5468 = vmatpush2.bf16.msra.mxu0 0
      %5469 = vmatprep.subr.bf16.mxu0 0
      %5470 = vmatpush2.bf16.msra.mxu0 0
      %5471 = vmatprep.subr.bf16.mxu0 0
      %5472 = vmatpush2.bf16.msra.mxu0 0
      %5473 = vmatprep.subr.bf16.mxu0 0
      %5474 = vmatpush2.bf16.msra.mxu0 0
      %5475 = vmatprep.mubr.bf16.mxu0 0
      %5476 = vmatmul.mubr.bf16.gmra.mxu0 %v5347
      %v5477 = vpop.f32.mrf.mxu0
      %v5478 = vadd.f32 %v5151, %v5477
      %v5479 = vpop.f32.mrf.mxu0
      %v5480 = vpop.f32.mrf.mxu0
      %v5481 = vadd.f32 %v5154, %v5480
      %v5482 = vpop.f32.mrf.mxu0
      %5483 = vmatprep.mubr.bf16.mxu0 0
      %5484 = vmatmul.mubr.bf16.gmra.mxu0 %v5348
      %v5485 = vpop.f32.mrf.mxu0
      %v5486 = vadd.f32 %v5159, %v5485
      %v5487 = vpop.f32.mrf.mxu0
      %v5488 = vpop.f32.mrf.mxu0
      %v5489 = vadd.f32 %v5162, %v5488
      %v5490 = vpop.f32.mrf.mxu0
      %5491 = vmatprep.mubr.bf16.mxu0 0
      %5492 = vmatmul.mubr.bf16.gmra.mxu0 %v5349
      %v5493 = vpop.f32.mrf.mxu0
      %v5494 = vadd.f32 %v5167, %v5493
      %v5495 = vpop.f32.mrf.mxu0
      %v5496 = vpop.f32.mrf.mxu0
      %v5497 = vadd.f32 %v5170, %v5496
      %v5498 = vpop.f32.mrf.mxu0
      %5499 = vmatprep.mubr.bf16.mxu0 0
      %5500 = vmatmul.mubr.bf16.gmra.mxu0 %v5350
      %v5501 = vpop.f32.mrf.mxu0
      %v5502 = vadd.f32 %v5175, %v5501
      %v5503 = vpop.f32.mrf.mxu0
      %v5504 = vpop.f32.mrf.mxu0
      %v5505 = vadd.f32 %v5178, %v5504
      %v5506 = vpop.f32.mrf.mxu0
      %5507 = vmatprep.mubr.bf16.mxu0 0
      %5508 = vmatmul.mubr.bf16.gmra.mxu0 %v5351
      %v5509 = vpop.f32.mrf.mxu0
      %v5510 = vadd.f32 %v5183, %v5509
      %v5511 = vpop.f32.mrf.mxu0
      %v5512 = vpop.f32.mrf.mxu0
      %v5513 = vadd.f32 %v5186, %v5512
      %v5514 = vpop.f32.mrf.mxu0
      %5515 = vmatprep.mubr.bf16.mxu0 0
      %5516 = vmatmul.mubr.bf16.gmra.mxu0 %v5352
      %v5517 = vpop.f32.mrf.mxu0
      %v5518 = vadd.f32 %v5191, %v5517
      %v5519 = vpop.f32.mrf.mxu0
      %v5520 = vpop.f32.mrf.mxu0
      %v5521 = vadd.f32 %v5194, %v5520
      %v5522 = vpop.f32.mrf.mxu0
      %5523 = vmatprep.mubr.bf16.mxu0 0
      %5524 = vmatmul.mubr.bf16.gmra.mxu0 %v5353
      %v5525 = vpop.f32.mrf.mxu0
      %v5526 = vadd.f32 %v5199, %v5525
      %v5527 = vpop.f32.mrf.mxu0
      %v5528 = vpop.f32.mrf.mxu0
      %v5529 = vadd.f32 %v5202, %v5528
      %v5530 = vpop.f32.mrf.mxu0
      %5531 = vmatprep.mubr.bf16.mxu0 0
      %5532 = vmatmul.mubr.bf16.gmra.mxu0 %v5354
      %v5533 = vpop.f32.mrf.mxu0
      %v5534 = vadd.f32 %v5207, %v5533
      %v5535 = vpop.f32.mrf.mxu0
      %v5536 = vpop.f32.mrf.mxu0
      %v5537 = vadd.f32 %v5210, %v5536
      %v5538 = vpop.f32.mrf.mxu0
      %5539 = vmatprep.mubr.bf16.mxu0 0
      %5540 = vmatmul.mubr.bf16.gmra.mxu0 %v5355
      %v5541 = vpop.f32.mrf.mxu0
      %v5542 = vadd.f32 %v5215, %v5541
      %v5543 = vpop.f32.mrf.mxu0
      %v5544 = vpop.f32.mrf.mxu0
      %v5545 = vadd.f32 %v5218, %v5544
      %v5546 = vpop.f32.mrf.mxu0
      %5547 = vmatprep.mubr.bf16.mxu0 0
      %5548 = vmatmul.mubr.bf16.gmra.mxu0 %v5356
      %v5549 = vpop.f32.mrf.mxu0
      %v5550 = vadd.f32 %v5223, %v5549
      %v5551 = vpop.f32.mrf.mxu0
      %v5552 = vpop.f32.mrf.mxu0
      %v5553 = vadd.f32 %v5226, %v5552
      %v5554 = vpop.f32.mrf.mxu0
      %5555 = vmatprep.mubr.bf16.mxu0 0
      %5556 = vmatmul.mubr.bf16.gmra.mxu0 %v5357
      %v5557 = vpop.f32.mrf.mxu0
      %v5558 = vadd.f32 %v5231, %v5557
      %v5559 = vpop.f32.mrf.mxu0
      %v5560 = vpop.f32.mrf.mxu0
      %v5561 = vadd.f32 %v5234, %v5560
      %v5562 = vpop.f32.mrf.mxu0
      %5563 = vmatprep.mubr.bf16.mxu0 0
      %5564 = vmatmul.mubr.bf16.gmra.mxu0 %v5358
      %v5565 = vpop.f32.mrf.mxu0
      %v5566 = vadd.f32 %v5239, %v5565
      %v5567 = vpop.f32.mrf.mxu0
      %v5568 = vpop.f32.mrf.mxu0
      %v5569 = vadd.f32 %v5242, %v5568
      %v5570 = vpop.f32.mrf.mxu0
      %5571 = vmatprep.mubr.bf16.mxu0 0
      %5572 = vmatmul.mubr.bf16.gmra.mxu0 %v5359
      %v5573 = vpop.f32.mrf.mxu0
      %v5574 = vadd.f32 %v5247, %v5573
      %v5575 = vpop.f32.mrf.mxu0
      %v5576 = vpop.f32.mrf.mxu0
      %v5577 = vadd.f32 %v5250, %v5576
      %v5578 = vpop.f32.mrf.mxu0
      %5579 = vmatprep.mubr.bf16.mxu0 0
      %5580 = vmatmul.mubr.bf16.gmra.mxu0 %v5360
      %v5581 = vpop.f32.mrf.mxu0
      %v5582 = vadd.f32 %v5255, %v5581
      %v5583 = vpop.f32.mrf.mxu0
      %v5584 = vpop.f32.mrf.mxu0
      %v5585 = vadd.f32 %v5258, %v5584
      %v5586 = vpop.f32.mrf.mxu0
      %5587 = vmatprep.mubr.bf16.mxu0 0
      %5588 = vmatmul.mubr.bf16.gmra.mxu0 %v5361
      %v5589 = vpop.f32.mrf.mxu0
      %v5590 = vadd.f32 %v5263, %v5589
      %v5591 = vpop.f32.mrf.mxu0
      %v5592 = vpop.f32.mrf.mxu0
      %v5593 = vadd.f32 %v5266, %v5592
      %v5594 = vpop.f32.mrf.mxu0
      %5595 = vmatprep.mubr.bf16.mxu0 0
      %5596 = vmatmul.mubr.bf16.gmra.mxu0 %v5362
      %v5597 = vpop.f32.mrf.mxu0
      %v5598 = vadd.f32 %v5271, %v5597
      %v5599 = vpop.f32.mrf.mxu0
      %v5600 = vpop.f32.mrf.mxu0
      %v5601 = vadd.f32 %v5274, %v5600
      %v5602 = vpop.f32.mrf.mxu0
      %5603 = vmatprep.mubr.bf16.mxu0 0
      %5604 = vmatmul.mubr.bf16.gmra.mxu0 %v5363
      %v5605 = vpop.f32.mrf.mxu0
      %v5606 = vadd.f32 %v5279, %v5605
      %v5607 = vpop.f32.mrf.mxu0
      %v5608 = vpop.f32.mrf.mxu0
      %v5609 = vadd.f32 %v5282, %v5608
      %v5610 = vpop.f32.mrf.mxu0
      %5611 = vmatprep.mubr.bf16.mxu0 0
      %5612 = vmatmul.mubr.bf16.gmra.mxu0 %v5364
      %v5613 = vpop.f32.mrf.mxu0
      %v5614 = vadd.f32 %v5287, %v5613
      %v5615 = vpop.f32.mrf.mxu0
      %v5616 = vpop.f32.mrf.mxu0
      %v5617 = vadd.f32 %v5290, %v5616
      %v5618 = vpop.f32.mrf.mxu0
      %5619 = vmatprep.mubr.bf16.mxu0 0
      %5620 = vmatmul.mubr.bf16.gmra.mxu0 %v5365
      %v5621 = vpop.f32.mrf.mxu0
      %v5622 = vadd.f32 %v5295, %v5621
      %v5623 = vpop.f32.mrf.mxu0
      %v5624 = vpop.f32.mrf.mxu0
      %v5625 = vadd.f32 %v5298, %v5624
      %v5626 = vpop.f32.mrf.mxu0
      %5627 = vmatprep.mubr.bf16.mxu0 0
      %5628 = vmatmul.mubr.bf16.gmra.mxu0 %v5366
      %v5629 = vpop.f32.mrf.mxu0
      %v5630 = vadd.f32 %v5303, %v5629
      %v5631 = vpop.f32.mrf.mxu0
      %v5632 = vpop.f32.mrf.mxu0
      %v5633 = vadd.f32 %v5306, %v5632
      %v5634 = vpop.f32.mrf.mxu0
      %5635 = vmatprep.mubr.bf16.mxu0 0
      %5636 = vmatmul.mubr.bf16.gmra.mxu0 %v5367
      %v5637 = vpop.f32.mrf.mxu0
      %v5638 = vadd.f32 %v5311, %v5637
      %v5639 = vpop.f32.mrf.mxu0
      %v5640 = vpop.f32.mrf.mxu0
      %v5641 = vadd.f32 %v5314, %v5640
      %v5642 = vpop.f32.mrf.mxu0
      %5643 = vmatprep.mubr.bf16.mxu0 0
      %5644 = vmatmul.mubr.bf16.gmra.mxu0 %v5368
      %v5645 = vpop.f32.mrf.mxu0
      %v5646 = vadd.f32 %v5319, %v5645
      %v5647 = vpop.f32.mrf.mxu0
      %v5648 = vpop.f32.mrf.mxu0
      %v5649 = vadd.f32 %v5322, %v5648
      %v5650 = vpop.f32.mrf.mxu0
      %5651 = vmatprep.mubr.bf16.mxu0 0
      %5652 = vmatmul.mubr.bf16.gmra.mxu0 %v5369
      %v5653 = vpop.f32.mrf.mxu0
      %v5654 = vadd.f32 %v5327, %v5653
      %v5655 = vpop.f32.mrf.mxu0
      %v5656 = vpop.f32.mrf.mxu0
      %v5657 = vadd.f32 %v5330, %v5656
      %v5658 = vpop.f32.mrf.mxu0
      %5659 = vmatprep.mubr.bf16.mxu0 0
      %5660 = vmatmul.mubr.bf16.gmra.mxu0 %v5370
      %v5661 = vpop.f32.mrf.mxu0
      %v5662 = vadd.f32 %v5335, %v5661
      %v5663 = vpop.f32.mrf.mxu0
      %v5664 = vpop.f32.mrf.mxu0
      %v5665 = vadd.f32 %v5338, %v5664
      %v5666 = vpop.f32.mrf.mxu0
      %5667 = vdwg.mxu0
      %s5668 = scalar_lea.vmem %s3, 512
      %v5669 = vld [vmem:[%s5668] sm:$0xf]
      %v5670 = vld [vmem:[%s5668 + $0x4] sm:$0xf]
      %v5671 = vld [vmem:[%s5668 + $0x8] sm:$0xf]
      %v5672 = vld [vmem:[%s5668 + $0xc] sm:$0xf]
      %v5673 = vld [vmem:[%s5668 + $0x10] sm:$0xf]
      %v5674 = vld [vmem:[%s5668 + $0x14] sm:$0xf]
      %v5675 = vld [vmem:[%s5668 + $0x18] sm:$0xf]
      %v5676 = vld [vmem:[%s5668 + $0x1c] sm:$0xf]
      %v5677 = vld [vmem:[%s5668 + $0x20] sm:$0xf]
      %v5678 = vld [vmem:[%s5668 + $0x24] sm:$0xf]
      %v5679 = vld [vmem:[%s5668 + $0x28] sm:$0xf]
      %v5680 = vld [vmem:[%s5668 + $0x2c] sm:$0xf]
      %v5681 = vld [vmem:[%s5668 + $0x30] sm:$0xf]
      %v5682 = vld [vmem:[%s5668 + $0x34] sm:$0xf]
      %v5683 = vld [vmem:[%s5668 + $0x38] sm:$0xf]
      %v5684 = vld [vmem:[%s5668 + $0x3c] sm:$0xf]
      %v5688 = vunpack.c.l.b16 %v4887
      %v5689 = vunpack.c.l.b16 %v4888
      %v5690 = vunpack.c.l.b16 %v4889
      %v5691 = vpack.c.b16 %v5018, %v5017
      %v5692 = vpack.c.b16 %v5688, %v5019
      %v5693 = vpack.c.b16 %v5690, %v5689
      %v5713 = vunpack.c.l.b16 %v5669
      %v5714 = vunpack.c.l.b16 %v5670
      %v5715 = vunpack.c.l.b16 %v5671
      %v5716 = vunpack.c.l.b16 %v5672
      %v5717 = vunpack.c.l.b16 %v5673
      %v5718 = vunpack.c.l.b16 %v5674
      %v5719 = vunpack.c.l.b16 %v5675
      %v5720 = vunpack.c.l.b16 %v5676
      %v5721 = vunpack.c.l.b16 %v5677
      %v5722 = vunpack.c.l.b16 %v5678
      %v5723 = vunpack.c.l.b16 %v5679
      %v5724 = vunpack.c.l.b16 %v5680
      %v5725 = vunpack.c.l.b16 %v5681
      %v5726 = vunpack.c.l.b16 %v5682
      %v5727 = vunpack.c.l.b16 %v5683
      %v5728 = vunpack.c.l.b16 %v5684
      %v5729 = vpack.c.b16 %v5714, %v5713
      %v5730 = vpack.c.b16 %v5716, %v5715
      %v5731 = vpack.c.b16 %v5718, %v5717
      %v5732 = vpack.c.b16 %v5720, %v5719
      %v5733 = vpack.c.b16 %v5722, %v5721
      %v5734 = vpack.c.b16 %v5724, %v5723
      %v5735 = vpack.c.b16 %v5726, %v5725
      %v5736 = vpack.c.b16 %v5728, %v5727
      %5745 = vmatprep.subr.bf16.mxu0 0
      %5746 = vmatpush1.bf16.msra.mxu0 %v5736
      %5747 = vmatprep.subr.bf16.mxu0 0
      %5748 = vmatpush1.bf16.msra.mxu0 %v5735
      %5749 = vmatprep.subr.bf16.mxu0 0
      %5750 = vmatpush1.bf16.msra.mxu0 %v5734
      %5751 = vmatprep.subr.bf16.mxu0 0
      %5752 = vmatpush1.bf16.msra.mxu0 %v5733
      %5753 = vmatprep.subr.bf16.mxu0 0
      %5754 = vmatpush1.bf16.msra.mxu0 %v5732
      %5755 = vmatprep.subr.bf16.mxu0 0
      %5756 = vmatpush1.bf16.msra.mxu0 %v5731
      %5757 = vmatprep.subr.bf16.mxu0 0
      %5758 = vmatpush1.bf16.msra.mxu0 %v5730
      %5759 = vmatprep.subr.bf16.mxu0 0
      %5760 = vmatpush1.bf16.msra.mxu0 %v5729
      %5761 = vmatprep.subr.bf16.mxu0 0
      %5762 = vmatpush2.bf16.msra.mxu0 0
      %5763 = vmatprep.subr.bf16.mxu0 0
      %5764 = vmatpush2.bf16.msra.mxu0 0
      %5765 = vmatprep.subr.bf16.mxu0 0
      %5766 = vmatpush2.bf16.msra.mxu0 0
      %5767 = vmatprep.subr.bf16.mxu0 0
      %5768 = vmatpush2.bf16.msra.mxu0 0
      %5769 = vmatprep.subr.bf16.mxu0 0
      %5770 = vmatpush2.bf16.msra.mxu0 0
      %5771 = vmatprep.subr.bf16.mxu0 0
      %5772 = vmatpush2.bf16.msra.mxu0 0
      %5773 = vmatprep.subr.bf16.mxu0 0
      %5774 = vmatpush2.bf16.msra.mxu0 0
      %5775 = vmatprep.subr.bf16.mxu0 0
      %5776 = vmatpush2.bf16.msra.mxu0 0
      %5777 = vmatprep.mubr.bf16.mxu0 0
      %5778 = vmatmul.mubr.bf16.gmra.mxu0 %v5350
      %v5779 = vpop.f32.mrf.mxu0
      %v5780 = vadd.f32 0.0, %v5779
      %v5781 = vpop.f32.mrf.mxu0
      %v5782 = vpop.f32.mrf.mxu0
      %v5783 = vadd.f32 0.0, %v5782
      %v5784 = vpop.f32.mrf.mxu0
      %5785 = vmatprep.mubr.bf16.mxu0 0
      %5786 = vmatmul.mubr.bf16.gmra.mxu0 %v5351
      %v5787 = vpop.f32.mrf.mxu0
      %v5788 = vadd.f32 0.0, %v5787
      %v5789 = vpop.f32.mrf.mxu0
      %v5790 = vpop.f32.mrf.mxu0
      %v5791 = vadd.f32 0.0, %v5790
      %v5792 = vpop.f32.mrf.mxu0
      %5793 = vmatprep.mubr.bf16.mxu0 0
      %5794 = vmatmul.mubr.bf16.gmra.mxu0 %v5352
      %v5795 = vpop.f32.mrf.mxu0
      %v5796 = vadd.f32 0.0, %v5795
      %v5797 = vpop.f32.mrf.mxu0
      %v5798 = vpop.f32.mrf.mxu0
      %v5799 = vadd.f32 0.0, %v5798
      %v5800 = vpop.f32.mrf.mxu0
      %5801 = vmatprep.mubr.bf16.mxu0 0
      %5802 = vmatmul.mubr.bf16.gmra.mxu0 %v5353
      %v5803 = vpop.f32.mrf.mxu0
      %v5804 = vadd.f32 0.0, %v5803
      %v5805 = vpop.f32.mrf.mxu0
      %v5806 = vpop.f32.mrf.mxu0
      %v5807 = vadd.f32 0.0, %v5806
      %v5808 = vpop.f32.mrf.mxu0
      %5809 = vmatprep.mubr.bf16.mxu0 0
      %5810 = vmatmul.mubr.bf16.gmra.mxu0 %v5354
      %v5811 = vpop.f32.mrf.mxu0
      %v5812 = vadd.f32 0.0, %v5811
      %v5813 = vpop.f32.mrf.mxu0
      %v5814 = vpop.f32.mrf.mxu0
      %v5815 = vadd.f32 0.0, %v5814
      %v5816 = vpop.f32.mrf.mxu0
      %5817 = vmatprep.mubr.bf16.mxu0 0
      %5818 = vmatmul.mubr.bf16.gmra.mxu0 %v5355
      %v5819 = vpop.f32.mrf.mxu0
      %v5820 = vadd.f32 0.0, %v5819
      %v5821 = vpop.f32.mrf.mxu0
      %v5822 = vpop.f32.mrf.mxu0
      %v5823 = vadd.f32 0.0, %v5822
      %v5824 = vpop.f32.mrf.mxu0
      %5825 = vmatprep.mubr.bf16.mxu0 0
      %5826 = vmatmul.mubr.bf16.gmra.mxu0 %v5356
      %v5827 = vpop.f32.mrf.mxu0
      %v5828 = vadd.f32 0.0, %v5827
      %v5829 = vpop.f32.mrf.mxu0
      %v5830 = vpop.f32.mrf.mxu0
      %v5831 = vadd.f32 0.0, %v5830
      %v5832 = vpop.f32.mrf.mxu0
      %5833 = vmatprep.mubr.bf16.mxu0 0
      %5834 = vmatmul.mubr.bf16.gmra.mxu0 %v5357
      %v5835 = vpop.f32.mrf.mxu0
      %v5836 = vadd.f32 0.0, %v5835
      %v5837 = vpop.f32.mrf.mxu0
      %v5838 = vpop.f32.mrf.mxu0
      %v5839 = vadd.f32 0.0, %v5838
      %v5840 = vpop.f32.mrf.mxu0
      %5841 = vmatprep.mubr.bf16.mxu0 0
      %5842 = vmatmul.mubr.bf16.gmra.mxu0 %v5358
      %v5843 = vpop.f32.mrf.mxu0
      %v5844 = vadd.f32 0.0, %v5843
      %v5845 = vpop.f32.mrf.mxu0
      %v5846 = vpop.f32.mrf.mxu0
      %v5847 = vadd.f32 0.0, %v5846
      %v5848 = vpop.f32.mrf.mxu0
      %5849 = vmatprep.mubr.bf16.mxu0 0
      %5850 = vmatmul.mubr.bf16.gmra.mxu0 %v5359
      %v5851 = vpop.f32.mrf.mxu0
      %v5852 = vadd.f32 0.0, %v5851
      %v5853 = vpop.f32.mrf.mxu0
      %v5854 = vpop.f32.mrf.mxu0
      %v5855 = vadd.f32 0.0, %v5854
      %v5856 = vpop.f32.mrf.mxu0
      %5857 = vmatprep.mubr.bf16.mxu0 0
      %5858 = vmatmul.mubr.bf16.gmra.mxu0 %v5360
      %v5859 = vpop.f32.mrf.mxu0
      %v5860 = vadd.f32 0.0, %v5859
      %v5861 = vpop.f32.mrf.mxu0
      %v5862 = vpop.f32.mrf.mxu0
      %v5863 = vadd.f32 0.0, %v5862
      %v5864 = vpop.f32.mrf.mxu0
      %5865 = vmatprep.mubr.bf16.mxu0 0
      %5866 = vmatmul.mubr.bf16.gmra.mxu0 %v5361
      %v5867 = vpop.f32.mrf.mxu0
      %v5868 = vadd.f32 0.0, %v5867
      %v5869 = vpop.f32.mrf.mxu0
      %v5870 = vpop.f32.mrf.mxu0
      %v5871 = vadd.f32 0.0, %v5870
      %v5872 = vpop.f32.mrf.mxu0
      %5873 = vmatprep.mubr.bf16.mxu0 0
      %5874 = vmatmul.mubr.bf16.gmra.mxu0 %v5362
      %v5875 = vpop.f32.mrf.mxu0
      %v5876 = vadd.f32 0.0, %v5875
      %v5877 = vpop.f32.mrf.mxu0
      %v5878 = vpop.f32.mrf.mxu0
      %v5879 = vadd.f32 0.0, %v5878
      %v5880 = vpop.f32.mrf.mxu0
      %5881 = vmatprep.mubr.bf16.mxu0 0
      %5882 = vmatmul.mubr.bf16.gmra.mxu0 %v5363
      %v5883 = vpop.f32.mrf.mxu0
      %v5884 = vadd.f32 0.0, %v5883
      %v5885 = vpop.f32.mrf.mxu0
      %v5886 = vpop.f32.mrf.mxu0
      %v5887 = vadd.f32 0.0, %v5886
      %v5888 = vpop.f32.mrf.mxu0
      %5889 = vmatprep.mubr.bf16.mxu0 0
      %5890 = vmatmul.mubr.bf16.gmra.mxu0 %v5364
      %v5891 = vpop.f32.mrf.mxu0
      %v5892 = vadd.f32 0.0, %v5891
      %v5893 = vpop.f32.mrf.mxu0
      %v5894 = vpop.f32.mrf.mxu0
      %v5895 = vadd.f32 0.0, %v5894
      %v5896 = vpop.f32.mrf.mxu0
      %5897 = vmatprep.mubr.bf16.mxu0 0
      %5898 = vmatmul.mubr.bf16.gmra.mxu0 %v5365
      %v5899 = vpop.f32.mrf.mxu0
      %v5900 = vadd.f32 0.0, %v5899
      %v5901 = vpop.f32.mrf.mxu0
      %v5902 = vpop.f32.mrf.mxu0
      %v5903 = vadd.f32 0.0, %v5902
      %v5904 = vpop.f32.mrf.mxu0
      %5905 = vmatprep.mubr.bf16.mxu0 0
      %5906 = vmatmul.mubr.bf16.gmra.mxu0 %v5366
      %v5907 = vpop.f32.mrf.mxu0
      %v5908 = vadd.f32 0.0, %v5907
      %v5909 = vpop.f32.mrf.mxu0
      %v5910 = vpop.f32.mrf.mxu0
      %v5911 = vadd.f32 0.0, %v5910
      %v5912 = vpop.f32.mrf.mxu0
      %5913 = vmatprep.mubr.bf16.mxu0 0
      %5914 = vmatmul.mubr.bf16.gmra.mxu0 %v5367
      %v5915 = vpop.f32.mrf.mxu0
      %v5916 = vadd.f32 0.0, %v5915
      %v5917 = vpop.f32.mrf.mxu0
      %v5918 = vpop.f32.mrf.mxu0
      %v5919 = vadd.f32 0.0, %v5918
      %v5920 = vpop.f32.mrf.mxu0
      %5921 = vmatprep.mubr.bf16.mxu0 0
      %5922 = vmatmul.mubr.bf16.gmra.mxu0 %v5368
      %v5923 = vpop.f32.mrf.mxu0
      %v5924 = vadd.f32 0.0, %v5923
      %v5925 = vpop.f32.mrf.mxu0
      %v5926 = vpop.f32.mrf.mxu0
      %v5927 = vadd.f32 0.0, %v5926
      %v5928 = vpop.f32.mrf.mxu0
      %5929 = vmatprep.mubr.bf16.mxu0 0
      %5930 = vmatmul.mubr.bf16.gmra.mxu0 %v5369
      %v5931 = vpop.f32.mrf.mxu0
      %v5932 = vadd.f32 0.0, %v5931
      %v5933 = vpop.f32.mrf.mxu0
      %v5934 = vpop.f32.mrf.mxu0
      %v5935 = vadd.f32 0.0, %v5934
      %v5936 = vpop.f32.mrf.mxu0
      %5937 = vmatprep.mubr.bf16.mxu0 0
      %5938 = vmatmul.mubr.bf16.gmra.mxu0 %v5370
      %v5939 = vpop.f32.mrf.mxu0
      %v5940 = vadd.f32 0.0, %v5939
      %v5941 = vpop.f32.mrf.mxu0
      %v5942 = vpop.f32.mrf.mxu0
      %v5943 = vadd.f32 0.0, %v5942
      %v5944 = vpop.f32.mrf.mxu0
      %5945 = vmatprep.mubr.bf16.mxu0 0
      %5946 = vmatmul.mubr.bf16.gmra.mxu0 %v5691
      %v5947 = vpop.f32.mrf.mxu0
      %v5948 = vadd.f32 0.0, %v5947
      %v5949 = vpop.f32.mrf.mxu0
      %v5950 = vpop.f32.mrf.mxu0
      %v5951 = vadd.f32 0.0, %v5950
      %v5952 = vpop.f32.mrf.mxu0
      %5953 = vmatprep.mubr.bf16.mxu0 0
      %5954 = vmatmul.mubr.bf16.gmra.mxu0 %v5692
      %v5955 = vpop.f32.mrf.mxu0
      %v5956 = vadd.f32 0.0, %v5955
      %v5957 = vpop.f32.mrf.mxu0
      %v5958 = vpop.f32.mrf.mxu0
      %v5959 = vadd.f32 0.0, %v5958
      %v5960 = vpop.f32.mrf.mxu0
      %5961 = vmatprep.mubr.bf16.mxu0 0
      %5962 = vmatmul.mubr.bf16.gmra.mxu0 %v5693
      %v5963 = vpop.f32.mrf.mxu0
      %v5964 = vadd.f32 0.0, %v5963
      %v5965 = vpop.f32.mrf.mxu0
      %v5966 = vpop.f32.mrf.mxu0
      %v5967 = vadd.f32 0.0, %v5966
      %v5968 = vpop.f32.mrf.mxu0
      %5969 = vdwg.mxu0
      %v5970 = vadd.f32 %v5478, %v5780
      %v5971 = vadd.f32 %v5481, %v5783
      %v5972 = vadd.f32 %v5486, %v5788
      %v5973 = vadd.f32 %v5489, %v5791
      %v5974 = vadd.f32 %v5494, %v5796
      %v5975 = vadd.f32 %v5497, %v5799
      %v5976 = vadd.f32 %v5502, %v5804
      %v5977 = vadd.f32 %v5505, %v5807
      %v5978 = vadd.f32 %v5510, %v5812
      %v5979 = vadd.f32 %v5513, %v5815
      %v5980 = vadd.f32 %v5518, %v5820
      %v5981 = vadd.f32 %v5521, %v5823
      %v5982 = vadd.f32 %v5526, %v5828
      %v5983 = vadd.f32 %v5529, %v5831
      %v5984 = vadd.f32 %v5534, %v5836
      %v5985 = vadd.f32 %v5537, %v5839
      %v5986 = vadd.f32 %v5542, %v5844
      %v5987 = vadd.f32 %v5545, %v5847
      %v5988 = vadd.f32 %v5550, %v5852
      %v5989 = vadd.f32 %v5553, %v5855
      %v5990 = vadd.f32 %v5558, %v5860
      %v5991 = vadd.f32 %v5561, %v5863
      %v5992 = vadd.f32 %v5566, %v5868
      %v5993 = vadd.f32 %v5569, %v5871
      %v5994 = vadd.f32 %v5574, %v5876
      %v5995 = vadd.f32 %v5577, %v5879
      %v5996 = vadd.f32 %v5582, %v5884
      %v5997 = vadd.f32 %v5585, %v5887
      %v5998 = vadd.f32 %v5590, %v5892
      %v5999 = vadd.f32 %v5593, %v5895
      %v6000 = vadd.f32 %v5598, %v5900
      %v6001 = vadd.f32 %v5601, %v5903
      %v6002 = vadd.f32 %v5606, %v5908
      %v6003 = vadd.f32 %v5609, %v5911
      %v6004 = vadd.f32 %v5614, %v5916
      %v6005 = vadd.f32 %v5617, %v5919
      %v6006 = vadd.f32 %v5622, %v5924
      %v6007 = vadd.f32 %v5625, %v5927
      %v6008 = vadd.f32 %v5630, %v5932
      %v6009 = vadd.f32 %v5633, %v5935
      %v6010 = vadd.f32 %v5638, %v5940
      %v6011 = vadd.f32 %v5641, %v5943
      %v6012 = vadd.f32 %v5646, %v5948
      %v6013 = vadd.f32 %v5649, %v5951
      %v6014 = vadd.f32 %v5654, %v5956
      %v6015 = vadd.f32 %v5657, %v5959
      %v6016 = vadd.f32 %v5662, %v5964
      %v6017 = vadd.f32 %v5665, %v5967
      %s6018 = scalar_lea.vmem %s3, 64
      %v6019 = vld [vmem:[%s6018] sm:$0xf]
      %v6020 = vld [vmem:[%s6018 + $0x4] sm:$0xf]
      %v6021 = vld [vmem:[%s6018 + $0x8] sm:$0xf]
      %v6022 = vld [vmem:[%s6018 + $0xc] sm:$0xf]
      %v6023 = vld [vmem:[%s6018 + $0x10] sm:$0xf]
      %v6024 = vld [vmem:[%s6018 + $0x14] sm:$0xf]
      %v6025 = vld [vmem:[%s6018 + $0x18] sm:$0xf]
      %v6026 = vld [vmem:[%s6018 + $0x1c] sm:$0xf]
      %v6027 = vld [vmem:[%s6018 + $0x20] sm:$0xf]
      %v6028 = vld [vmem:[%s6018 + $0x24] sm:$0xf]
      %v6029 = vld [vmem:[%s6018 + $0x28] sm:$0xf]
      %v6030 = vld [vmem:[%s6018 + $0x2c] sm:$0xf]
      %v6031 = vld [vmem:[%s6018 + $0x30] sm:$0xf]
      %v6032 = vld [vmem:[%s6018 + $0x34] sm:$0xf]
      %v6033 = vld [vmem:[%s6018 + $0x38] sm:$0xf]
      %v6034 = vld [vmem:[%s6018 + $0x3c] sm:$0xf]
      %s6035 = scalar_lea.vmem %s3, 256
      %v6036 = vld [vmem:[%s6035] sm:$0xf]
      %v6037 = vld [vmem:[%s6035 + $0x4] sm:$0xf]
      %v6038 = vld [vmem:[%s6035 + $0x8] sm:$0xf]
      %v6039 = vld [vmem:[%s6035 + $0xc] sm:$0xf]
      %v6040 = vld [vmem:[%s6035 + $0x10] sm:$0xf]
      %v6041 = vld [vmem:[%s6035 + $0x14] sm:$0xf]
      %v6042 = vld [vmem:[%s6035 + $0x18] sm:$0xf]
      %v6043 = vld [vmem:[%s6035 + $0x1c] sm:$0xf]
      %v6044 = vld [vmem:[%s6035 + $0x20] sm:$0xf]
      %v6045 = vld [vmem:[%s6035 + $0x24] sm:$0xf]
      %v6046 = vld [vmem:[%s6035 + $0x28] sm:$0xf]
      %v6047 = vld [vmem:[%s6035 + $0x2c] sm:$0xf]
      %v6048 = vld [vmem:[%s6035 + $0x30] sm:$0xf]
      %v6049 = vld [vmem:[%s6035 + $0x34] sm:$0xf]
      %v6050 = vld [vmem:[%s6035 + $0x38] sm:$0xf]
      %v6051 = vld [vmem:[%s6035 + $0x3c] sm:$0xf]
      %v6068 = vunpack.c.l.b16 %v6036
      %v6069 = vunpack.c.l.b16 %v6037
      %v6070 = vunpack.c.l.b16 %v6038
      %v6071 = vunpack.c.l.b16 %v6039
      %v6072 = vunpack.c.l.b16 %v6040
      %v6073 = vunpack.c.l.b16 %v6041
      %v6074 = vunpack.c.l.b16 %v6042
      %v6075 = vunpack.c.l.b16 %v6043
      %v6076 = vunpack.c.l.b16 %v6044
      %v6077 = vunpack.c.l.b16 %v6045
      %v6078 = vunpack.c.l.b16 %v6046
      %v6079 = vunpack.c.l.b16 %v6047
      %v6080 = vunpack.c.l.b16 %v6048
      %v6081 = vunpack.c.l.b16 %v6049
      %v6082 = vunpack.c.l.b16 %v6050
      %v6083 = vunpack.c.l.b16 %v6051
      %v6084 = vpack.c.b16 %v6069, %v6068
      %v6085 = vpack.c.b16 %v6071, %v6070
      %v6086 = vpack.c.b16 %v6073, %v6072
      %v6087 = vpack.c.b16 %v6075, %v6074
      %v6088 = vpack.c.b16 %v6077, %v6076
      %v6089 = vpack.c.b16 %v6079, %v6078
      %v6090 = vpack.c.b16 %v6081, %v6080
      %v6091 = vpack.c.b16 %v6083, %v6082
      %6100 = vmatprep.subr.bf16.mxu0 0
      %6101 = vmatpush1.bf16.msra.mxu0 %v6091
      %6102 = vmatprep.subr.bf16.mxu0 0
      %6103 = vmatpush1.bf16.msra.mxu0 %v6090
      %6104 = vmatprep.subr.bf16.mxu0 0
      %6105 = vmatpush1.bf16.msra.mxu0 %v6089
      %6106 = vmatprep.subr.bf16.mxu0 0
      %6107 = vmatpush1.bf16.msra.mxu0 %v6088
      %6108 = vmatprep.subr.bf16.mxu0 0
      %6109 = vmatpush1.bf16.msra.mxu0 %v6087
      %6110 = vmatprep.subr.bf16.mxu0 0
      %6111 = vmatpush1.bf16.msra.mxu0 %v6086
      %6112 = vmatprep.subr.bf16.mxu0 0
      %6113 = vmatpush1.bf16.msra.mxu0 %v6085
      %6114 = vmatprep.subr.bf16.mxu0 0
      %6115 = vmatpush1.bf16.msra.mxu0 %v6084
      %6116 = vmatprep.subr.bf16.mxu0 0
      %6117 = vmatpush2.bf16.msra.mxu0 0
      %6118 = vmatprep.subr.bf16.mxu0 0
      %6119 = vmatpush2.bf16.msra.mxu0 0
      %6120 = vmatprep.subr.bf16.mxu0 0
      %6121 = vmatpush2.bf16.msra.mxu0 0
      %6122 = vmatprep.subr.bf16.mxu0 0
      %6123 = vmatpush2.bf16.msra.mxu0 0
      %6124 = vmatprep.subr.bf16.mxu0 0
      %6125 = vmatpush2.bf16.msra.mxu0 0
      %6126 = vmatprep.subr.bf16.mxu0 0
      %6127 = vmatpush2.bf16.msra.mxu0 0
      %6128 = vmatprep.subr.bf16.mxu0 0
      %6129 = vmatpush2.bf16.msra.mxu0 0
      %6130 = vmatprep.subr.bf16.mxu0 0
      %6131 = vmatpush2.bf16.msra.mxu0 0
      %6132 = vmatprep.mubr.bf16.mxu0 0
      %6133 = vmatmul.mubr.bf16.gmra.mxu0 %v5020
      %v6134 = vpop.f32.mrf.mxu0
      %v6135 = vadd.f32 0.0, %v6134
      %v6136 = vpop.f32.mrf.mxu0
      %v6137 = vpop.f32.mrf.mxu0
      %v6138 = vadd.f32 0.0, %v6137
      %v6139 = vpop.f32.mrf.mxu0
      %6140 = vmatprep.mubr.bf16.mxu0 0
      %6141 = vmatmul.mubr.bf16.gmra.mxu0 %v5021
      %v6142 = vpop.f32.mrf.mxu0
      %v6143 = vadd.f32 0.0, %v6142
      %v6144 = vpop.f32.mrf.mxu0
      %v6145 = vpop.f32.mrf.mxu0
      %v6146 = vadd.f32 0.0, %v6145
      %v6147 = vpop.f32.mrf.mxu0
      %6148 = vmatprep.mubr.bf16.mxu0 0
      %6149 = vmatmul.mubr.bf16.gmra.mxu0 %v5022
      %v6150 = vpop.f32.mrf.mxu0
      %v6151 = vadd.f32 0.0, %v6150
      %v6152 = vpop.f32.mrf.mxu0
      %v6153 = vpop.f32.mrf.mxu0
      %v6154 = vadd.f32 0.0, %v6153
      %v6155 = vpop.f32.mrf.mxu0
      %6156 = vmatprep.mubr.bf16.mxu0 0
      %6157 = vmatmul.mubr.bf16.gmra.mxu0 %v5023
      %v6158 = vpop.f32.mrf.mxu0
      %v6159 = vadd.f32 0.0, %v6158
      %v6160 = vpop.f32.mrf.mxu0
      %v6161 = vpop.f32.mrf.mxu0
      %v6162 = vadd.f32 0.0, %v6161
      %v6163 = vpop.f32.mrf.mxu0
      %6164 = vmatprep.mubr.bf16.mxu0 0
      %6165 = vmatmul.mubr.bf16.gmra.mxu0 %v5024
      %v6166 = vpop.f32.mrf.mxu0
      %v6167 = vadd.f32 0.0, %v6166
      %v6168 = vpop.f32.mrf.mxu0
      %v6169 = vpop.f32.mrf.mxu0
      %v6170 = vadd.f32 0.0, %v6169
      %v6171 = vpop.f32.mrf.mxu0
      %6172 = vmatprep.mubr.bf16.mxu0 0
      %6173 = vmatmul.mubr.bf16.gmra.mxu0 %v5025
      %v6174 = vpop.f32.mrf.mxu0
      %v6175 = vadd.f32 0.0, %v6174
      %v6176 = vpop.f32.mrf.mxu0
      %v6177 = vpop.f32.mrf.mxu0
      %v6178 = vadd.f32 0.0, %v6177
      %v6179 = vpop.f32.mrf.mxu0
      %6180 = vmatprep.mubr.bf16.mxu0 0
      %6181 = vmatmul.mubr.bf16.gmra.mxu0 %v5026
      %v6182 = vpop.f32.mrf.mxu0
      %v6183 = vadd.f32 0.0, %v6182
      %v6184 = vpop.f32.mrf.mxu0
      %v6185 = vpop.f32.mrf.mxu0
      %v6186 = vadd.f32 0.0, %v6185
      %v6187 = vpop.f32.mrf.mxu0
      %6188 = vmatprep.mubr.bf16.mxu0 0
      %6189 = vmatmul.mubr.bf16.gmra.mxu0 %v5027
      %v6190 = vpop.f32.mrf.mxu0
      %v6191 = vadd.f32 0.0, %v6190
      %v6192 = vpop.f32.mrf.mxu0
      %v6193 = vpop.f32.mrf.mxu0
      %v6194 = vadd.f32 0.0, %v6193
      %v6195 = vpop.f32.mrf.mxu0
      %6196 = vmatprep.mubr.bf16.mxu0 0
      %6197 = vmatmul.mubr.bf16.gmra.mxu0 %v5028
      %v6198 = vpop.f32.mrf.mxu0
      %v6199 = vadd.f32 0.0, %v6198
      %v6200 = vpop.f32.mrf.mxu0
      %v6201 = vpop.f32.mrf.mxu0
      %v6202 = vadd.f32 0.0, %v6201
      %v6203 = vpop.f32.mrf.mxu0
      %6204 = vmatprep.mubr.bf16.mxu0 0
      %6205 = vmatmul.mubr.bf16.gmra.mxu0 %v5029
      %v6206 = vpop.f32.mrf.mxu0
      %v6207 = vadd.f32 0.0, %v6206
      %v6208 = vpop.f32.mrf.mxu0
      %v6209 = vpop.f32.mrf.mxu0
      %v6210 = vadd.f32 0.0, %v6209
      %v6211 = vpop.f32.mrf.mxu0
      %6212 = vmatprep.mubr.bf16.mxu0 0
      %6213 = vmatmul.mubr.bf16.gmra.mxu0 %v5030
      %v6214 = vpop.f32.mrf.mxu0
      %v6215 = vadd.f32 0.0, %v6214
      %v6216 = vpop.f32.mrf.mxu0
      %v6217 = vpop.f32.mrf.mxu0
      %v6218 = vadd.f32 0.0, %v6217
      %v6219 = vpop.f32.mrf.mxu0
      %6220 = vmatprep.mubr.bf16.mxu0 0
      %6221 = vmatmul.mubr.bf16.gmra.mxu0 %v5031
      %v6222 = vpop.f32.mrf.mxu0
      %v6223 = vadd.f32 0.0, %v6222
      %v6224 = vpop.f32.mrf.mxu0
      %v6225 = vpop.f32.mrf.mxu0
      %v6226 = vadd.f32 0.0, %v6225
      %v6227 = vpop.f32.mrf.mxu0
      %6228 = vmatprep.mubr.bf16.mxu0 0
      %6229 = vmatmul.mubr.bf16.gmra.mxu0 %v5032
      %v6230 = vpop.f32.mrf.mxu0
      %v6231 = vadd.f32 0.0, %v6230
      %v6232 = vpop.f32.mrf.mxu0
      %v6233 = vpop.f32.mrf.mxu0
      %v6234 = vadd.f32 0.0, %v6233
      %v6235 = vpop.f32.mrf.mxu0
      %6236 = vmatprep.mubr.bf16.mxu0 0
      %6237 = vmatmul.mubr.bf16.gmra.mxu0 %v5033
      %v6238 = vpop.f32.mrf.mxu0
      %v6239 = vadd.f32 0.0, %v6238
      %v6240 = vpop.f32.mrf.mxu0
      %v6241 = vpop.f32.mrf.mxu0
      %v6242 = vadd.f32 0.0, %v6241
      %v6243 = vpop.f32.mrf.mxu0
      %6244 = vmatprep.mubr.bf16.mxu0 0
      %6245 = vmatmul.mubr.bf16.gmra.mxu0 %v5034
      %v6246 = vpop.f32.mrf.mxu0
      %v6247 = vadd.f32 0.0, %v6246
      %v6248 = vpop.f32.mrf.mxu0
      %v6249 = vpop.f32.mrf.mxu0
      %v6250 = vadd.f32 0.0, %v6249
      %v6251 = vpop.f32.mrf.mxu0
      %6252 = vmatprep.mubr.bf16.mxu0 0
      %6253 = vmatmul.mubr.bf16.gmra.mxu0 %v5035
      %v6254 = vpop.f32.mrf.mxu0
      %v6255 = vadd.f32 0.0, %v6254
      %v6256 = vpop.f32.mrf.mxu0
      %v6257 = vpop.f32.mrf.mxu0
      %v6258 = vadd.f32 0.0, %v6257
      %v6259 = vpop.f32.mrf.mxu0
      %6260 = vmatprep.mubr.bf16.mxu0 0
      %6261 = vmatmul.mubr.bf16.gmra.mxu0 %v5036
      %v6262 = vpop.f32.mrf.mxu0
      %v6263 = vadd.f32 0.0, %v6262
      %v6264 = vpop.f32.mrf.mxu0
      %v6265 = vpop.f32.mrf.mxu0
      %v6266 = vadd.f32 0.0, %v6265
      %v6267 = vpop.f32.mrf.mxu0
      %6268 = vmatprep.mubr.bf16.mxu0 0
      %6269 = vmatmul.mubr.bf16.gmra.mxu0 %v5037
      %v6270 = vpop.f32.mrf.mxu0
      %v6271 = vadd.f32 0.0, %v6270
      %v6272 = vpop.f32.mrf.mxu0
      %v6273 = vpop.f32.mrf.mxu0
      %v6274 = vadd.f32 0.0, %v6273
      %v6275 = vpop.f32.mrf.mxu0
      %6276 = vmatprep.mubr.bf16.mxu0 0
      %6277 = vmatmul.mubr.bf16.gmra.mxu0 %v5038
      %v6278 = vpop.f32.mrf.mxu0
      %v6279 = vadd.f32 0.0, %v6278
      %v6280 = vpop.f32.mrf.mxu0
      %v6281 = vpop.f32.mrf.mxu0
      %v6282 = vadd.f32 0.0, %v6281
      %v6283 = vpop.f32.mrf.mxu0
      %6284 = vmatprep.mubr.bf16.mxu0 0
      %6285 = vmatmul.mubr.bf16.gmra.mxu0 %v5039
      %v6286 = vpop.f32.mrf.mxu0
      %v6287 = vadd.f32 0.0, %v6286
      %v6288 = vpop.f32.mrf.mxu0
      %v6289 = vpop.f32.mrf.mxu0
      %v6290 = vadd.f32 0.0, %v6289
      %v6291 = vpop.f32.mrf.mxu0
      %6292 = vmatprep.mubr.bf16.mxu0 0
      %6293 = vmatmul.mubr.bf16.gmra.mxu0 %v5040
      %v6294 = vpop.f32.mrf.mxu0
      %v6295 = vadd.f32 0.0, %v6294
      %v6296 = vpop.f32.mrf.mxu0
      %v6297 = vpop.f32.mrf.mxu0
      %v6298 = vadd.f32 0.0, %v6297
      %v6299 = vpop.f32.mrf.mxu0
      %6300 = vmatprep.mubr.bf16.mxu0 0
      %6301 = vmatmul.mubr.bf16.gmra.mxu0 %v5041
      %v6302 = vpop.f32.mrf.mxu0
      %v6303 = vadd.f32 0.0, %v6302
      %v6304 = vpop.f32.mrf.mxu0
      %v6305 = vpop.f32.mrf.mxu0
      %v6306 = vadd.f32 0.0, %v6305
      %v6307 = vpop.f32.mrf.mxu0
      %6308 = vmatprep.mubr.bf16.mxu0 0
      %6309 = vmatmul.mubr.bf16.gmra.mxu0 %v5042
      %v6310 = vpop.f32.mrf.mxu0
      %v6311 = vadd.f32 0.0, %v6310
      %v6312 = vpop.f32.mrf.mxu0
      %v6313 = vpop.f32.mrf.mxu0
      %v6314 = vadd.f32 0.0, %v6313
      %v6315 = vpop.f32.mrf.mxu0
      %6316 = vmatprep.mubr.bf16.mxu0 0
      %6317 = vmatmul.mubr.bf16.gmra.mxu0 %v5043
      %v6318 = vpop.f32.mrf.mxu0
      %v6319 = vadd.f32 0.0, %v6318
      %v6320 = vpop.f32.mrf.mxu0
      %v6321 = vpop.f32.mrf.mxu0
      %v6322 = vadd.f32 0.0, %v6321
      %v6323 = vpop.f32.mrf.mxu0
      %6324 = vdwg.mxu0
      %v6341 = vunpack.c.l.b16 %v6019
      %v6342 = vunpack.c.l.b16 %v6020
      %v6343 = vunpack.c.l.b16 %v6021
      %v6344 = vunpack.c.l.b16 %v6022
      %v6345 = vunpack.c.l.b16 %v6023
      %v6346 = vunpack.c.l.b16 %v6024
      %v6347 = vunpack.c.l.b16 %v6025
      %v6348 = vunpack.c.l.b16 %v6026
      %v6349 = vunpack.c.l.b16 %v6027
      %v6350 = vunpack.c.l.b16 %v6028
      %v6351 = vunpack.c.l.b16 %v6029
      %v6352 = vunpack.c.l.b16 %v6030
      %v6353 = vunpack.c.l.b16 %v6031
      %v6354 = vunpack.c.l.b16 %v6032
      %v6355 = vunpack.c.l.b16 %v6033
      %v6356 = vunpack.c.l.b16 %v6034
      %v6357 = vpack.c.b16 %v6342, %v6341
      %v6358 = vpack.c.b16 %v6344, %v6343
      %v6359 = vpack.c.b16 %v6346, %v6345
      %v6360 = vpack.c.b16 %v6348, %v6347
      %v6361 = vpack.c.b16 %v6350, %v6349
      %v6362 = vpack.c.b16 %v6352, %v6351
      %v6363 = vpack.c.b16 %v6354, %v6353
      %v6364 = vpack.c.b16 %v6356, %v6355
      %6373 = vmatprep.subr.bf16.mxu0 0
      %6374 = vmatpush1.bf16.msra.mxu0 %v6364
      %6375 = vmatprep.subr.bf16.mxu0 0
      %6376 = vmatpush1.bf16.msra.mxu0 %v6363
      %6377 = vmatprep.subr.bf16.mxu0 0
      %6378 = vmatpush1.bf16.msra.mxu0 %v6362
      %6379 = vmatprep.subr.bf16.mxu0 0
      %6380 = vmatpush1.bf16.msra.mxu0 %v6361
      %6381 = vmatprep.subr.bf16.mxu0 0
      %6382 = vmatpush1.bf16.msra.mxu0 %v6360
      %6383 = vmatprep.subr.bf16.mxu0 0
      %6384 = vmatpush1.bf16.msra.mxu0 %v6359
      %6385 = vmatprep.subr.bf16.mxu0 0
      %6386 = vmatpush1.bf16.msra.mxu0 %v6358
      %6387 = vmatprep.subr.bf16.mxu0 0
      %6388 = vmatpush1.bf16.msra.mxu0 %v6357
      %6389 = vmatprep.subr.bf16.mxu0 0
      %6390 = vmatpush2.bf16.msra.mxu0 0
      %6391 = vmatprep.subr.bf16.mxu0 0
      %6392 = vmatpush2.bf16.msra.mxu0 0
      %6393 = vmatprep.subr.bf16.mxu0 0
      %6394 = vmatpush2.bf16.msra.mxu0 0
      %6395 = vmatprep.subr.bf16.mxu0 0
      %6396 = vmatpush2.bf16.msra.mxu0 0
      %6397 = vmatprep.subr.bf16.mxu0 0
      %6398 = vmatpush2.bf16.msra.mxu0 0
      %6399 = vmatprep.subr.bf16.mxu0 0
      %6400 = vmatpush2.bf16.msra.mxu0 0
      %6401 = vmatprep.subr.bf16.mxu0 0
      %6402 = vmatpush2.bf16.msra.mxu0 0
      %6403 = vmatprep.subr.bf16.mxu0 0
      %6404 = vmatpush2.bf16.msra.mxu0 0
      %6405 = vmatprep.mubr.bf16.mxu0 0
      %6406 = vmatmul.mubr.bf16.gmra.mxu0 %v5347
      %v6407 = vpop.f32.mrf.mxu0
      %v6408 = vadd.f32 %v6135, %v6407
      %v6409 = vpop.f32.mrf.mxu0
      %v6410 = vpop.f32.mrf.mxu0
      %v6411 = vadd.f32 %v6138, %v6410
      %v6412 = vpop.f32.mrf.mxu0
      %6413 = vmatprep.mubr.bf16.mxu0 0
      %6414 = vmatmul.mubr.bf16.gmra.mxu0 %v5348
      %v6415 = vpop.f32.mrf.mxu0
      %v6416 = vadd.f32 %v6143, %v6415
      %v6417 = vpop.f32.mrf.mxu0
      %v6418 = vpop.f32.mrf.mxu0
      %v6419 = vadd.f32 %v6146, %v6418
      %v6420 = vpop.f32.mrf.mxu0
      %6421 = vmatprep.mubr.bf16.mxu0 0
      %6422 = vmatmul.mubr.bf16.gmra.mxu0 %v5349
      %v6423 = vpop.f32.mrf.mxu0
      %v6424 = vadd.f32 %v6151, %v6423
      %v6425 = vpop.f32.mrf.mxu0
      %v6426 = vpop.f32.mrf.mxu0
      %v6427 = vadd.f32 %v6154, %v6426
      %v6428 = vpop.f32.mrf.mxu0
      %6429 = vmatprep.mubr.bf16.mxu0 0
      %6430 = vmatmul.mubr.bf16.gmra.mxu0 %v5350
      %v6431 = vpop.f32.mrf.mxu0
      %v6432 = vadd.f32 %v6159, %v6431
      %v6433 = vpop.f32.mrf.mxu0
      %v6434 = vpop.f32.mrf.mxu0
      %v6435 = vadd.f32 %v6162, %v6434
      %v6436 = vpop.f32.mrf.mxu0
      %6437 = vmatprep.mubr.bf16.mxu0 0
      %6438 = vmatmul.mubr.bf16.gmra.mxu0 %v5351
      %v6439 = vpop.f32.mrf.mxu0
      %v6440 = vadd.f32 %v6167, %v6439
      %v6441 = vpop.f32.mrf.mxu0
      %v6442 = vpop.f32.mrf.mxu0
      %v6443 = vadd.f32 %v6170, %v6442
      %v6444 = vpop.f32.mrf.mxu0
      %6445 = vmatprep.mubr.bf16.mxu0 0
      %6446 = vmatmul.mubr.bf16.gmra.mxu0 %v5352
      %v6447 = vpop.f32.mrf.mxu0
      %v6448 = vadd.f32 %v6175, %v6447
      %v6449 = vpop.f32.mrf.mxu0
      %v6450 = vpop.f32.mrf.mxu0
      %v6451 = vadd.f32 %v6178, %v6450
      %v6452 = vpop.f32.mrf.mxu0
      %6453 = vmatprep.mubr.bf16.mxu0 0
      %6454 = vmatmul.mubr.bf16.gmra.mxu0 %v5353
      %v6455 = vpop.f32.mrf.mxu0
      %v6456 = vadd.f32 %v6183, %v6455
      %v6457 = vpop.f32.mrf.mxu0
      %v6458 = vpop.f32.mrf.mxu0
      %v6459 = vadd.f32 %v6186, %v6458
      %v6460 = vpop.f32.mrf.mxu0
      %6461 = vmatprep.mubr.bf16.mxu0 0
      %6462 = vmatmul.mubr.bf16.gmra.mxu0 %v5354
      %v6463 = vpop.f32.mrf.mxu0
      %v6464 = vadd.f32 %v6191, %v6463
      %v6465 = vpop.f32.mrf.mxu0
      %v6466 = vpop.f32.mrf.mxu0
      %v6467 = vadd.f32 %v6194, %v6466
      %v6468 = vpop.f32.mrf.mxu0
      %6469 = vmatprep.mubr.bf16.mxu0 0
      %6470 = vmatmul.mubr.bf16.gmra.mxu0 %v5355
      %v6471 = vpop.f32.mrf.mxu0
      %v6472 = vadd.f32 %v6199, %v6471
      %v6473 = vpop.f32.mrf.mxu0
      %v6474 = vpop.f32.mrf.mxu0
      %v6475 = vadd.f32 %v6202, %v6474
      %v6476 = vpop.f32.mrf.mxu0
      %6477 = vmatprep.mubr.bf16.mxu0 0
      %6478 = vmatmul.mubr.bf16.gmra.mxu0 %v5356
      %v6479 = vpop.f32.mrf.mxu0
      %v6480 = vadd.f32 %v6207, %v6479
      %v6481 = vpop.f32.mrf.mxu0
      %v6482 = vpop.f32.mrf.mxu0
      %v6483 = vadd.f32 %v6210, %v6482
      %v6484 = vpop.f32.mrf.mxu0
      %6485 = vmatprep.mubr.bf16.mxu0 0
      %6486 = vmatmul.mubr.bf16.gmra.mxu0 %v5357
      %v6487 = vpop.f32.mrf.mxu0
      %v6488 = vadd.f32 %v6215, %v6487
      %v6489 = vpop.f32.mrf.mxu0
      %v6490 = vpop.f32.mrf.mxu0
      %v6491 = vadd.f32 %v6218, %v6490
      %v6492 = vpop.f32.mrf.mxu0
      %6493 = vmatprep.mubr.bf16.mxu0 0
      %6494 = vmatmul.mubr.bf16.gmra.mxu0 %v5358
      %v6495 = vpop.f32.mrf.mxu0
      %v6496 = vadd.f32 %v6223, %v6495
      %v6497 = vpop.f32.mrf.mxu0
      %v6498 = vpop.f32.mrf.mxu0
      %v6499 = vadd.f32 %v6226, %v6498
      %v6500 = vpop.f32.mrf.mxu0
      %6501 = vmatprep.mubr.bf16.mxu0 0
      %6502 = vmatmul.mubr.bf16.gmra.mxu0 %v5359
      %v6503 = vpop.f32.mrf.mxu0
      %v6504 = vadd.f32 %v6231, %v6503
      %v6505 = vpop.f32.mrf.mxu0
      %v6506 = vpop.f32.mrf.mxu0
      %v6507 = vadd.f32 %v6234, %v6506
      %v6508 = vpop.f32.mrf.mxu0
      %6509 = vmatprep.mubr.bf16.mxu0 0
      %6510 = vmatmul.mubr.bf16.gmra.mxu0 %v5360
      %v6511 = vpop.f32.mrf.mxu0
      %v6512 = vadd.f32 %v6239, %v6511
      %v6513 = vpop.f32.mrf.mxu0
      %v6514 = vpop.f32.mrf.mxu0
      %v6515 = vadd.f32 %v6242, %v6514
      %v6516 = vpop.f32.mrf.mxu0
      %6517 = vmatprep.mubr.bf16.mxu0 0
      %6518 = vmatmul.mubr.bf16.gmra.mxu0 %v5361
      %v6519 = vpop.f32.mrf.mxu0
      %v6520 = vadd.f32 %v6247, %v6519
      %v6521 = vpop.f32.mrf.mxu0
      %v6522 = vpop.f32.mrf.mxu0
      %v6523 = vadd.f32 %v6250, %v6522
      %v6524 = vpop.f32.mrf.mxu0
      %6525 = vmatprep.mubr.bf16.mxu0 0
      %6526 = vmatmul.mubr.bf16.gmra.mxu0 %v5362
      %v6527 = vpop.f32.mrf.mxu0
      %v6528 = vadd.f32 %v6255, %v6527
      %v6529 = vpop.f32.mrf.mxu0
      %v6530 = vpop.f32.mrf.mxu0
      %v6531 = vadd.f32 %v6258, %v6530
      %v6532 = vpop.f32.mrf.mxu0
      %6533 = vmatprep.mubr.bf16.mxu0 0
      %6534 = vmatmul.mubr.bf16.gmra.mxu0 %v5363
      %v6535 = vpop.f32.mrf.mxu0
      %v6536 = vadd.f32 %v6263, %v6535
      %v6537 = vpop.f32.mrf.mxu0
      %v6538 = vpop.f32.mrf.mxu0
      %v6539 = vadd.f32 %v6266, %v6538
      %v6540 = vpop.f32.mrf.mxu0
      %6541 = vmatprep.mubr.bf16.mxu0 0
      %6542 = vmatmul.mubr.bf16.gmra.mxu0 %v5364
      %v6543 = vpop.f32.mrf.mxu0
      %v6544 = vadd.f32 %v6271, %v6543
      %v6545 = vpop.f32.mrf.mxu0
      %v6546 = vpop.f32.mrf.mxu0
      %v6547 = vadd.f32 %v6274, %v6546
      %v6548 = vpop.f32.mrf.mxu0
      %6549 = vmatprep.mubr.bf16.mxu0 0
      %6550 = vmatmul.mubr.bf16.gmra.mxu0 %v5365
      %v6551 = vpop.f32.mrf.mxu0
      %v6552 = vadd.f32 %v6279, %v6551
      %v6553 = vpop.f32.mrf.mxu0
      %v6554 = vpop.f32.mrf.mxu0
      %v6555 = vadd.f32 %v6282, %v6554
      %v6556 = vpop.f32.mrf.mxu0
      %6557 = vmatprep.mubr.bf16.mxu0 0
      %6558 = vmatmul.mubr.bf16.gmra.mxu0 %v5366
      %v6559 = vpop.f32.mrf.mxu0
      %v6560 = vadd.f32 %v6287, %v6559
      %v6561 = vpop.f32.mrf.mxu0
      %v6562 = vpop.f32.mrf.mxu0
      %v6563 = vadd.f32 %v6290, %v6562
      %v6564 = vpop.f32.mrf.mxu0
      %6565 = vmatprep.mubr.bf16.mxu0 0
      %6566 = vmatmul.mubr.bf16.gmra.mxu0 %v5367
      %v6567 = vpop.f32.mrf.mxu0
      %v6568 = vadd.f32 %v6295, %v6567
      %v6569 = vpop.f32.mrf.mxu0
      %v6570 = vpop.f32.mrf.mxu0
      %v6571 = vadd.f32 %v6298, %v6570
      %v6572 = vpop.f32.mrf.mxu0
      %6573 = vmatprep.mubr.bf16.mxu0 0
      %6574 = vmatmul.mubr.bf16.gmra.mxu0 %v5368
      %v6575 = vpop.f32.mrf.mxu0
      %v6576 = vadd.f32 %v6303, %v6575
      %v6577 = vpop.f32.mrf.mxu0
      %v6578 = vpop.f32.mrf.mxu0
      %v6579 = vadd.f32 %v6306, %v6578
      %v6580 = vpop.f32.mrf.mxu0
      %6581 = vmatprep.mubr.bf16.mxu0 0
      %6582 = vmatmul.mubr.bf16.gmra.mxu0 %v5369
      %v6583 = vpop.f32.mrf.mxu0
      %v6584 = vadd.f32 %v6311, %v6583
      %v6585 = vpop.f32.mrf.mxu0
      %v6586 = vpop.f32.mrf.mxu0
      %v6587 = vadd.f32 %v6314, %v6586
      %v6588 = vpop.f32.mrf.mxu0
      %6589 = vmatprep.mubr.bf16.mxu0 0
      %6590 = vmatmul.mubr.bf16.gmra.mxu0 %v5370
      %v6591 = vpop.f32.mrf.mxu0
      %v6592 = vadd.f32 %v6319, %v6591
      %v6593 = vpop.f32.mrf.mxu0
      %v6594 = vpop.f32.mrf.mxu0
      %v6595 = vadd.f32 %v6322, %v6594
      %v6596 = vpop.f32.mrf.mxu0
      %6597 = vdwg.mxu0
      %s6598 = scalar_lea.vmem %s3, 448
      %v6599 = vld [vmem:[%s6598] sm:$0xf]
      %v6600 = vld [vmem:[%s6598 + $0x4] sm:$0xf]
      %v6601 = vld [vmem:[%s6598 + $0x8] sm:$0xf]
      %v6602 = vld [vmem:[%s6598 + $0xc] sm:$0xf]
      %v6603 = vld [vmem:[%s6598 + $0x10] sm:$0xf]
      %v6604 = vld [vmem:[%s6598 + $0x14] sm:$0xf]
      %v6605 = vld [vmem:[%s6598 + $0x18] sm:$0xf]
      %v6606 = vld [vmem:[%s6598 + $0x1c] sm:$0xf]
      %v6607 = vld [vmem:[%s6598 + $0x20] sm:$0xf]
      %v6608 = vld [vmem:[%s6598 + $0x24] sm:$0xf]
      %v6609 = vld [vmem:[%s6598 + $0x28] sm:$0xf]
      %v6610 = vld [vmem:[%s6598 + $0x2c] sm:$0xf]
      %v6611 = vld [vmem:[%s6598 + $0x30] sm:$0xf]
      %v6612 = vld [vmem:[%s6598 + $0x34] sm:$0xf]
      %v6613 = vld [vmem:[%s6598 + $0x38] sm:$0xf]
      %v6614 = vld [vmem:[%s6598 + $0x3c] sm:$0xf]
      %v6631 = vunpack.c.l.b16 %v6599
      %v6632 = vunpack.c.l.b16 %v6600
      %v6633 = vunpack.c.l.b16 %v6601
      %v6634 = vunpack.c.l.b16 %v6602
      %v6635 = vunpack.c.l.b16 %v6603
      %v6636 = vunpack.c.l.b16 %v6604
      %v6637 = vunpack.c.l.b16 %v6605
      %v6638 = vunpack.c.l.b16 %v6606
      %v6639 = vunpack.c.l.b16 %v6607
      %v6640 = vunpack.c.l.b16 %v6608
      %v6641 = vunpack.c.l.b16 %v6609
      %v6642 = vunpack.c.l.b16 %v6610
      %v6643 = vunpack.c.l.b16 %v6611
      %v6644 = vunpack.c.l.b16 %v6612
      %v6645 = vunpack.c.l.b16 %v6613
      %v6646 = vunpack.c.l.b16 %v6614
      %v6647 = vpack.c.b16 %v6632, %v6631
      %v6648 = vpack.c.b16 %v6634, %v6633
      %v6649 = vpack.c.b16 %v6636, %v6635
      %v6650 = vpack.c.b16 %v6638, %v6637
      %v6651 = vpack.c.b16 %v6640, %v6639
      %v6652 = vpack.c.b16 %v6642, %v6641
      %v6653 = vpack.c.b16 %v6644, %v6643
      %v6654 = vpack.c.b16 %v6646, %v6645
      %6663 = vmatprep.subr.bf16.mxu0 0
      %6664 = vmatpush1.bf16.msra.mxu0 %v6654
      %6665 = vmatprep.subr.bf16.mxu0 0
      %6666 = vmatpush1.bf16.msra.mxu0 %v6653
      %6667 = vmatprep.subr.bf16.mxu0 0
      %6668 = vmatpush1.bf16.msra.mxu0 %v6652
      %6669 = vmatprep.subr.bf16.mxu0 0
      %6670 = vmatpush1.bf16.msra.mxu0 %v6651
      %6671 = vmatprep.subr.bf16.mxu0 0
      %6672 = vmatpush1.bf16.msra.mxu0 %v6650
      %6673 = vmatprep.subr.bf16.mxu0 0
      %6674 = vmatpush1.bf16.msra.mxu0 %v6649
      %6675 = vmatprep.subr.bf16.mxu0 0
      %6676 = vmatpush1.bf16.msra.mxu0 %v6648
      %6677 = vmatprep.subr.bf16.mxu0 0
      %6678 = vmatpush1.bf16.msra.mxu0 %v6647
      %6679 = vmatprep.subr.bf16.mxu0 0
      %6680 = vmatpush2.bf16.msra.mxu0 0
      %6681 = vmatprep.subr.bf16.mxu0 0
      %6682 = vmatpush2.bf16.msra.mxu0 0
      %6683 = vmatprep.subr.bf16.mxu0 0
      %6684 = vmatpush2.bf16.msra.mxu0 0
      %6685 = vmatprep.subr.bf16.mxu0 0
      %6686 = vmatpush2.bf16.msra.mxu0 0
      %6687 = vmatprep.subr.bf16.mxu0 0
      %6688 = vmatpush2.bf16.msra.mxu0 0
      %6689 = vmatprep.subr.bf16.mxu0 0
      %6690 = vmatpush2.bf16.msra.mxu0 0
      %6691 = vmatprep.subr.bf16.mxu0 0
      %6692 = vmatpush2.bf16.msra.mxu0 0
      %6693 = vmatprep.subr.bf16.mxu0 0
      %6694 = vmatpush2.bf16.msra.mxu0 0
      %6695 = vmatprep.mubr.bf16.mxu0 0
      %6696 = vmatmul.mubr.bf16.gmra.mxu0 %v5350
      %v6697 = vpop.f32.mrf.mxu0
      %v6698 = vadd.f32 0.0, %v6697
      %v6699 = vpop.f32.mrf.mxu0
      %v6700 = vpop.f32.mrf.mxu0
      %v6701 = vadd.f32 0.0, %v6700
      %v6702 = vpop.f32.mrf.mxu0
      %6703 = vmatprep.mubr.bf16.mxu0 0
      %6704 = vmatmul.mubr.bf16.gmra.mxu0 %v5351
      %v6705 = vpop.f32.mrf.mxu0
      %v6706 = vadd.f32 0.0, %v6705
      %v6707 = vpop.f32.mrf.mxu0
      %v6708 = vpop.f32.mrf.mxu0
      %v6709 = vadd.f32 0.0, %v6708
      %v6710 = vpop.f32.mrf.mxu0
      %6711 = vmatprep.mubr.bf16.mxu0 0
      %6712 = vmatmul.mubr.bf16.gmra.mxu0 %v5352
      %v6713 = vpop.f32.mrf.mxu0
      %v6714 = vadd.f32 0.0, %v6713
      %v6715 = vpop.f32.mrf.mxu0
      %v6716 = vpop.f32.mrf.mxu0
      %v6717 = vadd.f32 0.0, %v6716
      %v6718 = vpop.f32.mrf.mxu0
      %6719 = vmatprep.mubr.bf16.mxu0 0
      %6720 = vmatmul.mubr.bf16.gmra.mxu0 %v5353
      %v6721 = vpop.f32.mrf.mxu0
      %v6722 = vadd.f32 0.0, %v6721
      %v6723 = vpop.f32.mrf.mxu0
      %v6724 = vpop.f32.mrf.mxu0
      %v6725 = vadd.f32 0.0, %v6724
      %v6726 = vpop.f32.mrf.mxu0
      %6727 = vmatprep.mubr.bf16.mxu0 0
      %6728 = vmatmul.mubr.bf16.gmra.mxu0 %v5354
      %v6729 = vpop.f32.mrf.mxu0
      %v6730 = vadd.f32 0.0, %v6729
      %v6731 = vpop.f32.mrf.mxu0
      %v6732 = vpop.f32.mrf.mxu0
      %v6733 = vadd.f32 0.0, %v6732
      %v6734 = vpop.f32.mrf.mxu0
      %6735 = vmatprep.mubr.bf16.mxu0 0
      %6736 = vmatmul.mubr.bf16.gmra.mxu0 %v5355
      %v6737 = vpop.f32.mrf.mxu0
      %v6738 = vadd.f32 0.0, %v6737
      %v6739 = vpop.f32.mrf.mxu0
      %v6740 = vpop.f32.mrf.mxu0
      %v6741 = vadd.f32 0.0, %v6740
      %v6742 = vpop.f32.mrf.mxu0
      %6743 = vmatprep.mubr.bf16.mxu0 0
      %6744 = vmatmul.mubr.bf16.gmra.mxu0 %v5356
      %v6745 = vpop.f32.mrf.mxu0
      %v6746 = vadd.f32 0.0, %v6745
      %v6747 = vpop.f32.mrf.mxu0
      %v6748 = vpop.f32.mrf.mxu0
      %v6749 = vadd.f32 0.0, %v6748
      %v6750 = vpop.f32.mrf.mxu0
      %6751 = vmatprep.mubr.bf16.mxu0 0
      %6752 = vmatmul.mubr.bf16.gmra.mxu0 %v5357
      %v6753 = vpop.f32.mrf.mxu0
      %v6754 = vadd.f32 0.0, %v6753
      %v6755 = vpop.f32.mrf.mxu0
      %v6756 = vpop.f32.mrf.mxu0
      %v6757 = vadd.f32 0.0, %v6756
      %v6758 = vpop.f32.mrf.mxu0
      %6759 = vmatprep.mubr.bf16.mxu0 0
      %6760 = vmatmul.mubr.bf16.gmra.mxu0 %v5358
      %v6761 = vpop.f32.mrf.mxu0
      %v6762 = vadd.f32 0.0, %v6761
      %v6763 = vpop.f32.mrf.mxu0
      %v6764 = vpop.f32.mrf.mxu0
      %v6765 = vadd.f32 0.0, %v6764
      %v6766 = vpop.f32.mrf.mxu0
      %6767 = vmatprep.mubr.bf16.mxu0 0
      %6768 = vmatmul.mubr.bf16.gmra.mxu0 %v5359
      %v6769 = vpop.f32.mrf.mxu0
      %v6770 = vadd.f32 0.0, %v6769
      %v6771 = vpop.f32.mrf.mxu0
      %v6772 = vpop.f32.mrf.mxu0
      %v6773 = vadd.f32 0.0, %v6772
      %v6774 = vpop.f32.mrf.mxu0
      %6775 = vmatprep.mubr.bf16.mxu0 0
      %6776 = vmatmul.mubr.bf16.gmra.mxu0 %v5360
      %v6777 = vpop.f32.mrf.mxu0
      %v6778 = vadd.f32 0.0, %v6777
      %v6779 = vpop.f32.mrf.mxu0
      %v6780 = vpop.f32.mrf.mxu0
      %v6781 = vadd.f32 0.0, %v6780
      %v6782 = vpop.f32.mrf.mxu0
      %6783 = vmatprep.mubr.bf16.mxu0 0
      %6784 = vmatmul.mubr.bf16.gmra.mxu0 %v5361
      %v6785 = vpop.f32.mrf.mxu0
      %v6786 = vadd.f32 0.0, %v6785
      %v6787 = vpop.f32.mrf.mxu0
      %v6788 = vpop.f32.mrf.mxu0
      %v6789 = vadd.f32 0.0, %v6788
      %v6790 = vpop.f32.mrf.mxu0
      %6791 = vmatprep.mubr.bf16.mxu0 0
      %6792 = vmatmul.mubr.bf16.gmra.mxu0 %v5362
      %v6793 = vpop.f32.mrf.mxu0
      %v6794 = vadd.f32 0.0, %v6793
      %v6795 = vpop.f32.mrf.mxu0
      %v6796 = vpop.f32.mrf.mxu0
      %v6797 = vadd.f32 0.0, %v6796
      %v6798 = vpop.f32.mrf.mxu0
      %6799 = vmatprep.mubr.bf16.mxu0 0
      %6800 = vmatmul.mubr.bf16.gmra.mxu0 %v5363
      %v6801 = vpop.f32.mrf.mxu0
      %v6802 = vadd.f32 0.0, %v6801
      %v6803 = vpop.f32.mrf.mxu0
      %v6804 = vpop.f32.mrf.mxu0
      %v6805 = vadd.f32 0.0, %v6804
      %v6806 = vpop.f32.mrf.mxu0
      %6807 = vmatprep.mubr.bf16.mxu0 0
      %6808 = vmatmul.mubr.bf16.gmra.mxu0 %v5364
      %v6809 = vpop.f32.mrf.mxu0
      %v6810 = vadd.f32 0.0, %v6809
      %v6811 = vpop.f32.mrf.mxu0
      %v6812 = vpop.f32.mrf.mxu0
      %v6813 = vadd.f32 0.0, %v6812
      %v6814 = vpop.f32.mrf.mxu0
      %6815 = vmatprep.mubr.bf16.mxu0 0
      %6816 = vmatmul.mubr.bf16.gmra.mxu0 %v5365
      %v6817 = vpop.f32.mrf.mxu0
      %v6818 = vadd.f32 0.0, %v6817
      %v6819 = vpop.f32.mrf.mxu0
      %v6820 = vpop.f32.mrf.mxu0
      %v6821 = vadd.f32 0.0, %v6820
      %v6822 = vpop.f32.mrf.mxu0
      %6823 = vmatprep.mubr.bf16.mxu0 0
      %6824 = vmatmul.mubr.bf16.gmra.mxu0 %v5366
      %v6825 = vpop.f32.mrf.mxu0
      %v6826 = vadd.f32 0.0, %v6825
      %v6827 = vpop.f32.mrf.mxu0
      %v6828 = vpop.f32.mrf.mxu0
      %v6829 = vadd.f32 0.0, %v6828
      %v6830 = vpop.f32.mrf.mxu0
      %6831 = vmatprep.mubr.bf16.mxu0 0
      %6832 = vmatmul.mubr.bf16.gmra.mxu0 %v5367
      %v6833 = vpop.f32.mrf.mxu0
      %v6834 = vadd.f32 0.0, %v6833
      %v6835 = vpop.f32.mrf.mxu0
      %v6836 = vpop.f32.mrf.mxu0
      %v6837 = vadd.f32 0.0, %v6836
      %v6838 = vpop.f32.mrf.mxu0
      %6839 = vmatprep.mubr.bf16.mxu0 0
      %6840 = vmatmul.mubr.bf16.gmra.mxu0 %v5368
      %v6841 = vpop.f32.mrf.mxu0
      %v6842 = vadd.f32 0.0, %v6841
      %v6843 = vpop.f32.mrf.mxu0
      %v6844 = vpop.f32.mrf.mxu0
      %v6845 = vadd.f32 0.0, %v6844
      %v6846 = vpop.f32.mrf.mxu0
      %6847 = vmatprep.mubr.bf16.mxu0 0
      %6848 = vmatmul.mubr.bf16.gmra.mxu0 %v5369
      %v6849 = vpop.f32.mrf.mxu0
      %v6850 = vadd.f32 0.0, %v6849
      %v6851 = vpop.f32.mrf.mxu0
      %v6852 = vpop.f32.mrf.mxu0
      %v6853 = vadd.f32 0.0, %v6852
      %v6854 = vpop.f32.mrf.mxu0
      %6855 = vmatprep.mubr.bf16.mxu0 0
      %6856 = vmatmul.mubr.bf16.gmra.mxu0 %v5370
      %v6857 = vpop.f32.mrf.mxu0
      %v6858 = vadd.f32 0.0, %v6857
      %v6859 = vpop.f32.mrf.mxu0
      %v6860 = vpop.f32.mrf.mxu0
      %v6861 = vadd.f32 0.0, %v6860
      %v6862 = vpop.f32.mrf.mxu0
      %6863 = vmatprep.mubr.bf16.mxu0 0
      %6864 = vmatmul.mubr.bf16.gmra.mxu0 %v5691
      %v6865 = vpop.f32.mrf.mxu0
      %v6866 = vadd.f32 0.0, %v6865
      %v6867 = vpop.f32.mrf.mxu0
      %v6868 = vpop.f32.mrf.mxu0
      %v6869 = vadd.f32 0.0, %v6868
      %v6870 = vpop.f32.mrf.mxu0
      %6871 = vmatprep.mubr.bf16.mxu0 0
      %6872 = vmatmul.mubr.bf16.gmra.mxu0 %v5692
      %v6873 = vpop.f32.mrf.mxu0
      %v6874 = vadd.f32 0.0, %v6873
      %v6875 = vpop.f32.mrf.mxu0
      %v6876 = vpop.f32.mrf.mxu0
      %v6877 = vadd.f32 0.0, %v6876
      %v6878 = vpop.f32.mrf.mxu0
      %6879 = vmatprep.mubr.bf16.mxu0 0
      %6880 = vmatmul.mubr.bf16.gmra.mxu0 %v5693
      %v6881 = vpop.f32.mrf.mxu0
      %v6882 = vadd.f32 0.0, %v6881
      %v6883 = vpop.f32.mrf.mxu0
      %v6884 = vpop.f32.mrf.mxu0
      %v6885 = vadd.f32 0.0, %v6884
      %v6886 = vpop.f32.mrf.mxu0
      %6887 = vdwg.mxu0
      %v6888 = vadd.f32 %v6408, %v6698
      %v6889 = vadd.f32 %v6411, %v6701
      %v6890 = vadd.f32 %v6416, %v6706
      %v6891 = vadd.f32 %v6419, %v6709
      %v6892 = vadd.f32 %v6424, %v6714
      %v6893 = vadd.f32 %v6427, %v6717
      %v6894 = vadd.f32 %v6432, %v6722
      %v6895 = vadd.f32 %v6435, %v6725
      %v6896 = vadd.f32 %v6440, %v6730
      %v6897 = vadd.f32 %v6443, %v6733
      %v6898 = vadd.f32 %v6448, %v6738
      %v6899 = vadd.f32 %v6451, %v6741
      %v6900 = vadd.f32 %v6456, %v6746
      %v6901 = vadd.f32 %v6459, %v6749
      %v6902 = vadd.f32 %v6464, %v6754
      %v6903 = vadd.f32 %v6467, %v6757
      %v6904 = vadd.f32 %v6472, %v6762
      %v6905 = vadd.f32 %v6475, %v6765
      %v6906 = vadd.f32 %v6480, %v6770
      %v6907 = vadd.f32 %v6483, %v6773
      %v6908 = vadd.f32 %v6488, %v6778
      %v6909 = vadd.f32 %v6491, %v6781
      %v6910 = vadd.f32 %v6496, %v6786
      %v6911 = vadd.f32 %v6499, %v6789
      %v6912 = vadd.f32 %v6504, %v6794
      %v6913 = vadd.f32 %v6507, %v6797
      %v6914 = vadd.f32 %v6512, %v6802
      %v6915 = vadd.f32 %v6515, %v6805
      %v6916 = vadd.f32 %v6520, %v6810
      %v6917 = vadd.f32 %v6523, %v6813
      %v6918 = vadd.f32 %v6528, %v6818
      %v6919 = vadd.f32 %v6531, %v6821
      %v6920 = vadd.f32 %v6536, %v6826
      %v6921 = vadd.f32 %v6539, %v6829
      %v6922 = vadd.f32 %v6544, %v6834
      %v6923 = vadd.f32 %v6547, %v6837
      %v6924 = vadd.f32 %v6552, %v6842
      %v6925 = vadd.f32 %v6555, %v6845
      %v6926 = vadd.f32 %v6560, %v6850
      %v6927 = vadd.f32 %v6563, %v6853
      %v6928 = vadd.f32 %v6568, %v6858
      %v6929 = vadd.f32 %v6571, %v6861
      %v6930 = vadd.f32 %v6576, %v6866
      %v6931 = vadd.f32 %v6579, %v6869
      %v6932 = vadd.f32 %v6584, %v6874
      %v6933 = vadd.f32 %v6587, %v6877
      %v6934 = vadd.f32 %v6592, %v6882
      %v6935 = vadd.f32 %v6595, %v6885
      %v6936 = vrot.slane %v5970, 1
      %v6937 = vrot.slane %v5971, 1
      %v6938 = vrot.slane %v5972, 1
      %v6939 = vrot.slane %v5973, 1
      %v6940 = vrot.slane %v5974, 1
      %v6941 = vrot.slane %v5975, 1
      %v6942 = vrot.slane %v5976, 1
      %v6943 = vrot.slane %v5977, 1
      %v6944 = vrot.slane %v5978, 1
      %v6945 = vrot.slane %v5979, 1
      %v6946 = vrot.slane %v5980, 1
      %v6947 = vrot.slane %v5981, 1
      %v6948 = vrot.slane %v5982, 1
      %v6949 = vrot.slane %v5983, 1
      %v6950 = vrot.slane %v5984, 1
      %v6951 = vrot.slane %v5985, 1
      %v6952 = vrot.slane %v5986, 1
      %v6953 = vrot.slane %v5987, 1
      %v6954 = vrot.slane %v5988, 1
      %v6955 = vrot.slane %v5989, 1
      %v6956 = vrot.slane %v5990, 1
      %v6957 = vrot.slane %v5991, 1
      %v6958 = vrot.slane %v5992, 1
      %v6959 = vrot.slane %v5993, 1
      %v6960 = vrot.slane %v5994, 1
      %v6961 = vrot.slane %v5995, 1
      %v6962 = vrot.slane %v5996, 1
      %v6963 = vrot.slane %v5997, 1
      %v6964 = vrot.slane %v5998, 1
      %v6965 = vrot.slane %v5999, 1
      %v6966 = vrot.slane %v6000, 1
      %v6967 = vrot.slane %v6001, 1
      %v6968 = vrot.slane %v6002, 1
      %v6969 = vrot.slane %v6003, 1
      %v6970 = vrot.slane %v6004, 1
      %v6971 = vrot.slane %v6005, 1
      %v6972 = vrot.slane %v6006, 1
      %v6973 = vrot.slane %v6007, 1
      %v6974 = vrot.slane %v6008, 1
      %v6975 = vrot.slane %v6009, 1
      %v6976 = vrot.slane %v6010, 1
      %v6977 = vrot.slane %v6011, 1
      %v6978 = vrot.slane %v6012, 1
      %v6979 = vrot.slane %v6013, 1
      %v6980 = vrot.slane %v6014, 1
      %v6981 = vrot.slane %v6015, 1
      %v6982 = vrot.slane %v6016, 1
      %v6983 = vrot.slane %v6017, 1
      %v6984 = vsel %vm2801, %v6982, %v6983
      %v6985 = vsel %vm2801, %v6981, %v6982
      %v6986 = vsel %vm2801, %v6980, %v6981
      %v6987 = vsel %vm2801, %v6979, %v6980
      %v6988 = vsel %vm2801, %v6978, %v6979
      %v6989 = vsel %vm2801, %v6977, %v6978
      %v6990 = vsel %vm2801, %v6976, %v6977
      %v6991 = vsel %vm2801, %v6975, %v6976
      %v6992 = vsel %vm2801, %v6974, %v6975
      %v6993 = vsel %vm2801, %v6973, %v6974
      %v6994 = vsel %vm2801, %v6972, %v6973
      %v6995 = vsel %vm2801, %v6971, %v6972
      %v6996 = vsel %vm2801, %v6970, %v6971
      %v6997 = vsel %vm2801, %v6969, %v6970
      %v6998 = vsel %vm2801, %v6968, %v6969
      %v6999 = vsel %vm2801, %v6967, %v6968
      %v7000 = vsel %vm2801, %v6966, %v6967
      %v7001 = vsel %vm2801, %v6965, %v6966
      %v7002 = vsel %vm2801, %v6964, %v6965
      %v7003 = vsel %vm2801, %v6963, %v6964
      %v7004 = vsel %vm2801, %v6962, %v6963
      %v7005 = vsel %vm2801, %v6961, %v6962
      %v7006 = vsel %vm2801, %v6960, %v6961
      %v7007 = vsel %vm2801, %v6959, %v6960
      %v7008 = vsel %vm2801, %v6958, %v6959
      %v7009 = vsel %vm2801, %v6957, %v6958
      %v7010 = vsel %vm2801, %v6956, %v6957
      %v7011 = vsel %vm2801, %v6955, %v6956
      %v7012 = vsel %vm2801, %v6954, %v6955
      %v7013 = vsel %vm2801, %v6953, %v6954
      %v7014 = vsel %vm2801, %v6952, %v6953
      %v7015 = vsel %vm2801, %v6951, %v6952
      %v7016 = vsel %vm2801, %v6950, %v6951
      %v7017 = vsel %vm2801, %v6949, %v6950
      %v7018 = vsel %vm2801, %v6948, %v6949
      %v7019 = vsel %vm2801, %v6947, %v6948
      %v7020 = vsel %vm2801, %v6946, %v6947
      %v7021 = vsel %vm2801, %v6945, %v6946
      %v7022 = vsel %vm2801, %v6944, %v6945
      %v7023 = vsel %vm2801, %v6943, %v6944
      %v7024 = vsel %vm2801, %v6942, %v6943
      %v7025 = vsel %vm2801, %v6941, %v6942
      %v7026 = vsel %vm2801, %v6940, %v6941
      %v7027 = vsel %vm2801, %v6939, %v6940
      %v7028 = vsel %vm2801, %v6938, %v6939
      %v7029 = vsel %vm2801, %v6937, %v6938
      %v7030 = vsel %vm2801, %v6936, %v6937
      %v7031 = vsel %vm2801, %v6983, %v6936
      %v7032 = vadd.f32 %v7030, %v6888
      %v7033 = vadd.f32 %v7029, %v6889
      %v7034 = vadd.f32 %v7028, %v6890
      %v7035 = vadd.f32 %v7027, %v6891
      %v7036 = vadd.f32 %v7026, %v6892
      %v7037 = vadd.f32 %v7025, %v6893
      %v7038 = vadd.f32 %v7024, %v6894
      %v7039 = vadd.f32 %v7023, %v6895
      %v7040 = vadd.f32 %v7022, %v6896
      %v7041 = vadd.f32 %v7021, %v6897
      %v7042 = vadd.f32 %v7020, %v6898
      %v7043 = vadd.f32 %v7019, %v6899
      %v7044 = vadd.f32 %v7018, %v6900
      %v7045 = vadd.f32 %v7017, %v6901
      %v7046 = vadd.f32 %v7016, %v6902
      %v7047 = vadd.f32 %v7015, %v6903
      %v7048 = vadd.f32 %v7014, %v6904
      %v7049 = vadd.f32 %v7013, %v6905
      %v7050 = vadd.f32 %v7012, %v6906
      %v7051 = vadd.f32 %v7011, %v6907
      %v7052 = vadd.f32 %v7010, %v6908
      %v7053 = vadd.f32 %v7009, %v6909
      %v7054 = vadd.f32 %v7008, %v6910
      %v7055 = vadd.f32 %v7007, %v6911
      %v7056 = vadd.f32 %v7006, %v6912
      %v7057 = vadd.f32 %v7005, %v6913
      %v7058 = vadd.f32 %v7004, %v6914
      %v7059 = vadd.f32 %v7003, %v6915
      %v7060 = vadd.f32 %v7002, %v6916
      %v7061 = vadd.f32 %v7001, %v6917
      %v7062 = vadd.f32 %v7000, %v6918
      %v7063 = vadd.f32 %v6999, %v6919
      %v7064 = vadd.f32 %v6998, %v6920
      %v7065 = vadd.f32 %v6997, %v6921
      %v7066 = vadd.f32 %v6996, %v6922
      %v7067 = vadd.f32 %v6995, %v6923
      %v7068 = vadd.f32 %v6994, %v6924
      %v7069 = vadd.f32 %v6993, %v6925
      %v7070 = vadd.f32 %v6992, %v6926
      %v7071 = vadd.f32 %v6991, %v6927
      %v7072 = vadd.f32 %v6990, %v6928
      %v7073 = vadd.f32 %v6989, %v6929
      %v7074 = vadd.f32 %v6988, %v6930
      %v7075 = vadd.f32 %v6987, %v6931
      %v7076 = vadd.f32 %v6986, %v6932
      %v7077 = vadd.f32 %v6985, %v6933
      %v7078 = vadd.f32 %v6984, %v6934
      %v7079 = vadd.f32 %v7031, %v6935
      %v7080 = vld [vmem:[%s3] sm:$0xf]
      %v7081 = vld [vmem:[%s3 + $0x4] sm:$0xf]
      %v7082 = vld [vmem:[%s3 + $0x8] sm:$0xf]
      %v7083 = vld [vmem:[%s3 + $0xc] sm:$0xf]
      %v7084 = vld [vmem:[%s3 + $0x10] sm:$0xf]
      %v7085 = vld [vmem:[%s3 + $0x14] sm:$0xf]
      %v7086 = vld [vmem:[%s3 + $0x18] sm:$0xf]
      %v7087 = vld [vmem:[%s3 + $0x1c] sm:$0xf]
      %v7088 = vld [vmem:[%s3 + $0x20] sm:$0xf]
      %v7089 = vld [vmem:[%s3 + $0x24] sm:$0xf]
      %v7090 = vld [vmem:[%s3 + $0x28] sm:$0xf]
      %v7091 = vld [vmem:[%s3 + $0x2c] sm:$0xf]
      %v7092 = vld [vmem:[%s3 + $0x30] sm:$0xf]
      %v7093 = vld [vmem:[%s3 + $0x34] sm:$0xf]
      %v7094 = vld [vmem:[%s3 + $0x38] sm:$0xf]
      %v7095 = vld [vmem:[%s3 + $0x3c] sm:$0xf]
      %s7096 = scalar_lea.vmem %s3, 192
      %v7097 = vld [vmem:[%s7096] sm:$0xf]
      %v7098 = vld [vmem:[%s7096 + $0x4] sm:$0xf]
      %v7099 = vld [vmem:[%s7096 + $0x8] sm:$0xf]
      %v7100 = vld [vmem:[%s7096 + $0xc] sm:$0xf]
      %v7101 = vld [vmem:[%s7096 + $0x10] sm:$0xf]
      %v7102 = vld [vmem:[%s7096 + $0x14] sm:$0xf]
      %v7103 = vld [vmem:[%s7096 + $0x18] sm:$0xf]
      %v7104 = vld [vmem:[%s7096 + $0x1c] sm:$0xf]
      %v7105 = vld [vmem:[%s7096 + $0x20] sm:$0xf]
      %v7106 = vld [vmem:[%s7096 + $0x24] sm:$0xf]
      %v7107 = vld [vmem:[%s7096 + $0x28] sm:$0xf]
      %v7108 = vld [vmem:[%s7096 + $0x2c] sm:$0xf]
      %v7109 = vld [vmem:[%s7096 + $0x30] sm:$0xf]
      %v7110 = vld [vmem:[%s7096 + $0x34] sm:$0xf]
      %v7111 = vld [vmem:[%s7096 + $0x38] sm:$0xf]
      %v7112 = vld [vmem:[%s7096 + $0x3c] sm:$0xf]
      %v7129 = vunpack.c.l.b16 %v7097
      %v7130 = vunpack.c.l.b16 %v7098
      %v7131 = vunpack.c.l.b16 %v7099
      %v7132 = vunpack.c.l.b16 %v7100
      %v7133 = vunpack.c.l.b16 %v7101
      %v7134 = vunpack.c.l.b16 %v7102
      %v7135 = vunpack.c.l.b16 %v7103
      %v7136 = vunpack.c.l.b16 %v7104
      %v7137 = vunpack.c.l.b16 %v7105
      %v7138 = vunpack.c.l.b16 %v7106
      %v7139 = vunpack.c.l.b16 %v7107
      %v7140 = vunpack.c.l.b16 %v7108
      %v7141 = vunpack.c.l.b16 %v7109
      %v7142 = vunpack.c.l.b16 %v7110
      %v7143 = vunpack.c.l.b16 %v7111
      %v7144 = vunpack.c.l.b16 %v7112
      %v7145 = vpack.c.b16 %v7130, %v7129
      %v7146 = vpack.c.b16 %v7132, %v7131
      %v7147 = vpack.c.b16 %v7134, %v7133
      %v7148 = vpack.c.b16 %v7136, %v7135
      %v7149 = vpack.c.b16 %v7138, %v7137
      %v7150 = vpack.c.b16 %v7140, %v7139
      %v7151 = vpack.c.b16 %v7142, %v7141
      %v7152 = vpack.c.b16 %v7144, %v7143
      %7161 = vmatprep.subr.bf16.mxu0 0
      %7162 = vmatpush1.bf16.msra.mxu0 %v7152
      %7163 = vmatprep.subr.bf16.mxu0 0
      %7164 = vmatpush1.bf16.msra.mxu0 %v7151
      %7165 = vmatprep.subr.bf16.mxu0 0
      %7166 = vmatpush1.bf16.msra.mxu0 %v7150
      %7167 = vmatprep.subr.bf16.mxu0 0
      %7168 = vmatpush1.bf16.msra.mxu0 %v7149
      %7169 = vmatprep.subr.bf16.mxu0 0
      %7170 = vmatpush1.bf16.msra.mxu0 %v7148
      %7171 = vmatprep.subr.bf16.mxu0 0
      %7172 = vmatpush1.bf16.msra.mxu0 %v7147
      %7173 = vmatprep.subr.bf16.mxu0 0
      %7174 = vmatpush1.bf16.msra.mxu0 %v7146
      %7175 = vmatprep.subr.bf16.mxu0 0
      %7176 = vmatpush1.bf16.msra.mxu0 %v7145
      %7177 = vmatprep.subr.bf16.mxu0 0
      %7178 = vmatpush2.bf16.msra.mxu0 0
      %7179 = vmatprep.subr.bf16.mxu0 0
      %7180 = vmatpush2.bf16.msra.mxu0 0
      %7181 = vmatprep.subr.bf16.mxu0 0
      %7182 = vmatpush2.bf16.msra.mxu0 0
      %7183 = vmatprep.subr.bf16.mxu0 0
      %7184 = vmatpush2.bf16.msra.mxu0 0
      %7185 = vmatprep.subr.bf16.mxu0 0
      %7186 = vmatpush2.bf16.msra.mxu0 0
      %7187 = vmatprep.subr.bf16.mxu0 0
      %7188 = vmatpush2.bf16.msra.mxu0 0
      %7189 = vmatprep.subr.bf16.mxu0 0
      %7190 = vmatpush2.bf16.msra.mxu0 0
      %7191 = vmatprep.subr.bf16.mxu0 0
      %7192 = vmatpush2.bf16.msra.mxu0 0
      %7193 = vmatprep.mubr.bf16.mxu0 0
      %7194 = vmatmul.mubr.bf16.gmra.mxu0 %v5020
      %v7195 = vpop.f32.mrf.mxu0
      %v7196 = vadd.f32 0.0, %v7195
      %v7197 = vpop.f32.mrf.mxu0
      %v7198 = vpop.f32.mrf.mxu0
      %v7199 = vadd.f32 0.0, %v7198
      %v7200 = vpop.f32.mrf.mxu0
      %7201 = vmatprep.mubr.bf16.mxu0 0
      %7202 = vmatmul.mubr.bf16.gmra.mxu0 %v5021
      %v7203 = vpop.f32.mrf.mxu0
      %v7204 = vpop.f32.mrf.mxu0
      %v7205 = vpop.f32.mrf.mxu0
      %v7206 = vadd.f32 0.0, %v7205
      %v7207 = vpop.f32.mrf.mxu0
      %7208 = vmatprep.mubr.bf16.mxu0 0
      %7209 = vmatmul.mubr.bf16.gmra.mxu0 %v5022
      %v7210 = vpop.f32.mrf.mxu0
      %v7211 = vadd.f32 0.0, %v7210
      %v7212 = vpop.f32.mrf.mxu0
      %v7213 = vpop.f32.mrf.mxu0
      %v7214 = vpop.f32.mrf.mxu0
      %7215 = vmatprep.mubr.bf16.mxu0 0
      %7216 = vmatmul.mubr.bf16.gmra.mxu0 %v5023
      %v7217 = vpop.f32.mrf.mxu0
      %v7218 = vadd.f32 0.0, %v7217
      %v7219 = vpop.f32.mrf.mxu0
      %v7220 = vpop.f32.mrf.mxu0
      %v7221 = vadd.f32 0.0, %v7220
      %v7222 = vpop.f32.mrf.mxu0
      %7223 = vmatprep.mubr.bf16.mxu0 0
      %7224 = vmatmul.mubr.bf16.gmra.mxu0 %v5024
      %v7225 = vpop.f32.mrf.mxu0
      %v7226 = vpop.f32.mrf.mxu0
      %v7227 = vpop.f32.mrf.mxu0
      %v7228 = vadd.f32 0.0, %v7227
      %v7229 = vpop.f32.mrf.mxu0
      %7230 = vmatprep.mubr.bf16.mxu0 0
      %7231 = vmatmul.mubr.bf16.gmra.mxu0 %v5025
      %v7232 = vpop.f32.mrf.mxu0
      %v7233 = vadd.f32 0.0, %v7232
      %v7234 = vpop.f32.mrf.mxu0
      %v7235 = vpop.f32.mrf.mxu0
      %v7236 = vpop.f32.mrf.mxu0
      %7237 = vmatprep.mubr.bf16.mxu0 0
      %7238 = vmatmul.mubr.bf16.gmra.mxu0 %v5026
      %v7239 = vpop.f32.mrf.mxu0
      %v7240 = vadd.f32 0.0, %v7239
      %v7241 = vpop.f32.mrf.mxu0
      %v7242 = vpop.f32.mrf.mxu0
      %v7243 = vadd.f32 0.0, %v7242
      %v7244 = vpop.f32.mrf.mxu0
      %7245 = vmatprep.mubr.bf16.mxu0 0
      %7246 = vmatmul.mubr.bf16.gmra.mxu0 %v5027
      %v7247 = vpop.f32.mrf.mxu0
      %v7248 = vpop.f32.mrf.mxu0
      %v7249 = vpop.f32.mrf.mxu0
      %v7250 = vadd.f32 0.0, %v7249
      %v7251 = vpop.f32.mrf.mxu0
      %7252 = vmatprep.mubr.bf16.mxu0 0
      %7253 = vmatmul.mubr.bf16.gmra.mxu0 %v5028
      %v7254 = vpop.f32.mrf.mxu0
      %v7255 = vadd.f32 0.0, %v7254
      %v7256 = vpop.f32.mrf.mxu0
      %v7257 = vpop.f32.mrf.mxu0
      %v7258 = vpop.f32.mrf.mxu0
      %7259 = vmatprep.mubr.bf16.mxu0 0
      %7260 = vmatmul.mubr.bf16.gmra.mxu0 %v5029
      %v7261 = vpop.f32.mrf.mxu0
      %v7262 = vadd.f32 0.0, %v7261
      %v7263 = vpop.f32.mrf.mxu0
      %v7264 = vpop.f32.mrf.mxu0
      %v7265 = vadd.f32 0.0, %v7264
      %v7266 = vpop.f32.mrf.mxu0
      %7267 = vmatprep.mubr.bf16.mxu0 0
      %7268 = vmatmul.mubr.bf16.gmra.mxu0 %v5030
      %v7269 = vpop.f32.mrf.mxu0
      %v7270 = vpop.f32.mrf.mxu0
      %v7271 = vpop.f32.mrf.mxu0
      %v7272 = vadd.f32 0.0, %v7271
      %v7273 = vpop.f32.mrf.mxu0
      %7274 = vmatprep.mubr.bf16.mxu0 0
      %7275 = vmatmul.mubr.bf16.gmra.mxu0 %v5031
      %v7276 = vpop.f32.mrf.mxu0
      %v7277 = vadd.f32 0.0, %v7276
      %v7278 = vpop.f32.mrf.mxu0
      %v7279 = vpop.f32.mrf.mxu0
      %v7280 = vpop.f32.mrf.mxu0
      %7281 = vmatprep.mubr.bf16.mxu0 0
      %7282 = vmatmul.mubr.bf16.gmra.mxu0 %v5032
      %v7283 = vpop.f32.mrf.mxu0
      %v7284 = vadd.f32 0.0, %v7283
      %v7285 = vpop.f32.mrf.mxu0
      %v7286 = vpop.f32.mrf.mxu0
      %v7287 = vadd.f32 0.0, %v7286
      %v7288 = vpop.f32.mrf.mxu0
      %7289 = vmatprep.mubr.bf16.mxu0 0
      %7290 = vmatmul.mubr.bf16.gmra.mxu0 %v5033
      %v7291 = vpop.f32.mrf.mxu0
      %v7292 = vpop.f32.mrf.mxu0
      %v7293 = vpop.f32.mrf.mxu0
      %v7294 = vadd.f32 0.0, %v7293
      %v7295 = vpop.f32.mrf.mxu0
      %7296 = vmatprep.mubr.bf16.mxu0 0
      %7297 = vmatmul.mubr.bf16.gmra.mxu0 %v5034
      %v7298 = vpop.f32.mrf.mxu0
      %v7299 = vadd.f32 0.0, %v7298
      %v7300 = vpop.f32.mrf.mxu0
      %v7301 = vpop.f32.mrf.mxu0
      %v7302 = vpop.f32.mrf.mxu0
      %7303 = vmatprep.mubr.bf16.mxu0 0
      %7304 = vmatmul.mubr.bf16.gmra.mxu0 %v5035
      %v7305 = vpop.f32.mrf.mxu0
      %v7306 = vadd.f32 0.0, %v7305
      %v7307 = vpop.f32.mrf.mxu0
      %v7308 = vpop.f32.mrf.mxu0
      %v7309 = vadd.f32 0.0, %v7308
      %v7310 = vpop.f32.mrf.mxu0
      %7311 = vmatprep.mubr.bf16.mxu0 0
      %7312 = vmatmul.mubr.bf16.gmra.mxu0 %v5036
      %v7313 = vpop.f32.mrf.mxu0
      %v7314 = vpop.f32.mrf.mxu0
      %v7315 = vpop.f32.mrf.mxu0
      %v7316 = vadd.f32 0.0, %v7315
      %v7317 = vpop.f32.mrf.mxu0
      %7318 = vmatprep.mubr.bf16.mxu0 0
      %7319 = vmatmul.mubr.bf16.gmra.mxu0 %v5037
      %v7320 = vpop.f32.mrf.mxu0
      %v7321 = vadd.f32 0.0, %v7320
      %v7322 = vpop.f32.mrf.mxu0
      %v7323 = vpop.f32.mrf.mxu0
      %v7324 = vpop.f32.mrf.mxu0
      %7325 = vmatprep.mubr.bf16.mxu0 0
      %7326 = vmatmul.mubr.bf16.gmra.mxu0 %v5038
      %v7327 = vpop.f32.mrf.mxu0
      %v7328 = vadd.f32 0.0, %v7327
      %v7329 = vpop.f32.mrf.mxu0
      %v7330 = vpop.f32.mrf.mxu0
      %v7331 = vadd.f32 0.0, %v7330
      %v7332 = vpop.f32.mrf.mxu0
      %7333 = vmatprep.mubr.bf16.mxu0 0
      %7334 = vmatmul.mubr.bf16.gmra.mxu0 %v5039
      %v7335 = vpop.f32.mrf.mxu0
      %v7336 = vpop.f32.mrf.mxu0
      %v7337 = vpop.f32.mrf.mxu0
      %v7338 = vadd.f32 0.0, %v7337
      %v7339 = vpop.f32.mrf.mxu0
      %7340 = vmatprep.mubr.bf16.mxu0 0
      %7341 = vmatmul.mubr.bf16.gmra.mxu0 %v5040
      %v7342 = vpop.f32.mrf.mxu0
      %v7343 = vadd.f32 0.0, %v7342
      %v7344 = vpop.f32.mrf.mxu0
      %v7345 = vpop.f32.mrf.mxu0
      %v7346 = vpop.f32.mrf.mxu0
      %7347 = vmatprep.mubr.bf16.mxu0 0
      %7348 = vmatmul.mubr.bf16.gmra.mxu0 %v5041
      %v7349 = vpop.f32.mrf.mxu0
      %v7350 = vadd.f32 0.0, %v7349
      %v7351 = vpop.f32.mrf.mxu0
      %v7352 = vpop.f32.mrf.mxu0
      %v7353 = vadd.f32 0.0, %v7352
      %v7354 = vpop.f32.mrf.mxu0
      %7355 = vmatprep.mubr.bf16.mxu0 0
      %7356 = vmatmul.mubr.bf16.gmra.mxu0 %v5042
      %v7357 = vpop.f32.mrf.mxu0
      %v7358 = vpop.f32.mrf.mxu0
      %v7359 = vpop.f32.mrf.mxu0
      %v7360 = vadd.f32 0.0, %v7359
      %v7361 = vpop.f32.mrf.mxu0
      %7362 = vmatprep.mubr.bf16.mxu0 0
      %7363 = vmatmul.mubr.bf16.gmra.mxu0 %v5043
      %v7364 = vpop.f32.mrf.mxu0
      %v7365 = vadd.f32 0.0, %v7364
      %v7366 = vpop.f32.mrf.mxu0
      %v7367 = vpop.f32.mrf.mxu0
      %v7368 = vpop.f32.mrf.mxu0
      %7369 = vdwg.mxu0
      %v7386 = vunpack.c.l.b16 %v7080
      %v7387 = vunpack.c.l.b16 %v7081
      %v7388 = vunpack.c.l.b16 %v7082
      %v7389 = vunpack.c.l.b16 %v7083
      %v7390 = vunpack.c.l.b16 %v7084
      %v7391 = vunpack.c.l.b16 %v7085
      %v7392 = vunpack.c.l.b16 %v7086
      %v7393 = vunpack.c.l.b16 %v7087
      %v7394 = vunpack.c.l.b16 %v7088
      %v7395 = vunpack.c.l.b16 %v7089
      %v7396 = vunpack.c.l.b16 %v7090
      %v7397 = vunpack.c.l.b16 %v7091
      %v7398 = vunpack.c.l.b16 %v7092
      %v7399 = vunpack.c.l.b16 %v7093
      %v7400 = vunpack.c.l.b16 %v7094
      %v7401 = vunpack.c.l.b16 %v7095
      %v7402 = vpack.c.b16 %v7387, %v7386
      %v7403 = vpack.c.b16 %v7389, %v7388
      %v7404 = vpack.c.b16 %v7391, %v7390
      %v7405 = vpack.c.b16 %v7393, %v7392
      %v7406 = vpack.c.b16 %v7395, %v7394
      %v7407 = vpack.c.b16 %v7397, %v7396
      %v7408 = vpack.c.b16 %v7399, %v7398
      %v7409 = vpack.c.b16 %v7401, %v7400
      %7418 = vmatprep.subr.bf16.mxu0 0
      %7419 = vmatpush1.bf16.msra.mxu0 %v7409
      %7420 = vmatprep.subr.bf16.mxu0 0
      %7421 = vmatpush1.bf16.msra.mxu0 %v7408
      %7422 = vmatprep.subr.bf16.mxu0 0
      %7423 = vmatpush1.bf16.msra.mxu0 %v7407
      %7424 = vmatprep.subr.bf16.mxu0 0
      %7425 = vmatpush1.bf16.msra.mxu0 %v7406
      %7426 = vmatprep.subr.bf16.mxu0 0
      %7427 = vmatpush1.bf16.msra.mxu0 %v7405
      %7428 = vmatprep.subr.bf16.mxu0 0
      %7429 = vmatpush1.bf16.msra.mxu0 %v7404
      %7430 = vmatprep.subr.bf16.mxu0 0
      %7431 = vmatpush1.bf16.msra.mxu0 %v7403
      %7432 = vmatprep.subr.bf16.mxu0 0
      %7433 = vmatpush1.bf16.msra.mxu0 %v7402
      %7434 = vmatprep.subr.bf16.mxu0 0
      %7435 = vmatpush2.bf16.msra.mxu0 0
      %7436 = vmatprep.subr.bf16.mxu0 0
      %7437 = vmatpush2.bf16.msra.mxu0 0
      %7438 = vmatprep.subr.bf16.mxu0 0
      %7439 = vmatpush2.bf16.msra.mxu0 0
      %7440 = vmatprep.subr.bf16.mxu0 0
      %7441 = vmatpush2.bf16.msra.mxu0 0
      %7442 = vmatprep.subr.bf16.mxu0 0
      %7443 = vmatpush2.bf16.msra.mxu0 0
      %7444 = vmatprep.subr.bf16.mxu0 0
      %7445 = vmatpush2.bf16.msra.mxu0 0
      %7446 = vmatprep.subr.bf16.mxu0 0
      %7447 = vmatpush2.bf16.msra.mxu0 0
      %7448 = vmatprep.subr.bf16.mxu0 0
      %7449 = vmatpush2.bf16.msra.mxu0 0
      %7450 = vmatprep.mubr.bf16.mxu0 0
      %7451 = vmatmul.mubr.bf16.gmra.mxu0 %v5347
      %v7452 = vpop.f32.mrf.mxu0
      %v7453 = vadd.f32 %v7196, %v7452
      %v7454 = vpop.f32.mrf.mxu0
      %v7455 = vpop.f32.mrf.mxu0
      %v7456 = vadd.f32 %v7199, %v7455
      %v7457 = vpop.f32.mrf.mxu0
      %7458 = vmatprep.mubr.bf16.mxu0 0
      %7459 = vmatmul.mubr.bf16.gmra.mxu0 %v5348
      %v7460 = vpop.f32.mrf.mxu0
      %v7461 = vpop.f32.mrf.mxu0
      %v7462 = vpop.f32.mrf.mxu0
      %v7463 = vadd.f32 %v7206, %v7462
      %v7464 = vpop.f32.mrf.mxu0
      %7465 = vmatprep.mubr.bf16.mxu0 0
      %7466 = vmatmul.mubr.bf16.gmra.mxu0 %v5349
      %v7467 = vpop.f32.mrf.mxu0
      %v7468 = vadd.f32 %v7211, %v7467
      %v7469 = vpop.f32.mrf.mxu0
      %v7470 = vpop.f32.mrf.mxu0
      %v7471 = vpop.f32.mrf.mxu0
      %7472 = vmatprep.mubr.bf16.mxu0 0
      %7473 = vmatmul.mubr.bf16.gmra.mxu0 %v5350
      %v7474 = vpop.f32.mrf.mxu0
      %v7475 = vadd.f32 %v7218, %v7474
      %v7476 = vpop.f32.mrf.mxu0
      %v7477 = vpop.f32.mrf.mxu0
      %v7478 = vadd.f32 %v7221, %v7477
      %v7479 = vpop.f32.mrf.mxu0
      %7480 = vmatprep.mubr.bf16.mxu0 0
      %7481 = vmatmul.mubr.bf16.gmra.mxu0 %v5351
      %v7482 = vpop.f32.mrf.mxu0
      %v7483 = vpop.f32.mrf.mxu0
      %v7484 = vpop.f32.mrf.mxu0
      %v7485 = vadd.f32 %v7228, %v7484
      %v7486 = vpop.f32.mrf.mxu0
      %7487 = vmatprep.mubr.bf16.mxu0 0
      %7488 = vmatmul.mubr.bf16.gmra.mxu0 %v5352
      %v7489 = vpop.f32.mrf.mxu0
      %v7490 = vadd.f32 %v7233, %v7489
      %v7491 = vpop.f32.mrf.mxu0
      %v7492 = vpop.f32.mrf.mxu0
      %v7493 = vpop.f32.mrf.mxu0
      %7494 = vmatprep.mubr.bf16.mxu0 0
      %7495 = vmatmul.mubr.bf16.gmra.mxu0 %v5353
      %v7496 = vpop.f32.mrf.mxu0
      %v7497 = vadd.f32 %v7240, %v7496
      %v7498 = vpop.f32.mrf.mxu0
      %v7499 = vpop.f32.mrf.mxu0
      %v7500 = vadd.f32 %v7243, %v7499
      %v7501 = vpop.f32.mrf.mxu0
      %7502 = vmatprep.mubr.bf16.mxu0 0
      %7503 = vmatmul.mubr.bf16.gmra.mxu0 %v5354
      %v7504 = vpop.f32.mrf.mxu0
      %v7505 = vpop.f32.mrf.mxu0
      %v7506 = vpop.f32.mrf.mxu0
      %v7507 = vadd.f32 %v7250, %v7506
      %v7508 = vpop.f32.mrf.mxu0
      %7509 = vmatprep.mubr.bf16.mxu0 0
      %7510 = vmatmul.mubr.bf16.gmra.mxu0 %v5355
      %v7511 = vpop.f32.mrf.mxu0
      %v7512 = vadd.f32 %v7255, %v7511
      %v7513 = vpop.f32.mrf.mxu0
      %v7514 = vpop.f32.mrf.mxu0
      %v7515 = vpop.f32.mrf.mxu0
      %7516 = vmatprep.mubr.bf16.mxu0 0
      %7517 = vmatmul.mubr.bf16.gmra.mxu0 %v5356
      %v7518 = vpop.f32.mrf.mxu0
      %v7519 = vadd.f32 %v7262, %v7518
      %v7520 = vpop.f32.mrf.mxu0
      %v7521 = vpop.f32.mrf.mxu0
      %v7522 = vadd.f32 %v7265, %v7521
      %v7523 = vpop.f32.mrf.mxu0
      %7524 = vmatprep.mubr.bf16.mxu0 0
      %7525 = vmatmul.mubr.bf16.gmra.mxu0 %v5357
      %v7526 = vpop.f32.mrf.mxu0
      %v7527 = vpop.f32.mrf.mxu0
      %v7528 = vpop.f32.mrf.mxu0
      %v7529 = vadd.f32 %v7272, %v7528
      %v7530 = vpop.f32.mrf.mxu0
      %7531 = vmatprep.mubr.bf16.mxu0 0
      %7532 = vmatmul.mubr.bf16.gmra.mxu0 %v5358
      %v7533 = vpop.f32.mrf.mxu0
      %v7534 = vadd.f32 %v7277, %v7533
      %v7535 = vpop.f32.mrf.mxu0
      %v7536 = vpop.f32.mrf.mxu0
      %v7537 = vpop.f32.mrf.mxu0
      %7538 = vmatprep.mubr.bf16.mxu0 0
      %7539 = vmatmul.mubr.bf16.gmra.mxu0 %v5359
      %v7540 = vpop.f32.mrf.mxu0
      %v7541 = vadd.f32 %v7284, %v7540
      %v7542 = vpop.f32.mrf.mxu0
      %v7543 = vpop.f32.mrf.mxu0
      %v7544 = vadd.f32 %v7287, %v7543
      %v7545 = vpop.f32.mrf.mxu0
      %7546 = vmatprep.mubr.bf16.mxu0 0
      %7547 = vmatmul.mubr.bf16.gmra.mxu0 %v5360
      %v7548 = vpop.f32.mrf.mxu0
      %v7549 = vpop.f32.mrf.mxu0
      %v7550 = vpop.f32.mrf.mxu0
      %v7551 = vadd.f32 %v7294, %v7550
      %v7552 = vpop.f32.mrf.mxu0
      %7553 = vmatprep.mubr.bf16.mxu0 0
      %7554 = vmatmul.mubr.bf16.gmra.mxu0 %v5361
      %v7555 = vpop.f32.mrf.mxu0
      %v7556 = vadd.f32 %v7299, %v7555
      %v7557 = vpop.f32.mrf.mxu0
      %v7558 = vpop.f32.mrf.mxu0
      %v7559 = vpop.f32.mrf.mxu0
      %7560 = vmatprep.mubr.bf16.mxu0 0
      %7561 = vmatmul.mubr.bf16.gmra.mxu0 %v5362
      %v7562 = vpop.f32.mrf.mxu0
      %v7563 = vadd.f32 %v7306, %v7562
      %v7564 = vpop.f32.mrf.mxu0
      %v7565 = vpop.f32.mrf.mxu0
      %v7566 = vadd.f32 %v7309, %v7565
      %v7567 = vpop.f32.mrf.mxu0
      %7568 = vmatprep.mubr.bf16.mxu0 0
      %7569 = vmatmul.mubr.bf16.gmra.mxu0 %v5363
      %v7570 = vpop.f32.mrf.mxu0
      %v7571 = vpop.f32.mrf.mxu0
      %v7572 = vpop.f32.mrf.mxu0
      %v7573 = vadd.f32 %v7316, %v7572
      %v7574 = vpop.f32.mrf.mxu0
      %7575 = vmatprep.mubr.bf16.mxu0 0
      %7576 = vmatmul.mubr.bf16.gmra.mxu0 %v5364
      %v7577 = vpop.f32.mrf.mxu0
      %v7578 = vadd.f32 %v7321, %v7577
      %v7579 = vpop.f32.mrf.mxu0
      %v7580 = vpop.f32.mrf.mxu0
      %v7581 = vpop.f32.mrf.mxu0
      %7582 = vmatprep.mubr.bf16.mxu0 0
      %7583 = vmatmul.mubr.bf16.gmra.mxu0 %v5365
      %v7584 = vpop.f32.mrf.mxu0
      %v7585 = vadd.f32 %v7328, %v7584
      %v7586 = vpop.f32.mrf.mxu0
      %v7587 = vpop.f32.mrf.mxu0
      %v7588 = vadd.f32 %v7331, %v7587
      %v7589 = vpop.f32.mrf.mxu0
      %7590 = vmatprep.mubr.bf16.mxu0 0
      %7591 = vmatmul.mubr.bf16.gmra.mxu0 %v5366
      %v7592 = vpop.f32.mrf.mxu0
      %v7593 = vpop.f32.mrf.mxu0
      %v7594 = vpop.f32.mrf.mxu0
      %v7595 = vadd.f32 %v7338, %v7594
      %v7596 = vpop.f32.mrf.mxu0
      %7597 = vmatprep.mubr.bf16.mxu0 0
      %7598 = vmatmul.mubr.bf16.gmra.mxu0 %v5367
      %v7599 = vpop.f32.mrf.mxu0
      %v7600 = vadd.f32 %v7343, %v7599
      %v7601 = vpop.f32.mrf.mxu0
      %v7602 = vpop.f32.mrf.mxu0
      %v7603 = vpop.f32.mrf.mxu0
      %7604 = vmatprep.mubr.bf16.mxu0 0
      %7605 = vmatmul.mubr.bf16.gmra.mxu0 %v5368
      %v7606 = vpop.f32.mrf.mxu0
      %v7607 = vadd.f32 %v7350, %v7606
      %v7608 = vpop.f32.mrf.mxu0
      %v7609 = vpop.f32.mrf.mxu0
      %v7610 = vadd.f32 %v7353, %v7609
      %v7611 = vpop.f32.mrf.mxu0
      %7612 = vmatprep.mubr.bf16.mxu0 0
      %7613 = vmatmul.mubr.bf16.gmra.mxu0 %v5369
      %v7614 = vpop.f32.mrf.mxu0
      %v7615 = vpop.f32.mrf.mxu0
      %v7616 = vpop.f32.mrf.mxu0
      %v7617 = vadd.f32 %v7360, %v7616
      %v7618 = vpop.f32.mrf.mxu0
      %7619 = vmatprep.mubr.bf16.mxu0 0
      %7620 = vmatmul.mubr.bf16.gmra.mxu0 %v5370
      %v7621 = vpop.f32.mrf.mxu0
      %v7622 = vadd.f32 %v7365, %v7621
      %v7623 = vpop.f32.mrf.mxu0
      %v7624 = vpop.f32.mrf.mxu0
      %v7625 = vpop.f32.mrf.mxu0
      %7626 = vdwg.mxu0
      %s7627 = scalar_lea.vmem %s3, 384
      %v7628 = vld [vmem:[%s7627] sm:$0xf]
      %v7629 = vld [vmem:[%s7627 + $0x4] sm:$0xf]
      %v7630 = vld [vmem:[%s7627 + $0x8] sm:$0xf]
      %v7631 = vld [vmem:[%s7627 + $0xc] sm:$0xf]
      %v7632 = vld [vmem:[%s7627 + $0x10] sm:$0xf]
      %v7633 = vld [vmem:[%s7627 + $0x14] sm:$0xf]
      %v7634 = vld [vmem:[%s7627 + $0x18] sm:$0xf]
      %v7635 = vld [vmem:[%s7627 + $0x1c] sm:$0xf]
      %v7636 = vld [vmem:[%s7627 + $0x20] sm:$0xf]
      %v7637 = vld [vmem:[%s7627 + $0x24] sm:$0xf]
      %v7638 = vld [vmem:[%s7627 + $0x28] sm:$0xf]
      %v7639 = vld [vmem:[%s7627 + $0x2c] sm:$0xf]
      %v7640 = vld [vmem:[%s7627 + $0x30] sm:$0xf]
      %v7641 = vld [vmem:[%s7627 + $0x34] sm:$0xf]
      %v7642 = vld [vmem:[%s7627 + $0x38] sm:$0xf]
      %v7643 = vld [vmem:[%s7627 + $0x3c] sm:$0xf]
      %v7660 = vunpack.c.l.b16 %v7628
      %v7661 = vunpack.c.l.b16 %v7629
      %v7662 = vunpack.c.l.b16 %v7630
      %v7663 = vunpack.c.l.b16 %v7631
      %v7664 = vunpack.c.l.b16 %v7632
      %v7665 = vunpack.c.l.b16 %v7633
      %v7666 = vunpack.c.l.b16 %v7634
      %v7667 = vunpack.c.l.b16 %v7635
      %v7668 = vunpack.c.l.b16 %v7636
      %v7669 = vunpack.c.l.b16 %v7637
      %v7670 = vunpack.c.l.b16 %v7638
      %v7671 = vunpack.c.l.b16 %v7639
      %v7672 = vunpack.c.l.b16 %v7640
      %v7673 = vunpack.c.l.b16 %v7641
      %v7674 = vunpack.c.l.b16 %v7642
      %v7675 = vunpack.c.l.b16 %v7643
      %v7676 = vpack.c.b16 %v7661, %v7660
      %v7677 = vpack.c.b16 %v7663, %v7662
      %v7678 = vpack.c.b16 %v7665, %v7664
      %v7679 = vpack.c.b16 %v7667, %v7666
      %v7680 = vpack.c.b16 %v7669, %v7668
      %v7681 = vpack.c.b16 %v7671, %v7670
      %v7682 = vpack.c.b16 %v7673, %v7672
      %v7683 = vpack.c.b16 %v7675, %v7674
      %7692 = vmatprep.subr.bf16.mxu0 0
      %7693 = vmatpush1.bf16.msra.mxu0 %v7683
      %7694 = vmatprep.subr.bf16.mxu0 0
      %7695 = vmatpush1.bf16.msra.mxu0 %v7682
      %7696 = vmatprep.subr.bf16.mxu0 0
      %7697 = vmatpush1.bf16.msra.mxu0 %v7681
      %7698 = vmatprep.subr.bf16.mxu0 0
      %7699 = vmatpush1.bf16.msra.mxu0 %v7680
      %7700 = vmatprep.subr.bf16.mxu0 0
      %7701 = vmatpush1.bf16.msra.mxu0 %v7679
      %7702 = vmatprep.subr.bf16.mxu0 0
      %7703 = vmatpush1.bf16.msra.mxu0 %v7678
      %7704 = vmatprep.subr.bf16.mxu0 0
      %7705 = vmatpush1.bf16.msra.mxu0 %v7677
      %7706 = vmatprep.subr.bf16.mxu0 0
      %7707 = vmatpush1.bf16.msra.mxu0 %v7676
      %7708 = vmatprep.subr.bf16.mxu0 0
      %7709 = vmatpush2.bf16.msra.mxu0 0
      %7710 = vmatprep.subr.bf16.mxu0 0
      %7711 = vmatpush2.bf16.msra.mxu0 0
      %7712 = vmatprep.subr.bf16.mxu0 0
      %7713 = vmatpush2.bf16.msra.mxu0 0
      %7714 = vmatprep.subr.bf16.mxu0 0
      %7715 = vmatpush2.bf16.msra.mxu0 0
      %7716 = vmatprep.subr.bf16.mxu0 0
      %7717 = vmatpush2.bf16.msra.mxu0 0
      %7718 = vmatprep.subr.bf16.mxu0 0
      %7719 = vmatpush2.bf16.msra.mxu0 0
      %7720 = vmatprep.subr.bf16.mxu0 0
      %7721 = vmatpush2.bf16.msra.mxu0 0
      %7722 = vmatprep.subr.bf16.mxu0 0
      %7723 = vmatpush2.bf16.msra.mxu0 0
      %7724 = vmatprep.mubr.bf16.mxu0 0
      %7725 = vmatmul.mubr.bf16.gmra.mxu0 %v5350
      %v7726 = vpop.f32.mrf.mxu0
      %v7727 = vadd.f32 0.0, %v7726
      %v7728 = vpop.f32.mrf.mxu0
      %v7729 = vpop.f32.mrf.mxu0
      %v7730 = vadd.f32 0.0, %v7729
      %v7731 = vpop.f32.mrf.mxu0
      %7732 = vmatprep.mubr.bf16.mxu0 0
      %7733 = vmatmul.mubr.bf16.gmra.mxu0 %v5351
      %v7734 = vpop.f32.mrf.mxu0
      %v7735 = vpop.f32.mrf.mxu0
      %v7736 = vpop.f32.mrf.mxu0
      %v7737 = vadd.f32 0.0, %v7736
      %v7738 = vpop.f32.mrf.mxu0
      %7739 = vmatprep.mubr.bf16.mxu0 0
      %7740 = vmatmul.mubr.bf16.gmra.mxu0 %v5352
      %v7741 = vpop.f32.mrf.mxu0
      %v7742 = vadd.f32 0.0, %v7741
      %v7743 = vpop.f32.mrf.mxu0
      %v7744 = vpop.f32.mrf.mxu0
      %v7745 = vpop.f32.mrf.mxu0
      %7746 = vmatprep.mubr.bf16.mxu0 0
      %7747 = vmatmul.mubr.bf16.gmra.mxu0 %v5353
      %v7748 = vpop.f32.mrf.mxu0
      %v7749 = vadd.f32 0.0, %v7748
      %v7750 = vpop.f32.mrf.mxu0
      %v7751 = vpop.f32.mrf.mxu0
      %v7752 = vadd.f32 0.0, %v7751
      %v7753 = vpop.f32.mrf.mxu0
      %7754 = vmatprep.mubr.bf16.mxu0 0
      %7755 = vmatmul.mubr.bf16.gmra.mxu0 %v5354
      %v7756 = vpop.f32.mrf.mxu0
      %v7757 = vpop.f32.mrf.mxu0
      %v7758 = vpop.f32.mrf.mxu0
      %v7759 = vadd.f32 0.0, %v7758
      %v7760 = vpop.f32.mrf.mxu0
      %7761 = vmatprep.mubr.bf16.mxu0 0
      %7762 = vmatmul.mubr.bf16.gmra.mxu0 %v5355
      %v7763 = vpop.f32.mrf.mxu0
      %v7764 = vadd.f32 0.0, %v7763
      %v7765 = vpop.f32.mrf.mxu0
      %v7766 = vpop.f32.mrf.mxu0
      %v7767 = vpop.f32.mrf.mxu0
      %7768 = vmatprep.mubr.bf16.mxu0 0
      %7769 = vmatmul.mubr.bf16.gmra.mxu0 %v5356
      %v7770 = vpop.f32.mrf.mxu0
      %v7771 = vadd.f32 0.0, %v7770
      %v7772 = vpop.f32.mrf.mxu0
      %v7773 = vpop.f32.mrf.mxu0
      %v7774 = vadd.f32 0.0, %v7773
      %v7775 = vpop.f32.mrf.mxu0
      %7776 = vmatprep.mubr.bf16.mxu0 0
      %7777 = vmatmul.mubr.bf16.gmra.mxu0 %v5357
      %v7778 = vpop.f32.mrf.mxu0
      %v7779 = vpop.f32.mrf.mxu0
      %v7780 = vpop.f32.mrf.mxu0
      %v7781 = vadd.f32 0.0, %v7780
      %v7782 = vpop.f32.mrf.mxu0
      %7783 = vmatprep.mubr.bf16.mxu0 0
      %7784 = vmatmul.mubr.bf16.gmra.mxu0 %v5358
      %v7785 = vpop.f32.mrf.mxu0
      %v7786 = vadd.f32 0.0, %v7785
      %v7787 = vpop.f32.mrf.mxu0
      %v7788 = vpop.f32.mrf.mxu0
      %v7789 = vpop.f32.mrf.mxu0
      %7790 = vmatprep.mubr.bf16.mxu0 0
      %7791 = vmatmul.mubr.bf16.gmra.mxu0 %v5359
      %v7792 = vpop.f32.mrf.mxu0
      %v7793 = vadd.f32 0.0, %v7792
      %v7794 = vpop.f32.mrf.mxu0
      %v7795 = vpop.f32.mrf.mxu0
      %v7796 = vadd.f32 0.0, %v7795
      %v7797 = vpop.f32.mrf.mxu0
      %7798 = vmatprep.mubr.bf16.mxu0 0
      %7799 = vmatmul.mubr.bf16.gmra.mxu0 %v5360
      %v7800 = vpop.f32.mrf.mxu0
      %v7801 = vpop.f32.mrf.mxu0
      %v7802 = vpop.f32.mrf.mxu0
      %v7803 = vadd.f32 0.0, %v7802
      %v7804 = vpop.f32.mrf.mxu0
      %7805 = vmatprep.mubr.bf16.mxu0 0
      %7806 = vmatmul.mubr.bf16.gmra.mxu0 %v5361
      %v7807 = vpop.f32.mrf.mxu0
      %v7808 = vadd.f32 0.0, %v7807
      %v7809 = vpop.f32.mrf.mxu0
      %v7810 = vpop.f32.mrf.mxu0
      %v7811 = vpop.f32.mrf.mxu0
      %7812 = vmatprep.mubr.bf16.mxu0 0
      %7813 = vmatmul.mubr.bf16.gmra.mxu0 %v5362
      %v7814 = vpop.f32.mrf.mxu0
      %v7815 = vadd.f32 0.0, %v7814
      %v7816 = vpop.f32.mrf.mxu0
      %v7817 = vpop.f32.mrf.mxu0
      %v7818 = vadd.f32 0.0, %v7817
      %v7819 = vpop.f32.mrf.mxu0
      %7820 = vmatprep.mubr.bf16.mxu0 0
      %7821 = vmatmul.mubr.bf16.gmra.mxu0 %v5363
      %v7822 = vpop.f32.mrf.mxu0
      %v7823 = vpop.f32.mrf.mxu0
      %v7824 = vpop.f32.mrf.mxu0
      %v7825 = vadd.f32 0.0, %v7824
      %v7826 = vpop.f32.mrf.mxu0
      %7827 = vmatprep.mubr.bf16.mxu0 0
      %7828 = vmatmul.mubr.bf16.gmra.mxu0 %v5364
      %v7829 = vpop.f32.mrf.mxu0
      %v7830 = vadd.f32 0.0, %v7829
      %v7831 = vpop.f32.mrf.mxu0
      %v7832 = vpop.f32.mrf.mxu0
      %v7833 = vpop.f32.mrf.mxu0
      %7834 = vmatprep.mubr.bf16.mxu0 0
      %7835 = vmatmul.mubr.bf16.gmra.mxu0 %v5365
      %v7836 = vpop.f32.mrf.mxu0
      %v7837 = vadd.f32 0.0, %v7836
      %v7838 = vpop.f32.mrf.mxu0
      %v7839 = vpop.f32.mrf.mxu0
      %v7840 = vadd.f32 0.0, %v7839
      %v7841 = vpop.f32.mrf.mxu0
      %7842 = vmatprep.mubr.bf16.mxu0 0
      %7843 = vmatmul.mubr.bf16.gmra.mxu0 %v5366
      %v7844 = vpop.f32.mrf.mxu0
      %v7845 = vpop.f32.mrf.mxu0
      %v7846 = vpop.f32.mrf.mxu0
      %v7847 = vadd.f32 0.0, %v7846
      %v7848 = vpop.f32.mrf.mxu0
      %7849 = vmatprep.mubr.bf16.mxu0 0
      %7850 = vmatmul.mubr.bf16.gmra.mxu0 %v5367
      %v7851 = vpop.f32.mrf.mxu0
      %v7852 = vadd.f32 0.0, %v7851
      %v7853 = vpop.f32.mrf.mxu0
      %v7854 = vpop.f32.mrf.mxu0
      %v7855 = vpop.f32.mrf.mxu0
      %7856 = vmatprep.mubr.bf16.mxu0 0
      %7857 = vmatmul.mubr.bf16.gmra.mxu0 %v5368
      %v7858 = vpop.f32.mrf.mxu0
      %v7859 = vadd.f32 0.0, %v7858
      %v7860 = vpop.f32.mrf.mxu0
      %v7861 = vpop.f32.mrf.mxu0
      %v7862 = vadd.f32 0.0, %v7861
      %v7863 = vpop.f32.mrf.mxu0
      %7864 = vmatprep.mubr.bf16.mxu0 0
      %7865 = vmatmul.mubr.bf16.gmra.mxu0 %v5369
      %v7866 = vpop.f32.mrf.mxu0
      %v7867 = vpop.f32.mrf.mxu0
      %v7868 = vpop.f32.mrf.mxu0
      %v7869 = vadd.f32 0.0, %v7868
      %v7870 = vpop.f32.mrf.mxu0
      %7871 = vmatprep.mubr.bf16.mxu0 0
      %7872 = vmatmul.mubr.bf16.gmra.mxu0 %v5370
      %v7873 = vpop.f32.mrf.mxu0
      %v7874 = vadd.f32 0.0, %v7873
      %v7875 = vpop.f32.mrf.mxu0
      %v7876 = vpop.f32.mrf.mxu0
      %v7877 = vpop.f32.mrf.mxu0
      %7878 = vmatprep.mubr.bf16.mxu0 0
      %7879 = vmatmul.mubr.bf16.gmra.mxu0 %v5691
      %v7880 = vpop.f32.mrf.mxu0
      %v7881 = vadd.f32 0.0, %v7880
      %v7882 = vpop.f32.mrf.mxu0
      %v7883 = vpop.f32.mrf.mxu0
      %v7884 = vadd.f32 0.0, %v7883
      %v7885 = vpop.f32.mrf.mxu0
      %7886 = vmatprep.mubr.bf16.mxu0 0
      %7887 = vmatmul.mubr.bf16.gmra.mxu0 %v5692
      %v7888 = vpop.f32.mrf.mxu0
      %v7889 = vpop.f32.mrf.mxu0
      %v7890 = vpop.f32.mrf.mxu0
      %v7891 = vadd.f32 0.0, %v7890
      %v7892 = vpop.f32.mrf.mxu0
      %7893 = vmatprep.mubr.bf16.mxu0 0
      %7894 = vmatmul.mubr.bf16.gmra.mxu0 %v5693
      %v7895 = vpop.f32.mrf.mxu0
      %v7896 = vadd.f32 0.0, %v7895
      %v7897 = vpop.f32.mrf.mxu0
      %v7898 = vpop.f32.mrf.mxu0
      %v7899 = vpop.f32.mrf.mxu0
      %7900 = vdwg.mxu0
      %v7901 = vadd.f32 %v7453, %v7727
      %v7902 = vadd.f32 %v7456, %v7730
      %v7903 = vadd.f32 %v7463, %v7737
      %v7904 = vadd.f32 %v7468, %v7742
      %v7905 = vadd.f32 %v7475, %v7749
      %v7906 = vadd.f32 %v7478, %v7752
      %v7907 = vadd.f32 %v7485, %v7759
      %v7908 = vadd.f32 %v7490, %v7764
      %v7909 = vadd.f32 %v7497, %v7771
      %v7910 = vadd.f32 %v7500, %v7774
      %v7911 = vadd.f32 %v7507, %v7781
      %v7912 = vadd.f32 %v7512, %v7786
      %v7913 = vadd.f32 %v7519, %v7793
      %v7914 = vadd.f32 %v7522, %v7796
      %v7915 = vadd.f32 %v7529, %v7803
      %v7916 = vadd.f32 %v7534, %v7808
      %v7917 = vadd.f32 %v7541, %v7815
      %v7918 = vadd.f32 %v7544, %v7818
      %v7919 = vadd.f32 %v7551, %v7825
      %v7920 = vadd.f32 %v7556, %v7830
      %v7921 = vadd.f32 %v7563, %v7837
      %v7922 = vadd.f32 %v7566, %v7840
      %v7923 = vadd.f32 %v7573, %v7847
      %v7924 = vadd.f32 %v7578, %v7852
      %v7925 = vadd.f32 %v7585, %v7859
      %v7926 = vadd.f32 %v7588, %v7862
      %v7927 = vadd.f32 %v7595, %v7869
      %v7928 = vadd.f32 %v7600, %v7874
      %v7929 = vadd.f32 %v7607, %v7881
      %v7930 = vadd.f32 %v7610, %v7884
      %v7931 = vadd.f32 %v7617, %v7891
      %v7932 = vadd.f32 %v7622, %v7896
      %v7933 = vrot.slane %v7032, 1
      %v7934 = vrot.slane %v7033, 1
      %v7935 = vrot.slane %v7034, 1
      %v7936 = vrot.slane %v7035, 1
      %v7937 = vrot.slane %v7036, 1
      %v7938 = vrot.slane %v7037, 1
      %v7939 = vrot.slane %v7038, 1
      %v7940 = vrot.slane %v7039, 1
      %v7941 = vrot.slane %v7040, 1
      %v7942 = vrot.slane %v7041, 1
      %v7943 = vrot.slane %v7042, 1
      %v7944 = vrot.slane %v7043, 1
      %v7945 = vrot.slane %v7044, 1
      %v7946 = vrot.slane %v7045, 1
      %v7947 = vrot.slane %v7046, 1
      %v7948 = vrot.slane %v7047, 1
      %v7949 = vrot.slane %v7048, 1
      %v7950 = vrot.slane %v7049, 1
      %v7951 = vrot.slane %v7050, 1
      %v7952 = vrot.slane %v7051, 1
      %v7953 = vrot.slane %v7052, 1
      %v7954 = vrot.slane %v7053, 1
      %v7955 = vrot.slane %v7054, 1
      %v7956 = vrot.slane %v7055, 1
      %v7957 = vrot.slane %v7056, 1
      %v7958 = vrot.slane %v7057, 1
      %v7959 = vrot.slane %v7058, 1
      %v7960 = vrot.slane %v7059, 1
      %v7961 = vrot.slane %v7060, 1
      %v7962 = vrot.slane %v7061, 1
      %v7963 = vrot.slane %v7062, 1
      %v7964 = vrot.slane %v7063, 1
      %v7965 = vrot.slane %v7064, 1
      %v7966 = vrot.slane %v7065, 1
      %v7967 = vrot.slane %v7066, 1
      %v7968 = vrot.slane %v7067, 1
      %v7969 = vrot.slane %v7068, 1
      %v7970 = vrot.slane %v7069, 1
      %v7971 = vrot.slane %v7070, 1
      %v7972 = vrot.slane %v7071, 1
      %v7973 = vrot.slane %v7072, 1
      %v7974 = vrot.slane %v7073, 1
      %v7975 = vrot.slane %v7074, 1
      %v7976 = vrot.slane %v7075, 1
      %v7977 = vrot.slane %v7076, 1
      %v7978 = vrot.slane %v7077, 1
      %v7979 = vrot.slane %v7078, 1
      %v7980 = vrot.slane %v7079, 1
      %v7981 = vsel %vm2801, %v7979, %v7980
      %v7982 = vsel %vm2801, %v7978, %v7979
      %v7983 = vsel %vm2801, %v7976, %v7977
      %v7984 = vsel %vm2801, %v7975, %v7976
      %v7985 = vsel %vm2801, %v7973, %v7974
      %v7986 = vsel %vm2801, %v7972, %v7973
      %v7987 = vsel %vm2801, %v7970, %v7971
      %v7988 = vsel %vm2801, %v7969, %v7970
      %v7989 = vsel %vm2801, %v7967, %v7968
      %v7990 = vsel %vm2801, %v7966, %v7967
      %v7991 = vsel %vm2801, %v7964, %v7965
      %v7992 = vsel %vm2801, %v7963, %v7964
      %v7993 = vsel %vm2801, %v7961, %v7962
      %v7994 = vsel %vm2801, %v7960, %v7961
      %v7995 = vsel %vm2801, %v7958, %v7959
      %v7996 = vsel %vm2801, %v7957, %v7958
      %v7997 = vsel %vm2801, %v7955, %v7956
      %v7998 = vsel %vm2801, %v7954, %v7955
      %v7999 = vsel %vm2801, %v7952, %v7953
      %v8000 = vsel %vm2801, %v7951, %v7952
      %v8001 = vsel %vm2801, %v7949, %v7950
      %v8002 = vsel %vm2801, %v7948, %v7949
      %v8003 = vsel %vm2801, %v7946, %v7947
      %v8004 = vsel %vm2801, %v7945, %v7946
      %v8005 = vsel %vm2801, %v7943, %v7944
      %v8006 = vsel %vm2801, %v7942, %v7943
      %v8007 = vsel %vm2801, %v7940, %v7941
      %v8008 = vsel %vm2801, %v7939, %v7940
      %v8009 = vsel %vm2801, %v7937, %v7938
      %v8010 = vsel %vm2801, %v7936, %v7937
      %v8011 = vsel %vm2801, %v7934, %v7935
      %v8012 = vsel %vm2801, %v7933, %v7934
      %v8013 = vadd.f32 %v8012, %v7901
      %v8014 = vadd.f32 %v8011, %v7902
      %v8015 = vadd.f32 %v8010, %v7903
      %v8016 = vadd.f32 %v8009, %v7904
      %v8017 = vadd.f32 %v8008, %v7905
      %v8018 = vadd.f32 %v8007, %v7906
      %v8019 = vadd.f32 %v8006, %v7907
      %v8020 = vadd.f32 %v8005, %v7908
      %v8021 = vadd.f32 %v8004, %v7909
      %v8022 = vadd.f32 %v8003, %v7910
      %v8023 = vadd.f32 %v8002, %v7911
      %v8024 = vadd.f32 %v8001, %v7912
      %v8025 = vadd.f32 %v8000, %v7913
      %v8026 = vadd.f32 %v7999, %v7914
      %v8027 = vadd.f32 %v7998, %v7915
      %v8028 = vadd.f32 %v7997, %v7916
      %v8029 = vadd.f32 %v7996, %v7917
      %v8030 = vadd.f32 %v7995, %v7918
      %v8031 = vadd.f32 %v7994, %v7919
      %v8032 = vadd.f32 %v7993, %v7920
      %v8033 = vadd.f32 %v7992, %v7921
      %v8034 = vadd.f32 %v7991, %v7922
      %v8035 = vadd.f32 %v7990, %v7923
      %v8036 = vadd.f32 %v7989, %v7924
      %v8037 = vadd.f32 %v7988, %v7925
      %v8038 = vadd.f32 %v7987, %v7926
      %v8039 = vadd.f32 %v7986, %v7927
      %v8040 = vadd.f32 %v7985, %v7928
      %v8041 = vadd.f32 %v7984, %v7929
      %v8042 = vadd.f32 %v7983, %v7930
      %v8043 = vadd.f32 %v7982, %v7931
      %v8044 = vadd.f32 %v7981, %v7932
      %v8045 = vld [vmem:[%s4] sm:$0x1]
      %v8047 = vlaneseq
      %v8048 = vshrl.u32 %v8047, 7
      %v8049 = vsub.s32 0, %v8048
      %v8050 = vrot.slane %v8045, %v8049
      %v8052 = vadd.f32 %v8013, %v8050
      %v8053 = vadd.f32 %v8014, %v8050
      %v8054 = vadd.f32 %v8015, %v8050
      %v8055 = vadd.f32 %v8016, %v8050
      %v8056 = vadd.f32 %v8017, %v8050
      %v8057 = vadd.f32 %v8018, %v8050
      %v8058 = vadd.f32 %v8019, %v8050
      %v8059 = vadd.f32 %v8020, %v8050
      %v8060 = vadd.f32 %v8021, %v8050
      %v8061 = vadd.f32 %v8022, %v8050
      %v8062 = vadd.f32 %v8023, %v8050
      %v8063 = vadd.f32 %v8024, %v8050
      %v8064 = vadd.f32 %v8025, %v8050
      %v8065 = vadd.f32 %v8026, %v8050
      %v8066 = vadd.f32 %v8027, %v8050
      %v8067 = vadd.f32 %v8028, %v8050
      %v8068 = vadd.f32 %v8029, %v8050
      %v8069 = vadd.f32 %v8030, %v8050
      %v8070 = vadd.f32 %v8031, %v8050
      %v8071 = vadd.f32 %v8032, %v8050
      %v8072 = vadd.f32 %v8033, %v8050
      %v8073 = vadd.f32 %v8034, %v8050
      %v8074 = vadd.f32 %v8035, %v8050
      %v8075 = vadd.f32 %v8036, %v8050
      %v8076 = vadd.f32 %v8037, %v8050
      %v8077 = vadd.f32 %v8038, %v8050
      %v8078 = vadd.f32 %v8039, %v8050
      %v8079 = vadd.f32 %v8040, %v8050
      %v8080 = vadd.f32 %v8041, %v8050
      %v8081 = vadd.f32 %v8042, %v8050
      %v8082 = vadd.f32 %v8043, %v8050
      %v8083 = vadd.f32 %v8044, %v8050
      %v8084 = vmax.f32 %v8052, 0.0
      %v8085 = vmax.f32 %v8053, 0.0
      %v8086 = vmax.f32 %v8054, 0.0
      %v8087 = vmax.f32 %v8055, 0.0
      %v8088 = vmax.f32 %v8056, 0.0
      %v8089 = vmax.f32 %v8057, 0.0
      %v8090 = vmax.f32 %v8058, 0.0
      %v8091 = vmax.f32 %v8059, 0.0
      %v8092 = vmax.f32 %v8060, 0.0
      %v8093 = vmax.f32 %v8061, 0.0
      %v8094 = vmax.f32 %v8062, 0.0
      %v8095 = vmax.f32 %v8063, 0.0
      %v8096 = vmax.f32 %v8064, 0.0
      %v8097 = vmax.f32 %v8065, 0.0
      %v8098 = vmax.f32 %v8066, 0.0
      %v8099 = vmax.f32 %v8067, 0.0
      %v8100 = vmax.f32 %v8068, 0.0
      %v8101 = vmax.f32 %v8069, 0.0
      %v8102 = vmax.f32 %v8070, 0.0
      %v8103 = vmax.f32 %v8071, 0.0
      %v8104 = vmax.f32 %v8072, 0.0
      %v8105 = vmax.f32 %v8073, 0.0
      %v8106 = vmax.f32 %v8074, 0.0
      %v8107 = vmax.f32 %v8075, 0.0
      %v8108 = vmax.f32 %v8076, 0.0
      %v8109 = vmax.f32 %v8077, 0.0
      %v8110 = vmax.f32 %v8078, 0.0
      %v8111 = vmax.f32 %v8079, 0.0
      %v8112 = vmax.f32 %v8080, 0.0
      %v8113 = vmax.f32 %v8081, 0.0
      %v8114 = vmax.f32 %v8082, 0.0
      %v8115 = vmax.f32 %v8083, 0.0
      %8116 = vst [vmem:[%s202] sm:$0xff] %v8084
      %8117 = vst [vmem:[%s202 + $0x8] sm:$0xff] %v8085
      %8118 = vst [vmem:[%s202 + $0x10] sm:$0xff] %v8086
      %8119 = vst [vmem:[%s202 + $0x18] sm:$0xff] %v8087
      %8120 = vst [vmem:[%s202 + $0x20] sm:$0xff] %v8088
      %8121 = vst [vmem:[%s202 + $0x28] sm:$0xff] %v8089
      %8122 = vst [vmem:[%s202 + $0x30] sm:$0xff] %v8090
      %8123 = vst [vmem:[%s202 + $0x38] sm:$0xff] %v8091
      %8124 = vst [vmem:[%s202 + $0x40] sm:$0xff] %v8092
      %8125 = vst [vmem:[%s202 + $0x48] sm:$0xff] %v8093
      %8126 = vst [vmem:[%s202 + $0x50] sm:$0xff] %v8094
      %8127 = vst [vmem:[%s202 + $0x58] sm:$0xff] %v8095
      %8128 = vst [vmem:[%s202 + $0x60] sm:$0xff] %v8096
      %8129 = vst [vmem:[%s202 + $0x68] sm:$0xff] %v8097
      %8130 = vst [vmem:[%s202 + $0x70] sm:$0xff] %v8098
      %8131 = vst [vmem:[%s202 + $0x78] sm:$0xff] %v8099
      %8132 = vst [vmem:[%s202 + $0x80] sm:$0xff] %v8100
      %8133 = vst [vmem:[%s202 + $0x88] sm:$0xff] %v8101
      %8134 = vst [vmem:[%s202 + $0x90] sm:$0xff] %v8102
      %8135 = vst [vmem:[%s202 + $0x98] sm:$0xff] %v8103
      %8136 = vst [vmem:[%s202 + $0xa0] sm:$0xff] %v8104
      %8137 = vst [vmem:[%s202 + $0xa8] sm:$0xff] %v8105
      %8138 = vst [vmem:[%s202 + $0xb0] sm:$0xff] %v8106
      %8139 = vst [vmem:[%s202 + $0xb8] sm:$0xff] %v8107
      %8140 = vst [vmem:[%s202 + $0xc0] sm:$0xff] %v8108
      %8141 = vst [vmem:[%s202 + $0xc8] sm:$0xff] %v8109
      %8142 = vst [vmem:[%s202 + $0xd0] sm:$0xff] %v8110
      %8143 = vst [vmem:[%s202 + $0xd8] sm:$0xff] %v8111
      %8144 = vst [vmem:[%s202 + $0xe0] sm:$0xff] %v8112
      %8145 = vst [vmem:[%s202 + $0xe8] sm:$0xff] %v8113
      %8146 = vst [vmem:[%s202 + $0xf0] sm:$0xff] %v8114
      %8147 = vst [vmem:[%s202 + $0xf8] sm:$0xff] %v8115
      %s8148 = smul.u32 16, %s21
      %p8149 = scmp.lt.s32.totalorder %s20, 1
      %s8150 = scalar_select %p8149, %s20, 1
      %p8151 = scmp.lt.s32.totalorder %s8148, 15
      %s8152 = scalar_select %p8151, %s8148, 15
      %s8153 = smul.addr %s8152, 2
      %s8154 = smul.addr %s8150, 32
      %s8155 = sadd.s32 %s8153, %s8154
      %s8156 = smul.addr %s8155, 8
      %s8157 = scalar_lea.vmem %s5, %s8156
      // Predicated region
      $region113: #{double_conv.1} parent=35 // pred_check
        %p8158 = pneg %p132
      $region114: #{double_conv.1} parent=35 // pred_check_branch
        %8160 = sbr.rel (%p8158) target = $region116
      $region115: #{double_conv.1} parent=35 // pred_region
        %s8161 = smul.u32 16, %s21
      $region116: #{double_conv.1} parent=35 // pred_fallthru
        _
    $region36: #{double_conv.1} parent=5 // pred_fallthru
      _
    %p8162 = scmp.le.s32.totalorder 2, %s11
    // Predicated region
    $region117: #{double_conv.1} parent=5 // pred_check
      %p8163 = pneg %p8162
    $region118: #{double_conv.1} parent=5 // pred_check_branch
      %8165 = sbr.rel (%p8163) target = $region120
    $region119: #{double_conv.1} parent=5 // pred_region
      %s8166 = ssub.s32 %s11, 2
      // Predicated region
      $region121: #{double_conv.1} parent=119 // pred_check
        %p8167 = pneg %p138
      $region122: #{double_conv.1} parent=119 // pred_check_branch
        %8169 = sbr.rel (%p8167) target = $region124
      $region123: #{double_conv.1} parent=119 // pred_region
        %s8170 = smul.u32 16, %s23
        %p8171 = scmp.lt.s32.totalorder %s22, 1
        %s8172 = scalar_select %p8171, %s22, 1
        %p8173 = scmp.lt.s32.totalorder %s8170, 15
        %s8174 = scalar_select %p8173, %s8170, 15
        %s8175 = smul.addr %s8174, 2
        %s8176 = smul.addr %s8172, 32
        %s8177 = sadd.s32 %s8175, %s8176
        %s8178 = smul.addr %s8177, 8
        %s8179 = scalar_lea.vmem %s5, %s8178
      $region124: #{double_conv.1} parent=119 // pred_fallthru
        _
    $region120: #{double_conv.1} parent=5 // pred_fallthru
      _
  $region6: #{double_conv.1} parent=0 // loop_footer
    %s15 = sadd.s32 1, %s11
  $region7: #{double_conv.1} parent=0 // loop_footer_branch
    %10 = sbr.rel target = $region3
  $region8: #{double_conv.1} parent=0 // loop_exit
    _
  %8180 = vsyncmov [#allocation4]
  %s8181 = vpop.sfrf %8180
  %p8182 = scmp.eq.s32.totalorder %s8181, 0
  %p8183 = pneg %p8182
  %8185 = shalt.err (%p8183)
  %s8186 = scalar_lea.sflag [#allocation4], 1
  %8187 = vsyncmov %s8186
  %s8188 = vpop.sfrf %8187
  %p8189 = scmp.eq.s32.totalorder %s8188, 0
  %p8190 = pneg %p8189
  %8192 = shalt.err (%p8190)

</llo_original>
